<compile_context>
chip_gen: v5e
topology: v5e:2x2
jax: 0.10.0
libtpu: 0.0.40
codegen_flags: <defaults>
</compile_context>

<pallas_src>
import functools
import math

import jax
import jax.numpy as jnp
from jax import lax
from jax.experimental import pallas as pl
from jax.experimental.pallas import tpu as pltpu

NEG_INF = -1e9
LN_EPS = 1e-5


# ----------------------------------------------------------------------------------
# Fused stem kernel: hidden-mask fill + layer_A (BN folded) + positional encoding
# ----------------------------------------------------------------------------------

def _stem_kernel(sf_ref, hm_ref, w1_ref, b1_ref, w2_ref, b2_ref,
                 w3_ref, b3_ref, pe_ref, o_ref):
    x = sf_ref[...]
    x = jnp.where(hm_ref[...] > 0.5, -1.0, x)               # state_feat[hidden_mask] = -1
    h = jnp.dot(x.astype(jnp.bfloat16), w1_ref[...],
                preferred_element_type=jnp.float32)
    h = jnp.maximum(h + b1_ref[...], 0.0)
    h = jnp.dot(h.astype(jnp.bfloat16), w2_ref[...],
                preferred_element_type=jnp.float32)
    h = jnp.maximum(h + b2_ref[...], 0.0)
    h = jnp.dot(h.astype(jnp.bfloat16), w3_ref[...],
                preferred_element_type=jnp.float32)
    h = jnp.maximum(h + b3_ref[...], 0.0)
    o_ref[...] = (h + pe_ref[...]).astype(o_ref.dtype)       # layer_B positional encoding


def stem_forward(params, state_feat, hidden_mask):
    A, T, F = state_feat.shape
    D = params["pe"].shape[-1]
    sf2 = state_feat.reshape(A * T, F)
    hm2 = hidden_mask.reshape(A * T, 1).astype(jnp.float32)
    pe_tiled = jnp.tile(params["pe"][:T], (A, 1))            # [A*T, D]
    (w1, b1), (w2, b2), (w3, b3) = params["layer_A"]
    out = pl.pallas_call(
        _stem_kernel,
        out_shape=jax.ShapeDtypeStruct((A * T, D), jnp.float32),
    )(sf2, hm2, w1, b1, w2, b2, w3, b3, pe_tiled)
    return out.reshape(A, T, D)


# ----------------------------------------------------------------------------------
# Fused SelfAttLayer_Enc kernel (LN1 + QKV + attention + out-proj + residual + FFN + LN2)
# ----------------------------------------------------------------------------------

def _att_block_kernel(x_ref, mask_ref,
                      ln1_g_ref, ln1_b_ref,
                      wqkv_ref, bqkv_ref, wo_ref, bo_ref,
                      w1_ref, b1_ref, w2_ref, b2_ref,
                      ln2_g_ref, ln2_b_ref,
                      o_ref, *, heads, across_time):
    b = pl.program_id(0)
    x = x_ref[0]                                             # [S, D] f32
    S, D = x.shape
    Dh = D // heads
    scale = 1.0 / math.sqrt(Dh)

    # ---- LN1 (f32, VPU) ----
    mu = jnp.mean(x, axis=-1, keepdims=True)
    var = jnp.mean((x - mu) ** 2, axis=-1, keepdims=True)
    xn = (x - mu) * lax.rsqrt(var + LN_EPS)
    xn = xn * ln1_g_ref[...] + ln1_b_ref[...]

    # ---- fused QKV projection (bf16 MXU operands, f32 accumulation) ----
    qkv = jnp.dot(xn.astype(jnp.bfloat16), wqkv_ref[...],
                  preferred_element_type=jnp.float32) + bqkv_ref[...]   # [S, 3D]

    # ---- additive mask built in-kernel (no [B,S,S] HBM materialization) ----
    if across_time:
        # per-agent key padding mask: mask_ref is [A, T] (1.0 where key is padded)
        add_mask = mask_ref[pl.ds(b, 1), :] * NEG_INF        # [1, S]
    else:
        # agent-to-agent mask (same for every timestep): mask_ref is [A, A]
        # (1.0 where attention is NOT allowed)
        add_mask = mask_ref[...] * NEG_INF                   # [S, S]

    # ---- multi-head attention; heads unrolled statically, all in vregs ----
    head_outs = []
    for h in range(heads):
        qh = qkv[:, h * Dh:(h + 1) * Dh]
        kh = qkv[:, D + h * Dh:D + (h + 1) * Dh]
        vh = qkv[:, 2 * D + h * Dh:2 * D + (h + 1) * Dh]
        s = jnp.dot(qh.astype(jnp.bfloat16), kh.astype(jnp.bfloat16).T,
                    preferred_element_type=jnp.float32) * scale + add_mask
        s = s - jnp.max(s, axis=-1, keepdims=True)
        p = jnp.exp(s)
        p = p * pl.reciprocal(jnp.sum(p, axis=-1, keepdims=True), approx=True)
        head_outs.append(jnp.dot(p.astype(jnp.bfloat16), vh.astype(jnp.bfloat16),
                                 preferred_element_type=jnp.float32))
    att = jnp.concatenate(head_outs, axis=-1)                # [S, D]

    # ---- output projection + residual ----
    att = jnp.dot(att.astype(jnp.bfloat16), wo_ref[...],
                  preferred_element_type=jnp.float32) + bo_ref[...]
    s_res = x + att

    # ---- FFN (intermediate stays in VMEM/vregs) ----
    h1 = jnp.dot(s_res.astype(jnp.bfloat16), w1_ref[...],
                 preferred_element_type=jnp.float32) + b1_ref[...]
    h1 = jnp.maximum(h1, 0.0)
    f = jnp.dot(h1.astype(jnp.bfloat16), w2_ref[...],
                preferred_element_type=jnp.float32) + b2_ref[...]

    # ---- LN2 (f32) ----
    z = s_res + f
    mu2 = jnp.mean(z, axis=-1, keepdims=True)
    var2 = jnp.mean((z - mu2) ** 2, axis=-1, keepdims=True)
    zn = (z - mu2) * lax.rsqrt(var2 + LN_EPS)
    o_ref[0] = (zn * ln2_g_ref[...] + ln2_b_ref[...]).astype(o_ref.dtype)


def _full(shape):
    nd = len(shape)
    return pl.BlockSpec(shape, lambda b, nd=nd: (0,) * nd)


def self_att_layer(x, mask_f, p, heads, across_time):
    """One fused SelfAttLayer_Enc.

    x: [B, S, D] where (B, S) = (agents, time) for across_time=True and
       (time, agents) for across_time=False (caller transposes).
    mask_f: [A, T] padding mask (across_time) or [A, A] disallowed-agent mask.
    """
    B, S, D = x.shape
    kD = p["w1"].shape[1]
    kernel = functools.partial(_att_block_kernel, heads=heads, across_time=across_time)
    return pl.pallas_call(
        kernel,
        out_shape=jax.ShapeDtypeStruct((B, S, D), jnp.float32),
        grid=(B,),
        in_specs=[
            pl.BlockSpec((1, S, D), lambda b: (b, 0, 0)),
            _full(mask_f.shape),
            _full((1, D)), _full((1, D)),                     # LN1
            _full((D, 3 * D)), _full((1, 3 * D)),             # QKV
            _full((D, D)), _full((1, D)),                     # out proj
            _full((D, kD)), _full((1, kD)),                   # FFN 1
            _full((kD, D)), _full((1, D)),                    # FFN 2
            _full((1, D)), _full((1, D)),                     # LN2
        ],
        out_specs=pl.BlockSpec((1, S, D), lambda b: (b, 0, 0)),
        compiler_params=pltpu.CompilerParams(dimension_semantics=("parallel",)),
    )(x, mask_f, p["ln1_g"], p["ln1_b"], p["wqkv"], p["bqkv"], p["wo"], p["bo"],
      p["w1"], p["b1"], p["w2"], p["b2"], p["ln2_g"], p["ln2_b"])


# ----------------------------------------------------------------------------------
# Model glue (plain JAX): layer loop, transposes for across-agent attention
# ----------------------------------------------------------------------------------

def encoder_forward(params, state_feat, agent_batch_mask, padding_mask,
                    hidden_mask, agent_ids_batch):
    # agent_ids_batch accepted but unused (embedding branch is commented out upstream)
    del agent_ids_batch

    x = stem_forward(params, state_feat, hidden_mask)         # [A, T, D]

    time_mask = padding_mask.astype(jnp.float32)              # [A, T]  1.0 = padded key
    agent_mask = (~agent_batch_mask).astype(jnp.float32)      # [A, A]  1.0 = may NOT attend

    out_layer_O = x
    for i, lp in enumerate(params["att_layers"]):
        if i % 2 == 0:     # across time, per agent
            x = self_att_layer(x, time_mask, lp, params["head_num"], across_time=True)
        else:              # across agents, per timestep
            xt = jnp.transpose(x, (1, 0, 2))                  # [T, A, D]
            xt = self_att_layer(xt, agent_mask, lp, params["head_num"], across_time=False)
            x = jnp.transpose(xt, (1, 0, 2))
        if i == 9:                                            # after layer_O
            out_layer_O = x

    return {"out": x, "att_weights": 0, "out_layer_O": out_layer_O}


# ----------------------------------------------------------------------------------
# Deterministic parameter construction
# ----------------------------------------------------------------------------------

def fold_bn_into_linear(w, b, gamma, beta, mean, var, eps=1e-5):
    """Fold eval-mode BatchNorm1d into the preceding Linear (y = BN(x @ w + b))."""
    scale = gamma / jnp.sqrt(var + eps)
    return w * scale[None, :], (b - mean) * scale + beta


def sinusoidal_pe(time_steps, d_model):
    pos = jnp.arange(time_steps, dtype=jnp.float32)[:, None]
    div = jnp.exp(jnp.arange(0, d_model, 2, dtype=jnp.float32)
                  * (-math.log(10000.0) / d_model))
    pe = jnp.zeros((time_steps, d_model), jnp.float32)
    pe = pe.at[:, 0::2].set(jnp.sin(pos * div))
    pe = pe.at[:, 1::2].set(jnp.cos(pos * div))
    return pe


def _xavier(key, shape):
    fan_in, fan_out = shape
    lim = math.sqrt(6.0 / (fan_in + fan_out))
    return jax.random.uniform(key, shape, jnp.float32, -lim, lim)


def init_encoder_params(key, in_feat_dim, time_steps, feature_dim, head_num, k):
    keys = iter(jax.random.split(key, 256))
    params = {"head_num": head_num}

    # layer_A: Linear(F,32)+BN, Linear(32,128)+BN, Linear(128,D)+BN (BN folded, eval mode)
    dims = [(in_feat_dim, 32), (32, 128), (128, feature_dim)]
    layer_a = []
    for (din, dout) in dims:
        w = _xavier(next(keys), (din, dout))
        b = jnp.zeros((dout,), jnp.float32)
        gamma = 1.0 + 0.05 * jax.random.normal(next(keys), (dout,), jnp.float32)
        beta = 0.05 * jax.random.normal(next(keys), (dout,), jnp.float32)
        mean = 0.01 * jax.random.normal(next(keys), (dout,), jnp.float32)
        var = 1.0 + 0.05 * jax.random.uniform(next(keys), (dout,), jnp.float32)
        wf, bf = fold_bn_into_linear(w, b, gamma, beta, mean, var)
        layer_a.append((wf.astype(jnp.bfloat16), bf.reshape(1, dout)))
    params["layer_A"] = layer_a

    params["pe"] = sinusoidal_pe(time_steps, feature_dim)

    # 12 SelfAttLayer_Enc blocks (D, E, F, G, H, I, L, M, N, O, P, Q)
    att_layers = []
    d, kd = feature_dim, k * feature_dim
    for _ in range(12):
        wq = _xavier(next(keys), (d, d))
        wk = _xavier(next(keys), (d, d))
        wv = _xavier(next(keys), (d, d))
        wo = _xavier(next(keys), (d, d))
        lp = {
            "wqkv": jnp.concatenate([wq, wk, wv], axis=1).astype(jnp.bfloat16),
            "bqkv": jnp.zeros((1, 3 * d), jnp.float32),
            "wo": wo.astype(jnp.bfloat16), "bo": jnp.zeros((1, d), jnp.float32),
            "ln1_g": jnp.ones((1, d), jnp.float32), "ln1_b": jnp.zeros((1, d), jnp.float32),
            "w1": _xavier(next(keys), (d, kd)).astype(jnp.bfloat16),
            "b1": jnp.zeros((1, kd), jnp.float32),
            "w2": _xavier(next(keys), (kd, d)).astype(jnp.bfloat16),
            "b2": jnp.zeros((1, d), jnp.float32),
            "ln2_g": jnp.ones((1, d), jnp.float32), "ln2_b": jnp.zeros((1, d), jnp.float32),
        }
        att_layers.append(lp)
    params["att_layers"] = att_layers
    return params


# ----------------------------------------------------------------------------------
# Main
# ----------------------------------------------------------------------------------

if __name__ == "__main__":
    # Small shapes consistent with the module: A agents, T time steps, F input features,
    # D feature_dim (divisible by head_num), k FFN expansion.
    A, T, F_IN, D, HEADS, K_FF = 4, 8, 6, 32, 4, 2

    key = jax.random.PRNGKey(0)
    k_in, k_par = jax.random.split(key)

    state_feat = jax.random.normal(k_in, (A, T, F_IN), jnp.float32)
    hidden_mask = jnp.zeros((A, T), jnp.bool_).at[0, -2:].set(True)
    padding_mask = jnp.zeros((A, T), jnp.bool_).at[3, -1].set(True)
    scene = jnp.array([0, 0, 1, 1], jnp.int32)
    agent_batch_mask = (scene[:, None] == scene[None, :])     # True = same scene (may attend)
    agent_ids_batch = jnp.array([-1, 1, 2, 3], jnp.int32)

    params = init_encoder_params(k_par, F_IN, T, D, HEADS, K_FF)

    fwd = jax.jit(functools.partial(encoder_forward, params))
    out = fwd(state_feat, agent_batch_mask, padding_mask, hidden_mask, agent_ids_batch)
    jax.block_until_ready(out["out"])
    jax.block_until_ready(out["out_layer_O"])

    assert out["out"].shape == (A, T, D)
    assert out["out_layer_O"].shape == (A, T, D)
    assert bool(jnp.all(jnp.isfinite(out["out"])))
    assert bool(jnp.all(jnp.isfinite(out["out_layer_O"])))
    print("KERNEL_OK")
</pallas_src>

<mosaic_0001>
module attributes {stable_mosaic.version = 11 : i64} {
  func.func @_stem_kernel(%arg0: memref<32x6xf32, #tpu.memory_space<vmem>>, %arg1: memref<32x1xf32, #tpu.memory_space<vmem>>, %arg2: memref<6x32xbf16, #tpu.memory_space<vmem>>, %arg3: memref<1x32xf32, #tpu.memory_space<vmem>>, %arg4: memref<32x128xbf16, #tpu.memory_space<vmem>>, %arg5: memref<1x128xf32, #tpu.memory_space<vmem>>, %arg6: memref<128x32xbf16, #tpu.memory_space<vmem>>, %arg7: memref<1x32xf32, #tpu.memory_space<vmem>>, %arg8: memref<32x32xf32, #tpu.memory_space<vmem>>, %arg9: memref<32x32xf32, #tpu.memory_space<vmem>>) attributes {dimension_semantics = [], scalar_prefetch = 0 : i64, scratch_operands = 0 : i64, tpu.core_type = #tpu.core_type<tc>} {
    %c0 = arith.constant 0 : index
    %c0_0 = arith.constant 0 : index
    %0 = vector.load %arg0[%c0, %c0_0] : memref<32x6xf32, #tpu.memory_space<vmem>>, vector<32x6xf32>
    %c0_1 = arith.constant 0 : index
    %c0_2 = arith.constant 0 : index
    %1 = vector.load %arg1[%c0_1, %c0_2] : memref<32x1xf32, #tpu.memory_space<vmem>>, vector<32x1xf32>
    %cst = arith.constant 5.000000e-01 : f32
    %2 = vector.broadcast %cst : f32 to vector<32x1xf32>
    %3 = arith.cmpf ogt, %1, %2 : vector<32x1xf32>
    %cst_3 = arith.constant -1.000000e+00 : f32
    %4 = vector.shape_cast %3 : vector<32x1xi1> to vector<32x1xi1>
    %5 = vector.broadcast %4 : vector<32x1xi1> to vector<32x6xi1>
    %6 = vector.broadcast %cst_3 : f32 to vector<32x6xf32>
    %7 = arith.select %5, %6, %0 : vector<32x6xi1>, vector<32x6xf32>
    %8 = arith.truncf %7 : vector<32x6xf32> to vector<32x6xbf16>
    %c0_4 = arith.constant 0 : index
    %c0_5 = arith.constant 0 : index
    %9 = vector.load %arg2[%c0_4, %c0_5] : memref<6x32xbf16, #tpu.memory_space<vmem>>, vector<6x32xbf16>
    %cst_6 = arith.constant dense<0.000000e+00> : vector<32x32xf32>
    %10 = tpu.matmul %8, %9, %cst_6 {dimension_numbers = #tpu.dot_dimension_numbers<[1], [0], [0], [1], [0, 0, 1, 1], [], []>} : vector<32x6xbf16>, vector<6x32xbf16>, vector<32x32xf32> -> vector<32x32xf32>
    %c0_7 = arith.constant 0 : index
    %c0_8 = arith.constant 0 : index
    %11 = vector.load %arg3[%c0_7, %c0_8] : memref<1x32xf32, #tpu.memory_space<vmem>>, vector<1x32xf32>
    %12 = vector.broadcast %11 : vector<1x32xf32> to vector<32x32xf32>
    %13 = arith.addf %10, %12 : vector<32x32xf32>
    %cst_9 = arith.constant 0.000000e+00 : f32
    %14 = vector.broadcast %cst_9 : f32 to vector<32x32xf32>
    %15 = arith.maximumf %13, %14 : vector<32x32xf32>
    %16 = arith.truncf %15 : vector<32x32xf32> to vector<32x32xbf16>
    %c0_10 = arith.constant 0 : index
    %c0_11 = arith.constant 0 : index
    %17 = vector.load %arg4[%c0_10, %c0_11] : memref<32x128xbf16, #tpu.memory_space<vmem>>, vector<32x128xbf16>
    %cst_12 = arith.constant dense<0.000000e+00> : vector<32x128xf32>
    %18 = tpu.matmul %16, %17, %cst_12 {dimension_numbers = #tpu.dot_dimension_numbers<[1], [0], [0], [1], [0, 0, 1, 1], [], []>} : vector<32x32xbf16>, vector<32x128xbf16>, vector<32x128xf32> -> vector<32x128xf32>
    %c0_13 = arith.constant 0 : index
    %c0_14 = arith.constant 0 : index
    %19 = vector.load %arg5[%c0_13, %c0_14] : memref<1x128xf32, #tpu.memory_space<vmem>>, vector<1x128xf32>
    %20 = vector.broadcast %19 : vector<1x128xf32> to vector<32x128xf32>
    %21 = arith.addf %18, %20 : vector<32x128xf32>
    %cst_15 = arith.constant 0.000000e+00 : f32
    %22 = vector.broadcast %cst_15 : f32 to vector<32x128xf32>
    %23 = arith.maximumf %21, %22 : vector<32x128xf32>
    %24 = arith.truncf %23 : vector<32x128xf32> to vector<32x128xbf16>
    %c0_16 = arith.constant 0 : index
    %c0_17 = arith.constant 0 : index
    %25 = vector.load %arg6[%c0_16, %c0_17] : memref<128x32xbf16, #tpu.memory_space<vmem>>, vector<128x32xbf16>
    %cst_18 = arith.constant dense<0.000000e+00> : vector<32x32xf32>
    %26 = tpu.matmul %24, %25, %cst_18 {dimension_numbers = #tpu.dot_dimension_numbers<[1], [0], [0], [1], [0, 0, 1, 1], [], []>} : vector<32x128xbf16>, vector<128x32xbf16>, vector<32x32xf32> -> vector<32x32xf32>
    %c0_19 = arith.constant 0 : index
    %c0_20 = arith.constant 0 : index
    %27 = vector.load %arg7[%c0_19, %c0_20] : memref<1x32xf32, #tpu.memory_space<vmem>>, vector<1x32xf32>
    %28 = vector.broadcast %27 : vector<1x32xf32> to vector<32x32xf32>
    %29 = arith.addf %26, %28 : vector<32x32xf32>
    %cst_21 = arith.constant 0.000000e+00 : f32
    %30 = vector.broadcast %cst_21 : f32 to vector<32x32xf32>
    %31 = arith.maximumf %29, %30 : vector<32x32xf32>
    %c0_22 = arith.constant 0 : index
    %c0_23 = arith.constant 0 : index
    %32 = vector.load %arg8[%c0_22, %c0_23] : memref<32x32xf32, #tpu.memory_space<vmem>>, vector<32x32xf32>
    %33 = arith.addf %31, %32 : vector<32x32xf32>
    %c0_24 = arith.constant 0 : index
    %c0_25 = arith.constant 0 : index
    %34 = vector.load %arg9[%c0_24, %c0_25] : memref<32x32xf32, #tpu.memory_space<vmem>>, vector<32x32xf32>
    tpu.vector_store %arg9[%c0_24, %c0_25], %33 {strides = array<i32>} : memref<32x32xf32, #tpu.memory_space<vmem>>, vector<32x32xf32>,
    return
  }
}

module attributes {stable_mosaic.version = 11 : i64} {
  func.func @_att_block_kernel(%arg0: i32, %arg1: memref<1x4x32xf32, #tpu.memory_space<vmem>>, %arg2: memref<4x4xf32, #tpu.memory_space<vmem>>, %arg3: memref<1x32xf32, #tpu.memory_space<vmem>>, %arg4: memref<1x32xf32, #tpu.memory_space<vmem>>, %arg5: memref<32x96xbf16, #tpu.memory_space<vmem>>, %arg6: memref<1x96xf32, #tpu.memory_space<vmem>>, %arg7: memref<32x32xbf16, #tpu.memory_space<vmem>>, %arg8: memref<1x32xf32, #tpu.memory_space<vmem>>, %arg9: memref<32x64xbf16, #tpu.memory_space<vmem>>, %arg10: memref<1x64xf32, #tpu.memory_space<vmem>>, %arg11: memref<64x32xbf16, #tpu.memory_space<vmem>>, %arg12: memref<1x32xf32, #tpu.memory_space<vmem>>, %arg13: memref<1x32xf32, #tpu.memory_space<vmem>>, %arg14: memref<1x32xf32, #tpu.memory_space<vmem>>, %arg15: memref<1x4x32xf32, #tpu.memory_space<vmem>>) attributes {dimension_semantics = [#tpu.dimension_semantics<parallel>], iteration_bounds = array<i64: 8>, scalar_prefetch = 0 : i64, scratch_operands = 0 : i64, tpu.core_type = #tpu.core_type<tc>, window_params = [{transform_indices = @transform_0, window_bounds = array<i64: 1, 4, 32>}, {pipeline_mode = #tpu.pipeline_mode<synchronous>, transform_indices = @transform_1, window_bounds = array<i64: 4, 4>}, {pipeline_mode = #tpu.pipeline_mode<synchronous>, transform_indices = @transform_2, window_bounds = array<i64: 1, 32>}, {pipeline_mode = #tpu.pipeline_mode<synchronous>, transform_indices = @transform_3, window_bounds = array<i64: 1, 32>}, {pipeline_mode = #tpu.pipeline_mode<synchronous>, transform_indices = @transform_4, window_bounds = array<i64: 32, 96>}, {pipeline_mode = #tpu.pipeline_mode<synchronous>, transform_indices = @transform_5, window_bounds = array<i64: 1, 96>}, {pipeline_mode = #tpu.pipeline_mode<synchronous>, transform_indices = @transform_6, window_bounds = array<i64: 32, 32>}, {pipeline_mode = #tpu.pipeline_mode<synchronous>, transform_indices = @transform_7, window_bounds = array<i64: 1, 32>}, {pipeline_mode = #tpu.pipeline_mode<synchronous>, transform_indices = @transform_8, window_bounds = array<i64: 32, 64>}, {pipeline_mode = #tpu.pipeline_mode<synchronous>, transform_indices = @transform_9, window_bounds = array<i64: 1, 64>}, {pipeline_mode = #tpu.pipeline_mode<synchronous>, transform_indices = @transform_10, window_bounds = array<i64: 64, 32>}, {pipeline_mode = #tpu.pipeline_mode<synchronous>, transform_indices = @transform_11, window_bounds = array<i64: 1, 32>}, {pipeline_mode = #tpu.pipeline_mode<synchronous>, transform_indices = @transform_12, window_bounds = array<i64: 1, 32>}, {pipeline_mode = #tpu.pipeline_mode<synchronous>, transform_indices = @transform_13, window_bounds = array<i64: 1, 32>}, {transform_indices = @transform_14, window_bounds = array<i64: 1, 4, 32>}]} {
    %c0 = arith.constant 0 : index
    %c0_0 = arith.constant 0 : index
    %c0_1 = arith.constant 0 : index
    %0 = vector.load %arg1[%c0, %c0_0, %c0_1] : memref<1x4x32xf32, #tpu.memory_space<vmem>>, vector<1x4x32xf32>
    %1 = vector.shape_cast %0 : vector<1x4x32xf32> to vector<4x32xf32>
    %cst = arith.constant dense<0.000000e+00> : vector<4xf32>
    %2 = vector.multi_reduction <add>, %1, %cst [1] : vector<4x32xf32> to vector<4xf32>
    %3 = vector.shape_cast %2 : vector<4xf32> to vector<4x1xf32>
    %cst_2 = arith.constant 3.200000e+01 : f32
    %4 = vector.broadcast %cst_2 : f32 to vector<4x1xf32>
    %5 = arith.divf %3, %4 : vector<4x1xf32>
    %6 = vector.broadcast %5 : vector<4x1xf32> to vector<4x32xf32>
    %7 = arith.subf %1, %6 : vector<4x32xf32>
    %8 = arith.mulf %7, %7 : vector<4x32xf32>
    %cst_3 = arith.constant dense<0.000000e+00> : vector<4xf32>
    %9 = vector.multi_reduction <add>, %8, %cst_3 [1] : vector<4x32xf32> to vector<4xf32>
    %10 = vector.shape_cast %9 : vector<4xf32> to vector<4x1xf32>
    %cst_4 = arith.constant 3.200000e+01 : f32
    %11 = vector.broadcast %cst_4 : f32 to vector<4x1xf32>
    %12 = arith.divf %10, %11 : vector<4x1xf32>
    %13 = vector.broadcast %5 : vector<4x1xf32> to vector<4x32xf32>
    %14 = arith.subf %1, %13 : vector<4x32xf32>
    %cst_5 = arith.constant 9.99999974E-6 : f32
    %15 = vector.broadcast %cst_5 : f32 to vector<4x1xf32>
    %16 = arith.addf %12, %15 : vector<4x1xf32>
    %17 = math.rsqrt %16 : vector<4x1xf32>
    %18 = vector.broadcast %17 : vector<4x1xf32> to vector<4x32xf32>
    %19 = arith.mulf %14, %18 : vector<4x32xf32>
    %c0_6 = arith.constant 0 : index
    %c0_7 = arith.constant 0 : index
    %20 = vector.load %arg3[%c0_6, %c0_7] : memref<1x32xf32, #tpu.memory_space<vmem>>, vector<1x32xf32>
    %21 = vector.broadcast %20 : vector<1x32xf32> to vector<4x32xf32>
    %22 = arith.mulf %19, %21 : vector<4x32xf32>
    %c0_8 = arith.constant 0 : index
    %c0_9 = arith.constant 0 : index
    %23 = vector.load %arg4[%c0_8, %c0_9] : memref<1x32xf32, #tpu.memory_space<vmem>>, vector<1x32xf32>
    %24 = vector.broadcast %23 : vector<1x32xf32> to vector<4x32xf32>
    %25 = arith.addf %22, %24 : vector<4x32xf32>
    %26 = arith.truncf %25 : vector<4x32xf32> to vector<4x32xbf16>
    %c0_10 = arith.constant 0 : index
    %c0_11 = arith.constant 0 : index
    %27 = vector.load %arg5[%c0_10, %c0_11] : memref<32x96xbf16, #tpu.memory_space<vmem>>, vector<32x96xbf16>
    %cst_12 = arith.constant dense<0.000000e+00> : vector<4x96xf32>
    %28 = tpu.matmul %26, %27, %cst_12 {dimension_numbers = #tpu.dot_dimension_numbers<[1], [0], [0], [1], [0, 0, 1, 1], [], []>} : vector<4x32xbf16>, vector<32x96xbf16>, vector<4x96xf32> -> vector<4x96xf32>
    %c0_13 = arith.constant 0 : index
    %c0_14 = arith.constant 0 : index
    %29 = vector.load %arg6[%c0_13, %c0_14] : memref<1x96xf32, #tpu.memory_space<vmem>>, vector<1x96xf32>
    %30 = vector.broadcast %29 : vector<1x96xf32> to vector<4x96xf32>
    %31 = arith.addf %28, %30 : vector<4x96xf32>
    %c0_15 = arith.constant 0 : index
    %c0_16 = arith.constant 0 : index
    %32 = vector.load %arg2[%c0_15, %c0_16] : memref<4x4xf32, #tpu.memory_space<vmem>>, vector<4x4xf32>
    %cst_17 = arith.constant -1.000000e+09 : f32
    %33 = vector.broadcast %cst_17 : f32 to vector<4x4xf32>
    %34 = arith.mulf %32, %33 : vector<4x4xf32>
    %35 = vector.extract_strided_slice %31 {offsets = [0, 0], sizes = [4, 8], strides = [1, 1]} : vector<4x96xf32> to vector<4x8xf32>
    %36 = vector.extract_strided_slice %31 {offsets = [0, 32], sizes = [4, 8], strides = [1, 1]} : vector<4x96xf32> to vector<4x8xf32>
    %37 = vector.extract_strided_slice %31 {offsets = [0, 64], sizes = [4, 8], strides = [1, 1]} : vector<4x96xf32> to vector<4x8xf32>
    %38 = arith.truncf %35 : vector<4x8xf32> to vector<4x8xbf16>
    %39 = arith.truncf %36 : vector<4x8xf32> to vector<4x8xbf16>
    %40 = tpu.transpose %39, [1, 0] : vector<4x8xbf16> -> vector<8x4xbf16>
    %cst_18 = arith.constant dense<0.000000e+00> : vector<4x4xf32>
    %41 = tpu.matmul %38, %40, %cst_18 {dimension_numbers = #tpu.dot_dimension_numbers<[1], [0], [0], [1], [0, 0, 1, 1], [], []>} : vector<4x8xbf16>, vector<8x4xbf16>, vector<4x4xf32> -> vector<4x4xf32>
    %cst_19 = arith.constant 0.353553385 : f32
    %42 = vector.broadcast %cst_19 : f32 to vector<4x4xf32>
    %43 = arith.mulf %41, %42 : vector<4x4xf32>
    %44 = arith.addf %43, %34 : vector<4x4xf32>
    %cst_20 = arith.constant dense<0xFF800000> : vector<4xf32>
    %45 = vector.multi_reduction <maximumf>, %44, %cst_20 [1] : vector<4x4xf32> to vector<4xf32>
    %46 = vector.shape_cast %45 : vector<4xf32> to vector<4x1xf32>
    %47 = vector.broadcast %46 : vector<4x1xf32> to vector<4x4xf32>
    %48 = arith.subf %44, %47 : vector<4x4xf32>
    %49 = math.exp %48 : vector<4x4xf32>
    %cst_21 = arith.constant dense<0.000000e+00> : vector<4xf32>
    %50 = vector.multi_reduction <add>, %49, %cst_21 [1] : vector<4x4xf32> to vector<4xf32>
    %51 = vector.shape_cast %50 : vector<4xf32> to vector<4x1xf32>
    %52 = tpu.reciprocal %51 {approx = true} : vector<4x1xf32> -> vector<4x1xf32>
    %53 = vector.broadcast %52 : vector<4x1xf32> to vector<4x4xf32>
    %54 = arith.mulf %49, %53 : vector<4x4xf32>
    %55 = arith.truncf %54 : vector<4x4xf32> to vector<4x4xbf16>
    %56 = arith.truncf %37 : vector<4x8xf32> to vector<4x8xbf16>
    %cst_22 = arith.constant dense<0.000000e+00> : vector<4x8xf32>
    %57 = tpu.matmul %55, %56, %cst_22 {dimension_numbers = #tpu.dot_dimension_numbers<[1], [0], [0], [1], [0, 0, 1, 1], [], []>} : vector<4x4xbf16>, vector<4x8xbf16>, vector<4x8xf32> -> vector<4x8xf32>
    %58 = vector.extract_strided_slice %31 {offsets = [0, 8], sizes = [4, 8], strides = [1, 1]} : vector<4x96xf32> to vector<4x8xf32>
    %59 = vector.extract_strided_slice %31 {offsets = [0, 40], sizes = [4, 8], strides = [1, 1]} : vector<4x96xf32> to vector<4x8xf32>
    %60 = vector.extract_strided_slice %31 {offsets = [0, 72], sizes = [4, 8], strides = [1, 1]} : vector<4x96xf32> to vector<4x8xf32>
    %61 = arith.truncf %58 : vector<4x8xf32> to vector<4x8xbf16>
    %62 = arith.truncf %59 : vector<4x8xf32> to vector<4x8xbf16>
    %63 = tpu.transpose %62, [1, 0] : vector<4x8xbf16> -> vector<8x4xbf16>
    %cst_23 = arith.constant dense<0.000000e+00> : vector<4x4xf32>
    %64 = tpu.matmul %61, %63, %cst_23 {dimension_numbers = #tpu.dot_dimension_numbers<[1], [0], [0], [1], [0, 0, 1, 1], [], []>} : vector<4x8xbf16>, vector<8x4xbf16>, vector<4x4xf32> -> vector<4x4xf32>
    %cst_24 = arith.constant 0.353553385 : f32
    %65 = vector.broadcast %cst_24 : f32 to vector<4x4xf32>
    %66 = arith.mulf %64, %65 : vector<4x4xf32>
    %67 = arith.addf %66, %34 : vector<4x4xf32>
    %cst_25 = arith.constant dense<0xFF800000> : vector<4xf32>
    %68 = vector.multi_reduction <maximumf>, %67, %cst_25 [1] : vector<4x4xf32> to vector<4xf32>
    %69 = vector.shape_cast %68 : vector<4xf32> to vector<4x1xf32>
    %70 = vector.broadcast %69 : vector<4x1xf32> to vector<4x4xf32>
    %71 = arith.subf %67, %70 : vector<4x4xf32>
    %72 = math.exp %71 : vector<4x4xf32>
    %cst_26 = arith.constant dense<0.000000e+00> : vector<4xf32>
    %73 = vector.multi_reduction <add>, %72, %cst_26 [1] : vector<4x4xf32> to vector<4xf32>
    %74 = vector.shape_cast %73 : vector<4xf32> to vector<4x1xf32>
    %75 = tpu.reciprocal %74 {approx = true} : vector<4x1xf32> -> vector<4x1xf32>
    %76 = vector.broadcast %75 : vector<4x1xf32> to vector<4x4xf32>
    %77 = arith.mulf %72, %76 : vector<4x4xf32>
    %78 = arith.truncf %77 : vector<4x4xf32> to vector<4x4xbf16>
    %79 = arith.truncf %60 : vector<4x8xf32> to vector<4x8xbf16>
    %cst_27 = arith.constant dense<0.000000e+00> : vector<4x8xf32>
    %80 = tpu.matmul %78, %79, %cst_27 {dimension_numbers = #tpu.dot_dimension_numbers<[1], [0], [0], [1], [0, 0, 1, 1], [], []>} : vector<4x4xbf16>, vector<4x8xbf16>, vector<4x8xf32> -> vector<4x8xf32>
    %81 = vector.extract_strided_slice %31 {offsets = [0, 16], sizes = [4, 8], strides = [1, 1]} : vector<4x96xf32> to vector<4x8xf32>
    %82 = vector.extract_strided_slice %31 {offsets = [0, 48], sizes = [4, 8], strides = [1, 1]} : vector<4x96xf32> to vector<4x8xf32>
    %83 = vector.extract_strided_slice %31 {offsets = [0, 80], sizes = [4, 8], strides = [1, 1]} : vector<4x96xf32> to vector<4x8xf32>
    %84 = arith.truncf %81 : vector<4x8xf32> to vector<4x8xbf16>
    %85 = arith.truncf %82 : vector<4x8xf32> to vector<4x8xbf16>
    %86 = tpu.transpose %85, [1, 0] : vector<4x8xbf16> -> vector<8x4xbf16>
    %cst_28 = arith.constant dense<0.000000e+00> : vector<4x4xf32>
    %87 = tpu.matmul %84, %86, %cst_28 {dimension_numbers = #tpu.dot_dimension_numbers<[1], [0], [0], [1], [0, 0, 1, 1], [], []>} : vector<4x8xbf16>, vector<8x4xbf16>, vector<4x4xf32> -> vector<4x4xf32>
    %cst_29 = arith.constant 0.353553385 : f32
    %88 = vector.broadcast %cst_29 : f32 to vector<4x4xf32>
    %89 = arith.mulf %87, %88 : vector<4x4xf32>
    %90 = arith.addf %89, %34 : vector<4x4xf32>
    %cst_30 = arith.constant dense<0xFF800000> : vector<4xf32>
    %91 = vector.multi_reduction <maximumf>, %90, %cst_30 [1] : vector<4x4xf32> to vector<4xf32>
    %92 = vector.shape_cast %91 : vector<4xf32> to vector<4x1xf32>
    %93 = vector.broadcast %92 : vector<4x1xf32> to vector<4x4xf32>
    %94 = arith.subf %90, %93 : vector<4x4xf32>
    %95 = math.exp %94 : vector<4x4xf32>
    %cst_31 = arith.constant dense<0.000000e+00> : vector<4xf32>
    %96 = vector.multi_reduction <add>, %95, %cst_31 [1] : vector<4x4xf32> to vector<4xf32>
    %97 = vector.shape_cast %96 : vector<4xf32> to vector<4x1xf32>
    %98 = tpu.reciprocal %97 {approx = true} : vector<4x1xf32> -> vector<4x1xf32>
    %99 = vector.broadcast %98 : vector<4x1xf32> to vector<4x4xf32>
    %100 = arith.mulf %95, %99 : vector<4x4xf32>
    %101 = arith.truncf %100 : vector<4x4xf32> to vector<4x4xbf16>
    %102 = arith.truncf %83 : vector<4x8xf32> to vector<4x8xbf16>
    %cst_32 = arith.constant dense<0.000000e+00> : vector<4x8xf32>
    %103 = tpu.matmul %101, %102, %cst_32 {dimension_numbers = #tpu.dot_dimension_numbers<[1], [0], [0], [1], [0, 0, 1, 1], [], []>} : vector<4x4xbf16>, vector<4x8xbf16>, vector<4x8xf32> -> vector<4x8xf32>
    %104 = vector.extract_strided_slice %31 {offsets = [0, 24], sizes = [4, 8], strides = [1, 1]} : vector<4x96xf32> to vector<4x8xf32>
    %105 = vector.extract_strided_slice %31 {offsets = [0, 56], sizes = [4, 8], strides = [1, 1]} : vector<4x96xf32> to vector<4x8xf32>
    %106 = vector.extract_strided_slice %31 {offsets = [0, 88], sizes = [4, 8], strides = [1, 1]} : vector<4x96xf32> to vector<4x8xf32>
    %107 = arith.truncf %104 : vector<4x8xf32> to vector<4x8xbf16>
    %108 = arith.truncf %105 : vector<4x8xf32> to vector<4x8xbf16>
    %109 = tpu.transpose %108, [1, 0] : vector<4x8xbf16> -> vector<8x4xbf16>
    %cst_33 = arith.constant dense<0.000000e+00> : vector<4x4xf32>
    %110 = tpu.matmul %107, %109, %cst_33 {dimension_numbers = #tpu.dot_dimension_numbers<[1], [0], [0], [1], [0, 0, 1, 1], [], []>} : vector<4x8xbf16>, vector<8x4xbf16>, vector<4x4xf32> -> vector<4x4xf32>
    %cst_34 = arith.constant 0.353553385 : f32
    %111 = vector.broadcast %cst_34 : f32 to vector<4x4xf32>
    %112 = arith.mulf %110, %111 : vector<4x4xf32>
    %113 = arith.addf %112, %34 : vector<4x4xf32>
    %cst_35 = arith.constant dense<0xFF800000> : vector<4xf32>
    %114 = vector.multi_reduction <maximumf>, %113, %cst_35 [1] : vector<4x4xf32> to vector<4xf32>
    %115 = vector.shape_cast %114 : vector<4xf32> to vector<4x1xf32>
    %116 = vector.broadcast %115 : vector<4x1xf32> to vector<4x4xf32>
    %117 = arith.subf %113, %116 : vector<4x4xf32>
    %118 = math.exp %117 : vector<4x4xf32>
    %cst_36 = arith.constant dense<0.000000e+00> : vector<4xf32>
    %119 = vector.multi_reduction <add>, %118, %cst_36 [1] : vector<4x4xf32> to vector<4xf32>
    %120 = vector.shape_cast %119 : vector<4xf32> to vector<4x1xf32>
    %121 = tpu.reciprocal %120 {approx = true} : vector<4x1xf32> -> vector<4x1xf32>
    %122 = vector.broadcast %121 : vector<4x1xf32> to vector<4x4xf32>
    %123 = arith.mulf %118, %122 : vector<4x4xf32>
    %124 = arith.truncf %123 : vector<4x4xf32> to vector<4x4xbf16>
    %125 = arith.truncf %106 : vector<4x8xf32> to vector<4x8xbf16>
    %cst_37 = arith.constant dense<0.000000e+00> : vector<4x8xf32>
    %126 = tpu.matmul %124, %125, %cst_37 {dimension_numbers = #tpu.dot_dimension_numbers<[1], [0], [0], [1], [0, 0, 1, 1], [], []>} : vector<4x4xbf16>, vector<4x8xbf16>, vector<4x8xf32> -> vector<4x8xf32>
    %127 = tpu.concatenate %57, %80, %103, %126 in 1 : vector<4x8xf32>, vector<4x8xf32>, vector<4x8xf32>, vector<4x8xf32> -> vector<4x32xf32>
    %128 = arith.truncf %127 : vector<4x32xf32> to vector<4x32xbf16>
    %c0_38 = arith.constant 0 : index
    %c0_39 = arith.constant 0 : index
    %129 = vector.load %arg7[%c0_38, %c0_39] : memref<32x32xbf16, #tpu.memory_space<vmem>>, vector<32x32xbf16>
    %cst_40 = arith.constant dense<0.000000e+00> : vector<4x32xf32>
    %130 = tpu.matmul %128, %129, %cst_40 {dimension_numbers = #tpu.dot_dimension_numbers<[1], [0], [0], [1], [0, 0, 1, 1], [], []>} : vector<4x32xbf16>, vector<32x32xbf16>, vector<4x32xf32> -> vector<4x32xf32>
    %c0_41 = arith.constant 0 : index
    %c0_42 = arith.constant 0 : index
    %131 = vector.load %arg8[%c0_41, %c0_42] : memref<1x32xf32, #tpu.memory_space<vmem>>, vector<1x32xf32>
    %132 = vector.broadcast %131 : vector<1x32xf32> to vector<4x32xf32>
    %133 = arith.addf %130, %132 : vector<4x32xf32>
    %134 = arith.addf %1, %133 : vector<4x32xf32>
    %135 = arith.truncf %134 : vector<4x32xf32> to vector<4x32xbf16>
    %c0_43 = arith.constant 0 : index
    %c0_44 = arith.constant 0 : index
    %136 = vector.load %arg9[%c0_43, %c0_44] : memref<32x64xbf16, #tpu.memory_space<vmem>>, vector<32x64xbf16>
    %cst_45 = arith.constant dense<0.000000e+00> : vector<4x64xf32>
    %137 = tpu.matmul %135, %136, %cst_45 {dimension_numbers = #tpu.dot_dimension_numbers<[1], [0], [0], [1], [0, 0, 1, 1], [], []>} : vector<4x32xbf16>, vector<32x64xbf16>, vector<4x64xf32> -> vector<4x64xf32>
    %c0_46 = arith.constant 0 : index
    %c0_47 = arith.constant 0 : index
    %138 = vector.load %arg10[%c0_46, %c0_47] : memref<1x64xf32, #tpu.memory_space<vmem>>, vector<1x64xf32>
    %139 = vector.broadcast %138 : vector<1x64xf32> to vector<4x64xf32>
    %140 = arith.addf %137, %139 : vector<4x64xf32>
    %cst_48 = arith.constant 0.000000e+00 : f32
    %141 = vector.broadcast %cst_48 : f32 to vector<4x64xf32>
    %142 = arith.maximumf %140, %141 : vector<4x64xf32>
    %143 = arith.truncf %142 : vector<4x64xf32> to vector<4x64xbf16>
    %c0_49 = arith.constant 0 : index
    %c0_50 = arith.constant 0 : index
    %144 = vector.load %arg11[%c0_49, %c0_50] : memref<64x32xbf16, #tpu.memory_space<vmem>>, vector<64x32xbf16>
    %cst_51 = arith.constant dense<0.000000e+00> : vector<4x32xf32>
    %145 = tpu.matmul %143, %144, %cst_51 {dimension_numbers = #tpu.dot_dimension_numbers<[1], [0], [0], [1], [0, 0, 1, 1], [], []>} : vector<4x64xbf16>, vector<64x32xbf16>, vector<4x32xf32> -> vector<4x32xf32>
    %c0_52 = arith.constant 0 : index
    %c0_53 = arith.constant 0 : index
    %146 = vector.load %arg12[%c0_52, %c0_53] : memref<1x32xf32, #tpu.memory_space<vmem>>, vector<1x32xf32>
    %147 = vector.broadcast %146 : vector<1x32xf32> to vector<4x32xf32>
    %148 = arith.addf %145, %147 : vector<4x32xf32>
    %149 = arith.addf %134, %148 : vector<4x32xf32>
    %cst_54 = arith.constant dense<0.000000e+00> : vector<4xf32>
    %150 = vector.multi_reduction <add>, %149, %cst_54 [1] : vector<4x32xf32> to vector<4xf32>
    %151 = vector.shape_cast %150 : vector<4xf32> to vector<4x1xf32>
    %cst_55 = arith.constant 3.200000e+01 : f32
    %152 = vector.broadcast %cst_55 : f32 to vector<4x1xf32>
    %153 = arith.divf %151, %152 : vector<4x1xf32>
    %154 = vector.broadcast %153 : vector<4x1xf32> to vector<4x32xf32>
    %155 = arith.subf %149, %154 : vector<4x32xf32>
    %156 = arith.mulf %155, %155 : vector<4x32xf32>
    %cst_56 = arith.constant dense<0.000000e+00> : vector<4xf32>
    %157 = vector.multi_reduction <add>, %156, %cst_56 [1] : vector<4x32xf32> to vector<4xf32>
    %158 = vector.shape_cast %157 : vector<4xf32> to vector<4x1xf32>
    %cst_57 = arith.constant 3.200000e+01 : f32
    %159 = vector.broadcast %cst_57 : f32 to vector<4x1xf32>
    %160 = arith.divf %158, %159 : vector<4x1xf32>
    %161 = vector.broadcast %153 : vector<4x1xf32> to vector<4x32xf32>
    %162 = arith.subf %149, %161 : vector<4x32xf32>
    %cst_58 = arith.constant 9.99999974E-6 : f32
    %163 = vector.broadcast %cst_58 : f32 to vector<4x1xf32>
    %164 = arith.addf %160, %163 : vector<4x1xf32>
    %165 = math.rsqrt %164 : vector<4x1xf32>
    %166 = vector.broadcast %165 : vector<4x1xf32> to vector<4x32xf32>
    %167 = arith.mulf %162, %166 : vector<4x32xf32>
    %c0_59 = arith.constant 0 : index
    %c0_60 = arith.constant 0 : index
    %168 = vector.load %arg13[%c0_59, %c0_60] : memref<1x32xf32, #tpu.memory_space<vmem>>, vector<1x32xf32>
    %169 = vector.broadcast %168 : vector<1x32xf32> to vector<4x32xf32>
    %170 = arith.mulf %167, %169 : vector<4x32xf32>
    %c0_61 = arith.constant 0 : index
    %c0_62 = arith.constant 0 : index
    %171 = vector.load %arg14[%c0_61, %c0_62] : memref<1x32xf32, #tpu.memory_space<vmem>>, vector<1x32xf32>
    %172 = vector.broadcast %171 : vector<1x32xf32> to vector<4x32xf32>
    %173 = arith.addf %170, %172 : vector<4x32xf32>
    %c0_63 = arith.constant 0 : index
    %c0_64 = arith.constant 0 : index
    %c0_65 = arith.constant 0 : index
    %174 = vector.load %arg15[%c0_63, %c0_64, %c0_65] : memref<1x4x32xf32, #tpu.memory_space<vmem>>, vector<1x4x32xf32>
    %175 = vector.shape_cast %174 : vector<1x4x32xf32> to vector<4x32xf32>
    %176 = vector.shape_cast %173 : vector<4x32xf32> to vector<1x4x32xf32>
    tpu.vector_store %arg15[%c0_63, %c0_64, %c0_65], %176 {strides = array<i32>} : memref<1x4x32xf32, #tpu.memory_space<vmem>>, vector<1x4x32xf32>,
    return
  }
  func.func @transform_0(%arg0: i32) -> (i32, i32, i32) {
    %c0_i32 = arith.constant 0 : i32
    %c0_i32_0 = arith.constant 0 : i32
    %c0_i32_1 = arith.constant 0 : i32
    return %arg0, %c0_i32, %c0_i32_0 : i32, i32, i32
  }
  func.func @transform_1(%arg0: i32) -> (i32, i32) {
    %c0_i32 = arith.constant 0 : i32
    %c0_i32_0 = arith.constant 0 : i32
    %c0_i32_1 = arith.constant 0 : i32
    return %c0_i32, %c0_i32_0 : i32, i32
  }
  func.func @transform_2(%arg0: i32) -> (i32, i32) {
    %c0_i32 = arith.constant 0 : i32
    %c0_i32_0 = arith.constant 0 : i32
    %c0_i32_1 = arith.constant 0 : i32
    return %c0_i32, %c0_i32_0 : i32, i32
  }
  func.func @transform_3(%arg0: i32) -> (i32, i32) {
    %c0_i32 = arith.constant 0 : i32
    %c0_i32_0 = arith.constant 0 : i32
    %c0_i32_1 = arith.constant 0 : i32
    return %c0_i32, %c0_i32_0 : i32, i32
  }
  func.func @transform_4(%arg0: i32) -> (i32, i32) {
    %c0_i32 = arith.constant 0 : i32
    %c0_i32_0 = arith.constant 0 : i32
    %c0_i32_1 = arith.constant 0 : i32
    return %c0_i32, %c0_i32_0 : i32, i32
  }
  func.func @transform_5(%arg0: i32) -> (i32, i32) {
    %c0_i32 = arith.constant 0 : i32
    %c0_i32_0 = arith.constant 0 : i32
    %c0_i32_1 = arith.constant 0 : i32
    return %c0_i32, %c0_i32_0 : i32, i32
  }
  func.func @transform_6(%arg0: i32) -> (i32, i32) {
    %c0_i32 = arith.constant 0 : i32
    %c0_i32_0 = arith.constant 0 : i32
    %c0_i32_1 = arith.constant 0 : i32
    return %c0_i32, %c0_i32_0 : i32, i32
  }
  func.func @transform_7(%arg0: i32) -> (i32, i32) {
    %c0_i32 = arith.constant 0 : i32
    %c0_i32_0 = arith.constant 0 : i32
    %c0_i32_1 = arith.constant 0 : i32
    return %c0_i32, %c0_i32_0 : i32, i32
  }
  func.func @transform_8(%arg0: i32) -> (i32, i32) {
    %c0_i32 = arith.constant 0 : i32
    %c0_i32_0 = arith.constant 0 : i32
    %c0_i32_1 = arith.constant 0 : i32
    return %c0_i32, %c0_i32_0 : i32, i32
  }
  func.func @transform_9(%arg0: i32) -> (i32, i32) {
    %c0_i32 = arith.constant 0 : i32
    %c0_i32_0 = arith.constant 0 : i32
    %c0_i32_1 = arith.constant 0 : i32
    return %c0_i32, %c0_i32_0 : i32, i32
  }
  func.func @transform_10(%arg0: i32) -> (i32, i32) {
    %c0_i32 = arith.constant 0 : i32
    %c0_i32_0 = arith.constant 0 : i32
    %c0_i32_1 = arith.constant 0 : i32
    return %c0_i32, %c0_i32_0 : i32, i32
  }
  func.func @transform_11(%arg0: i32) -> (i32, i32) {
    %c0_i32 = arith.constant 0 : i32
    %c0_i32_0 = arith.constant 0 : i32
    %c0_i32_1 = arith.constant 0 : i32
    return %c0_i32, %c0_i32_0 : i32, i32
  }
  func.func @transform_12(%arg0: i32) -> (i32, i32) {
    %c0_i32 = arith.constant 0 : i32
    %c0_i32_0 = arith.constant 0 : i32
    %c0_i32_1 = arith.constant 0 : i32
    return %c0_i32, %c0_i32_0 : i32, i32
  }
  func.func @transform_13(%arg0: i32) -> (i32, i32) {
    %c0_i32 = arith.constant 0 : i32
    %c0_i32_0 = arith.constant 0 : i32
    %c0_i32_1 = arith.constant 0 : i32
    return %c0_i32, %c0_i32_0 : i32, i32
  }
  func.func @transform_14(%arg0: i32) -> (i32, i32, i32) {
    %c0_i32 = arith.constant 0 : i32
    %c0_i32_0 = arith.constant 0 : i32
    %c0_i32_1 = arith.constant 0 : i32
    return %arg0, %c0_i32, %c0_i32_0 : i32, i32, i32
  }
}

module attributes {stable_mosaic.version = 11 : i64} {
  func.func @_att_block_kernel(%arg0: i32, %arg1: memref<1x8x32xf32, #tpu.memory_space<vmem>>, %arg2: memref<4x8xf32, #tpu.memory_space<vmem>>, %arg3: memref<1x32xf32, #tpu.memory_space<vmem>>, %arg4: memref<1x32xf32, #tpu.memory_space<vmem>>, %arg5: memref<32x96xbf16, #tpu.memory_space<vmem>>, %arg6: memref<1x96xf32, #tpu.memory_space<vmem>>, %arg7: memref<32x32xbf16, #tpu.memory_space<vmem>>, %arg8: memref<1x32xf32, #tpu.memory_space<vmem>>, %arg9: memref<32x64xbf16, #tpu.memory_space<vmem>>, %arg10: memref<1x64xf32, #tpu.memory_space<vmem>>, %arg11: memref<64x32xbf16, #tpu.memory_space<vmem>>, %arg12: memref<1x32xf32, #tpu.memory_space<vmem>>, %arg13: memref<1x32xf32, #tpu.memory_space<vmem>>, %arg14: memref<1x32xf32, #tpu.memory_space<vmem>>, %arg15: memref<1x8x32xf32, #tpu.memory_space<vmem>>) attributes {dimension_semantics = [#tpu.dimension_semantics<parallel>], iteration_bounds = array<i64: 4>, scalar_prefetch = 0 : i64, scratch_operands = 0 : i64, tpu.core_type = #tpu.core_type<tc>, window_params = [{transform_indices = @transform_0, window_bounds = array<i64: 1, 8, 32>}, {pipeline_mode = #tpu.pipeline_mode<synchronous>, transform_indices = @transform_1, window_bounds = array<i64: 4, 8>}, {pipeline_mode = #tpu.pipeline_mode<synchronous>, transform_indices = @transform_2, window_bounds = array<i64: 1, 32>}, {pipeline_mode = #tpu.pipeline_mode<synchronous>, transform_indices = @transform_3, window_bounds = array<i64: 1, 32>}, {pipeline_mode = #tpu.pipeline_mode<synchronous>, transform_indices = @transform_4, window_bounds = array<i64: 32, 96>}, {pipeline_mode = #tpu.pipeline_mode<synchronous>, transform_indices = @transform_5, window_bounds = array<i64: 1, 96>}, {pipeline_mode = #tpu.pipeline_mode<synchronous>, transform_indices = @transform_6, window_bounds = array<i64: 32, 32>}, {pipeline_mode = #tpu.pipeline_mode<synchronous>, transform_indices = @transform_7, window_bounds = array<i64: 1, 32>}, {pipeline_mode = #tpu.pipeline_mode<synchronous>, transform_indices = @transform_8, window_bounds = array<i64: 32, 64>}, {pipeline_mode = #tpu.pipeline_mode<synchronous>, transform_indices = @transform_9, window_bounds = array<i64: 1, 64>}, {pipeline_mode = #tpu.pipeline_mode<synchronous>, transform_indices = @transform_10, window_bounds = array<i64: 64, 32>}, {pipeline_mode = #tpu.pipeline_mode<synchronous>, transform_indices = @transform_11, window_bounds = array<i64: 1, 32>}, {pipeline_mode = #tpu.pipeline_mode<synchronous>, transform_indices = @transform_12, window_bounds = array<i64: 1, 32>}, {pipeline_mode = #tpu.pipeline_mode<synchronous>, transform_indices = @transform_13, window_bounds = array<i64: 1, 32>}, {transform_indices = @transform_14, window_bounds = array<i64: 1, 8, 32>}]} {
    %c0 = arith.constant 0 : index
    %c0_0 = arith.constant 0 : index
    %c0_1 = arith.constant 0 : index
    %0 = vector.load %arg1[%c0, %c0_0, %c0_1] : memref<1x8x32xf32, #tpu.memory_space<vmem>>, vector<1x8x32xf32>
    %1 = vector.shape_cast %0 : vector<1x8x32xf32> to vector<8x32xf32>
    %cst = arith.constant dense<0.000000e+00> : vector<8xf32>
    %2 = vector.multi_reduction <add>, %1, %cst [1] : vector<8x32xf32> to vector<8xf32>
    %3 = vector.shape_cast %2 : vector<8xf32> to vector<8x1xf32>
    %cst_2 = arith.constant 3.200000e+01 : f32
    %4 = vector.broadcast %cst_2 : f32 to vector<8x1xf32>
    %5 = arith.divf %3, %4 : vector<8x1xf32>
    %6 = vector.broadcast %5 : vector<8x1xf32> to vector<8x32xf32>
    %7 = arith.subf %1, %6 : vector<8x32xf32>
    %8 = arith.mulf %7, %7 : vector<8x32xf32>
    %cst_3 = arith.constant dense<0.000000e+00> : vector<8xf32>
    %9 = vector.multi_reduction <add>, %8, %cst_3 [1] : vector<8x32xf32> to vector<8xf32>
    %10 = vector.shape_cast %9 : vector<8xf32> to vector<8x1xf32>
    %cst_4 = arith.constant 3.200000e+01 : f32
    %11 = vector.broadcast %cst_4 : f32 to vector<8x1xf32>
    %12 = arith.divf %10, %11 : vector<8x1xf32>
    %13 = vector.broadcast %5 : vector<8x1xf32> to vector<8x32xf32>
    %14 = arith.subf %1, %13 : vector<8x32xf32>
    %cst_5 = arith.constant 9.99999974E-6 : f32
    %15 = vector.broadcast %cst_5 : f32 to vector<8x1xf32>
    %16 = arith.addf %12, %15 : vector<8x1xf32>
    %17 = math.rsqrt %16 : vector<8x1xf32>
    %18 = vector.broadcast %17 : vector<8x1xf32> to vector<8x32xf32>
    %19 = arith.mulf %14, %18 : vector<8x32xf32>
    %c0_6 = arith.constant 0 : index
    %c0_7 = arith.constant 0 : index
    %20 = vector.load %arg3[%c0_6, %c0_7] : memref<1x32xf32, #tpu.memory_space<vmem>>, vector<1x32xf32>
    %21 = vector.broadcast %20 : vector<1x32xf32> to vector<8x32xf32>
    %22 = arith.mulf %19, %21 : vector<8x32xf32>
    %c0_8 = arith.constant 0 : index
    %c0_9 = arith.constant 0 : index
    %23 = vector.load %arg4[%c0_8, %c0_9] : memref<1x32xf32, #tpu.memory_space<vmem>>, vector<1x32xf32>
    %24 = vector.broadcast %23 : vector<1x32xf32> to vector<8x32xf32>
    %25 = arith.addf %22, %24 : vector<8x32xf32>
    %26 = arith.truncf %25 : vector<8x32xf32> to vector<8x32xbf16>
    %c0_10 = arith.constant 0 : index
    %c0_11 = arith.constant 0 : index
    %27 = vector.load %arg5[%c0_10, %c0_11] : memref<32x96xbf16, #tpu.memory_space<vmem>>, vector<32x96xbf16>
    %cst_12 = arith.constant dense<0.000000e+00> : vector<8x96xf32>
    %28 = tpu.matmul %26, %27, %cst_12 {dimension_numbers = #tpu.dot_dimension_numbers<[1], [0], [0], [1], [0, 0, 1, 1], [], []>} : vector<8x32xbf16>, vector<32x96xbf16>, vector<8x96xf32> -> vector<8x96xf32>
    %c0_13 = arith.constant 0 : index
    %c0_14 = arith.constant 0 : index
    %29 = vector.load %arg6[%c0_13, %c0_14] : memref<1x96xf32, #tpu.memory_space<vmem>>, vector<1x96xf32>
    %30 = vector.broadcast %29 : vector<1x96xf32> to vector<8x96xf32>
    %31 = arith.addf %28, %30 : vector<8x96xf32>
    %32 = arith.index_cast %arg0 : i32 to index
    %c0_15 = arith.constant 0 : index
    %33 = vector.load %arg2[%32, %c0_15] : memref<4x8xf32, #tpu.memory_space<vmem>>, vector<1x8xf32>
    %cst_16 = arith.constant -1.000000e+09 : f32
    %34 = vector.broadcast %cst_16 : f32 to vector<1x8xf32>
    %35 = arith.mulf %33, %34 : vector<1x8xf32>
    %36 = vector.extract_strided_slice %31 {offsets = [0, 0], sizes = [8, 8], strides = [1, 1]} : vector<8x96xf32> to vector<8x8xf32>
    %37 = vector.extract_strided_slice %31 {offsets = [0, 32], sizes = [8, 8], strides = [1, 1]} : vector<8x96xf32> to vector<8x8xf32>
    %38 = vector.extract_strided_slice %31 {offsets = [0, 64], sizes = [8, 8], strides = [1, 1]} : vector<8x96xf32> to vector<8x8xf32>
    %39 = arith.truncf %36 : vector<8x8xf32> to vector<8x8xbf16>
    %40 = arith.truncf %37 : vector<8x8xf32> to vector<8x8xbf16>
    %41 = tpu.transpose %40, [1, 0] : vector<8x8xbf16> -> vector<8x8xbf16>
    %cst_17 = arith.constant dense<0.000000e+00> : vector<8x8xf32>
    %42 = tpu.matmul %39, %41, %cst_17 {dimension_numbers = #tpu.dot_dimension_numbers<[1], [0], [0], [1], [0, 0, 1, 1], [], []>} : vector<8x8xbf16>, vector<8x8xbf16>, vector<8x8xf32> -> vector<8x8xf32>
    %cst_18 = arith.constant 0.353553385 : f32
    %43 = vector.broadcast %cst_18 : f32 to vector<8x8xf32>
    %44 = arith.mulf %42, %43 : vector<8x8xf32>
    %45 = vector.broadcast %35 : vector<1x8xf32> to vector<8x8xf32>
    %46 = arith.addf %44, %45 : vector<8x8xf32>
    %cst_19 = arith.constant dense<0xFF800000> : vector<8xf32>
    %47 = vector.multi_reduction <maximumf>, %46, %cst_19 [1] : vector<8x8xf32> to vector<8xf32>
    %48 = vector.shape_cast %47 : vector<8xf32> to vector<8x1xf32>
    %49 = vector.broadcast %48 : vector<8x1xf32> to vector<8x8xf32>
    %50 = arith.subf %46, %49 : vector<8x8xf32>
    %51 = math.exp %50 : vector<8x8xf32>
    %cst_20 = arith.constant dense<0.000000e+00> : vector<8xf32>
    %52 = vector.multi_reduction <add>, %51, %cst_20 [1] : vector<8x8xf32> to vector<8xf32>
    %53 = vector.shape_cast %52 : vector<8xf32> to vector<8x1xf32>
    %54 = tpu.reciprocal %53 {approx = true} : vector<8x1xf32> -> vector<8x1xf32>
    %55 = vector.broadcast %54 : vector<8x1xf32> to vector<8x8xf32>
    %56 = arith.mulf %51, %55 : vector<8x8xf32>
    %57 = arith.truncf %56 : vector<8x8xf32> to vector<8x8xbf16>
    %58 = arith.truncf %38 : vector<8x8xf32> to vector<8x8xbf16>
    %cst_21 = arith.constant dense<0.000000e+00> : vector<8x8xf32>
    %59 = tpu.matmul %57, %58, %cst_21 {dimension_numbers = #tpu.dot_dimension_numbers<[1], [0], [0], [1], [0, 0, 1, 1], [], []>} : vector<8x8xbf16>, vector<8x8xbf16>, vector<8x8xf32> -> vector<8x8xf32>
    %60 = vector.extract_strided_slice %31 {offsets = [0, 8], sizes = [8, 8], strides = [1, 1]} : vector<8x96xf32> to vector<8x8xf32>
    %61 = vector.extract_strided_slice %31 {offsets = [0, 40], sizes = [8, 8], strides = [1, 1]} : vector<8x96xf32> to vector<8x8xf32>
    %62 = vector.extract_strided_slice %31 {offsets = [0, 72], sizes = [8, 8], strides = [1, 1]} : vector<8x96xf32> to vector<8x8xf32>
    %63 = arith.truncf %60 : vector<8x8xf32> to vector<8x8xbf16>
    %64 = arith.truncf %61 : vector<8x8xf32> to vector<8x8xbf16>
    %65 = tpu.transpose %64, [1, 0] : vector<8x8xbf16> -> vector<8x8xbf16>
    %cst_22 = arith.constant dense<0.000000e+00> : vector<8x8xf32>
    %66 = tpu.matmul %63, %65, %cst_22 {dimension_numbers = #tpu.dot_dimension_numbers<[1], [0], [0], [1], [0, 0, 1, 1], [], []>} : vector<8x8xbf16>, vector<8x8xbf16>, vector<8x8xf32> -> vector<8x8xf32>
    %cst_23 = arith.constant 0.353553385 : f32
    %67 = vector.broadcast %cst_23 : f32 to vector<8x8xf32>
    %68 = arith.mulf %66, %67 : vector<8x8xf32>
    %69 = vector.broadcast %35 : vector<1x8xf32> to vector<8x8xf32>
    %70 = arith.addf %68, %69 : vector<8x8xf32>
    %cst_24 = arith.constant dense<0xFF800000> : vector<8xf32>
    %71 = vector.multi_reduction <maximumf>, %70, %cst_24 [1] : vector<8x8xf32> to vector<8xf32>
    %72 = vector.shape_cast %71 : vector<8xf32> to vector<8x1xf32>
    %73 = vector.broadcast %72 : vector<8x1xf32> to vector<8x8xf32>
    %74 = arith.subf %70, %73 : vector<8x8xf32>
    %75 = math.exp %74 : vector<8x8xf32>
    %cst_25 = arith.constant dense<0.000000e+00> : vector<8xf32>
    %76 = vector.multi_reduction <add>, %75, %cst_25 [1] : vector<8x8xf32> to vector<8xf32>
    %77 = vector.shape_cast %76 : vector<8xf32> to vector<8x1xf32>
    %78 = tpu.reciprocal %77 {approx = true} : vector<8x1xf32> -> vector<8x1xf32>
    %79 = vector.broadcast %78 : vector<8x1xf32> to vector<8x8xf32>
    %80 = arith.mulf %75, %79 : vector<8x8xf32>
    %81 = arith.truncf %80 : vector<8x8xf32> to vector<8x8xbf16>
    %82 = arith.truncf %62 : vector<8x8xf32> to vector<8x8xbf16>
    %cst_26 = arith.constant dense<0.000000e+00> : vector<8x8xf32>
    %83 = tpu.matmul %81, %82, %cst_26 {dimension_numbers = #tpu.dot_dimension_numbers<[1], [0], [0], [1], [0, 0, 1, 1], [], []>} : vector<8x8xbf16>, vector<8x8xbf16>, vector<8x8xf32> -> vector<8x8xf32>
    %84 = vector.extract_strided_slice %31 {offsets = [0, 16], sizes = [8, 8], strides = [1, 1]} : vector<8x96xf32> to vector<8x8xf32>
    %85 = vector.extract_strided_slice %31 {offsets = [0, 48], sizes = [8, 8], strides = [1, 1]} : vector<8x96xf32> to vector<8x8xf32>
    %86 = vector.extract_strided_slice %31 {offsets = [0, 80], sizes = [8, 8], strides = [1, 1]} : vector<8x96xf32> to vector<8x8xf32>
    %87 = arith.truncf %84 : vector<8x8xf32> to vector<8x8xbf16>
    %88 = arith.truncf %85 : vector<8x8xf32> to vector<8x8xbf16>
    %89 = tpu.transpose %88, [1, 0] : vector<8x8xbf16> -> vector<8x8xbf16>
    %cst_27 = arith.constant dense<0.000000e+00> : vector<8x8xf32>
    %90 = tpu.matmul %87, %89, %cst_27 {dimension_numbers = #tpu.dot_dimension_numbers<[1], [0], [0], [1], [0, 0, 1, 1], [], []>} : vector<8x8xbf16>, vector<8x8xbf16>, vector<8x8xf32> -> vector<8x8xf32>
    %cst_28 = arith.constant 0.353553385 : f32
    %91 = vector.broadcast %cst_28 : f32 to vector<8x8xf32>
    %92 = arith.mulf %90, %91 : vector<8x8xf32>
    %93 = vector.broadcast %35 : vector<1x8xf32> to vector<8x8xf32>
    %94 = arith.addf %92, %93 : vector<8x8xf32>
    %cst_29 = arith.constant dense<0xFF800000> : vector<8xf32>
    %95 = vector.multi_reduction <maximumf>, %94, %cst_29 [1] : vector<8x8xf32> to vector<8xf32>
    %96 = vector.shape_cast %95 : vector<8xf32> to vector<8x1xf32>
    %97 = vector.broadcast %96 : vector<8x1xf32> to vector<8x8xf32>
    %98 = arith.subf %94, %97 : vector<8x8xf32>
    %99 = math.exp %98 : vector<8x8xf32>
    %cst_30 = arith.constant dense<0.000000e+00> : vector<8xf32>
    %100 = vector.multi_reduction <add>, %99, %cst_30 [1] : vector<8x8xf32> to vector<8xf32>
    %101 = vector.shape_cast %100 : vector<8xf32> to vector<8x1xf32>
    %102 = tpu.reciprocal %101 {approx = true} : vector<8x1xf32> -> vector<8x1xf32>
    %103 = vector.broadcast %102 : vector<8x1xf32> to vector<8x8xf32>
    %104 = arith.mulf %99, %103 : vector<8x8xf32>
    %105 = arith.truncf %104 : vector<8x8xf32> to vector<8x8xbf16>
    %106 = arith.truncf %86 : vector<8x8xf32> to vector<8x8xbf16>
    %cst_31 = arith.constant dense<0.000000e+00> : vector<8x8xf32>
    %107 = tpu.matmul %105, %106, %cst_31 {dimension_numbers = #tpu.dot_dimension_numbers<[1], [0], [0], [1], [0, 0, 1, 1], [], []>} : vector<8x8xbf16>, vector<8x8xbf16>, vector<8x8xf32> -> vector<8x8xf32>
    %108 = vector.extract_strided_slice %31 {offsets = [0, 24], sizes = [8, 8], strides = [1, 1]} : vector<8x96xf32> to vector<8x8xf32>
    %109 = vector.extract_strided_slice %31 {offsets = [0, 56], sizes = [8, 8], strides = [1, 1]} : vector<8x96xf32> to vector<8x8xf32>
    %110 = vector.extract_strided_slice %31 {offsets = [0, 88], sizes = [8, 8], strides = [1, 1]} : vector<8x96xf32> to vector<8x8xf32>
    %111 = arith.truncf %108 : vector<8x8xf32> to vector<8x8xbf16>
    %112 = arith.truncf %109 : vector<8x8xf32> to vector<8x8xbf16>
    %113 = tpu.transpose %112, [1, 0] : vector<8x8xbf16> -> vector<8x8xbf16>
    %cst_32 = arith.constant dense<0.000000e+00> : vector<8x8xf32>
    %114 = tpu.matmul %111, %113, %cst_32 {dimension_numbers = #tpu.dot_dimension_numbers<[1], [0], [0], [1], [0, 0, 1, 1], [], []>} : vector<8x8xbf16>, vector<8x8xbf16>, vector<8x8xf32> -> vector<8x8xf32>
    %cst_33 = arith.constant 0.353553385 : f32
    %115 = vector.broadcast %cst_33 : f32 to vector<8x8xf32>
    %116 = arith.mulf %114, %115 : vector<8x8xf32>
    %117 = vector.broadcast %35 : vector<1x8xf32> to vector<8x8xf32>
    %118 = arith.addf %116, %117 : vector<8x8xf32>
    %cst_34 = arith.constant dense<0xFF800000> : vector<8xf32>
    %119 = vector.multi_reduction <maximumf>, %118, %cst_34 [1] : vector<8x8xf32> to vector<8xf32>
    %120 = vector.shape_cast %119 : vector<8xf32> to vector<8x1xf32>
    %121 = vector.broadcast %120 : vector<8x1xf32> to vector<8x8xf32>
    %122 = arith.subf %118, %121 : vector<8x8xf32>
    %123 = math.exp %122 : vector<8x8xf32>
    %cst_35 = arith.constant dense<0.000000e+00> : vector<8xf32>
    %124 = vector.multi_reduction <add>, %123, %cst_35 [1] : vector<8x8xf32> to vector<8xf32>
    %125 = vector.shape_cast %124 : vector<8xf32> to vector<8x1xf32>
    %126 = tpu.reciprocal %125 {approx = true} : vector<8x1xf32> -> vector<8x1xf32>
    %127 = vector.broadcast %126 : vector<8x1xf32> to vector<8x8xf32>
    %128 = arith.mulf %123, %127 : vector<8x8xf32>
    %129 = arith.truncf %128 : vector<8x8xf32> to vector<8x8xbf16>
    %130 = arith.truncf %110 : vector<8x8xf32> to vector<8x8xbf16>
    %cst_36 = arith.constant dense<0.000000e+00> : vector<8x8xf32>
    %131 = tpu.matmul %129, %130, %cst_36 {dimension_numbers = #tpu.dot_dimension_numbers<[1], [0], [0], [1], [0, 0, 1, 1], [], []>} : vector<8x8xbf16>, vector<8x8xbf16>, vector<8x8xf32> -> vector<8x8xf32>
    %132 = tpu.concatenate %59, %83, %107, %131 in 1 : vector<8x8xf32>, vector<8x8xf32>, vector<8x8xf32>, vector<8x8xf32> -> vector<8x32xf32>
    %133 = arith.truncf %132 : vector<8x32xf32> to vector<8x32xbf16>
    %c0_37 = arith.constant 0 : index
    %c0_38 = arith.constant 0 : index
    %134 = vector.load %arg7[%c0_37, %c0_38] : memref<32x32xbf16, #tpu.memory_space<vmem>>, vector<32x32xbf16>
    %cst_39 = arith.constant dense<0.000000e+00> : vector<8x32xf32>
    %135 = tpu.matmul %133, %134, %cst_39 {dimension_numbers = #tpu.dot_dimension_numbers<[1], [0], [0], [1], [0, 0, 1, 1], [], []>} : vector<8x32xbf16>, vector<32x32xbf16>, vector<8x32xf32> -> vector<8x32xf32>
    %c0_40 = arith.constant 0 : index
    %c0_41 = arith.constant 0 : index
    %136 = vector.load %arg8[%c0_40, %c0_41] : memref<1x32xf32, #tpu.memory_space<vmem>>, vector<1x32xf32>
    %137 = vector.broadcast %136 : vector<1x32xf32> to vector<8x32xf32>
    %138 = arith.addf %135, %137 : vector<8x32xf32>
    %139 = arith.addf %1, %138 : vector<8x32xf32>
    %140 = arith.truncf %139 : vector<8x32xf32> to vector<8x32xbf16>
    %c0_42 = arith.constant 0 : index
    %c0_43 = arith.constant 0 : index
    %141 = vector.load %arg9[%c0_42, %c0_43] : memref<32x64xbf16, #tpu.memory_space<vmem>>, vector<32x64xbf16>
    %cst_44 = arith.constant dense<0.000000e+00> : vector<8x64xf32>
    %142 = tpu.matmul %140, %141, %cst_44 {dimension_numbers = #tpu.dot_dimension_numbers<[1], [0], [0], [1], [0, 0, 1, 1], [], []>} : vector<8x32xbf16>, vector<32x64xbf16>, vector<8x64xf32> -> vector<8x64xf32>
    %c0_45 = arith.constant 0 : index
    %c0_46 = arith.constant 0 : index
    %143 = vector.load %arg10[%c0_45, %c0_46] : memref<1x64xf32, #tpu.memory_space<vmem>>, vector<1x64xf32>
    %144 = vector.broadcast %143 : vector<1x64xf32> to vector<8x64xf32>
    %145 = arith.addf %142, %144 : vector<8x64xf32>
    %cst_47 = arith.constant 0.000000e+00 : f32
    %146 = vector.broadcast %cst_47 : f32 to vector<8x64xf32>
    %147 = arith.maximumf %145, %146 : vector<8x64xf32>
    %148 = arith.truncf %147 : vector<8x64xf32> to vector<8x64xbf16>
    %c0_48 = arith.constant 0 : index
    %c0_49 = arith.constant 0 : index
    %149 = vector.load %arg11[%c0_48, %c0_49] : memref<64x32xbf16, #tpu.memory_space<vmem>>, vector<64x32xbf16>
    %cst_50 = arith.constant dense<0.000000e+00> : vector<8x32xf32>
    %150 = tpu.matmul %148, %149, %cst_50 {dimension_numbers = #tpu.dot_dimension_numbers<[1], [0], [0], [1], [0, 0, 1, 1], [], []>} : vector<8x64xbf16>, vector<64x32xbf16>, vector<8x32xf32> -> vector<8x32xf32>
    %c0_51 = arith.constant 0 : index
    %c0_52 = arith.constant 0 : index
    %151 = vector.load %arg12[%c0_51, %c0_52] : memref<1x32xf32, #tpu.memory_space<vmem>>, vector<1x32xf32>
    %152 = vector.broadcast %151 : vector<1x32xf32> to vector<8x32xf32>
    %153 = arith.addf %150, %152 : vector<8x32xf32>
    %154 = arith.addf %139, %153 : vector<8x32xf32>
    %cst_53 = arith.constant dense<0.000000e+00> : vector<8xf32>
    %155 = vector.multi_reduction <add>, %154, %cst_53 [1] : vector<8x32xf32> to vector<8xf32>
    %156 = vector.shape_cast %155 : vector<8xf32> to vector<8x1xf32>
    %cst_54 = arith.constant 3.200000e+01 : f32
    %157 = vector.broadcast %cst_54 : f32 to vector<8x1xf32>
    %158 = arith.divf %156, %157 : vector<8x1xf32>
    %159 = vector.broadcast %158 : vector<8x1xf32> to vector<8x32xf32>
    %160 = arith.subf %154, %159 : vector<8x32xf32>
    %161 = arith.mulf %160, %160 : vector<8x32xf32>
    %cst_55 = arith.constant dense<0.000000e+00> : vector<8xf32>
    %162 = vector.multi_reduction <add>, %161, %cst_55 [1] : vector<8x32xf32> to vector<8xf32>
    %163 = vector.shape_cast %162 : vector<8xf32> to vector<8x1xf32>
    %cst_56 = arith.constant 3.200000e+01 : f32
    %164 = vector.broadcast %cst_56 : f32 to vector<8x1xf32>
    %165 = arith.divf %163, %164 : vector<8x1xf32>
    %166 = vector.broadcast %158 : vector<8x1xf32> to vector<8x32xf32>
    %167 = arith.subf %154, %166 : vector<8x32xf32>
    %cst_57 = arith.constant 9.99999974E-6 : f32
    %168 = vector.broadcast %cst_57 : f32 to vector<8x1xf32>
    %169 = arith.addf %165, %168 : vector<8x1xf32>
    %170 = math.rsqrt %169 : vector<8x1xf32>
    %171 = vector.broadcast %170 : vector<8x1xf32> to vector<8x32xf32>
    %172 = arith.mulf %167, %171 : vector<8x32xf32>
    %c0_58 = arith.constant 0 : index
    %c0_59 = arith.constant 0 : index
    %173 = vector.load %arg13[%c0_58, %c0_59] : memref<1x32xf32, #tpu.memory_space<vmem>>, vector<1x32xf32>
    %174 = vector.broadcast %173 : vector<1x32xf32> to vector<8x32xf32>
    %175 = arith.mulf %172, %174 : vector<8x32xf32>
    %c0_60 = arith.constant 0 : index
    %c0_61 = arith.constant 0 : index
    %176 = vector.load %arg14[%c0_60, %c0_61] : memref<1x32xf32, #tpu.memory_space<vmem>>, vector<1x32xf32>
    %177 = vector.broadcast %176 : vector<1x32xf32> to vector<8x32xf32>
    %178 = arith.addf %175, %177 : vector<8x32xf32>
    %c0_62 = arith.constant 0 : index
    %c0_63 = arith.constant 0 : index
    %c0_64 = arith.constant 0 : index
    %179 = vector.load %arg15[%c0_62, %c0_63, %c0_64] : memref<1x8x32xf32, #tpu.memory_space<vmem>>, vector<1x8x32xf32>
    %180 = vector.shape_cast %179 : vector<1x8x32xf32> to vector<8x32xf32>
    %181 = vector.shape_cast %178 : vector<8x32xf32> to vector<1x8x32xf32>
    tpu.vector_store %arg15[%c0_62, %c0_63, %c0_64], %181 {strides = array<i32>} : memref<1x8x32xf32, #tpu.memory_space<vmem>>, vector<1x8x32xf32>,
    return
  }
  func.func @transform_0(%arg0: i32) -> (i32, i32, i32) {
    %c0_i32 = arith.constant 0 : i32
    %c0_i32_0 = arith.constant 0 : i32
    %c0_i32_1 = arith.constant 0 : i32
    return %arg0, %c0_i32, %c0_i32_0 : i32, i32, i32
  }
  func.func @transform_1(%arg0: i32) -> (i32, i32) {
    %c0_i32 = arith.constant 0 : i32
    %c0_i32_0 = arith.constant 0 : i32
    %c0_i32_1 = arith.constant 0 : i32
    return %c0_i32, %c0_i32_0 : i32, i32
  }
  func.func @transform_2(%arg0: i32) -> (i32, i32) {
    %c0_i32 = arith.constant 0 : i32
    %c0_i32_0 = arith.constant 0 : i32
    %c0_i32_1 = arith.constant 0 : i32
    return %c0_i32, %c0_i32_0 : i32, i32
  }
  func.func @transform_3(%arg0: i32) -> (i32, i32) {
    %c0_i32 = arith.constant 0 : i32
    %c0_i32_0 = arith.constant 0 : i32
    %c0_i32_1 = arith.constant 0 : i32
    return %c0_i32, %c0_i32_0 : i32, i32
  }
  func.func @transform_4(%arg0: i32) -> (i32, i32) {
    %c0_i32 = arith.constant 0 : i32
    %c0_i32_0 = arith.constant 0 : i32
    %c0_i32_1 = arith.constant 0 : i32
    return %c0_i32, %c0_i32_0 : i32, i32
  }
  func.func @transform_5(%arg0: i32) -> (i32, i32) {
    %c0_i32 = arith.constant 0 : i32
    %c0_i32_0 = arith.constant 0 : i32
    %c0_i32_1 = arith.constant 0 : i32
    return %c0_i32, %c0_i32_0 : i32, i32
  }
  func.func @transform_6(%arg0: i32) -> (i32, i32) {
    %c0_i32 = arith.constant 0 : i32
    %c0_i32_0 = arith.constant 0 : i32
    %c0_i32_1 = arith.constant 0 : i32
    return %c0_i32, %c0_i32_0 : i32, i32
  }
  func.func @transform_7(%arg0: i32) -> (i32, i32) {
    %c0_i32 = arith.constant 0 : i32
    %c0_i32_0 = arith.constant 0 : i32
    %c0_i32_1 = arith.constant 0 : i32
    return %c0_i32, %c0_i32_0 : i32, i32
  }
  func.func @transform_8(%arg0: i32) -> (i32, i32) {
    %c0_i32 = arith.constant 0 : i32
    %c0_i32_0 = arith.constant 0 : i32
    %c0_i32_1 = arith.constant 0 : i32
    return %c0_i32, %c0_i32_0 : i32, i32
  }
  func.func @transform_9(%arg0: i32) -> (i32, i32) {
    %c0_i32 = arith.constant 0 : i32
    %c0_i32_0 = arith.constant 0 : i32
    %c0_i32_1 = arith.constant 0 : i32
    return %c0_i32, %c0_i32_0 : i32, i32
  }
  func.func @transform_10(%arg0: i32) -> (i32, i32) {
    %c0_i32 = arith.constant 0 : i32
    %c0_i32_0 = arith.constant 0 : i32
    %c0_i32_1 = arith.constant 0 : i32
    return %c0_i32, %c0_i32_0 : i32, i32
  }
  func.func @transform_11(%arg0: i32) -> (i32, i32) {
    %c0_i32 = arith.constant 0 : i32
    %c0_i32_0 = arith.constant 0 : i32
    %c0_i32_1 = arith.constant 0 : i32
    return %c0_i32, %c0_i32_0 : i32, i32
  }
  func.func @transform_12(%arg0: i32) -> (i32, i32) {
    %c0_i32 = arith.constant 0 : i32
    %c0_i32_0 = arith.constant 0 : i32
    %c0_i32_1 = arith.constant 0 : i32
    return %c0_i32, %c0_i32_0 : i32, i32
  }
  func.func @transform_13(%arg0: i32) -> (i32, i32) {
    %c0_i32 = arith.constant 0 : i32
    %c0_i32_0 = arith.constant 0 : i32
    %c0_i32_1 = arith.constant 0 : i32
    return %c0_i32, %c0_i32_0 : i32, i32
  }
  func.func @transform_14(%arg0: i32) -> (i32, i32, i32) {
    %c0_i32 = arith.constant 0 : i32
    %c0_i32_0 = arith.constant 0 : i32
    %c0_i32_1 = arith.constant 0 : i32
    return %arg0, %c0_i32, %c0_i32_0 : i32, i32, i32
  }
}

module attributes {stable_mosaic.version = 11 : i64} {
  func.func @_att_block_kernel(%arg0: i32, %arg1: memref<1x8x32xf32, #tpu.memory_space<vmem>>, %arg2: memref<4x8xf32, #tpu.memory_space<vmem>>, %arg3: memref<1x32xf32, #tpu.memory_space<vmem>>, %arg4: memref<1x32xf32, #tpu.memory_space<vmem>>, %arg5: memref<32x96xbf16, #tpu.memory_space<vmem>>, %arg6: memref<1x96xf32, #tpu.memory_space<vmem>>, %arg7: memref<32x32xbf16, #tpu.memory_space<vmem>>, %arg8: memref<1x32xf32, #tpu.memory_space<vmem>>, %arg9: memref<32x64xbf16, #tpu.memory_space<vmem>>, %arg10: memref<1x64xf32, #tpu.memory_space<vmem>>, %arg11: memref<64x32xbf16, #tpu.memory_space<vmem>>, %arg12: memref<1x32xf32, #tpu.memory_space<vmem>>, %arg13: memref<1x32xf32, #tpu.memory_space<vmem>>, %arg14: memref<1x32xf32, #tpu.memory_space<vmem>>, %arg15: memref<1x8x32xf32, #tpu.memory_space<vmem>>) attributes {dimension_semantics = [#tpu.dimension_semantics<parallel>], iteration_bounds = array<i64: 4>, scalar_prefetch = 0 : i64, scratch_operands = 0 : i64, tpu.core_type = #tpu.core_type<tc>, window_params = [{transform_indices = @transform_0, window_bounds = array<i64: 1, 8, 32>}, {pipeline_mode = #tpu.pipeline_mode<synchronous>, transform_indices = @transform_1, window_bounds = array<i64: 4, 8>}, {pipeline_mode = #tpu.pipeline_mode<synchronous>, transform_indices = @transform_2, window_bounds = array<i64: 1, 32>}, {pipeline_mode = #tpu.pipeline_mode<synchronous>, transform_indices = @transform_3, window_bounds = array<i64: 1, 32>}, {pipeline_mode = #tpu.pipeline_mode<synchronous>, transform_indices = @transform_4, window_bounds = array<i64: 32, 96>}, {pipeline_mode = #tpu.pipeline_mode<synchronous>, transform_indices = @transform_5, window_bounds = array<i64: 1, 96>}, {pipeline_mode = #tpu.pipeline_mode<synchronous>, transform_indices = @transform_6, window_bounds = array<i64: 32, 32>}, {pipeline_mode = #tpu.pipeline_mode<synchronous>, transform_indices = @transform_7, window_bounds = array<i64: 1, 32>}, {pipeline_mode = #tpu.pipeline_mode<synchronous>, transform_indices = @transform_8, window_bounds = array<i64: 32, 64>}, {pipeline_mode = #tpu.pipeline_mode<synchronous>, transform_indices = @transform_9, window_bounds = array<i64: 1, 64>}, {pipeline_mode = #tpu.pipeline_mode<synchronous>, transform_indices = @transform_10, window_bounds = array<i64: 64, 32>}, {pipeline_mode = #tpu.pipeline_mode<synchronous>, transform_indices = @transform_11, window_bounds = array<i64: 1, 32>}, {pipeline_mode = #tpu.pipeline_mode<synchronous>, transform_indices = @transform_12, window_bounds = array<i64: 1, 32>}, {pipeline_mode = #tpu.pipeline_mode<synchronous>, transform_indices = @transform_13, window_bounds = array<i64: 1, 32>}, {transform_indices = @transform_14, window_bounds = array<i64: 1, 8, 32>}]} {
    %c0 = arith.constant 0 : index
    %c0_0 = arith.constant 0 : index
    %c0_1 = arith.constant 0 : index
    %0 = vector.load %arg1[%c0, %c0_0, %c0_1] : memref<1x8x32xf32, #tpu.memory_space<vmem>>, vector<1x8x32xf32>
    %1 = vector.shape_cast %0 : vector<1x8x32xf32> to vector<8x32xf32>
    %cst = arith.constant dense<0.000000e+00> : vector<8xf32>
    %2 = vector.multi_reduction <add>, %1, %cst [1] : vector<8x32xf32> to vector<8xf32>
    %3 = vector.shape_cast %2 : vector<8xf32> to vector<8x1xf32>
    %cst_2 = arith.constant 3.200000e+01 : f32
    %4 = vector.broadcast %cst_2 : f32 to vector<8x1xf32>
    %5 = arith.divf %3, %4 : vector<8x1xf32>
    %6 = vector.broadcast %5 : vector<8x1xf32> to vector<8x32xf32>
    %7 = arith.subf %1, %6 : vector<8x32xf32>
    %8 = arith.mulf %7, %7 : vector<8x32xf32>
    %cst_3 = arith.constant dense<0.000000e+00> : vector<8xf32>
    %9 = vector.multi_reduction <add>, %8, %cst_3 [1] : vector<8x32xf32> to vector<8xf32>
    %10 = vector.shape_cast %9 : vector<8xf32> to vector<8x1xf32>
    %cst_4 = arith.constant 3.200000e+01 : f32
    %11 = vector.broadcast %cst_4 : f32 to vector<8x1xf32>
    %12 = arith.divf %10, %11 : vector<8x1xf32>
    %13 = vector.broadcast %5 : vector<8x1xf32> to vector<8x32xf32>
    %14 = arith.subf %1, %13 : vector<8x32xf32>
    %cst_5 = arith.constant 9.99999974E-6 : f32
    %15 = vector.broadcast %cst_5 : f32 to vector<8x1xf32>
    %16 = arith.addf %12, %15 : vector<8x1xf32>
    %17 = math.rsqrt %16 : vector<8x1xf32>
    %18 = vector.broadcast %17 : vector<8x1xf32> to vector<8x32xf32>
    %19 = arith.mulf %14, %18 : vector<8x32xf32>
    %c0_6 = arith.constant 0 : index
    %c0_7 = arith.constant 0 : index
    %20 = vector.load %arg3[%c0_6, %c0_7] : memref<1x32xf32, #tpu.memory_space<vmem>>, vector<1x32xf32>
    %21 = vector.broadcast %20 : vector<1x32xf32> to vector<8x32xf32>
    %22 = arith.mulf %19, %21 : vector<8x32xf32>
    %c0_8 = arith.constant 0 : index
    %c0_9 = arith.constant 0 : index
    %23 = vector.load %arg4[%c0_8, %c0_9] : memref<1x32xf32, #tpu.memory_space<vmem>>, vector<1x32xf32>
    %24 = vector.broadcast %23 : vector<1x32xf32> to vector<8x32xf32>
    %25 = arith.addf %22, %24 : vector<8x32xf32>
    %26 = arith.truncf %25 : vector<8x32xf32> to vector<8x32xbf16>
    %c0_10 = arith.constant 0 : index
    %c0_11 = arith.constant 0 : index
    %27 = vector.load %arg5[%c0_10, %c0_11] : memref<32x96xbf16, #tpu.memory_space<vmem>>, vector<32x96xbf16>
    %cst_12 = arith.constant dense<0.000000e+00> : vector<8x96xf32>
    %28 = tpu.matmul %26, %27, %cst_12 {dimension_numbers = #tpu.dot_dimension_numbers<[1], [0], [0], [1], [0, 0, 1, 1], [], []>} : vector<8x32xbf16>, vector<32x96xbf16>, vector<8x96xf32> -> vector<8x96xf32>
    %c0_13 = arith.constant 0 : index
    %c0_14 = arith.constant 0 : index
    %29 = vector.load %arg6[%c0_13, %c0_14] : memref<1x96xf32, #tpu.memory_space<vmem>>, vector<1x96xf32>
    %30 = vector.broadcast %29 : vector<1x96xf32> to vector<8x96xf32>
    %31 = arith.addf %28, %30 : vector<8x96xf32>
    %32 = arith.index_cast %arg0 : i32 to index
    %c0_15 = arith.constant 0 : index
    %33 = vector.load %arg2[%32, %c0_15] : memref<4x8xf32, #tpu.memory_space<vmem>>, vector<1x8xf32>
    %cst_16 = arith.constant -1.000000e+09 : f32
    %34 = vector.broadcast %cst_16 : f32 to vector<1x8xf32>
    %35 = arith.mulf %33, %34 : vector<1x8xf32>
    %36 = vector.extract_strided_slice %31 {offsets = [0, 0], sizes = [8, 8], strides = [1, 1]} : vector<8x96xf32> to vector<8x8xf32>
    %37 = vector.extract_strided_slice %31 {offsets = [0, 32], sizes = [8, 8], strides = [1, 1]} : vector<8x96xf32> to vector<8x8xf32>
    %38 = vector.extract_strided_slice %31 {offsets = [0, 64], sizes = [8, 8], strides = [1, 1]} : vector<8x96xf32> to vector<8x8xf32>
    %39 = arith.truncf %36 : vector<8x8xf32> to vector<8x8xbf16>
    %40 = arith.truncf %37 : vector<8x8xf32> to vector<8x8xbf16>
    %41 = tpu.transpose %40, [1, 0] : vector<8x8xbf16> -> vector<8x8xbf16>
    %cst_17 = arith.constant dense<0.000000e+00> : vector<8x8xf32>
    %42 = tpu.matmul %39, %41, %cst_17 {dimension_numbers = #tpu.dot_dimension_numbers<[1], [0], [0], [1], [0, 0, 1, 1], [], []>} : vector<8x8xbf16>, vector<8x8xbf16>, vector<8x8xf32> -> vector<8x8xf32>
    %cst_18 = arith.constant 0.353553385 : f32
    %43 = vector.broadcast %cst_18 : f32 to vector<8x8xf32>
    %44 = arith.mulf %42, %43 : vector<8x8xf32>
    %45 = vector.broadcast %35 : vector<1x8xf32> to vector<8x8xf32>
    %46 = arith.addf %44, %45 : vector<8x8xf32>
    %cst_19 = arith.constant dense<0xFF800000> : vector<8xf32>
    %47 = vector.multi_reduction <maximumf>, %46, %cst_19 [1] : vector<8x8xf32> to vector<8xf32>
    %48 = vector.shape_cast %47 : vector<8xf32> to vector<8x1xf32>
    %49 = vector.broadcast %48 : vector<8x1xf32> to vector<8x8xf32>
    %50 = arith.subf %46, %49 : vector<8x8xf32>
    %51 = math.exp %50 : vector<8x8xf32>
    %cst_20 = arith.constant dense<0.000000e+00> : vector<8xf32>
    %52 = vector.multi_reduction <add>, %51, %cst_20 [1] : vector<8x8xf32> to vector<8xf32>
    %53 = vector.shape_cast %52 : vector<8xf32> to vector<8x1xf32>
    %54 = tpu.reciprocal %53 {approx = true} : vector<8x1xf32> -> vector<8x1xf32>
    %55 = vector.broadcast %54 : vector<8x1xf32> to vector<8x8xf32>
    %56 = arith.mulf %51, %55 : vector<8x8xf32>
    %57 = arith.truncf %56 : vector<8x8xf32> to vector<8x8xbf16>
    %58 = arith.truncf %38 : vector<8x8xf32> to vector<8x8xbf16>
    %cst_21 = arith.constant dense<0.000000e+00> : vector<8x8xf32>
    %59 = tpu.matmul %57, %58, %cst_21 {dimension_numbers = #tpu.dot_dimension_numbers<[1], [0], [0], [1], [0, 0, 1, 1], [], []>} : vector<8x8xbf16>, vector<8x8xbf16>, vector<8x8xf32> -> vector<8x8xf32>
    %60 = vector.extract_strided_slice %31 {offsets = [0, 8], sizes = [8, 8], strides = [1, 1]} : vector<8x96xf32> to vector<8x8xf32>
    %61 = vector.extract_strided_slice %31 {offsets = [0, 40], sizes = [8, 8], strides = [1, 1]} : vector<8x96xf32> to vector<8x8xf32>
    %62 = vector.extract_strided_slice %31 {offsets = [0, 72], sizes = [8, 8], strides = [1, 1]} : vector<8x96xf32> to vector<8x8xf32>
    %63 = arith.truncf %60 : vector<8x8xf32> to vector<8x8xbf16>
    %64 = arith.truncf %61 : vector<8x8xf32> to vector<8x8xbf16>
    %65 = tpu.transpose %64, [1, 0] : vector<8x8xbf16> -> vector<8x8xbf16>
    %cst_22 = arith.constant dense<0.000000e+00> : vector<8x8xf32>
    %66 = tpu.matmul %63, %65, %cst_22 {dimension_numbers = #tpu.dot_dimension_numbers<[1], [0], [0], [1], [0, 0, 1, 1], [], []>} : vector<8x8xbf16>, vector<8x8xbf16>, vector<8x8xf32> -> vector<8x8xf32>
    %cst_23 = arith.constant 0.353553385 : f32
    %67 = vector.broadcast %cst_23 : f32 to vector<8x8xf32>
    %68 = arith.mulf %66, %67 : vector<8x8xf32>
    %69 = vector.broadcast %35 : vector<1x8xf32> to vector<8x8xf32>
    %70 = arith.addf %68, %69 : vector<8x8xf32>
    %cst_24 = arith.constant dense<0xFF800000> : vector<8xf32>
    %71 = vector.multi_reduction <maximumf>, %70, %cst_24 [1] : vector<8x8xf32> to vector<8xf32>
    %72 = vector.shape_cast %71 : vector<8xf32> to vector<8x1xf32>
    %73 = vector.broadcast %72 : vector<8x1xf32> to vector<8x8xf32>
    %74 = arith.subf %70, %73 : vector<8x8xf32>
    %75 = math.exp %74 : vector<8x8xf32>
    %cst_25 = arith.constant dense<0.000000e+00> : vector<8xf32>
    %76 = vector.multi_reduction <add>, %75, %cst_25 [1] : vector<8x8xf32> to vector<8xf32>
    %77 = vector.shape_cast %76 : vector<8xf32> to vector<8x1xf32>
    %78 = tpu.reciprocal %77 {approx = true} : vector<8x1xf32> -> vector<8x1xf32>
    %79 = vector.broadcast %78 : vector<8x1xf32> to vector<8x8xf32>
    %80 = arith.mulf %75, %79 : vector<8x8xf32>
    %81 = arith.truncf %80 : vector<8x8xf32> to vector<8x8xbf16>
    %82 = arith.truncf %62 : vector<8x8xf32> to vector<8x8xbf16>
    %cst_26 = arith.constant dense<0.000000e+00> : vector<8x8xf32>
    %83 = tpu.matmul %81, %82, %cst_26 {dimension_numbers = #tpu.dot_dimension_numbers<[1], [0], [0], [1], [0, 0, 1, 1], [], []>} : vector<8x8xbf16>, vector<8x8xbf16>, vector<8x8xf32> -> vector<8x8xf32>
    %84 = vector.extract_strided_slice %31 {offsets = [0, 16], sizes = [8, 8], strides = [1, 1]} : vector<8x96xf32> to vector<8x8xf32>
    %85 = vector.extract_strided_slice %31 {offsets = [0, 48], sizes = [8, 8], strides = [1, 1]} : vector<8x96xf32> to vector<8x8xf32>
    %86 = vector.extract_strided_slice %31 {offsets = [0, 80], sizes = [8, 8], strides = [1, 1]} : vector<8x96xf32> to vector<8x8xf32>
    %87 = arith.truncf %84 : vector<8x8xf32> to vector<8x8xbf16>
    %88 = arith.truncf %85 : vector<8x8xf32> to vector<8x8xbf16>
    %89 = tpu.transpose %88, [1, 0] : vector<8x8xbf16> -> vector<8x8xbf16>
    %cst_27 = arith.constant dense<0.000000e+00> : vector<8x8xf32>
    %90 = tpu.matmul %87, %89, %cst_27 {dimension_numbers = #tpu.dot_dimension_numbers<[1], [0], [0], [1], [0, 0, 1, 1], [], []>} : vector<8x8xbf16>, vector<8x8xbf16>, vector<8x8xf32> -> vector<8x8xf32>
    %cst_28 = arith.constant 0.353553385 : f32
    %91 = vector.broadcast %cst_28 : f32 to vector<8x8xf32>
    %92 = arith.mulf %90, %91 : vector<8x8xf32>
    %93 = vector.broadcast %35 : vector<1x8xf32> to vector<8x8xf32>
    %94 = arith.addf %92, %93 : vector<8x8xf32>
    %cst_29 = arith.constant dense<0xFF800000> : vector<8xf32>
    %95 = vector.multi_reduction <maximumf>, %94, %cst_29 [1] : vector<8x8xf32> to vector<8xf32>
    %96 = vector.shape_cast %95 : vector<8xf32> to vector<8x1xf32>
    %97 = vector.broadcast %96 : vector<8x1xf32> to vector<8x8xf32>
    %98 = arith.subf %94, %97 : vector<8x8xf32>
    %99 = math.exp %98 : vector<8x8xf32>
    %cst_30 = arith.constant dense<0.000000e+00> : vector<8xf32>
    %100 = vector.multi_reduction <add>, %99, %cst_30 [1] : vector<8x8xf32> to vector<8xf32>
    %101 = vector.shape_cast %100 : vector<8xf32> to vector<8x1xf32>
    %102 = tpu.reciprocal %101 {approx = true} : vector<8x1xf32> -> vector<8x1xf32>
    %103 = vector.broadcast %102 : vector<8x1xf32> to vector<8x8xf32>
    %104 = arith.mulf %99, %103 : vector<8x8xf32>
    %105 = arith.truncf %104 : vector<8x8xf32> to vector<8x8xbf16>
    %106 = arith.truncf %86 : vector<8x8xf32> to vector<8x8xbf16>
    %cst_31 = arith.constant dense<0.000000e+00> : vector<8x8xf32>
    %107 = tpu.matmul %105, %106, %cst_31 {dimension_numbers = #tpu.dot_dimension_numbers<[1], [0], [0], [1], [0, 0, 1, 1], [], []>} : vector<8x8xbf16>, vector<8x8xbf16>, vector<8x8xf32> -> vector<8x8xf32>
    %108 = vector.extract_strided_slice %31 {offsets = [0, 24], sizes = [8, 8], strides = [1, 1]} : vector<8x96xf32> to vector<8x8xf32>
    %109 = vector.extract_strided_slice %31 {offsets = [0, 56], sizes = [8, 8], strides = [1, 1]} : vector<8x96xf32> to vector<8x8xf32>
    %110 = vector.extract_strided_slice %31 {offsets = [0, 88], sizes = [8, 8], strides = [1, 1]} : vector<8x96xf32> to vector<8x8xf32>
    %111 = arith.truncf %108 : vector<8x8xf32> to vector<8x8xbf16>
    %112 = arith.truncf %109 : vector<8x8xf32> to vector<8x8xbf16>
    %113 = tpu.transpose %112, [1, 0] : vector<8x8xbf16> -> vector<8x8xbf16>
    %cst_32 = arith.constant dense<0.000000e+00> : vector<8x8xf32>
    %114 = tpu.matmul %111, %113, %cst_32 {dimension_numbers = #tpu.dot_dimension_numbers<[1], [0], [0], [1], [0, 0, 1, 1], [], []>} : vector<8x8xbf16>, vector<8x8xbf16>, vector<8x8xf32> -> vector<8x8xf32>
    %cst_33 = arith.constant 0.353553385 : f32
    %115 = vector.broadcast %cst_33 : f32 to vector<8x8xf32>
    %116 = arith.mulf %114, %115 : vector<8x8xf32>
    %117 = vector.broadcast %35 : vector<1x8xf32> to vector<8x8xf32>
    %118 = arith.addf %116, %117 : vector<8x8xf32>
    %cst_34 = arith.constant dense<0xFF800000> : vector<8xf32>
    %119 = vector.multi_reduction <maximumf>, %118, %cst_34 [1] : vector<8x8xf32> to vector<8xf32>
    %120 = vector.shape_cast %119 : vector<8xf32> to vector<8x1xf32>
    %121 = vector.broadcast %120 : vector<8x1xf32> to vector<8x8xf32>
    %122 = arith.subf %118, %121 : vector<8x8xf32>
    %123 = math.exp %122 : vector<8x8xf32>
    %cst_35 = arith.constant dense<0.000000e+00> : vector<8xf32>
    %124 = vector.multi_reduction <add>, %123, %cst_35 [1] : vector<8x8xf32> to vector<8xf32>
    %125 = vector.shape_cast %124 : vector<8xf32> to vector<8x1xf32>
    %126 = tpu.reciprocal %125 {approx = true} : vector<8x1xf32> -> vector<8x1xf32>
    %127 = vector.broadcast %126 : vector<8x1xf32> to vector<8x8xf32>
    %128 = arith.mulf %123, %127 : vector<8x8xf32>
    %129 = arith.truncf %128 : vector<8x8xf32> to vector<8x8xbf16>
    %130 = arith.truncf %110 : vector<8x8xf32> to vector<8x8xbf16>
    %cst_36 = arith.constant dense<0.000000e+00> : vector<8x8xf32>
    %131 = tpu.matmul %129, %130, %cst_36 {dimension_numbers = #tpu.dot_dimension_numbers<[1], [0], [0], [1], [0, 0, 1, 1], [], []>} : vector<8x8xbf16>, vector<8x8xbf16>, vector<8x8xf32> -> vector<8x8xf32>
    %132 = tpu.concatenate %59, %83, %107, %131 in 1 : vector<8x8xf32>, vector<8x8xf32>, vector<8x8xf32>, vector<8x8xf32> -> vector<8x32xf32>
    %133 = arith.truncf %132 : vector<8x32xf32> to vector<8x32xbf16>
    %c0_37 = arith.constant 0 : index
    %c0_38 = arith.constant 0 : index
    %134 = vector.load %arg7[%c0_37, %c0_38] : memref<32x32xbf16, #tpu.memory_space<vmem>>, vector<32x32xbf16>
    %cst_39 = arith.constant dense<0.000000e+00> : vector<8x32xf32>
    %135 = tpu.matmul %133, %134, %cst_39 {dimension_numbers = #tpu.dot_dimension_numbers<[1], [0], [0], [1], [0, 0, 1, 1], [], []>} : vector<8x32xbf16>, vector<32x32xbf16>, vector<8x32xf32> -> vector<8x32xf32>
    %c0_40 = arith.constant 0 : index
    %c0_41 = arith.constant 0 : index
    %136 = vector.load %arg8[%c0_40, %c0_41] : memref<1x32xf32, #tpu.memory_space<vmem>>, vector<1x32xf32>
    %137 = vector.broadcast %136 : vector<1x32xf32> to vector<8x32xf32>
    %138 = arith.addf %135, %137 : vector<8x32xf32>
    %139 = arith.addf %1, %138 : vector<8x32xf32>
    %140 = arith.truncf %139 : vector<8x32xf32> to vector<8x32xbf16>
    %c0_42 = arith.constant 0 : index
    %c0_43 = arith.constant 0 : index
    %141 = vector.load %arg9[%c0_42, %c0_43] : memref<32x64xbf16, #tpu.memory_space<vmem>>, vector<32x64xbf16>
    %cst_44 = arith.constant dense<0.000000e+00> : vector<8x64xf32>
    %142 = tpu.matmul %140, %141, %cst_44 {dimension_numbers = #tpu.dot_dimension_numbers<[1], [0], [0], [1], [0, 0, 1, 1], [], []>} : vector<8x32xbf16>, vector<32x64xbf16>, vector<8x64xf32> -> vector<8x64xf32>
    %c0_45 = arith.constant 0 : index
    %c0_46 = arith.constant 0 : index
    %143 = vector.load %arg10[%c0_45, %c0_46] : memref<1x64xf32, #tpu.memory_space<vmem>>, vector<1x64xf32>
    %144 = vector.broadcast %143 : vector<1x64xf32> to vector<8x64xf32>
    %145 = arith.addf %142, %144 : vector<8x64xf32>
    %cst_47 = arith.constant 0.000000e+00 : f32
    %146 = vector.broadcast %cst_47 : f32 to vector<8x64xf32>
    %147 = arith.maximumf %145, %146 : vector<8x64xf32>
    %148 = arith.truncf %147 : vector<8x64xf32> to vector<8x64xbf16>
    %c0_48 = arith.constant 0 : index
    %c0_49 = arith.constant 0 : index
    %149 = vector.load %arg11[%c0_48, %c0_49] : memref<64x32xbf16, #tpu.memory_space<vmem>>, vector<64x32xbf16>
    %cst_50 = arith.constant dense<0.000000e+00> : vector<8x32xf32>
    %150 = tpu.matmul %148, %149, %cst_50 {dimension_numbers = #tpu.dot_dimension_numbers<[1], [0], [0], [1], [0, 0, 1, 1], [], []>} : vector<8x64xbf16>, vector<64x32xbf16>, vector<8x32xf32> -> vector<8x32xf32>
    %c0_51 = arith.constant 0 : index
    %c0_52 = arith.constant 0 : index
    %151 = vector.load %arg12[%c0_51, %c0_52] : memref<1x32xf32, #tpu.memory_space<vmem>>, vector<1x32xf32>
    %152 = vector.broadcast %151 : vector<1x32xf32> to vector<8x32xf32>
    %153 = arith.addf %150, %152 : vector<8x32xf32>
    %154 = arith.addf %139, %153 : vector<8x32xf32>
    %cst_53 = arith.constant dense<0.000000e+00> : vector<8xf32>
    %155 = vector.multi_reduction <add>, %154, %cst_53 [1] : vector<8x32xf32> to vector<8xf32>
    %156 = vector.shape_cast %155 : vector<8xf32> to vector<8x1xf32>
    %cst_54 = arith.constant 3.200000e+01 : f32
    %157 = vector.broadcast %cst_54 : f32 to vector<8x1xf32>
    %158 = arith.divf %156, %157 : vector<8x1xf32>
    %159 = vector.broadcast %158 : vector<8x1xf32> to vector<8x32xf32>
    %160 = arith.subf %154, %159 : vector<8x32xf32>
    %161 = arith.mulf %160, %160 : vector<8x32xf32>
    %cst_55 = arith.constant dense<0.000000e+00> : vector<8xf32>
    %162 = vector.multi_reduction <add>, %161, %cst_55 [1] : vector<8x32xf32> to vector<8xf32>
    %163 = vector.shape_cast %162 : vector<8xf32> to vector<8x1xf32>
    %cst_56 = arith.constant 3.200000e+01 : f32
    %164 = vector.broadcast %cst_56 : f32 to vector<8x1xf32>
    %165 = arith.divf %163, %164 : vector<8x1xf32>
    %166 = vector.broadcast %158 : vector<8x1xf32> to vector<8x32xf32>
    %167 = arith.subf %154, %166 : vector<8x32xf32>
    %cst_57 = arith.constant 9.99999974E-6 : f32
    %168 = vector.broadcast %cst_57 : f32 to vector<8x1xf32>
    %169 = arith.addf %165, %168 : vector<8x1xf32>
    %170 = math.rsqrt %169 : vector<8x1xf32>
    %171 = vector.broadcast %170 : vector<8x1xf32> to vector<8x32xf32>
    %172 = arith.mulf %167, %171 : vector<8x32xf32>
    %c0_58 = arith.constant 0 : index
    %c0_59 = arith.constant 0 : index
    %173 = vector.load %arg13[%c0_58, %c0_59] : memref<1x32xf32, #tpu.memory_space<vmem>>, vector<1x32xf32>
    %174 = vector.broadcast %173 : vector<1x32xf32> to vector<8x32xf32>
    %175 = arith.mulf %172, %174 : vector<8x32xf32>
    %c0_60 = arith.constant 0 : index
    %c0_61 = arith.constant 0 : index
    %176 = vector.load %arg14[%c0_60, %c0_61] : memref<1x32xf32, #tpu.memory_space<vmem>>, vector<1x32xf32>
    %177 = vector.broadcast %176 : vector<1x32xf32> to vector<8x32xf32>
    %178 = arith.addf %175, %177 : vector<8x32xf32>
    %c0_62 = arith.constant 0 : index
    %c0_63 = arith.constant 0 : index
    %c0_64 = arith.constant 0 : index
    %179 = vector.load %arg15[%c0_62, %c0_63, %c0_64] : memref<1x8x32xf32, #tpu.memory_space<vmem>>, vector<1x8x32xf32>
    %180 = vector.shape_cast %179 : vector<1x8x32xf32> to vector<8x32xf32>
    %181 = vector.shape_cast %178 : vector<8x32xf32> to vector<1x8x32xf32>
    tpu.vector_store %arg15[%c0_62, %c0_63, %c0_64], %181 {strides = array<i32>} : memref<1x8x32xf32, #tpu.memory_space<vmem>>, vector<1x8x32xf32>,
    return
  }
  func.func @transform_0(%arg0: i32) -> (i32, i32, i32) {
    %c0_i32 = arith.constant 0 : i32
    %c0_i32_0 = arith.constant 0 : i32
    %c0_i32_1 = arith.constant 0 : i32
    return %arg0, %c0_i32, %c0_i32_0 : i32, i32, i32
  }
  func.func @transform_1(%arg0: i32) -> (i32, i32) {
    %c0_i32 = arith.constant 0 : i32
    %c0_i32_0 = arith.constant 0 : i32
    %c0_i32_1 = arith.constant 0 : i32
    return %c0_i32, %c0_i32_0 : i32, i32
  }
  func.func @transform_2(%arg0: i32) -> (i32, i32) {
    %c0_i32 = arith.constant 0 : i32
    %c0_i32_0 = arith.constant 0 : i32
    %c0_i32_1 = arith.constant 0 : i32
    return %c0_i32, %c0_i32_0 : i32, i32
  }
  func.func @transform_3(%arg0: i32) -> (i32, i32) {
    %c0_i32 = arith.constant 0 : i32
    %c0_i32_0 = arith.constant 0 : i32
    %c0_i32_1 = arith.constant 0 : i32
    return %c0_i32, %c0_i32_0 : i32, i32
  }
  func.func @transform_4(%arg0: i32) -> (i32, i32) {
    %c0_i32 = arith.constant 0 : i32
    %c0_i32_0 = arith.constant 0 : i32
    %c0_i32_1 = arith.constant 0 : i32
    return %c0_i32, %c0_i32_0 : i32, i32
  }
  func.func @transform_5(%arg0: i32) -> (i32, i32) {
    %c0_i32 = arith.constant 0 : i32
    %c0_i32_0 = arith.constant 0 : i32
    %c0_i32_1 = arith.constant 0 : i32
    return %c0_i32, %c0_i32_0 : i32, i32
  }
  func.func @transform_6(%arg0: i32) -> (i32, i32) {
    %c0_i32 = arith.constant 0 : i32
    %c0_i32_0 = arith.constant 0 : i32
    %c0_i32_1 = arith.constant 0 : i32
    return %c0_i32, %c0_i32_0 : i32, i32
  }
  func.func @transform_7(%arg0: i32) -> (i32, i32) {
    %c0_i32 = arith.constant 0 : i32
    %c0_i32_0 = arith.constant 0 : i32
    %c0_i32_1 = arith.constant 0 : i32
    return %c0_i32, %c0_i32_0 : i32, i32
  }
  func.func @transform_8(%arg0: i32) -> (i32, i32) {
    %c0_i32 = arith.constant 0 : i32
    %c0_i32_0 = arith.constant 0 : i32
    %c0_i32_1 = arith.constant 0 : i32
    return %c0_i32, %c0_i32_0 : i32, i32
  }
  func.func @transform_9(%arg0: i32) -> (i32, i32) {
    %c0_i32 = arith.constant 0 : i32
    %c0_i32_0 = arith.constant 0 : i32
    %c0_i32_1 = arith.constant 0 : i32
    return %c0_i32, %c0_i32_0 : i32, i32
  }
  func.func @transform_10(%arg0: i32) -> (i32, i32) {
    %c0_i32 = arith.constant 0 : i32
    %c0_i32_0 = arith.constant 0 : i32
    %c0_i32_1 = arith.constant 0 : i32
    return %c0_i32, %c0_i32_0 : i32, i32
  }
  func.func @transform_11(%arg0: i32) -> (i32, i32) {
    %c0_i32 = arith.constant 0 : i32
    %c0_i32_0 = arith.constant 0 : i32
    %c0_i32_1 = arith.constant 0 : i32
    return %c0_i32, %c0_i32_0 : i32, i32
  }
  func.func @transform_12(%arg0: i32) -> (i32, i32) {
    %c0_i32 = arith.constant 0 : i32
    %c0_i32_0 = arith.constant 0 : i32
    %c0_i32_1 = arith.constant 0 : i32
    return %c0_i32, %c0_i32_0 : i32, i32
  }
  func.func @transform_13(%arg0: i32) -> (i32, i32) {
    %c0_i32 = arith.constant 0 : i32
    %c0_i32_0 = arith.constant 0 : i32
    %c0_i32_1 = arith.constant 0 : i32
    return %c0_i32, %c0_i32_0 : i32, i32
  }
  func.func @transform_14(%arg0: i32) -> (i32, i32, i32) {
    %c0_i32 = arith.constant 0 : i32
    %c0_i32_0 = arith.constant 0 : i32
    %c0_i32_1 = arith.constant 0 : i32
    return %arg0, %c0_i32, %c0_i32_0 : i32, i32, i32
  }
}

module attributes {stable_mosaic.version = 11 : i64} {
  func.func @_att_block_kernel(%arg0: i32, %arg1: memref<1x4x32xf32, #tpu.memory_space<vmem>>, %arg2: memref<4x4xf32, #tpu.memory_space<vmem>>, %arg3: memref<1x32xf32, #tpu.memory_space<vmem>>, %arg4: memref<1x32xf32, #tpu.memory_space<vmem>>, %arg5: memref<32x96xbf16, #tpu.memory_space<vmem>>, %arg6: memref<1x96xf32, #tpu.memory_space<vmem>>, %arg7: memref<32x32xbf16, #tpu.memory_space<vmem>>, %arg8: memref<1x32xf32, #tpu.memory_space<vmem>>, %arg9: memref<32x64xbf16, #tpu.memory_space<vmem>>, %arg10: memref<1x64xf32, #tpu.memory_space<vmem>>, %arg11: memref<64x32xbf16, #tpu.memory_space<vmem>>, %arg12: memref<1x32xf32, #tpu.memory_space<vmem>>, %arg13: memref<1x32xf32, #tpu.memory_space<vmem>>, %arg14: memref<1x32xf32, #tpu.memory_space<vmem>>, %arg15: memref<1x4x32xf32, #tpu.memory_space<vmem>>) attributes {dimension_semantics = [#tpu.dimension_semantics<parallel>], iteration_bounds = array<i64: 8>, scalar_prefetch = 0 : i64, scratch_operands = 0 : i64, tpu.core_type = #tpu.core_type<tc>, window_params = [{transform_indices = @transform_0, window_bounds = array<i64: 1, 4, 32>}, {pipeline_mode = #tpu.pipeline_mode<synchronous>, transform_indices = @transform_1, window_bounds = array<i64: 4, 4>}, {pipeline_mode = #tpu.pipeline_mode<synchronous>, transform_indices = @transform_2, window_bounds = array<i64: 1, 32>}, {pipeline_mode = #tpu.pipeline_mode<synchronous>, transform_indices = @transform_3, window_bounds = array<i64: 1, 32>}, {pipeline_mode = #tpu.pipeline_mode<synchronous>, transform_indices = @transform_4, window_bounds = array<i64: 32, 96>}, {pipeline_mode = #tpu.pipeline_mode<synchronous>, transform_indices = @transform_5, window_bounds = array<i64: 1, 96>}, {pipeline_mode = #tpu.pipeline_mode<synchronous>, transform_indices = @transform_6, window_bounds = array<i64: 32, 32>}, {pipeline_mode = #tpu.pipeline_mode<synchronous>, transform_indices = @transform_7, window_bounds = array<i64: 1, 32>}, {pipeline_mode = #tpu.pipeline_mode<synchronous>, transform_indices = @transform_8, window_bounds = array<i64: 32, 64>}, {pipeline_mode = #tpu.pipeline_mode<synchronous>, transform_indices = @transform_9, window_bounds = array<i64: 1, 64>}, {pipeline_mode = #tpu.pipeline_mode<synchronous>, transform_indices = @transform_10, window_bounds = array<i64: 64, 32>}, {pipeline_mode = #tpu.pipeline_mode<synchronous>, transform_indices = @transform_11, window_bounds = array<i64: 1, 32>}, {pipeline_mode = #tpu.pipeline_mode<synchronous>, transform_indices = @transform_12, window_bounds = array<i64: 1, 32>}, {pipeline_mode = #tpu.pipeline_mode<synchronous>, transform_indices = @transform_13, window_bounds = array<i64: 1, 32>}, {transform_indices = @transform_14, window_bounds = array<i64: 1, 4, 32>}]} {
    %c0 = arith.constant 0 : index
    %c0_0 = arith.constant 0 : index
    %c0_1 = arith.constant 0 : index
    %0 = vector.load %arg1[%c0, %c0_0, %c0_1] : memref<1x4x32xf32, #tpu.memory_space<vmem>>, vector<1x4x32xf32>
    %1 = vector.shape_cast %0 : vector<1x4x32xf32> to vector<4x32xf32>
    %cst = arith.constant dense<0.000000e+00> : vector<4xf32>
    %2 = vector.multi_reduction <add>, %1, %cst [1] : vector<4x32xf32> to vector<4xf32>
    %3 = vector.shape_cast %2 : vector<4xf32> to vector<4x1xf32>
    %cst_2 = arith.constant 3.200000e+01 : f32
    %4 = vector.broadcast %cst_2 : f32 to vector<4x1xf32>
    %5 = arith.divf %3, %4 : vector<4x1xf32>
    %6 = vector.broadcast %5 : vector<4x1xf32> to vector<4x32xf32>
    %7 = arith.subf %1, %6 : vector<4x32xf32>
    %8 = arith.mulf %7, %7 : vector<4x32xf32>
    %cst_3 = arith.constant dense<0.000000e+00> : vector<4xf32>
    %9 = vector.multi_reduction <add>, %8, %cst_3 [1] : vector<4x32xf32> to vector<4xf32>
    %10 = vector.shape_cast %9 : vector<4xf32> to vector<4x1xf32>
    %cst_4 = arith.constant 3.200000e+01 : f32
    %11 = vector.broadcast %cst_4 : f32 to vector<4x1xf32>
    %12 = arith.divf %10, %11 : vector<4x1xf32>
    %13 = vector.broadcast %5 : vector<4x1xf32> to vector<4x32xf32>
    %14 = arith.subf %1, %13 : vector<4x32xf32>
    %cst_5 = arith.constant 9.99999974E-6 : f32
    %15 = vector.broadcast %cst_5 : f32 to vector<4x1xf32>
    %16 = arith.addf %12, %15 : vector<4x1xf32>
    %17 = math.rsqrt %16 : vector<4x1xf32>
    %18 = vector.broadcast %17 : vector<4x1xf32> to vector<4x32xf32>
    %19 = arith.mulf %14, %18 : vector<4x32xf32>
    %c0_6 = arith.constant 0 : index
    %c0_7 = arith.constant 0 : index
    %20 = vector.load %arg3[%c0_6, %c0_7] : memref<1x32xf32, #tpu.memory_space<vmem>>, vector<1x32xf32>
    %21 = vector.broadcast %20 : vector<1x32xf32> to vector<4x32xf32>
    %22 = arith.mulf %19, %21 : vector<4x32xf32>
    %c0_8 = arith.constant 0 : index
    %c0_9 = arith.constant 0 : index
    %23 = vector.load %arg4[%c0_8, %c0_9] : memref<1x32xf32, #tpu.memory_space<vmem>>, vector<1x32xf32>
    %24 = vector.broadcast %23 : vector<1x32xf32> to vector<4x32xf32>
    %25 = arith.addf %22, %24 : vector<4x32xf32>
    %26 = arith.truncf %25 : vector<4x32xf32> to vector<4x32xbf16>
    %c0_10 = arith.constant 0 : index
    %c0_11 = arith.constant 0 : index
    %27 = vector.load %arg5[%c0_10, %c0_11] : memref<32x96xbf16, #tpu.memory_space<vmem>>, vector<32x96xbf16>
    %cst_12 = arith.constant dense<0.000000e+00> : vector<4x96xf32>
    %28 = tpu.matmul %26, %27, %cst_12 {dimension_numbers = #tpu.dot_dimension_numbers<[1], [0], [0], [1], [0, 0, 1, 1], [], []>} : vector<4x32xbf16>, vector<32x96xbf16>, vector<4x96xf32> -> vector<4x96xf32>
    %c0_13 = arith.constant 0 : index
    %c0_14 = arith.constant 0 : index
    %29 = vector.load %arg6[%c0_13, %c0_14] : memref<1x96xf32, #tpu.memory_space<vmem>>, vector<1x96xf32>
    %30 = vector.broadcast %29 : vector<1x96xf32> to vector<4x96xf32>
    %31 = arith.addf %28, %30 : vector<4x96xf32>
    %c0_15 = arith.constant 0 : index
    %c0_16 = arith.constant 0 : index
    %32 = vector.load %arg2[%c0_15, %c0_16] : memref<4x4xf32, #tpu.memory_space<vmem>>, vector<4x4xf32>
    %cst_17 = arith.constant -1.000000e+09 : f32
    %33 = vector.broadcast %cst_17 : f32 to vector<4x4xf32>
    %34 = arith.mulf %32, %33 : vector<4x4xf32>
    %35 = vector.extract_strided_slice %31 {offsets = [0, 0], sizes = [4, 8], strides = [1, 1]} : vector<4x96xf32> to vector<4x8xf32>
    %36 = vector.extract_strided_slice %31 {offsets = [0, 32], sizes = [4, 8], strides = [1, 1]} : vector<4x96xf32> to vector<4x8xf32>
    %37 = vector.extract_strided_slice %31 {offsets = [0, 64], sizes = [4, 8], strides = [1, 1]} : vector<4x96xf32> to vector<4x8xf32>
    %38 = arith.truncf %35 : vector<4x8xf32> to vector<4x8xbf16>
    %39 = arith.truncf %36 : vector<4x8xf32> to vector<4x8xbf16>
    %40 = tpu.transpose %39, [1, 0] : vector<4x8xbf16> -> vector<8x4xbf16>
    %cst_18 = arith.constant dense<0.000000e+00> : vector<4x4xf32>
    %41 = tpu.matmul %38, %40, %cst_18 {dimension_numbers = #tpu.dot_dimension_numbers<[1], [0], [0], [1], [0, 0, 1, 1], [], []>} : vector<4x8xbf16>, vector<8x4xbf16>, vector<4x4xf32> -> vector<4x4xf32>
    %cst_19 = arith.constant 0.353553385 : f32
    %42 = vector.broadcast %cst_19 : f32 to vector<4x4xf32>
    %43 = arith.mulf %41, %42 : vector<4x4xf32>
    %44 = arith.addf %43, %34 : vector<4x4xf32>
    %cst_20 = arith.constant dense<0xFF800000> : vector<4xf32>
    %45 = vector.multi_reduction <maximumf>, %44, %cst_20 [1] : vector<4x4xf32> to vector<4xf32>
    %46 = vector.shape_cast %45 : vector<4xf32> to vector<4x1xf32>
    %47 = vector.broadcast %46 : vector<4x1xf32> to vector<4x4xf32>
    %48 = arith.subf %44, %47 : vector<4x4xf32>
    %49 = math.exp %48 : vector<4x4xf32>
    %cst_21 = arith.constant dense<0.000000e+00> : vector<4xf32>
    %50 = vector.multi_reduction <add>, %49, %cst_21 [1] : vector<4x4xf32> to vector<4xf32>
    %51 = vector.shape_cast %50 : vector<4xf32> to vector<4x1xf32>
    %52 = tpu.reciprocal %51 {approx = true} : vector<4x1xf32> -> vector<4x1xf32>
    %53 = vector.broadcast %52 : vector<4x1xf32> to vector<4x4xf32>
    %54 = arith.mulf %49, %53 : vector<4x4xf32>
    %55 = arith.truncf %54 : vector<4x4xf32> to vector<4x4xbf16>
    %56 = arith.truncf %37 : vector<4x8xf32> to vector<4x8xbf16>
    %cst_22 = arith.constant dense<0.000000e+00> : vector<4x8xf32>
    %57 = tpu.matmul %55, %56, %cst_22 {dimension_numbers = #tpu.dot_dimension_numbers<[1], [0], [0], [1], [0, 0, 1, 1], [], []>} : vector<4x4xbf16>, vector<4x8xbf16>, vector<4x8xf32> -> vector<4x8xf32>
    %58 = vector.extract_strided_slice %31 {offsets = [0, 8], sizes = [4, 8], strides = [1, 1]} : vector<4x96xf32> to vector<4x8xf32>
    %59 = vector.extract_strided_slice %31 {offsets = [0, 40], sizes = [4, 8], strides = [1, 1]} : vector<4x96xf32> to vector<4x8xf32>
    %60 = vector.extract_strided_slice %31 {offsets = [0, 72], sizes = [4, 8], strides = [1, 1]} : vector<4x96xf32> to vector<4x8xf32>
    %61 = arith.truncf %58 : vector<4x8xf32> to vector<4x8xbf16>
    %62 = arith.truncf %59 : vector<4x8xf32> to vector<4x8xbf16>
    %63 = tpu.transpose %62, [1, 0] : vector<4x8xbf16> -> vector<8x4xbf16>
    %cst_23 = arith.constant dense<0.000000e+00> : vector<4x4xf32>
    %64 = tpu.matmul %61, %63, %cst_23 {dimension_numbers = #tpu.dot_dimension_numbers<[1], [0], [0], [1], [0, 0, 1, 1], [], []>} : vector<4x8xbf16>, vector<8x4xbf16>, vector<4x4xf32> -> vector<4x4xf32>
    %cst_24 = arith.constant 0.353553385 : f32
    %65 = vector.broadcast %cst_24 : f32 to vector<4x4xf32>
    %66 = arith.mulf %64, %65 : vector<4x4xf32>
    %67 = arith.addf %66, %34 : vector<4x4xf32>
    %cst_25 = arith.constant dense<0xFF800000> : vector<4xf32>
    %68 = vector.multi_reduction <maximumf>, %67, %cst_25 [1] : vector<4x4xf32> to vector<4xf32>
    %69 = vector.shape_cast %68 : vector<4xf32> to vector<4x1xf32>
    %70 = vector.broadcast %69 : vector<4x1xf32> to vector<4x4xf32>
    %71 = arith.subf %67, %70 : vector<4x4xf32>
    %72 = math.exp %71 : vector<4x4xf32>
    %cst_26 = arith.constant dense<0.000000e+00> : vector<4xf32>
    %73 = vector.multi_reduction <add>, %72, %cst_26 [1] : vector<4x4xf32> to vector<4xf32>
    %74 = vector.shape_cast %73 : vector<4xf32> to vector<4x1xf32>
    %75 = tpu.reciprocal %74 {approx = true} : vector<4x1xf32> -> vector<4x1xf32>
    %76 = vector.broadcast %75 : vector<4x1xf32> to vector<4x4xf32>
    %77 = arith.mulf %72, %76 : vector<4x4xf32>
    %78 = arith.truncf %77 : vector<4x4xf32> to vector<4x4xbf16>
    %79 = arith.truncf %60 : vector<4x8xf32> to vector<4x8xbf16>
    %cst_27 = arith.constant dense<0.000000e+00> : vector<4x8xf32>
    %80 = tpu.matmul %78, %79, %cst_27 {dimension_numbers = #tpu.dot_dimension_numbers<[1], [0], [0], [1], [0, 0, 1, 1], [], []>} : vector<4x4xbf16>, vector<4x8xbf16>, vector<4x8xf32> -> vector<4x8xf32>
    %81 = vector.extract_strided_slice %31 {offsets = [0, 16], sizes = [4, 8], strides = [1, 1]} : vector<4x96xf32> to vector<4x8xf32>
    %82 = vector.extract_strided_slice %31 {offsets = [0, 48], sizes = [4, 8], strides = [1, 1]} : vector<4x96xf32> to vector<4x8xf32>
    %83 = vector.extract_strided_slice %31 {offsets = [0, 80], sizes = [4, 8], strides = [1, 1]} : vector<4x96xf32> to vector<4x8xf32>
    %84 = arith.truncf %81 : vector<4x8xf32> to vector<4x8xbf16>
    %85 = arith.truncf %82 : vector<4x8xf32> to vector<4x8xbf16>
    %86 = tpu.transpose %85, [1, 0] : vector<4x8xbf16> -> vector<8x4xbf16>
    %cst_28 = arith.constant dense<0.000000e+00> : vector<4x4xf32>
    %87 = tpu.matmul %84, %86, %cst_28 {dimension_numbers = #tpu.dot_dimension_numbers<[1], [0], [0], [1], [0, 0, 1, 1], [], []>} : vector<4x8xbf16>, vector<8x4xbf16>, vector<4x4xf32> -> vector<4x4xf32>
    %cst_29 = arith.constant 0.353553385 : f32
    %88 = vector.broadcast %cst_29 : f32 to vector<4x4xf32>
    %89 = arith.mulf %87, %88 : vector<4x4xf32>
    %90 = arith.addf %89, %34 : vector<4x4xf32>
    %cst_30 = arith.constant dense<0xFF800000> : vector<4xf32>
    %91 = vector.multi_reduction <maximumf>, %90, %cst_30 [1] : vector<4x4xf32> to vector<4xf32>
    %92 = vector.shape_cast %91 : vector<4xf32> to vector<4x1xf32>
    %93 = vector.broadcast %92 : vector<4x1xf32> to vector<4x4xf32>
    %94 = arith.subf %90, %93 : vector<4x4xf32>
    %95 = math.exp %94 : vector<4x4xf32>
    %cst_31 = arith.constant dense<0.000000e+00> : vector<4xf32>
    %96 = vector.multi_reduction <add>, %95, %cst_31 [1] : vector<4x4xf32> to vector<4xf32>
    %97 = vector.shape_cast %96 : vector<4xf32> to vector<4x1xf32>
    %98 = tpu.reciprocal %97 {approx = true} : vector<4x1xf32> -> vector<4x1xf32>
    %99 = vector.broadcast %98 : vector<4x1xf32> to vector<4x4xf32>
    %100 = arith.mulf %95, %99 : vector<4x4xf32>
    %101 = arith.truncf %100 : vector<4x4xf32> to vector<4x4xbf16>
    %102 = arith.truncf %83 : vector<4x8xf32> to vector<4x8xbf16>
    %cst_32 = arith.constant dense<0.000000e+00> : vector<4x8xf32>
    %103 = tpu.matmul %101, %102, %cst_32 {dimension_numbers = #tpu.dot_dimension_numbers<[1], [0], [0], [1], [0, 0, 1, 1], [], []>} : vector<4x4xbf16>, vector<4x8xbf16>, vector<4x8xf32> -> vector<4x8xf32>
    %104 = vector.extract_strided_slice %31 {offsets = [0, 24], sizes = [4, 8], strides = [1, 1]} : vector<4x96xf32> to vector<4x8xf32>
    %105 = vector.extract_strided_slice %31 {offsets = [0, 56], sizes = [4, 8], strides = [1, 1]} : vector<4x96xf32> to vector<4x8xf32>
    %106 = vector.extract_strided_slice %31 {offsets = [0, 88], sizes = [4, 8], strides = [1, 1]} : vector<4x96xf32> to vector<4x8xf32>
    %107 = arith.truncf %104 : vector<4x8xf32> to vector<4x8xbf16>
    %108 = arith.truncf %105 : vector<4x8xf32> to vector<4x8xbf16>
    %109 = tpu.transpose %108, [1, 0] : vector<4x8xbf16> -> vector<8x4xbf16>
    %cst_33 = arith.constant dense<0.000000e+00> : vector<4x4xf32>
    %110 = tpu.matmul %107, %109, %cst_33 {dimension_numbers = #tpu.dot_dimension_numbers<[1], [0], [0], [1], [0, 0, 1, 1], [], []>} : vector<4x8xbf16>, vector<8x4xbf16>, vector<4x4xf32> -> vector<4x4xf32>
    %cst_34 = arith.constant 0.353553385 : f32
    %111 = vector.broadcast %cst_34 : f32 to vector<4x4xf32>
    %112 = arith.mulf %110, %111 : vector<4x4xf32>
    %113 = arith.addf %112, %34 : vector<4x4xf32>
    %cst_35 = arith.constant dense<0xFF800000> : vector<4xf32>
    %114 = vector.multi_reduction <maximumf>, %113, %cst_35 [1] : vector<4x4xf32> to vector<4xf32>
    %115 = vector.shape_cast %114 : vector<4xf32> to vector<4x1xf32>
    %116 = vector.broadcast %115 : vector<4x1xf32> to vector<4x4xf32>
    %117 = arith.subf %113, %116 : vector<4x4xf32>
    %118 = math.exp %117 : vector<4x4xf32>
    %cst_36 = arith.constant dense<0.000000e+00> : vector<4xf32>
    %119 = vector.multi_reduction <add>, %118, %cst_36 [1] : vector<4x4xf32> to vector<4xf32>
    %120 = vector.shape_cast %119 : vector<4xf32> to vector<4x1xf32>
    %121 = tpu.reciprocal %120 {approx = true} : vector<4x1xf32> -> vector<4x1xf32>
    %122 = vector.broadcast %121 : vector<4x1xf32> to vector<4x4xf32>
    %123 = arith.mulf %118, %122 : vector<4x4xf32>
    %124 = arith.truncf %123 : vector<4x4xf32> to vector<4x4xbf16>
    %125 = arith.truncf %106 : vector<4x8xf32> to vector<4x8xbf16>
    %cst_37 = arith.constant dense<0.000000e+00> : vector<4x8xf32>
    %126 = tpu.matmul %124, %125, %cst_37 {dimension_numbers = #tpu.dot_dimension_numbers<[1], [0], [0], [1], [0, 0, 1, 1], [], []>} : vector<4x4xbf16>, vector<4x8xbf16>, vector<4x8xf32> -> vector<4x8xf32>
    %127 = tpu.concatenate %57, %80, %103, %126 in 1 : vector<4x8xf32>, vector<4x8xf32>, vector<4x8xf32>, vector<4x8xf32> -> vector<4x32xf32>
    %128 = arith.truncf %127 : vector<4x32xf32> to vector<4x32xbf16>
    %c0_38 = arith.constant 0 : index
    %c0_39 = arith.constant 0 : index
    %129 = vector.load %arg7[%c0_38, %c0_39] : memref<32x32xbf16, #tpu.memory_space<vmem>>, vector<32x32xbf16>
    %cst_40 = arith.constant dense<0.000000e+00> : vector<4x32xf32>
    %130 = tpu.matmul %128, %129, %cst_40 {dimension_numbers = #tpu.dot_dimension_numbers<[1], [0], [0], [1], [0, 0, 1, 1], [], []>} : vector<4x32xbf16>, vector<32x32xbf16>, vector<4x32xf32> -> vector<4x32xf32>
    %c0_41 = arith.constant 0 : index
    %c0_42 = arith.constant 0 : index
    %131 = vector.load %arg8[%c0_41, %c0_42] : memref<1x32xf32, #tpu.memory_space<vmem>>, vector<1x32xf32>
    %132 = vector.broadcast %131 : vector<1x32xf32> to vector<4x32xf32>
    %133 = arith.addf %130, %132 : vector<4x32xf32>
    %134 = arith.addf %1, %133 : vector<4x32xf32>
    %135 = arith.truncf %134 : vector<4x32xf32> to vector<4x32xbf16>
    %c0_43 = arith.constant 0 : index
    %c0_44 = arith.constant 0 : index
    %136 = vector.load %arg9[%c0_43, %c0_44] : memref<32x64xbf16, #tpu.memory_space<vmem>>, vector<32x64xbf16>
    %cst_45 = arith.constant dense<0.000000e+00> : vector<4x64xf32>
    %137 = tpu.matmul %135, %136, %cst_45 {dimension_numbers = #tpu.dot_dimension_numbers<[1], [0], [0], [1], [0, 0, 1, 1], [], []>} : vector<4x32xbf16>, vector<32x64xbf16>, vector<4x64xf32> -> vector<4x64xf32>
    %c0_46 = arith.constant 0 : index
    %c0_47 = arith.constant 0 : index
    %138 = vector.load %arg10[%c0_46, %c0_47] : memref<1x64xf32, #tpu.memory_space<vmem>>, vector<1x64xf32>
    %139 = vector.broadcast %138 : vector<1x64xf32> to vector<4x64xf32>
    %140 = arith.addf %137, %139 : vector<4x64xf32>
    %cst_48 = arith.constant 0.000000e+00 : f32
    %141 = vector.broadcast %cst_48 : f32 to vector<4x64xf32>
    %142 = arith.maximumf %140, %141 : vector<4x64xf32>
    %143 = arith.truncf %142 : vector<4x64xf32> to vector<4x64xbf16>
    %c0_49 = arith.constant 0 : index
    %c0_50 = arith.constant 0 : index
    %144 = vector.load %arg11[%c0_49, %c0_50] : memref<64x32xbf16, #tpu.memory_space<vmem>>, vector<64x32xbf16>
    %cst_51 = arith.constant dense<0.000000e+00> : vector<4x32xf32>
    %145 = tpu.matmul %143, %144, %cst_51 {dimension_numbers = #tpu.dot_dimension_numbers<[1], [0], [0], [1], [0, 0, 1, 1], [], []>} : vector<4x64xbf16>, vector<64x32xbf16>, vector<4x32xf32> -> vector<4x32xf32>
    %c0_52 = arith.constant 0 : index
    %c0_53 = arith.constant 0 : index
    %146 = vector.load %arg12[%c0_52, %c0_53] : memref<1x32xf32, #tpu.memory_space<vmem>>, vector<1x32xf32>
    %147 = vector.broadcast %146 : vector<1x32xf32> to vector<4x32xf32>
    %148 = arith.addf %145, %147 : vector<4x32xf32>
    %149 = arith.addf %134, %148 : vector<4x32xf32>
    %cst_54 = arith.constant dense<0.000000e+00> : vector<4xf32>
    %150 = vector.multi_reduction <add>, %149, %cst_54 [1] : vector<4x32xf32> to vector<4xf32>
    %151 = vector.shape_cast %150 : vector<4xf32> to vector<4x1xf32>
    %cst_55 = arith.constant 3.200000e+01 : f32
    %152 = vector.broadcast %cst_55 : f32 to vector<4x1xf32>
    %153 = arith.divf %151, %152 : vector<4x1xf32>
    %154 = vector.broadcast %153 : vector<4x1xf32> to vector<4x32xf32>
    %155 = arith.subf %149, %154 : vector<4x32xf32>
    %156 = arith.mulf %155, %155 : vector<4x32xf32>
    %cst_56 = arith.constant dense<0.000000e+00> : vector<4xf32>
    %157 = vector.multi_reduction <add>, %156, %cst_56 [1] : vector<4x32xf32> to vector<4xf32>
    %158 = vector.shape_cast %157 : vector<4xf32> to vector<4x1xf32>
    %cst_57 = arith.constant 3.200000e+01 : f32
    %159 = vector.broadcast %cst_57 : f32 to vector<4x1xf32>
    %160 = arith.divf %158, %159 : vector<4x1xf32>
    %161 = vector.broadcast %153 : vector<4x1xf32> to vector<4x32xf32>
    %162 = arith.subf %149, %161 : vector<4x32xf32>
    %cst_58 = arith.constant 9.99999974E-6 : f32
    %163 = vector.broadcast %cst_58 : f32 to vector<4x1xf32>
    %164 = arith.addf %160, %163 : vector<4x1xf32>
    %165 = math.rsqrt %164 : vector<4x1xf32>
    %166 = vector.broadcast %165 : vector<4x1xf32> to vector<4x32xf32>
    %167 = arith.mulf %162, %166 : vector<4x32xf32>
    %c0_59 = arith.constant 0 : index
    %c0_60 = arith.constant 0 : index
    %168 = vector.load %arg13[%c0_59, %c0_60] : memref<1x32xf32, #tpu.memory_space<vmem>>, vector<1x32xf32>
    %169 = vector.broadcast %168 : vector<1x32xf32> to vector<4x32xf32>
    %170 = arith.mulf %167, %169 : vector<4x32xf32>
    %c0_61 = arith.constant 0 : index
    %c0_62 = arith.constant 0 : index
    %171 = vector.load %arg14[%c0_61, %c0_62] : memref<1x32xf32, #tpu.memory_space<vmem>>, vector<1x32xf32>
    %172 = vector.broadcast %171 : vector<1x32xf32> to vector<4x32xf32>
    %173 = arith.addf %170, %172 : vector<4x32xf32>
    %c0_63 = arith.constant 0 : index
    %c0_64 = arith.constant 0 : index
    %c0_65 = arith.constant 0 : index
    %174 = vector.load %arg15[%c0_63, %c0_64, %c0_65] : memref<1x4x32xf32, #tpu.memory_space<vmem>>, vector<1x4x32xf32>
    %175 = vector.shape_cast %174 : vector<1x4x32xf32> to vector<4x32xf32>
    %176 = vector.shape_cast %173 : vector<4x32xf32> to vector<1x4x32xf32>
    tpu.vector_store %arg15[%c0_63, %c0_64, %c0_65], %176 {strides = array<i32>} : memref<1x4x32xf32, #tpu.memory_space<vmem>>, vector<1x4x32xf32>,
    return
  }
  func.func @transform_0(%arg0: i32) -> (i32, i32, i32) {
    %c0_i32 = arith.constant 0 : i32
    %c0_i32_0 = arith.constant 0 : i32
    %c0_i32_1 = arith.constant 0 : i32
    return %arg0, %c0_i32, %c0_i32_0 : i32, i32, i32
  }
  func.func @transform_1(%arg0: i32) -> (i32, i32) {
    %c0_i32 = arith.constant 0 : i32
    %c0_i32_0 = arith.constant 0 : i32
    %c0_i32_1 = arith.constant 0 : i32
    return %c0_i32, %c0_i32_0 : i32, i32
  }
  func.func @transform_2(%arg0: i32) -> (i32, i32) {
    %c0_i32 = arith.constant 0 : i32
    %c0_i32_0 = arith.constant 0 : i32
    %c0_i32_1 = arith.constant 0 : i32
    return %c0_i32, %c0_i32_0 : i32, i32
  }
  func.func @transform_3(%arg0: i32) -> (i32, i32) {
    %c0_i32 = arith.constant 0 : i32
    %c0_i32_0 = arith.constant 0 : i32
    %c0_i32_1 = arith.constant 0 : i32
    return %c0_i32, %c0_i32_0 : i32, i32
  }
  func.func @transform_4(%arg0: i32) -> (i32, i32) {
    %c0_i32 = arith.constant 0 : i32
    %c0_i32_0 = arith.constant 0 : i32
    %c0_i32_1 = arith.constant 0 : i32
    return %c0_i32, %c0_i32_0 : i32, i32
  }
  func.func @transform_5(%arg0: i32) -> (i32, i32) {
    %c0_i32 = arith.constant 0 : i32
    %c0_i32_0 = arith.constant 0 : i32
    %c0_i32_1 = arith.constant 0 : i32
    return %c0_i32, %c0_i32_0 : i32, i32
  }
  func.func @transform_6(%arg0: i32) -> (i32, i32) {
    %c0_i32 = arith.constant 0 : i32
    %c0_i32_0 = arith.constant 0 : i32
    %c0_i32_1 = arith.constant 0 : i32
    return %c0_i32, %c0_i32_0 : i32, i32
  }
  func.func @transform_7(%arg0: i32) -> (i32, i32) {
    %c0_i32 = arith.constant 0 : i32
    %c0_i32_0 = arith.constant 0 : i32
    %c0_i32_1 = arith.constant 0 : i32
    return %c0_i32, %c0_i32_0 : i32, i32
  }
  func.func @transform_8(%arg0: i32) -> (i32, i32) {
    %c0_i32 = arith.constant 0 : i32
    %c0_i32_0 = arith.constant 0 : i32
    %c0_i32_1 = arith.constant 0 : i32
    return %c0_i32, %c0_i32_0 : i32, i32
  }
  func.func @transform_9(%arg0: i32) -> (i32, i32) {
    %c0_i32 = arith.constant 0 : i32
    %c0_i32_0 = arith.constant 0 : i32
    %c0_i32_1 = arith.constant 0 : i32
    return %c0_i32, %c0_i32_0 : i32, i32
  }
  func.func @transform_10(%arg0: i32) -> (i32, i32) {
    %c0_i32 = arith.constant 0 : i32
    %c0_i32_0 = arith.constant 0 : i32
    %c0_i32_1 = arith.constant 0 : i32
    return %c0_i32, %c0_i32_0 : i32, i32
  }
  func.func @transform_11(%arg0: i32) -> (i32, i32) {
    %c0_i32 = arith.constant 0 : i32
    %c0_i32_0 = arith.constant 0 : i32
    %c0_i32_1 = arith.constant 0 : i32
    return %c0_i32, %c0_i32_0 : i32, i32
  }
  func.func @transform_12(%arg0: i32) -> (i32, i32) {
    %c0_i32 = arith.constant 0 : i32
    %c0_i32_0 = arith.constant 0 : i32
    %c0_i32_1 = arith.constant 0 : i32
    return %c0_i32, %c0_i32_0 : i32, i32
  }
  func.func @transform_13(%arg0: i32) -> (i32, i32) {
    %c0_i32 = arith.constant 0 : i32
    %c0_i32_0 = arith.constant 0 : i32
    %c0_i32_1 = arith.constant 0 : i32
    return %c0_i32, %c0_i32_0 : i32, i32
  }
  func.func @transform_14(%arg0: i32) -> (i32, i32, i32) {
    %c0_i32 = arith.constant 0 : i32
    %c0_i32_0 = arith.constant 0 : i32
    %c0_i32_1 = arith.constant 0 : i32
    return %arg0, %c0_i32, %c0_i32_0 : i32, i32, i32
  }
}

module attributes {stable_mosaic.version = 11 : i64} {
  func.func @_att_block_kernel(%arg0: i32, %arg1: memref<1x8x32xf32, #tpu.memory_space<vmem>>, %arg2: memref<4x8xf32, #tpu.memory_space<vmem>>, %arg3: memref<1x32xf32, #tpu.memory_space<vmem>>, %arg4: memref<1x32xf32, #tpu.memory_space<vmem>>, %arg5: memref<32x96xbf16, #tpu.memory_space<vmem>>, %arg6: memref<1x96xf32, #tpu.memory_space<vmem>>, %arg7: memref<32x32xbf16, #tpu.memory_space<vmem>>, %arg8: memref<1x32xf32, #tpu.memory_space<vmem>>, %arg9: memref<32x64xbf16, #tpu.memory_space<vmem>>, %arg10: memref<1x64xf32, #tpu.memory_space<vmem>>, %arg11: memref<64x32xbf16, #tpu.memory_space<vmem>>, %arg12: memref<1x32xf32, #tpu.memory_space<vmem>>, %arg13: memref<1x32xf32, #tpu.memory_space<vmem>>, %arg14: memref<1x32xf32, #tpu.memory_space<vmem>>, %arg15: memref<1x8x32xf32, #tpu.memory_space<vmem>>) attributes {dimension_semantics = [#tpu.dimension_semantics<parallel>], iteration_bounds = array<i64: 4>, scalar_prefetch = 0 : i64, scratch_operands = 0 : i64, tpu.core_type = #tpu.core_type<tc>, window_params = [{transform_indices = @transform_0, window_bounds = array<i64: 1, 8, 32>}, {pipeline_mode = #tpu.pipeline_mode<synchronous>, transform_indices = @transform_1, window_bounds = array<i64: 4, 8>}, {pipeline_mode = #tpu.pipeline_mode<synchronous>, transform_indices = @transform_2, window_bounds = array<i64: 1, 32>}, {pipeline_mode = #tpu.pipeline_mode<synchronous>, transform_indices = @transform_3, window_bounds = array<i64: 1, 32>}, {pipeline_mode = #tpu.pipeline_mode<synchronous>, transform_indices = @transform_4, window_bounds = array<i64: 32, 96>}, {pipeline_mode = #tpu.pipeline_mode<synchronous>, transform_indices = @transform_5, window_bounds = array<i64: 1, 96>}, {pipeline_mode = #tpu.pipeline_mode<synchronous>, transform_indices = @transform_6, window_bounds = array<i64: 32, 32>}, {pipeline_mode = #tpu.pipeline_mode<synchronous>, transform_indices = @transform_7, window_bounds = array<i64: 1, 32>}, {pipeline_mode = #tpu.pipeline_mode<synchronous>, transform_indices = @transform_8, window_bounds = array<i64: 32, 64>}, {pipeline_mode = #tpu.pipeline_mode<synchronous>, transform_indices = @transform_9, window_bounds = array<i64: 1, 64>}, {pipeline_mode = #tpu.pipeline_mode<synchronous>, transform_indices = @transform_10, window_bounds = array<i64: 64, 32>}, {pipeline_mode = #tpu.pipeline_mode<synchronous>, transform_indices = @transform_11, window_bounds = array<i64: 1, 32>}, {pipeline_mode = #tpu.pipeline_mode<synchronous>, transform_indices = @transform_12, window_bounds = array<i64: 1, 32>}, {pipeline_mode = #tpu.pipeline_mode<synchronous>, transform_indices = @transform_13, window_bounds = array<i64: 1, 32>}, {transform_indices = @transform_14, window_bounds = array<i64: 1, 8, 32>}]} {
    %c0 = arith.constant 0 : index
    %c0_0 = arith.constant 0 : index
    %c0_1 = arith.constant 0 : index
    %0 = vector.load %arg1[%c0, %c0_0, %c0_1] : memref<1x8x32xf32, #tpu.memory_space<vmem>>, vector<1x8x32xf32>
    %1 = vector.shape_cast %0 : vector<1x8x32xf32> to vector<8x32xf32>
    %cst = arith.constant dense<0.000000e+00> : vector<8xf32>
    %2 = vector.multi_reduction <add>, %1, %cst [1] : vector<8x32xf32> to vector<8xf32>
    %3 = vector.shape_cast %2 : vector<8xf32> to vector<8x1xf32>
    %cst_2 = arith.constant 3.200000e+01 : f32
    %4 = vector.broadcast %cst_2 : f32 to vector<8x1xf32>
    %5 = arith.divf %3, %4 : vector<8x1xf32>
    %6 = vector.broadcast %5 : vector<8x1xf32> to vector<8x32xf32>
    %7 = arith.subf %1, %6 : vector<8x32xf32>
    %8 = arith.mulf %7, %7 : vector<8x32xf32>
    %cst_3 = arith.constant dense<0.000000e+00> : vector<8xf32>
    %9 = vector.multi_reduction <add>, %8, %cst_3 [1] : vector<8x32xf32> to vector<8xf32>
    %10 = vector.shape_cast %9 : vector<8xf32> to vector<8x1xf32>
    %cst_4 = arith.constant 3.200000e+01 : f32
    %11 = vector.broadcast %cst_4 : f32 to vector<8x1xf32>
    %12 = arith.divf %10, %11 : vector<8x1xf32>
    %13 = vector.broadcast %5 : vector<8x1xf32> to vector<8x32xf32>
    %14 = arith.subf %1, %13 : vector<8x32xf32>
    %cst_5 = arith.constant 9.99999974E-6 : f32
    %15 = vector.broadcast %cst_5 : f32 to vector<8x1xf32>
    %16 = arith.addf %12, %15 : vector<8x1xf32>
    %17 = math.rsqrt %16 : vector<8x1xf32>
    %18 = vector.broadcast %17 : vector<8x1xf32> to vector<8x32xf32>
    %19 = arith.mulf %14, %18 : vector<8x32xf32>
    %c0_6 = arith.constant 0 : index
    %c0_7 = arith.constant 0 : index
    %20 = vector.load %arg3[%c0_6, %c0_7] : memref<1x32xf32, #tpu.memory_space<vmem>>, vector<1x32xf32>
    %21 = vector.broadcast %20 : vector<1x32xf32> to vector<8x32xf32>
    %22 = arith.mulf %19, %21 : vector<8x32xf32>
    %c0_8 = arith.constant 0 : index
    %c0_9 = arith.constant 0 : index
    %23 = vector.load %arg4[%c0_8, %c0_9] : memref<1x32xf32, #tpu.memory_space<vmem>>, vector<1x32xf32>
    %24 = vector.broadcast %23 : vector<1x32xf32> to vector<8x32xf32>
    %25 = arith.addf %22, %24 : vector<8x32xf32>
    %26 = arith.truncf %25 : vector<8x32xf32> to vector<8x32xbf16>
    %c0_10 = arith.constant 0 : index
    %c0_11 = arith.constant 0 : index
    %27 = vector.load %arg5[%c0_10, %c0_11] : memref<32x96xbf16, #tpu.memory_space<vmem>>, vector<32x96xbf16>
    %cst_12 = arith.constant dense<0.000000e+00> : vector<8x96xf32>
    %28 = tpu.matmul %26, %27, %cst_12 {dimension_numbers = #tpu.dot_dimension_numbers<[1], [0], [0], [1], [0, 0, 1, 1], [], []>} : vector<8x32xbf16>, vector<32x96xbf16>, vector<8x96xf32> -> vector<8x96xf32>
    %c0_13 = arith.constant 0 : index
    %c0_14 = arith.constant 0 : index
    %29 = vector.load %arg6[%c0_13, %c0_14] : memref<1x96xf32, #tpu.memory_space<vmem>>, vector<1x96xf32>
    %30 = vector.broadcast %29 : vector<1x96xf32> to vector<8x96xf32>
    %31 = arith.addf %28, %30 : vector<8x96xf32>
    %32 = arith.index_cast %arg0 : i32 to index
    %c0_15 = arith.constant 0 : index
    %33 = vector.load %arg2[%32, %c0_15] : memref<4x8xf32, #tpu.memory_space<vmem>>, vector<1x8xf32>
    %cst_16 = arith.constant -1.000000e+09 : f32
    %34 = vector.broadcast %cst_16 : f32 to vector<1x8xf32>
    %35 = arith.mulf %33, %34 : vector<1x8xf32>
    %36 = vector.extract_strided_slice %31 {offsets = [0, 0], sizes = [8, 8], strides = [1, 1]} : vector<8x96xf32> to vector<8x8xf32>
    %37 = vector.extract_strided_slice %31 {offsets = [0, 32], sizes = [8, 8], strides = [1, 1]} : vector<8x96xf32> to vector<8x8xf32>
    %38 = vector.extract_strided_slice %31 {offsets = [0, 64], sizes = [8, 8], strides = [1, 1]} : vector<8x96xf32> to vector<8x8xf32>
    %39 = arith.truncf %36 : vector<8x8xf32> to vector<8x8xbf16>
    %40 = arith.truncf %37 : vector<8x8xf32> to vector<8x8xbf16>
    %41 = tpu.transpose %40, [1, 0] : vector<8x8xbf16> -> vector<8x8xbf16>
    %cst_17 = arith.constant dense<0.000000e+00> : vector<8x8xf32>
    %42 = tpu.matmul %39, %41, %cst_17 {dimension_numbers = #tpu.dot_dimension_numbers<[1], [0], [0], [1], [0, 0, 1, 1], [], []>} : vector<8x8xbf16>, vector<8x8xbf16>, vector<8x8xf32> -> vector<8x8xf32>
    %cst_18 = arith.constant 0.353553385 : f32
    %43 = vector.broadcast %cst_18 : f32 to vector<8x8xf32>
    %44 = arith.mulf %42, %43 : vector<8x8xf32>
    %45 = vector.broadcast %35 : vector<1x8xf32> to vector<8x8xf32>
    %46 = arith.addf %44, %45 : vector<8x8xf32>
    %cst_19 = arith.constant dense<0xFF800000> : vector<8xf32>
    %47 = vector.multi_reduction <maximumf>, %46, %cst_19 [1] : vector<8x8xf32> to vector<8xf32>
    %48 = vector.shape_cast %47 : vector<8xf32> to vector<8x1xf32>
    %49 = vector.broadcast %48 : vector<8x1xf32> to vector<8x8xf32>
    %50 = arith.subf %46, %49 : vector<8x8xf32>
    %51 = math.exp %50 : vector<8x8xf32>
    %cst_20 = arith.constant dense<0.000000e+00> : vector<8xf32>
    %52 = vector.multi_reduction <add>, %51, %cst_20 [1] : vector<8x8xf32> to vector<8xf32>
    %53 = vector.shape_cast %52 : vector<8xf32> to vector<8x1xf32>
    %54 = tpu.reciprocal %53 {approx = true} : vector<8x1xf32> -> vector<8x1xf32>
    %55 = vector.broadcast %54 : vector<8x1xf32> to vector<8x8xf32>
    %56 = arith.mulf %51, %55 : vector<8x8xf32>
    %57 = arith.truncf %56 : vector<8x8xf32> to vector<8x8xbf16>
    %58 = arith.truncf %38 : vector<8x8xf32> to vector<8x8xbf16>
    %cst_21 = arith.constant dense<0.000000e+00> : vector<8x8xf32>
    %59 = tpu.matmul %57, %58, %cst_21 {dimension_numbers = #tpu.dot_dimension_numbers<[1], [0], [0], [1], [0, 0, 1, 1], [], []>} : vector<8x8xbf16>, vector<8x8xbf16>, vector<8x8xf32> -> vector<8x8xf32>
    %60 = vector.extract_strided_slice %31 {offsets = [0, 8], sizes = [8, 8], strides = [1, 1]} : vector<8x96xf32> to vector<8x8xf32>
    %61 = vector.extract_strided_slice %31 {offsets = [0, 40], sizes = [8, 8], strides = [1, 1]} : vector<8x96xf32> to vector<8x8xf32>
    %62 = vector.extract_strided_slice %31 {offsets = [0, 72], sizes = [8, 8], strides = [1, 1]} : vector<8x96xf32> to vector<8x8xf32>
    %63 = arith.truncf %60 : vector<8x8xf32> to vector<8x8xbf16>
    %64 = arith.truncf %61 : vector<8x8xf32> to vector<8x8xbf16>
    %65 = tpu.transpose %64, [1, 0] : vector<8x8xbf16> -> vector<8x8xbf16>
    %cst_22 = arith.constant dense<0.000000e+00> : vector<8x8xf32>
    %66 = tpu.matmul %63, %65, %cst_22 {dimension_numbers = #tpu.dot_dimension_numbers<[1], [0], [0], [1], [0, 0, 1, 1], [], []>} : vector<8x8xbf16>, vector<8x8xbf16>, vector<8x8xf32> -> vector<8x8xf32>
    %cst_23 = arith.constant 0.353553385 : f32
    %67 = vector.broadcast %cst_23 : f32 to vector<8x8xf32>
    %68 = arith.mulf %66, %67 : vector<8x8xf32>
    %69 = vector.broadcast %35 : vector<1x8xf32> to vector<8x8xf32>
    %70 = arith.addf %68, %69 : vector<8x8xf32>
    %cst_24 = arith.constant dense<0xFF800000> : vector<8xf32>
    %71 = vector.multi_reduction <maximumf>, %70, %cst_24 [1] : vector<8x8xf32> to vector<8xf32>
    %72 = vector.shape_cast %71 : vector<8xf32> to vector<8x1xf32>
    %73 = vector.broadcast %72 : vector<8x1xf32> to vector<8x8xf32>
    %74 = arith.subf %70, %73 : vector<8x8xf32>
    %75 = math.exp %74 : vector<8x8xf32>
    %cst_25 = arith.constant dense<0.000000e+00> : vector<8xf32>
    %76 = vector.multi_reduction <add>, %75, %cst_25 [1] : vector<8x8xf32> to vector<8xf32>
    %77 = vector.shape_cast %76 : vector<8xf32> to vector<8x1xf32>
    %78 = tpu.reciprocal %77 {approx = true} : vector<8x1xf32> -> vector<8x1xf32>
    %79 = vector.broadcast %78 : vector<8x1xf32> to vector<8x8xf32>
    %80 = arith.mulf %75, %79 : vector<8x8xf32>
    %81 = arith.truncf %80 : vector<8x8xf32> to vector<8x8xbf16>
    %82 = arith.truncf %62 : vector<8x8xf32> to vector<8x8xbf16>
    %cst_26 = arith.constant dense<0.000000e+00> : vector<8x8xf32>
    %83 = tpu.matmul %81, %82, %cst_26 {dimension_numbers = #tpu.dot_dimension_numbers<[1], [0], [0], [1], [0, 0, 1, 1], [], []>} : vector<8x8xbf16>, vector<8x8xbf16>, vector<8x8xf32> -> vector<8x8xf32>
    %84 = vector.extract_strided_slice %31 {offsets = [0, 16], sizes = [8, 8], strides = [1, 1]} : vector<8x96xf32> to vector<8x8xf32>
    %85 = vector.extract_strided_slice %31 {offsets = [0, 48], sizes = [8, 8], strides = [1, 1]} : vector<8x96xf32> to vector<8x8xf32>
    %86 = vector.extract_strided_slice %31 {offsets = [0, 80], sizes = [8, 8], strides = [1, 1]} : vector<8x96xf32> to vector<8x8xf32>
    %87 = arith.truncf %84 : vector<8x8xf32> to vector<8x8xbf16>
    %88 = arith.truncf %85 : vector<8x8xf32> to vector<8x8xbf16>
    %89 = tpu.transpose %88, [1, 0] : vector<8x8xbf16> -> vector<8x8xbf16>
    %cst_27 = arith.constant dense<0.000000e+00> : vector<8x8xf32>
    %90 = tpu.matmul %87, %89, %cst_27 {dimension_numbers = #tpu.dot_dimension_numbers<[1], [0], [0], [1], [0, 0, 1, 1], [], []>} : vector<8x8xbf16>, vector<8x8xbf16>, vector<8x8xf32> -> vector<8x8xf32>
    %cst_28 = arith.constant 0.353553385 : f32
    %91 = vector.broadcast %cst_28 : f32 to vector<8x8xf32>
    %92 = arith.mulf %90, %91 : vector<8x8xf32>
    %93 = vector.broadcast %35 : vector<1x8xf32> to vector<8x8xf32>
    %94 = arith.addf %92, %93 : vector<8x8xf32>
    %cst_29 = arith.constant dense<0xFF800000> : vector<8xf32>
    %95 = vector.multi_reduction <maximumf>, %94, %cst_29 [1] : vector<8x8xf32> to vector<8xf32>
    %96 = vector.shape_cast %95 : vector<8xf32> to vector<8x1xf32>
    %97 = vector.broadcast %96 : vector<8x1xf32> to vector<8x8xf32>
    %98 = arith.subf %94, %97 : vector<8x8xf32>
    %99 = math.exp %98 : vector<8x8xf32>
    %cst_30 = arith.constant dense<0.000000e+00> : vector<8xf32>
    %100 = vector.multi_reduction <add>, %99, %cst_30 [1] : vector<8x8xf32> to vector<8xf32>
    %101 = vector.shape_cast %100 : vector<8xf32> to vector<8x1xf32>
    %102 = tpu.reciprocal %101 {approx = true} : vector<8x1xf32> -> vector<8x1xf32>
    %103 = vector.broadcast %102 : vector<8x1xf32> to vector<8x8xf32>
    %104 = arith.mulf %99, %103 : vector<8x8xf32>
    %105 = arith.truncf %104 : vector<8x8xf32> to vector<8x8xbf16>
    %106 = arith.truncf %86 : vector<8x8xf32> to vector<8x8xbf16>
    %cst_31 = arith.constant dense<0.000000e+00> : vector<8x8xf32>
    %107 = tpu.matmul %105, %106, %cst_31 {dimension_numbers = #tpu.dot_dimension_numbers<[1], [0], [0], [1], [0, 0, 1, 1], [], []>} : vector<8x8xbf16>, vector<8x8xbf16>, vector<8x8xf32> -> vector<8x8xf32>
    %108 = vector.extract_strided_slice %31 {offsets = [0, 24], sizes = [8, 8], strides = [1, 1]} : vector<8x96xf32> to vector<8x8xf32>
    %109 = vector.extract_strided_slice %31 {offsets = [0, 56], sizes = [8, 8], strides = [1, 1]} : vector<8x96xf32> to vector<8x8xf32>
    %110 = vector.extract_strided_slice %31 {offsets = [0, 88], sizes = [8, 8], strides = [1, 1]} : vector<8x96xf32> to vector<8x8xf32>
    %111 = arith.truncf %108 : vector<8x8xf32> to vector<8x8xbf16>
    %112 = arith.truncf %109 : vector<8x8xf32> to vector<8x8xbf16>
    %113 = tpu.transpose %112, [1, 0] : vector<8x8xbf16> -> vector<8x8xbf16>
    %cst_32 = arith.constant dense<0.000000e+00> : vector<8x8xf32>
    %114 = tpu.matmul %111, %113, %cst_32 {dimension_numbers = #tpu.dot_dimension_numbers<[1], [0], [0], [1], [0, 0, 1, 1], [], []>} : vector<8x8xbf16>, vector<8x8xbf16>, vector<8x8xf32> -> vector<8x8xf32>
    %cst_33 = arith.constant 0.353553385 : f32
    %115 = vector.broadcast %cst_33 : f32 to vector<8x8xf32>
    %116 = arith.mulf %114, %115 : vector<8x8xf32>
    %117 = vector.broadcast %35 : vector<1x8xf32> to vector<8x8xf32>
    %118 = arith.addf %116, %117 : vector<8x8xf32>
    %cst_34 = arith.constant dense<0xFF800000> : vector<8xf32>
    %119 = vector.multi_reduction <maximumf>, %118, %cst_34 [1] : vector<8x8xf32> to vector<8xf32>
    %120 = vector.shape_cast %119 : vector<8xf32> to vector<8x1xf32>
    %121 = vector.broadcast %120 : vector<8x1xf32> to vector<8x8xf32>
    %122 = arith.subf %118, %121 : vector<8x8xf32>
    %123 = math.exp %122 : vector<8x8xf32>
    %cst_35 = arith.constant dense<0.000000e+00> : vector<8xf32>
    %124 = vector.multi_reduction <add>, %123, %cst_35 [1] : vector<8x8xf32> to vector<8xf32>
    %125 = vector.shape_cast %124 : vector<8xf32> to vector<8x1xf32>
    %126 = tpu.reciprocal %125 {approx = true} : vector<8x1xf32> -> vector<8x1xf32>
    %127 = vector.broadcast %126 : vector<8x1xf32> to vector<8x8xf32>
    %128 = arith.mulf %123, %127 : vector<8x8xf32>
    %129 = arith.truncf %128 : vector<8x8xf32> to vector<8x8xbf16>
    %130 = arith.truncf %110 : vector<8x8xf32> to vector<8x8xbf16>
    %cst_36 = arith.constant dense<0.000000e+00> : vector<8x8xf32>
    %131 = tpu.matmul %129, %130, %cst_36 {dimension_numbers = #tpu.dot_dimension_numbers<[1], [0], [0], [1], [0, 0, 1, 1], [], []>} : vector<8x8xbf16>, vector<8x8xbf16>, vector<8x8xf32> -> vector<8x8xf32>
    %132 = tpu.concatenate %59, %83, %107, %131 in 1 : vector<8x8xf32>, vector<8x8xf32>, vector<8x8xf32>, vector<8x8xf32> -> vector<8x32xf32>
    %133 = arith.truncf %132 : vector<8x32xf32> to vector<8x32xbf16>
    %c0_37 = arith.constant 0 : index
    %c0_38 = arith.constant 0 : index
    %134 = vector.load %arg7[%c0_37, %c0_38] : memref<32x32xbf16, #tpu.memory_space<vmem>>, vector<32x32xbf16>
    %cst_39 = arith.constant dense<0.000000e+00> : vector<8x32xf32>
    %135 = tpu.matmul %133, %134, %cst_39 {dimension_numbers = #tpu.dot_dimension_numbers<[1], [0], [0], [1], [0, 0, 1, 1], [], []>} : vector<8x32xbf16>, vector<32x32xbf16>, vector<8x32xf32> -> vector<8x32xf32>
    %c0_40 = arith.constant 0 : index
    %c0_41 = arith.constant 0 : index
    %136 = vector.load %arg8[%c0_40, %c0_41] : memref<1x32xf32, #tpu.memory_space<vmem>>, vector<1x32xf32>
    %137 = vector.broadcast %136 : vector<1x32xf32> to vector<8x32xf32>
    %138 = arith.addf %135, %137 : vector<8x32xf32>
    %139 = arith.addf %1, %138 : vector<8x32xf32>
    %140 = arith.truncf %139 : vector<8x32xf32> to vector<8x32xbf16>
    %c0_42 = arith.constant 0 : index
    %c0_43 = arith.constant 0 : index
    %141 = vector.load %arg9[%c0_42, %c0_43] : memref<32x64xbf16, #tpu.memory_space<vmem>>, vector<32x64xbf16>
    %cst_44 = arith.constant dense<0.000000e+00> : vector<8x64xf32>
    %142 = tpu.matmul %140, %141, %cst_44 {dimension_numbers = #tpu.dot_dimension_numbers<[1], [0], [0], [1], [0, 0, 1, 1], [], []>} : vector<8x32xbf16>, vector<32x64xbf16>, vector<8x64xf32> -> vector<8x64xf32>
    %c0_45 = arith.constant 0 : index
    %c0_46 = arith.constant 0 : index
    %143 = vector.load %arg10[%c0_45, %c0_46] : memref<1x64xf32, #tpu.memory_space<vmem>>, vector<1x64xf32>
    %144 = vector.broadcast %143 : vector<1x64xf32> to vector<8x64xf32>
    %145 = arith.addf %142, %144 : vector<8x64xf32>
    %cst_47 = arith.constant 0.000000e+00 : f32
    %146 = vector.broadcast %cst_47 : f32 to vector<8x64xf32>
    %147 = arith.maximumf %145, %146 : vector<8x64xf32>
    %148 = arith.truncf %147 : vector<8x64xf32> to vector<8x64xbf16>
    %c0_48 = arith.constant 0 : index
    %c0_49 = arith.constant 0 : index
    %149 = vector.load %arg11[%c0_48, %c0_49] : memref<64x32xbf16, #tpu.memory_space<vmem>>, vector<64x32xbf16>
    %cst_50 = arith.constant dense<0.000000e+00> : vector<8x32xf32>
    %150 = tpu.matmul %148, %149, %cst_50 {dimension_numbers = #tpu.dot_dimension_numbers<[1], [0], [0], [1], [0, 0, 1, 1], [], []>} : vector<8x64xbf16>, vector<64x32xbf16>, vector<8x32xf32> -> vector<8x32xf32>
    %c0_51 = arith.constant 0 : index
    %c0_52 = arith.constant 0 : index
    %151 = vector.load %arg12[%c0_51, %c0_52] : memref<1x32xf32, #tpu.memory_space<vmem>>, vector<1x32xf32>
    %152 = vector.broadcast %151 : vector<1x32xf32> to vector<8x32xf32>
    %153 = arith.addf %150, %152 : vector<8x32xf32>
    %154 = arith.addf %139, %153 : vector<8x32xf32>
    %cst_53 = arith.constant dense<0.000000e+00> : vector<8xf32>
    %155 = vector.multi_reduction <add>, %154, %cst_53 [1] : vector<8x32xf32> to vector<8xf32>
    %156 = vector.shape_cast %155 : vector<8xf32> to vector<8x1xf32>
    %cst_54 = arith.constant 3.200000e+01 : f32
    %157 = vector.broadcast %cst_54 : f32 to vector<8x1xf32>
    %158 = arith.divf %156, %157 : vector<8x1xf32>
    %159 = vector.broadcast %158 : vector<8x1xf32> to vector<8x32xf32>
    %160 = arith.subf %154, %159 : vector<8x32xf32>
    %161 = arith.mulf %160, %160 : vector<8x32xf32>
    %cst_55 = arith.constant dense<0.000000e+00> : vector<8xf32>
    %162 = vector.multi_reduction <add>, %161, %cst_55 [1] : vector<8x32xf32> to vector<8xf32>
    %163 = vector.shape_cast %162 : vector<8xf32> to vector<8x1xf32>
    %cst_56 = arith.constant 3.200000e+01 : f32
    %164 = vector.broadcast %cst_56 : f32 to vector<8x1xf32>
    %165 = arith.divf %163, %164 : vector<8x1xf32>
    %166 = vector.broadcast %158 : vector<8x1xf32> to vector<8x32xf32>
    %167 = arith.subf %154, %166 : vector<8x32xf32>
    %cst_57 = arith.constant 9.99999974E-6 : f32
    %168 = vector.broadcast %cst_57 : f32 to vector<8x1xf32>
    %169 = arith.addf %165, %168 : vector<8x1xf32>
    %170 = math.rsqrt %169 : vector<8x1xf32>
    %171 = vector.broadcast %170 : vector<8x1xf32> to vector<8x32xf32>
    %172 = arith.mulf %167, %171 : vector<8x32xf32>
    %c0_58 = arith.constant 0 : index
    %c0_59 = arith.constant 0 : index
    %173 = vector.load %arg13[%c0_58, %c0_59] : memref<1x32xf32, #tpu.memory_space<vmem>>, vector<1x32xf32>
    %174 = vector.broadcast %173 : vector<1x32xf32> to vector<8x32xf32>
    %175 = arith.mulf %172, %174 : vector<8x32xf32>
    %c0_60 = arith.constant 0 : index
    %c0_61 = arith.constant 0 : index
    %176 = vector.load %arg14[%c0_60, %c0_61] : memref<1x32xf32, #tpu.memory_space<vmem>>, vector<1x32xf32>
    %177 = vector.broadcast %176 : vector<1x32xf32> to vector<8x32xf32>
    %178 = arith.addf %175, %177 : vector<8x32xf32>
    %c0_62 = arith.constant 0 : index
    %c0_63 = arith.constant 0 : index
    %c0_64 = arith.constant 0 : index
    %179 = vector.load %arg15[%c0_62, %c0_63, %c0_64] : memref<1x8x32xf32, #tpu.memory_space<vmem>>, vector<1x8x32xf32>
    %180 = vector.shape_cast %179 : vector<1x8x32xf32> to vector<8x32xf32>
    %181 = vector.shape_cast %178 : vector<8x32xf32> to vector<1x8x32xf32>
    tpu.vector_store %arg15[%c0_62, %c0_63, %c0_64], %181 {strides = array<i32>} : memref<1x8x32xf32, #tpu.memory_space<vmem>>, vector<1x8x32xf32>,
    return
  }
  func.func @transform_0(%arg0: i32) -> (i32, i32, i32) {
    %c0_i32 = arith.constant 0 : i32
    %c0_i32_0 = arith.constant 0 : i32
    %c0_i32_1 = arith.constant 0 : i32
    return %arg0, %c0_i32, %c0_i32_0 : i32, i32, i32
  }
  func.func @transform_1(%arg0: i32) -> (i32, i32) {
    %c0_i32 = arith.constant 0 : i32
    %c0_i32_0 = arith.constant 0 : i32
    %c0_i32_1 = arith.constant 0 : i32
    return %c0_i32, %c0_i32_0 : i32, i32
  }
  func.func @transform_2(%arg0: i32) -> (i32, i32) {
    %c0_i32 = arith.constant 0 : i32
    %c0_i32_0 = arith.constant 0 : i32
    %c0_i32_1 = arith.constant 0 : i32
    return %c0_i32, %c0_i32_0 : i32, i32
  }
  func.func @transform_3(%arg0: i32) -> (i32, i32) {
    %c0_i32 = arith.constant 0 : i32
    %c0_i32_0 = arith.constant 0 : i32
    %c0_i32_1 = arith.constant 0 : i32
    return %c0_i32, %c0_i32_0 : i32, i32
  }
  func.func @transform_4(%arg0: i32) -> (i32, i32) {
    %c0_i32 = arith.constant 0 : i32
    %c0_i32_0 = arith.constant 0 : i32
    %c0_i32_1 = arith.constant 0 : i32
    return %c0_i32, %c0_i32_0 : i32, i32
  }
  func.func @transform_5(%arg0: i32) -> (i32, i32) {
    %c0_i32 = arith.constant 0 : i32
    %c0_i32_0 = arith.constant 0 : i32
    %c0_i32_1 = arith.constant 0 : i32
    return %c0_i32, %c0_i32_0 : i32, i32
  }
  func.func @transform_6(%arg0: i32) -> (i32, i32) {
    %c0_i32 = arith.constant 0 : i32
    %c0_i32_0 = arith.constant 0 : i32
    %c0_i32_1 = arith.constant 0 : i32
    return %c0_i32, %c0_i32_0 : i32, i32
  }
  func.func @transform_7(%arg0: i32) -> (i32, i32) {
    %c0_i32 = arith.constant 0 : i32
    %c0_i32_0 = arith.constant 0 : i32
    %c0_i32_1 = arith.constant 0 : i32
    return %c0_i32, %c0_i32_0 : i32, i32
  }
  func.func @transform_8(%arg0: i32) -> (i32, i32) {
    %c0_i32 = arith.constant 0 : i32
    %c0_i32_0 = arith.constant 0 : i32
    %c0_i32_1 = arith.constant 0 : i32
    return %c0_i32, %c0_i32_0 : i32, i32
  }
  func.func @transform_9(%arg0: i32) -> (i32, i32) {
    %c0_i32 = arith.constant 0 : i32
    %c0_i32_0 = arith.constant 0 : i32
    %c0_i32_1 = arith.constant 0 : i32
    return %c0_i32, %c0_i32_0 : i32, i32
  }
  func.func @transform_10(%arg0: i32) -> (i32, i32) {
    %c0_i32 = arith.constant 0 : i32
    %c0_i32_0 = arith.constant 0 : i32
    %c0_i32_1 = arith.constant 0 : i32
    return %c0_i32, %c0_i32_0 : i32, i32
  }
  func.func @transform_11(%arg0: i32) -> (i32, i32) {
    %c0_i32 = arith.constant 0 : i32
    %c0_i32_0 = arith.constant 0 : i32
    %c0_i32_1 = arith.constant 0 : i32
    return %c0_i32, %c0_i32_0 : i32, i32
  }
  func.func @transform_12(%arg0: i32) -> (i32, i32) {
    %c0_i32 = arith.constant 0 : i32
    %c0_i32_0 = arith.constant 0 : i32
    %c0_i32_1 = arith.constant 0 : i32
    return %c0_i32, %c0_i32_0 : i32, i32
  }
  func.func @transform_13(%arg0: i32) -> (i32, i32) {
    %c0_i32 = arith.constant 0 : i32
    %c0_i32_0 = arith.constant 0 : i32
    %c0_i32_1 = arith.constant 0 : i32
    return %c0_i32, %c0_i32_0 : i32, i32
  }
  func.func @transform_14(%arg0: i32) -> (i32, i32, i32) {
    %c0_i32 = arith.constant 0 : i32
    %c0_i32_0 = arith.constant 0 : i32
    %c0_i32_1 = arith.constant 0 : i32
    return %arg0, %c0_i32, %c0_i32_0 : i32, i32, i32
  }
}

</mosaic_0001>

<llo_original>
// kernel: encoder_forward.13
$region0: #{encoder_forward.13}
  #allocation0 [shape = 'u32[]', space=smem, size = 0x4, offset = 0x4, fixed_abs, tag = 'smem constant byte address 0x4 - core index']
  #allocation1 [shape = 'u32[72,128]{1,0:T(1,128)}', space=vmem, size = 0x9000, scoped, tag = 'internal scratch']
  %s0 = inlined_call_operand.vmem [shape: f32[32,6], index: 0, kind: input, shape index: {}]
  %s1 = inlined_call_operand.vmem [shape: f32[32,1], index: 1, kind: input, shape index: {}]
  %s2 = inlined_call_operand.vmem [shape: bf16[6,32], index: 2, kind: input, shape index: {}]
  %s3 = inlined_call_operand.vmem [shape: f32[1,32], index: 3, kind: input, shape index: {}]
  %s4 = inlined_call_operand.hbm [shape: bf16[32,128], index: 4, kind: input, shape index: {}]
  %s5 = inlined_call_operand.vmem [shape: f32[1,128], index: 5, kind: input, shape index: {}]
  %s6 = inlined_call_operand.vmem [shape: bf16[128,32], index: 6, kind: input, shape index: {}]
  %s7 = inlined_call_operand.hbm [shape: f32[1,32], index: 7, kind: input, shape index: {}]
  %s8 = inlined_call_operand.vmem [shape: f32[32,32], index: 8, kind: input, shape index: {}]
  %s9 = inlined_call_operand.vmem [shape: f32[32,32], index: 9, kind: output, shape index: {}]
  %s10 = sld [smem:[#allocation0]]
  $region54: #{encoder_forward.13} parent=0
    _
  %s12 = ssub.s32 1, %s10
  %s13 = scalar_select 0, %s12, %s10
  $region1: #{encoder_forward.13} parent=0
    #allocation2 [shape = 'u8[8192]{0}', space=vmem, size = 0x2000, scoped, tag = 'input window, operand 4, single buffered']
    #allocation3 [shape = 's32[1]{0}', space=sflag, size = 0x4, scoped, tag = 'scoped memory for encoder_forward.13']
    #allocation4 [shape = 'u8[512]{0}', space=vmem, size = 0x400, scoped, tag = 'input window, operand 7, single buffered']
    #allocation5 [shape = 's32[1]{0}', space=sflag, size = 0x4, scoped, tag = 'scoped memory for encoder_forward.13']
    %14 = vsyncpa [#allocation3], 0
    %15 = vsyncpa [#allocation5], 0
    // Predicated region
    $region2: #{encoder_forward.13} parent=1 // pred_check
      _
    $region3: #{encoder_forward.13} parent=1 // pred_check_branch
      %17 = sbr.rel (0) target = $region5
    $region4: #{encoder_forward.13} parent=1 // pred_region
      _
    $region5: #{encoder_forward.13} parent=1 // pred_fallthru
      _
    // Predicated region
    $region6: #{encoder_forward.13} parent=1 // pred_check
      _
    $region7: #{encoder_forward.13} parent=1 // pred_check_branch
      %19 = sbr.rel (0) target = $region9
    $region8: #{encoder_forward.13} parent=1 // pred_region
      _
    $region9: #{encoder_forward.13} parent=1 // pred_fallthru
      _
    // Predicated region
    $region10: #{encoder_forward.13} parent=1 // pred_check
      _
    $region11: #{encoder_forward.13} parent=1 // pred_check_branch
      %21 = sbr.rel (0) target = $region13
    $region12: #{encoder_forward.13} parent=1 // pred_region
      _
    $region13: #{encoder_forward.13} parent=1 // pred_fallthru
      _
    // Predicated region
    $region14: #{encoder_forward.13} parent=1 // pred_check
      _
    $region15: #{encoder_forward.13} parent=1 // pred_check_branch
      %23 = sbr.rel (0) target = $region17
    $region16: #{encoder_forward.13} parent=1 // pred_region
      _
    $region17: #{encoder_forward.13} parent=1 // pred_fallthru
      _
    // Predicated region
    $region18: #{encoder_forward.13} parent=1 // pred_check
      _
    $region19: #{encoder_forward.13} parent=1 // pred_check_branch
      %25 = sbr.rel (0) target = $region21
    $region20: #{encoder_forward.13} parent=1 // pred_region
      %27 = vsyncadd [#allocation3], 0
      %s28 = sshll.u32 %s4, 4
      %s29 = int_to_ptr.hbm [resolvable:$true] %s28
      %s30 = sshll.u32 [#allocation2], 4
      %s31 = int_to_ptr.vmem [resolvable:$true] %s30
      %36 = dma.hbm_to_vmem [thread:$0]  %s29, 256, %s31, [#allocation3], 64, 64, 4
    $region21: #{encoder_forward.13} parent=1 // pred_fallthru
      _
    // Predicated region
    $region22: #{encoder_forward.13} parent=1 // pred_check
      _
    $region23: #{encoder_forward.13} parent=1 // pred_check_branch
      %38 = sbr.rel (0) target = $region25
    $region24: #{encoder_forward.13} parent=1 // pred_region
      _
    $region25: #{encoder_forward.13} parent=1 // pred_fallthru
      _
    // Predicated region
    $region26: #{encoder_forward.13} parent=1 // pred_check
      _
    $region27: #{encoder_forward.13} parent=1 // pred_check_branch
      %40 = sbr.rel (0) target = $region29
    $region28: #{encoder_forward.13} parent=1 // pred_region
      _
    $region29: #{encoder_forward.13} parent=1 // pred_fallthru
      _
    // Predicated region
    $region30: #{encoder_forward.13} parent=1 // pred_check
      _
    $region31: #{encoder_forward.13} parent=1 // pred_check_branch
      %42 = sbr.rel (0) target = $region33
    $region32: #{encoder_forward.13} parent=1 // pred_region
      %44 = vsyncadd [#allocation5], 0
      %s46 = sshll.u32 %s7, 4
      %s47 = int_to_ptr.hbm [resolvable:$true] %s46
      %s48 = sshll.u32 [#allocation4], 4
      %s49 = int_to_ptr.vmem [resolvable:$true] %s48
      %51 = dma.hbm_to_vmem [thread:$0]  %s47, 16, %s49, [#allocation5]
    $region33: #{encoder_forward.13} parent=1 // pred_fallthru
      _
    // Predicated region
    $region34: #{encoder_forward.13} parent=1 // pred_check
      _
    $region35: #{encoder_forward.13} parent=1 // pred_check_branch
      %53 = sbr.rel (0) target = $region37
    $region36: #{encoder_forward.13} parent=1 // pred_region
      _
    $region37: #{encoder_forward.13} parent=1 // pred_fallthru
      _
    // Predicated region
    $region38: #{encoder_forward.13} parent=1 // pred_check
      _
    $region39: #{encoder_forward.13} parent=1 // pred_check_branch
      %55 = sbr.rel (0) target = $region41
    $region40: #{encoder_forward.13} parent=1 // pred_region
      %57 = dma.done [#allocation3], 256
    $region41: #{encoder_forward.13} parent=1 // pred_fallthru
      _
    // Predicated region
    $region42: #{encoder_forward.13} parent=1 // pred_check
      _
    $region43: #{encoder_forward.13} parent=1 // pred_check_branch
      %59 = sbr.rel (0) target = $region45
    $region44: #{encoder_forward.13} parent=1 // pred_region
      %61 = dma.done [#allocation5], 16
    $region45: #{encoder_forward.13} parent=1 // pred_fallthru
      _
    %v63 = vld [vmem:[%s0] sm:$0xff]
    %v64 = vld [vmem:[%s0 + $0x8] sm:$0xff]
    %v65 = vld [vmem:[%s0 + $0x10] sm:$0xff]
    %v66 = vld [vmem:[%s0 + $0x18] sm:$0xff]
    %v67 = vld [vmem:[%s1] sm:$0xff]
    %v68 = vld [vmem:[%s1 + $0x8] sm:$0xff]
    %v69 = vld [vmem:[%s1 + $0x10] sm:$0xff]
    %v70 = vld [vmem:[%s1 + $0x18] sm:$0xff]
    %vm71 = vcmp.gt.f32.partialorder %v67, 0.5
    %vm72 = vcmp.gt.f32.partialorder %v68, 0.5
    %vm73 = vcmp.gt.f32.partialorder %v69, 0.5
    %vm74 = vcmp.gt.f32.partialorder %v70, 0.5
    %v75 = vsel %vm71, 1, 0
    %v76 = vsel %vm72, 1, 0
    %v77 = vsel %vm73, 1, 0
    %v78 = vsel %vm74, 1, 0
    %79 = vset.pattern.permute.xlu0 0
    %80 = vperm.xlu0 %79, %v75
    %v81 = vpop.permute.xlu0 %80
    %82 = vset.pattern.permute.xlu0 0
    %83 = vperm.xlu0 %82, %v76
    %v84 = vpop.permute.xlu0 %83
    %85 = vset.pattern.permute.xlu0 0
    %86 = vperm.xlu0 %85, %v77
    %v87 = vpop.permute.xlu0 %86
    %88 = vset.pattern.permute.xlu0 0
    %89 = vperm.xlu0 %88, %v78
    %v90 = vpop.permute.xlu0 %89
    %vm91 = vcmp.eq.s32.totalorder %v81, 1
    %vm92 = vcmp.eq.s32.totalorder %v84, 1
    %vm93 = vcmp.eq.s32.totalorder %v87, 1
    %vm94 = vcmp.eq.s32.totalorder %v90, 1
    %v95 = vsel %vm91, -1.0, %v63
    %v96 = vsel %vm92, -1.0, %v64
    %v97 = vsel %vm93, -1.0, %v65
    %v98 = vsel %vm94, -1.0, %v66
    %v99 = vpack.c.bf16 %v96, %v95
    %v100 = vpack.c.bf16 %v98, %v97
    %v101 = vld [vmem:[%s2] sm:$0x7]
    %v102 = vld [vmem:[%s3] sm:$0x1]
    %v104 = vperm.slane %v102, 0
    %vm106 = vcmask 48128
    %v108 = vsel %vm106, %v99, 0
    %v111 = vsel %vm106, %v100, 0
    %vm113 = vcmask 1042432
    %v115 = vsel %vm113, %v101, 0
    %117 = vmatpush.bf16.msra.mxu0 0
    %118 = vmatpush.bf16.msra.mxu0 0
    %119 = vmatpush.bf16.msra.mxu0 0
    %120 = vmatpush.bf16.msra.mxu0 0
    %121 = vmatpush.bf16.msra.mxu0 0
    %122 = vmatpush.bf16.msra.mxu0 0
    %123 = vmatpush.bf16.msra.mxu0 0
    %124 = vmatpush.bf16.msra.mxu0 %v115
    %125 = vmatmul.bf16.gmra.mxu0 %v108
    %v126 = vpop.f32.mrf.mxu0
    %v127 = vadd.f32 %v104, %v126
    %v128 = vpop.f32.mrf.mxu0
    %v129 = vadd.f32 %v104, %v128
    %130 = vmatmul.bf16.gmra.mxu0 %v111
    %v131 = vpop.f32.mrf.mxu0
    %v132 = vadd.f32 %v104, %v131
    %v133 = vpop.f32.mrf.mxu0
    %v134 = vadd.f32 %v104, %v133
    %135 = vdwg.mxu0
    %v136 = vmax.f32 %v127, 0.0
    %v137 = vmax.f32 %v129, 0.0
    %v138 = vmax.f32 %v132, 0.0
    %v139 = vmax.f32 %v134, 0.0
    %v140 = vpack.c.bf16 %v137, %v136
    %v141 = vpack.c.bf16 %v139, %v138
    %v142 = vld [vmem:[#allocation2] sm:$0xf]
    %v143 = vld [vmem:[#allocation2 + $0x4] sm:$0xf]
    %v144 = vld [vmem:[#allocation2 + $0x8] sm:$0xf]
    %v145 = vld [vmem:[#allocation2 + $0xc] sm:$0xf]
    %v146 = vld [vmem:[%s5] sm:$0x1]
    %v148 = vperm.slane %v146, 0
    %v154 = vunpack.c.l.b16 %v142
    %v155 = vunpack.c.l.b16 %v143
    %v156 = vunpack.c.l.b16 %v144
    %v157 = vunpack.c.l.b16 %v145
    %v158 = vpack.c.b16 %v155, %v154
    %v159 = vpack.c.b16 %v157, %v156
    %vm162 = vcmask 261120
    %v164 = vsel %vm162, %v140, 0
    %v167 = vsel %vm162, %v141, 0
    %169 = vmatpush.bf16.msra.mxu0 0
    %170 = vmatpush.bf16.msra.mxu0 0
    %171 = vmatpush.bf16.msra.mxu0 0
    %172 = vmatpush.bf16.msra.mxu0 0
    %173 = vmatpush.bf16.msra.mxu0 0
    %174 = vmatpush.bf16.msra.mxu0 0
    %175 = vmatpush.bf16.msra.mxu0 %v159
    %176 = vmatpush.bf16.msra.mxu0 %v158
    %177 = vmatmul.bf16.gmra.mxu0 %v164
    %v178 = vpop.f32.mrf.mxu0
    %v179 = vadd.f32 %v148, %v178
    %v180 = vpop.f32.mrf.mxu0
    %v181 = vadd.f32 %v148, %v180
    %182 = vmatmul.bf16.gmra.mxu0 %v167
    %v183 = vpop.f32.mrf.mxu0
    %v184 = vadd.f32 %v148, %v183
    %v185 = vpop.f32.mrf.mxu0
    %v186 = vadd.f32 %v148, %v185
    %187 = vdwg.mxu0
    %v188 = vmax.f32 %v179, 0.0
    %v189 = vmax.f32 %v181, 0.0
    %v190 = vmax.f32 %v184, 0.0
    %v191 = vmax.f32 %v186, 0.0
    %v192 = vpack.c.bf16 %v189, %v188
    %v193 = vpack.c.bf16 %v191, %v190
    %v194 = vld [vmem:[%s6] sm:$0xf]
    %v195 = vld [vmem:[%s6 + $0x4] sm:$0xf]
    %v196 = vld [vmem:[%s6 + $0x8] sm:$0xf]
    %v197 = vld [vmem:[%s6 + $0xc] sm:$0xf]
    %v198 = vld [vmem:[%s6 + $0x10] sm:$0xf]
    %v199 = vld [vmem:[%s6 + $0x14] sm:$0xf]
    %v200 = vld [vmem:[%s6 + $0x18] sm:$0xf]
    %v201 = vld [vmem:[%s6 + $0x1c] sm:$0xf]
    %v202 = vld [vmem:[%s6 + $0x20] sm:$0xf]
    %v203 = vld [vmem:[%s6 + $0x24] sm:$0xf]
    %v204 = vld [vmem:[%s6 + $0x28] sm:$0xf]
    %v205 = vld [vmem:[%s6 + $0x2c] sm:$0xf]
    %v206 = vld [vmem:[%s6 + $0x30] sm:$0xf]
    %v207 = vld [vmem:[%s6 + $0x34] sm:$0xf]
    %v208 = vld [vmem:[%s6 + $0x38] sm:$0xf]
    %v209 = vld [vmem:[%s6 + $0x3c] sm:$0xf]
    %v210 = vld [vmem:[#allocation4] sm:$0x1]
    %v212 = vperm.slane %v210, 0
    %v230 = vunpack.c.l.b16 %v194
    %v231 = vunpack.c.l.b16 %v195
    %v232 = vunpack.c.l.b16 %v196
    %v233 = vunpack.c.l.b16 %v197
    %v234 = vunpack.c.l.b16 %v198
    %v235 = vunpack.c.l.b16 %v199
    %v236 = vunpack.c.l.b16 %v200
    %v237 = vunpack.c.l.b16 %v201
    %v238 = vunpack.c.l.b16 %v202
    %v239 = vunpack.c.l.b16 %v203
    %v240 = vunpack.c.l.b16 %v204
    %v241 = vunpack.c.l.b16 %v205
    %v242 = vunpack.c.l.b16 %v206
    %v243 = vunpack.c.l.b16 %v207
    %v244 = vunpack.c.l.b16 %v208
    %v245 = vunpack.c.l.b16 %v209
    %v246 = vpack.c.b16 %v231, %v230
    %v247 = vpack.c.b16 %v233, %v232
    %v248 = vpack.c.b16 %v235, %v234
    %v249 = vpack.c.b16 %v237, %v236
    %v250 = vpack.c.b16 %v239, %v238
    %v251 = vpack.c.b16 %v241, %v240
    %v252 = vpack.c.b16 %v243, %v242
    %v253 = vpack.c.b16 %v245, %v244
    %262 = vmatpush.bf16.msra.mxu0 %v253
    %263 = vmatpush.bf16.msra.mxu0 %v252
    %264 = vmatpush.bf16.msra.mxu0 %v251
    %265 = vmatpush.bf16.msra.mxu0 %v250
    %266 = vmatpush.bf16.msra.mxu0 %v249
    %267 = vmatpush.bf16.msra.mxu0 %v248
    %268 = vmatpush.bf16.msra.mxu0 %v247
    %269 = vmatpush.bf16.msra.mxu0 %v246
    %270 = vmatmul.bf16.gmra.mxu0 %v192
    %v271 = vpop.f32.mrf.mxu0
    %v272 = vadd.f32 %v212, %v271
    %v273 = vpop.f32.mrf.mxu0
    %v274 = vadd.f32 %v212, %v273
    %275 = vmatmul.bf16.gmra.mxu0 %v193
    %v276 = vpop.f32.mrf.mxu0
    %v277 = vadd.f32 %v212, %v276
    %v278 = vpop.f32.mrf.mxu0
    %v279 = vadd.f32 %v212, %v278
    %280 = vdwg.mxu0
    %v281 = vmax.f32 %v272, 0.0
    %v282 = vmax.f32 %v274, 0.0
    %v283 = vmax.f32 %v277, 0.0
    %v284 = vmax.f32 %v279, 0.0
    %v285 = vld [vmem:[%s8] sm:$0xff]
    %v286 = vld [vmem:[%s8 + $0x8] sm:$0xff]
    %v287 = vld [vmem:[%s8 + $0x10] sm:$0xff]
    %v288 = vld [vmem:[%s8 + $0x18] sm:$0xff]
    %v289 = vadd.f32 %v281, %v285
    %v290 = vadd.f32 %v282, %v286
    %v291 = vadd.f32 %v283, %v287
    %v292 = vadd.f32 %v284, %v288
    %293 = vst.msk [vmem:[%s9] sm:$0xff] %vm162, %v289
    %294 = vst.msk [vmem:[%s9 + $0x8] sm:$0xff] %vm162, %v290
    %295 = vst.msk [vmem:[%s9 + $0x10] sm:$0xff] %vm162, %v291
    %296 = vst.msk [vmem:[%s9 + $0x18] sm:$0xff] %vm162, %v292
    // Predicated region
    $region46: #{encoder_forward.13} parent=1 // pred_check
      _
    $region47: #{encoder_forward.13} parent=1 // pred_check_branch
      %298 = sbr.rel (0) target = $region49
    $region48: #{encoder_forward.13} parent=1 // pred_region
      _
    $region49: #{encoder_forward.13} parent=1 // pred_fallthru
      _
    // Predicated region
    $region50: #{encoder_forward.13} parent=1 // pred_check
      _
    $region51: #{encoder_forward.13} parent=1 // pred_check_branch
      %300 = sbr.rel (0) target = $region53
    $region52: #{encoder_forward.13} parent=1 // pred_region
      _
    $region53: #{encoder_forward.13} parent=1 // pred_fallthru
      _
    %301 = vsyncpa [#allocation3], 1
    %302 = vsyncpa [#allocation5], 1

// kernel: encoder_forward.16
$region0: #{encoder_forward.16}
  #allocation0 [shape = 'u32[]', space=smem, size = 0x4, offset = 0x4, fixed_abs, tag = 'smem constant byte address 0x4 - core index']
  #allocation1 [shape = 'u32[72,128]{1,0:T(1,128)}', space=vmem, size = 0x9000, scoped, tag = 'internal scratch']
  %s0 = inlined_call_operand.vmem [shape: f32[4,8,32], index: 0, kind: input, shape index: {}]
  %s1 = inlined_call_operand.vmem [shape: f32[4,8], index: 1, kind: input, shape index: {}]
  %s2 = inlined_call_operand.vmem [shape: f32[1,32], index: 2, kind: input, shape index: {}, may-alias: {2,12}]
  %s3 = inlined_call_operand.vmem [shape: f32[1,32], index: 3, kind: input, shape index: {}, may-alias: {3,7,11,13}]
  %s4 = inlined_call_operand.hbm [shape: bf16[32,96], index: 4, kind: input, shape index: {}]
  %s5 = inlined_call_operand.vmem [shape: f32[1,96], index: 5, kind: input, shape index: {}]
  %s6 = inlined_call_operand.hbm [shape: bf16[32,32], index: 6, kind: input, shape index: {}]
  %s7 = inlined_call_operand.vmem [shape: f32[1,32], index: 7, kind: input, shape index: {}, may-alias: {3,7,11,13}]
  %s8 = inlined_call_operand.hbm [shape: bf16[32,64], index: 8, kind: input, shape index: {}]
  %s9 = inlined_call_operand.vmem [shape: f32[1,64], index: 9, kind: input, shape index: {}]
  %s10 = inlined_call_operand.vmem [shape: bf16[64,32], index: 10, kind: input, shape index: {}]
  %s11 = inlined_call_operand.vmem [shape: f32[1,32], index: 11, kind: input, shape index: {}, may-alias: {3,7,11,13}]
  %s12 = inlined_call_operand.vmem [shape: f32[1,32], index: 12, kind: input, shape index: {}, may-alias: {2,12}]
  %s13 = inlined_call_operand.vmem [shape: f32[1,32], index: 13, kind: input, shape index: {}, may-alias: {3,7,11,13}]
  %s14 = inlined_call_operand.vmem [shape: f32[4,8,32], index: 14, kind: output, shape index: {}]
  %s15 = sld [smem:[#allocation0]]
  $region101: #{encoder_forward.16} parent=0
    _
  %s17 = ssub.s32 1, %s15
  %s18 = scalar_select 0, %s17, %s15
  $region1: #{encoder_forward.16} parent=0
    #allocation2 [shape = 'u8[8192]{0}', space=vmem, size = 0x2000, scoped, tag = 'input window, operand 4, single buffered']
    #allocation3 [shape = 's32[2]{0}', space=sflag, size = 0x8, scoped, tag = 'scoped memory for encoder_forward.16']
    #allocation4 [shape = 'u8[8192]{0}', space=vmem, size = 0x2000, scoped, tag = 'input window, operand 6, single buffered']
    #allocation5 [shape = 's32[1]{0}', space=sflag, size = 0x4, scoped, tag = 'scoped memory for encoder_forward.16']
    #allocation6 [shape = 'u8[8192]{0}', space=vmem, size = 0x2000, scoped, tag = 'input window, operand 8, single buffered']
    %19 = vsyncpa [#allocation3], 0
    %20 = vsyncpa [#allocation5], 0
    loop: start=0, step=1, limit=6
    $region2: #{encoder_forward.16} parent=1 // loop_pre_header
      _
    $region3: #{encoder_forward.16} parent=1 // loop_header
      %s22 = sphi 0, %s26
      %p23 = scmp.ge.s32.totalorder %s22, 6
      %s32 = sphi 0, %s34
      %s35 = sphi 0, %s32
      %s36 = sphi 0, %s35
      %s52 = sphi 0, %s36
      %s56 = sphi 0, %s56
      %s58 = sphi 0, %s56
      %s59 = sphi 0, %s58
      %s73 = sphi 0, %s59
      %s77 = sphi 0, %s77
      %s79 = sphi 0, %s77
      %s80 = sphi 0, %s79
      %s94 = sphi 0, %s80
      %s98 = sphi 0, %s98
      %s100 = sphi 0, %s98
      %s101 = sphi 0, %s100
      %s115 = sphi 0, %s101
      %s119 = sphi 0, %s119
      %s121 = sphi 0, %s119
      %s122 = sphi 0, %s121
      %s136 = sphi 0, %s122
      %s140 = sphi 0, %s140
      %s142 = sphi 0, %s140
      %s143 = sphi 0, %s142
      %s157 = sphi 0, %s143
      %s161 = sphi 0, %s161
      %s163 = sphi 0, %s161
      %s164 = sphi 0, %s163
      %s178 = sphi 0, %s164
      %s182 = sphi 0, %s182
      %s184 = sphi 0, %s182
      %s185 = sphi 0, %s184
      %s199 = sphi 0, %s185
      %s203 = sphi 0, %s203
      %s205 = sphi 0, %s203
      %s206 = sphi 0, %s205
      %s220 = sphi 0, %s206
      %s224 = sphi 0, %s224
      %s226 = sphi 0, %s224
      %s227 = sphi 0, %s226
      %s241 = sphi 0, %s227
      %s245 = sphi 0, %s245
      %s247 = sphi 0, %s245
      %s248 = sphi 0, %s247
      %s262 = sphi 0, %s248
      %s266 = sphi 0, %s266
      %s268 = sphi 0, %s266
      %s269 = sphi 0, %s268
      %s283 = sphi 0, %s269
      %s287 = sphi 0, %s287
      %s289 = sphi 0, %s287
      %s290 = sphi 0, %s289
      %s304 = sphi 0, %s290
      %s308 = sphi 0, %s308
      %s310 = sphi 0, %s308
      %s311 = sphi 0, %s310
      %s325 = sphi 0, %s311
      %s331 = sphi 0, %s333
      %s334 = sphi 0, %s331
      %s335 = sphi 0, %s334
      %s351 = sphi 0, %s335
    $region4: #{encoder_forward.16} parent=1 // loop_header_branch
      %25 = sbr.rel (%p23) target = $region8
    $region5: #{encoder_forward.16} parent=1 // loop_body
      %s27 = ssub.s32 %s22, 1
      %s28 = ssub.s32 %s22, 2
      %s29 = sadd.s32 %s22, 1
      %s30 = ssub.s32 %s22, %s29
      %p31 = scmp.eq.s32.totalorder %s30, 0
      %s33 = sadd.s32 %s32, 1
      %s34 = scalar_select %p31, %s32, %s33
      %p37 = pneg %p31
      %p38 = scmp.eq.s32.totalorder %s22, 3
      %p39 = por %p37, %p38
      %p40 = scmp.ne.s32.totalorder %s32, %s35
      %p41 = scmp.eq.s32.totalorder %s22, 0
      %p42 = por %p40, %p41
      %p43 = scmp.ne.s32.totalorder %s32, %s35
      %p44 = scmp.eq.s32.totalorder %s27, 3
      %p45 = por %p43, %p44
      %p46 = scmp.ne.s32.totalorder %s35, %s36
      %p47 = scmp.eq.s32.totalorder %s27, 0
      %p48 = por %p46, %p47
      %p49 = scmp.ne.s32.totalorder %s35, %s36
      %p50 = scmp.eq.s32.totalorder %s28, 3
      %p51 = por %p49, %p50
      %p53 = scmp.ne.s32.totalorder %s36, %s52
      %p54 = scmp.eq.s32.totalorder %s28, 0
      %p55 = por %p53, %p54
      %s57 = sadd.s32 %s56, 1
      %p60 = scmp.eq.s32.totalorder %s22, 3
      %p61 = scmp.ne.s32.totalorder %s56, %s58
      %p62 = scmp.eq.s32.totalorder %s22, 0
      %p63 = por %p61, %p62
      %p64 = scmp.ne.s32.totalorder %s56, %s58
      %p65 = scmp.eq.s32.totalorder %s27, 3
      %p66 = por %p64, %p65
      %p67 = scmp.ne.s32.totalorder %s58, %s59
      %p68 = scmp.eq.s32.totalorder %s27, 0
      %p69 = por %p67, %p68
      %p70 = scmp.ne.s32.totalorder %s58, %s59
      %p71 = scmp.eq.s32.totalorder %s28, 3
      %p72 = por %p70, %p71
      %p74 = scmp.ne.s32.totalorder %s59, %s73
      %p75 = scmp.eq.s32.totalorder %s28, 0
      %p76 = por %p74, %p75
      %s78 = sadd.s32 %s77, 1
      %p81 = scmp.eq.s32.totalorder %s22, 3
      %p82 = scmp.ne.s32.totalorder %s77, %s79
      %p83 = scmp.eq.s32.totalorder %s22, 0
      %p84 = por %p82, %p83
      %p85 = scmp.ne.s32.totalorder %s77, %s79
      %p86 = scmp.eq.s32.totalorder %s27, 3
      %p87 = por %p85, %p86
      %p88 = scmp.ne.s32.totalorder %s79, %s80
      %p89 = scmp.eq.s32.totalorder %s27, 0
      %p90 = por %p88, %p89
      %p91 = scmp.ne.s32.totalorder %s79, %s80
      %p92 = scmp.eq.s32.totalorder %s28, 3
      %p93 = por %p91, %p92
      %p95 = scmp.ne.s32.totalorder %s80, %s94
      %p96 = scmp.eq.s32.totalorder %s28, 0
      %p97 = por %p95, %p96
      %s99 = sadd.s32 %s98, 1
      %p102 = scmp.eq.s32.totalorder %s22, 3
      %p103 = scmp.ne.s32.totalorder %s98, %s100
      %p104 = scmp.eq.s32.totalorder %s22, 0
      %p105 = por %p103, %p104
      %p106 = scmp.ne.s32.totalorder %s98, %s100
      %p107 = scmp.eq.s32.totalorder %s27, 3
      %p108 = por %p106, %p107
      %p109 = scmp.ne.s32.totalorder %s100, %s101
      %p110 = scmp.eq.s32.totalorder %s27, 0
      %p111 = por %p109, %p110
      %p112 = scmp.ne.s32.totalorder %s100, %s101
      %p113 = scmp.eq.s32.totalorder %s28, 3
      %p114 = por %p112, %p113
      %p116 = scmp.ne.s32.totalorder %s101, %s115
      %p117 = scmp.eq.s32.totalorder %s28, 0
      %p118 = por %p116, %p117
      %s120 = sadd.s32 %s119, 1
      %p123 = scmp.eq.s32.totalorder %s22, 3
      %p124 = scmp.ne.s32.totalorder %s119, %s121
      %p125 = scmp.eq.s32.totalorder %s22, 0
      %p126 = por %p124, %p125
      %p127 = scmp.ne.s32.totalorder %s119, %s121
      %p128 = scmp.eq.s32.totalorder %s27, 3
      %p129 = por %p127, %p128
      %p130 = scmp.ne.s32.totalorder %s121, %s122
      %p131 = scmp.eq.s32.totalorder %s27, 0
      %p132 = por %p130, %p131
      %p133 = scmp.ne.s32.totalorder %s121, %s122
      %p134 = scmp.eq.s32.totalorder %s28, 3
      %p135 = por %p133, %p134
      %p137 = scmp.ne.s32.totalorder %s122, %s136
      %p138 = scmp.eq.s32.totalorder %s28, 0
      %p139 = por %p137, %p138
      %s141 = sadd.s32 %s140, 1
      %p144 = scmp.eq.s32.totalorder %s22, 3
      %p145 = scmp.ne.s32.totalorder %s140, %s142
      %p146 = scmp.eq.s32.totalorder %s22, 0
      %p147 = por %p145, %p146
      %p148 = scmp.ne.s32.totalorder %s140, %s142
      %p149 = scmp.eq.s32.totalorder %s27, 3
      %p150 = por %p148, %p149
      %p151 = scmp.ne.s32.totalorder %s142, %s143
      %p152 = scmp.eq.s32.totalorder %s27, 0
      %p153 = por %p151, %p152
      %p154 = scmp.ne.s32.totalorder %s142, %s143
      %p155 = scmp.eq.s32.totalorder %s28, 3
      %p156 = por %p154, %p155
      %p158 = scmp.ne.s32.totalorder %s143, %s157
      %p159 = scmp.eq.s32.totalorder %s28, 0
      %p160 = por %p158, %p159
      %s162 = sadd.s32 %s161, 1
      %p165 = scmp.eq.s32.totalorder %s22, 3
      %p166 = scmp.ne.s32.totalorder %s161, %s163
      %p167 = scmp.eq.s32.totalorder %s22, 0
      %p168 = por %p166, %p167
      %p169 = scmp.ne.s32.totalorder %s161, %s163
      %p170 = scmp.eq.s32.totalorder %s27, 3
      %p171 = por %p169, %p170
      %p172 = scmp.ne.s32.totalorder %s163, %s164
      %p173 = scmp.eq.s32.totalorder %s27, 0
      %p174 = por %p172, %p173
      %p175 = scmp.ne.s32.totalorder %s163, %s164
      %p176 = scmp.eq.s32.totalorder %s28, 3
      %p177 = por %p175, %p176
      %p179 = scmp.ne.s32.totalorder %s164, %s178
      %p180 = scmp.eq.s32.totalorder %s28, 0
      %p181 = por %p179, %p180
      %s183 = sadd.s32 %s182, 1
      %p186 = scmp.eq.s32.totalorder %s22, 3
      %p187 = scmp.ne.s32.totalorder %s182, %s184
      %p188 = scmp.eq.s32.totalorder %s22, 0
      %p189 = por %p187, %p188
      %p190 = scmp.ne.s32.totalorder %s182, %s184
      %p191 = scmp.eq.s32.totalorder %s27, 3
      %p192 = por %p190, %p191
      %p193 = scmp.ne.s32.totalorder %s184, %s185
      %p194 = scmp.eq.s32.totalorder %s27, 0
      %p195 = por %p193, %p194
      %p196 = scmp.ne.s32.totalorder %s184, %s185
      %p197 = scmp.eq.s32.totalorder %s28, 3
      %p198 = por %p196, %p197
      %p200 = scmp.ne.s32.totalorder %s185, %s199
      %p201 = scmp.eq.s32.totalorder %s28, 0
      %p202 = por %p200, %p201
      %s204 = sadd.s32 %s203, 1
      %p207 = scmp.eq.s32.totalorder %s22, 3
      %p208 = scmp.ne.s32.totalorder %s203, %s205
      %p209 = scmp.eq.s32.totalorder %s22, 0
      %p210 = por %p208, %p209
      %p211 = scmp.ne.s32.totalorder %s203, %s205
      %p212 = scmp.eq.s32.totalorder %s27, 3
      %p213 = por %p211, %p212
      %p214 = scmp.ne.s32.totalorder %s205, %s206
      %p215 = scmp.eq.s32.totalorder %s27, 0
      %p216 = por %p214, %p215
      %p217 = scmp.ne.s32.totalorder %s205, %s206
      %p218 = scmp.eq.s32.totalorder %s28, 3
      %p219 = por %p217, %p218
      %p221 = scmp.ne.s32.totalorder %s206, %s220
      %p222 = scmp.eq.s32.totalorder %s28, 0
      %p223 = por %p221, %p222
      %s225 = sadd.s32 %s224, 1
      %p228 = scmp.eq.s32.totalorder %s22, 3
      %p229 = scmp.ne.s32.totalorder %s224, %s226
      %p230 = scmp.eq.s32.totalorder %s22, 0
      %p231 = por %p229, %p230
      %p232 = scmp.ne.s32.totalorder %s224, %s226
      %p233 = scmp.eq.s32.totalorder %s27, 3
      %p234 = por %p232, %p233
      %p235 = scmp.ne.s32.totalorder %s226, %s227
      %p236 = scmp.eq.s32.totalorder %s27, 0
      %p237 = por %p235, %p236
      %p238 = scmp.ne.s32.totalorder %s226, %s227
      %p239 = scmp.eq.s32.totalorder %s28, 3
      %p240 = por %p238, %p239
      %p242 = scmp.ne.s32.totalorder %s227, %s241
      %p243 = scmp.eq.s32.totalorder %s28, 0
      %p244 = por %p242, %p243
      %s246 = sadd.s32 %s245, 1
      %p249 = scmp.eq.s32.totalorder %s22, 3
      %p250 = scmp.ne.s32.totalorder %s245, %s247
      %p251 = scmp.eq.s32.totalorder %s22, 0
      %p252 = por %p250, %p251
      %p253 = scmp.ne.s32.totalorder %s245, %s247
      %p254 = scmp.eq.s32.totalorder %s27, 3
      %p255 = por %p253, %p254
      %p256 = scmp.ne.s32.totalorder %s247, %s248
      %p257 = scmp.eq.s32.totalorder %s27, 0
      %p258 = por %p256, %p257
      %p259 = scmp.ne.s32.totalorder %s247, %s248
      %p260 = scmp.eq.s32.totalorder %s28, 3
      %p261 = por %p259, %p260
      %p263 = scmp.ne.s32.totalorder %s248, %s262
      %p264 = scmp.eq.s32.totalorder %s28, 0
      %p265 = por %p263, %p264
      %s267 = sadd.s32 %s266, 1
      %p270 = scmp.eq.s32.totalorder %s22, 3
      %p271 = scmp.ne.s32.totalorder %s266, %s268
      %p272 = scmp.eq.s32.totalorder %s22, 0
      %p273 = por %p271, %p272
      %p274 = scmp.ne.s32.totalorder %s266, %s268
      %p275 = scmp.eq.s32.totalorder %s27, 3
      %p276 = por %p274, %p275
      %p277 = scmp.ne.s32.totalorder %s268, %s269
      %p278 = scmp.eq.s32.totalorder %s27, 0
      %p279 = por %p277, %p278
      %p280 = scmp.ne.s32.totalorder %s268, %s269
      %p281 = scmp.eq.s32.totalorder %s28, 3
      %p282 = por %p280, %p281
      %p284 = scmp.ne.s32.totalorder %s269, %s283
      %p285 = scmp.eq.s32.totalorder %s28, 0
      %p286 = por %p284, %p285
      %s288 = sadd.s32 %s287, 1
      %p291 = scmp.eq.s32.totalorder %s22, 3
      %p292 = scmp.ne.s32.totalorder %s287, %s289
      %p293 = scmp.eq.s32.totalorder %s22, 0
      %p294 = por %p292, %p293
      %p295 = scmp.ne.s32.totalorder %s287, %s289
      %p296 = scmp.eq.s32.totalorder %s27, 3
      %p297 = por %p295, %p296
      %p298 = scmp.ne.s32.totalorder %s289, %s290
      %p299 = scmp.eq.s32.totalorder %s27, 0
      %p300 = por %p298, %p299
      %p301 = scmp.ne.s32.totalorder %s289, %s290
      %p302 = scmp.eq.s32.totalorder %s28, 3
      %p303 = por %p301, %p302
      %p305 = scmp.ne.s32.totalorder %s290, %s304
      %p306 = scmp.eq.s32.totalorder %s28, 0
      %p307 = por %p305, %p306
      %s309 = sadd.s32 %s308, 1
      %p312 = scmp.eq.s32.totalorder %s22, 3
      %p313 = scmp.ne.s32.totalorder %s308, %s310
      %p314 = scmp.eq.s32.totalorder %s22, 0
      %p315 = por %p313, %p314
      %p316 = scmp.ne.s32.totalorder %s308, %s310
      %p317 = scmp.eq.s32.totalorder %s27, 3
      %p318 = por %p316, %p317
      %p319 = scmp.ne.s32.totalorder %s310, %s311
      %p320 = scmp.eq.s32.totalorder %s27, 0
      %p321 = por %p319, %p320
      %p322 = scmp.ne.s32.totalorder %s310, %s311
      %p323 = scmp.eq.s32.totalorder %s28, 3
      %p324 = por %p322, %p323
      %p326 = scmp.ne.s32.totalorder %s311, %s325
      %p327 = scmp.eq.s32.totalorder %s28, 0
      %p328 = por %p326, %p327
      %s329 = ssub.s32 %s22, %s29
      %p330 = scmp.eq.s32.totalorder %s329, 0
      %s332 = sadd.s32 %s331, 1
      %s333 = scalar_select %p330, %s331, %s332
      %p336 = pneg %p330
      %p337 = scmp.eq.s32.totalorder %s22, 3
      %p338 = por %p336, %p337
      %p339 = scmp.ne.s32.totalorder %s331, %s334
      %p340 = scmp.eq.s32.totalorder %s22, 0
      %p341 = por %p339, %p340
      %p342 = scmp.ne.s32.totalorder %s331, %s334
      %p343 = scmp.eq.s32.totalorder %s27, 3
      %p344 = por %p342, %p343
      %p345 = scmp.ne.s32.totalorder %s334, %s335
      %p346 = scmp.eq.s32.totalorder %s27, 0
      %p347 = por %p345, %p346
      %p348 = scmp.ne.s32.totalorder %s334, %s335
      %p349 = scmp.eq.s32.totalorder %s28, 3
      %p350 = por %p348, %p349
      %p352 = scmp.ne.s32.totalorder %s335, %s351
      %p353 = scmp.eq.s32.totalorder %s28, 0
      %p354 = por %p352, %p353
      %p355 = scmp.le.s32.totalorder 1, %s22
      %p356 = scmp.lt.s32.totalorder %s22, 5
      %p357 = pnand %p355, %p356
      %p358 = pneg %p357
      // Predicated region
      $region9: #{encoder_forward.16} parent=5 // pred_check
        _
      $region10: #{encoder_forward.16} parent=5 // pred_check_branch
        %360 = sbr.rel (%p357) target = $region12
      $region11: #{encoder_forward.16} parent=5 // pred_region
        %s361 = ssub.s32 %s22, 1
        // Predicated region
        $region13: #{encoder_forward.16} parent=11 // pred_check
          %p362 = pneg %p69
        $region14: #{encoder_forward.16} parent=11 // pred_check_branch
          %364 = sbr.rel (%p362) target = $region16
        $region15: #{encoder_forward.16} parent=11 // pred_region
          _
        $region16: #{encoder_forward.16} parent=11 // pred_fallthru
          _
        // Predicated region
        $region17: #{encoder_forward.16} parent=11 // pred_check
          %p365 = pneg %p90
        $region18: #{encoder_forward.16} parent=11 // pred_check_branch
          %367 = sbr.rel (%p365) target = $region20
        $region19: #{encoder_forward.16} parent=11 // pred_region
          _
        $region20: #{encoder_forward.16} parent=11 // pred_fallthru
          _
        // Predicated region
        $region21: #{encoder_forward.16} parent=11 // pred_check
          %p368 = pneg %p111
        $region22: #{encoder_forward.16} parent=11 // pred_check_branch
          %370 = sbr.rel (%p368) target = $region24
        $region23: #{encoder_forward.16} parent=11 // pred_region
          _
        $region24: #{encoder_forward.16} parent=11 // pred_fallthru
          _
        // Predicated region
        $region25: #{encoder_forward.16} parent=11 // pred_check
          %p371 = pneg %p132
        $region26: #{encoder_forward.16} parent=11 // pred_check_branch
          %373 = sbr.rel (%p371) target = $region28
        $region27: #{encoder_forward.16} parent=11 // pred_region
          %375 = vsyncadd [#allocation3], 0
          %s376 = sshll.u32 %s4, 4
          %s377 = int_to_ptr.hbm [resolvable:$true] %s376
          %s378 = sshll.u32 [#allocation2], 4
          %s379 = int_to_ptr.vmem [resolvable:$true] %s378
          %384 = dma.hbm_to_vmem [thread:$0]  %s377, 256, %s379, [#allocation3], 64, 64, 4
        $region28: #{encoder_forward.16} parent=11 // pred_fallthru
          _
        // Predicated region
        $region29: #{encoder_forward.16} parent=11 // pred_check
          %p385 = pneg %p153
        $region30: #{encoder_forward.16} parent=11 // pred_check_branch
          %387 = sbr.rel (%p385) target = $region32
        $region31: #{encoder_forward.16} parent=11 // pred_region
          _
        $region32: #{encoder_forward.16} parent=11 // pred_fallthru
          _
        // Predicated region
        $region33: #{encoder_forward.16} parent=11 // pred_check
          %p388 = pneg %p174
        $region34: #{encoder_forward.16} parent=11 // pred_check_branch
          %390 = sbr.rel (%p388) target = $region36
        $region35: #{encoder_forward.16} parent=11 // pred_region
          %392 = vsyncadd [#allocation5], 0
          %s393 = sshll.u32 %s6, 4
          %s394 = int_to_ptr.hbm [resolvable:$true] %s393
          %s395 = sshll.u32 [#allocation4], 4
          %s396 = int_to_ptr.vmem [resolvable:$true] %s395
          %401 = dma.hbm_to_vmem [thread:$0]  %s394, 256, %s396, [#allocation5], 64, 64, 4
        $region36: #{encoder_forward.16} parent=11 // pred_fallthru
          _
        // Predicated region
        $region37: #{encoder_forward.16} parent=11 // pred_check
          %p402 = pneg %p195
        $region38: #{encoder_forward.16} parent=11 // pred_check_branch
          %404 = sbr.rel (%p402) target = $region40
        $region39: #{encoder_forward.16} parent=11 // pred_region
          _
        $region40: #{encoder_forward.16} parent=11 // pred_fallthru
          _
        // Predicated region
        $region41: #{encoder_forward.16} parent=11 // pred_check
          %p405 = pneg %p216
        $region42: #{encoder_forward.16} parent=11 // pred_check_branch
          %407 = sbr.rel (%p405) target = $region44
        $region43: #{encoder_forward.16} parent=11 // pred_region
          %409 = vsyncadd [#allocation5], 0
          %s410 = sshll.u32 %s8, 4
          %s411 = int_to_ptr.hbm [resolvable:$true] %s410
          %s412 = sshll.u32 [#allocation6], 4
          %s413 = int_to_ptr.vmem [resolvable:$true] %s412
          %418 = dma.hbm_to_vmem [thread:$0]  %s411, 256, %s413, [#allocation5], 64, 64, 4
        $region44: #{encoder_forward.16} parent=11 // pred_fallthru
          _
        // Predicated region
        $region45: #{encoder_forward.16} parent=11 // pred_check
          %p419 = pneg %p237
        $region46: #{encoder_forward.16} parent=11 // pred_check_branch
          %421 = sbr.rel (%p419) target = $region48
        $region47: #{encoder_forward.16} parent=11 // pred_region
          _
        $region48: #{encoder_forward.16} parent=11 // pred_fallthru
          _
        // Predicated region
        $region49: #{encoder_forward.16} parent=11 // pred_check
          %p422 = pneg %p258
        $region50: #{encoder_forward.16} parent=11 // pred_check_branch
          %424 = sbr.rel (%p422) target = $region52
        $region51: #{encoder_forward.16} parent=11 // pred_region
          _
        $region52: #{encoder_forward.16} parent=11 // pred_fallthru
          _
        // Predicated region
        $region53: #{encoder_forward.16} parent=11 // pred_check
          %p425 = pneg %p279
        $region54: #{encoder_forward.16} parent=11 // pred_check_branch
          %427 = sbr.rel (%p425) target = $region56
        $region55: #{encoder_forward.16} parent=11 // pred_region
          _
        $region56: #{encoder_forward.16} parent=11 // pred_fallthru
          _
        // Predicated region
        $region57: #{encoder_forward.16} parent=11 // pred_check
          %p428 = pneg %p300
        $region58: #{encoder_forward.16} parent=11 // pred_check_branch
          %430 = sbr.rel (%p428) target = $region60
        $region59: #{encoder_forward.16} parent=11 // pred_region
          _
        $region60: #{encoder_forward.16} parent=11 // pred_fallthru
          _
        // Predicated region
        $region61: #{encoder_forward.16} parent=11 // pred_check
          %p431 = pneg %p321
        $region62: #{encoder_forward.16} parent=11 // pred_check_branch
          %433 = sbr.rel (%p431) target = $region64
        $region63: #{encoder_forward.16} parent=11 // pred_region
          _
        $region64: #{encoder_forward.16} parent=11 // pred_fallthru
          _
      $region12: #{encoder_forward.16} parent=5 // pred_fallthru
        _
      %p434 = scmp.lt.s32.totalorder %s22, 4
      // Predicated region
      $region65: #{encoder_forward.16} parent=5 // pred_check
        %p435 = pneg %p434
      $region66: #{encoder_forward.16} parent=5 // pred_check_branch
        %437 = sbr.rel (%p435) target = $region68
      $region67: #{encoder_forward.16} parent=5 // pred_region
        // Predicated region
        $region69: #{encoder_forward.16} parent=67 // pred_check
          %p438 = pneg %p42
        $region70: #{encoder_forward.16} parent=67 // pred_check_branch
          %440 = sbr.rel (%p438) target = $region72
        $region71: #{encoder_forward.16} parent=67 // pred_region
          %p441 = scmp.lt.s32.totalorder %s22, 3
          %s442 = scalar_select %p441, %s22, 3
          %s443 = smul.addr %s442, 8
          %s444 = scalar_lea.vmem %s0, %s443
        $region72: #{encoder_forward.16} parent=67 // pred_fallthru
          _
      $region68: #{encoder_forward.16} parent=5 // pred_fallthru
        _
      %p445 = scmp.le.s32.totalorder 1, %s22
      %p446 = scmp.lt.s32.totalorder %s22, 5
      %p447 = pnand %p445, %p446
      %p448 = pneg %p447
      // Predicated region
      $region73: #{encoder_forward.16} parent=5 // pred_check
        _
      $region74: #{encoder_forward.16} parent=5 // pred_check_branch
        %450 = sbr.rel (%p447) target = $region76
      $region75: #{encoder_forward.16} parent=5 // pred_region
        %s451 = ssub.s32 %s22, 1
        // Predicated region
        $region77: #{encoder_forward.16} parent=75 // pred_check
          %p452 = pneg %p132
        $region78: #{encoder_forward.16} parent=75 // pred_check_branch
          %454 = sbr.rel (%p452) target = $region80
        $region79: #{encoder_forward.16} parent=75 // pred_region
          %456 = dma.done [#allocation3], 256
        $region80: #{encoder_forward.16} parent=75 // pred_fallthru
          _
        // Predicated region
        $region81: #{encoder_forward.16} parent=75 // pred_check
          %p457 = pneg %p174
        $region82: #{encoder_forward.16} parent=75 // pred_check_branch
          %459 = sbr.rel (%p457) target = $region84
        $region83: #{encoder_forward.16} parent=75 // pred_region
          %461 = dma.done [#allocation5], 256
        $region84: #{encoder_forward.16} parent=75 // pred_fallthru
          _
        // Predicated region
        $region85: #{encoder_forward.16} parent=75 // pred_check
          %p462 = pneg %p216
        $region86: #{encoder_forward.16} parent=75 // pred_check_branch
          %464 = sbr.rel (%p462) target = $region88
        $region87: #{encoder_forward.16} parent=75 // pred_region
          %466 = dma.done [#allocation5], 256
        $region88: #{encoder_forward.16} parent=75 // pred_fallthru
          _
        %p467 = scmp.lt.s32.totalorder %s27, 3
        %s468 = scalar_select %p467, %s27, 3
        %s469 = smul.addr %s468, 8
        %s470 = scalar_lea.vmem %s0, %s469
        %p471 = pneg %p48
        %p472 = pneg %p45
        %p473 = pneg %p69
        %p474 = pneg %p66
        %p475 = pneg %p90
        %p476 = pneg %p87
        %p477 = pneg %p111
        %p478 = pneg %p108
        %p479 = pneg %p132
        %p480 = pneg %p129
        %p481 = pneg %p153
        %p482 = pneg %p150
        %p483 = pneg %p174
        %p484 = pneg %p171
        %p485 = pneg %p195
        %p486 = pneg %p192
        %p487 = pneg %p216
        %p488 = pneg %p213
        %p489 = pneg %p237
        %p490 = pneg %p234
        %p491 = pneg %p258
        %p492 = pneg %p255
        %p493 = pneg %p279
        %p494 = pneg %p276
        %p495 = pneg %p300
        %p496 = pneg %p297
        %p497 = pneg %p321
        %p498 = pneg %p318
        %p499 = pneg %p347
        %p500 = pneg %p344
        %p501 = scmp.lt.s32.totalorder %s27, 3
        %s502 = scalar_select %p501, %s27, 3
        %s503 = smul.addr %s502, 8
        %s504 = scalar_lea.vmem %s14, %s503
        %p505 = scmp.lt.s32.totalorder %s27, 3
        %s506 = scalar_select %p505, %s27, 3
        %s507 = smul.addr %s506, 8
        %s508 = scalar_lea.vmem %s0, %s507
        %p509 = scmp.lt.s32.totalorder %s27, 3
        %s510 = scalar_select %p509, %s27, 3
        %s511 = smul.addr %s510, 8
        %s512 = scalar_lea.vmem %s14, %s511
        %v514 = vld [vmem:[%s508] sm:$0xff]
        %vm515 = vcmask 261120
        %v516 = vsel %vm515, %v514, 0.0
        %517 = vadd.xlane.f32.xlu0 %v516
        %v518 = vpop.xlane.xlu0 %517
        %v519 = vrcp.pop 32.0
        %v520 = vmul.f32 32.0, %v519
        %v521 = vsub.f32 1.0, %v520
        %v522 = vmul.f32 %v519, %v521
        %v523 = vadd.f32 %v519, %v522
        %vm524 = vweird.f32 %v519
        %v525 = vsel %vm524, %v519, %v523
        %v526 = vmul.f32 %v518, %v525
        %v527 = vsub.f32 %v514, %v526
        %v528 = vmul.f32 %v527, %v527
        %v529 = vsel %vm515, %v528, 0.0
        %530 = vadd.xlane.f32.xlu0 %v529
        %v531 = vpop.xlane.xlu0 %530
        %v532 = vmul.f32 %v531, %v525
        %v533 = vadd.f32 %v532, 1e-05
        %v534 = vrsqrt.pop %v533
        %v535 = vmul.f32 %v534, %v533
        %v536 = vmul.f32 %v535, %v534
        %v537 = vmul.f32 0.5, %v536
        %v538 = vsub.f32 1.5, %v537
        %v539 = vmul.f32 %v534, %v538
        %vm540 = vweird.f32 %v533
        %vm541 = vweird.f32 %v534
        %vm542 = vmor %vm540, %vm541
        %v543 = vsel %vm542, %v534, %v539
        %v544 = vmul.f32 %v527, %v543
        %v545 = vld [vmem:[%s2] sm:$0x1]
        %v547 = vperm.slane %v545, 0
        %v549 = vmul.f32 %v544, %v547
        %v550 = vld [vmem:[%s3] sm:$0x1]
        %v552 = vperm.slane %v550, 0
        %v554 = vadd.f32 %v549, %v552
        %v555 = vpack.c.bf16 %v554, %v554
        %v556 = vld [vmem:[#allocation2] sm:$0xf]
        %v557 = vld [vmem:[#allocation2 + $0x4] sm:$0xf]
        %v558 = vld [vmem:[#allocation2 + $0x8] sm:$0xf]
        %v559 = vld [vmem:[#allocation2 + $0xc] sm:$0xf]
        %v560 = vld [vmem:[%s5] sm:$0x1]
        %v562 = vperm.slane %v560, 0
        %v568 = vunpack.c.l.b16 %v556
        %v569 = vunpack.c.l.b16 %v557
        %v570 = vunpack.c.l.b16 %v558
        %v571 = vunpack.c.l.b16 %v559
        %v572 = vpack.c.b16 %v569, %v568
        %v573 = vpack.c.b16 %v571, %v570
        %v577 = vsel %vm515, %v555, 0
        %579 = vmatpush.bf16.msra.mxu0 0
        %580 = vmatpush.bf16.msra.mxu0 0
        %581 = vmatpush.bf16.msra.mxu0 0
        %582 = vmatpush.bf16.msra.mxu0 0
        %583 = vmatpush.bf16.msra.mxu0 0
        %584 = vmatpush.bf16.msra.mxu0 0
        %585 = vmatpush.bf16.msra.mxu0 %v573
        %586 = vmatpush.bf16.msra.mxu0 %v572
        %587 = vmatmul.bf16.gmra.mxu0 %v577
        %v588 = vpop.f32.mrf.mxu0
        %v589 = vadd.f32 %v562, %v588
        %v590 = vpop.f32.mrf.mxu0
        %591 = vdwg.mxu0
        %s592 = scalar_lea.vmem %s1, %s27
        %v593 = vld [vmem:[%s592] sm:$0x1]
        %v594 = vmul.f32 %v593, -1e+09
        %v595 = vpack.c.bf16 %v589, %v589
        %597 = vrot.lane.b32.xlu0 %v595, 96
        %v598 = vpop.permute.xlu0 %597
        %vm599 = vcmask 64512
        %v601 = vsel %vm599, %v595, 0
        %v604 = vsel %vm599, %v598, 0
        %606 = vmatpush.bf16.xpose.msra.mxu0 0
        %607 = vmatpush.bf16.xpose.msra.mxu0 0
        %608 = vmatpush.bf16.xpose.msra.mxu0 0
        %609 = vmatpush.bf16.xpose.msra.mxu0 0
        %610 = vmatpush.bf16.xpose.msra.mxu0 0
        %611 = vmatpush.bf16.xpose.msra.mxu0 0
        %612 = vmatpush.bf16.xpose.msra.mxu0 0
        %613 = vmatpush.bf16.xpose.msra.mxu0 %v604
        %614 = vmatmul.bf16.gmra.mxu0 %v601
        %v615 = vpop.f32.mrf.mxu0
        %v616 = vadd.f32 0.0, %v615
        %v617 = vpop.f32.mrf.mxu0
        %618 = vdwg.mxu0
        %v619 = vmul.f32 %v616, 0.35355338
        %v620 = vperm.slane %v594, 0
        %v621 = vadd.f32 %v619, %v620
        %v622 = vsel %vm599, %v621, -inf
        %623 = vmax.xlane.f32.xlu0 %v622
        %v624 = vpop.xlane.xlu0 %623
        %v625 = vsub.f32 %v621, %v624
        %v626 = vmul.f32 %v625, 1.442695
        %v627 = vpow.pop %v626
        %v628 = vsel %vm599, %v627, 0.0
        %629 = vadd.xlane.f32.xlu0 %v628
        %v630 = vpop.xlane.xlu0 %629
        %v631 = vrcp.pop %v630
        %v632 = vmul.f32 %v627, %v631
        %v633 = vpack.c.bf16 %v632, %v632
        %634 = vrot.lane.b32.xlu0 %v595, 64
        %v635 = vpop.permute.xlu0 %634
        %v637 = vsel %vm599, %v633, 0
        %vm639 = vcmask 1043456
        %v641 = vsel %vm639, %v635, 0
        %643 = vmatpush.bf16.msra.mxu0 0
        %644 = vmatpush.bf16.msra.mxu0 0
        %645 = vmatpush.bf16.msra.mxu0 0
        %646 = vmatpush.bf16.msra.mxu0 0
        %647 = vmatpush.bf16.msra.mxu0 0
        %648 = vmatpush.bf16.msra.mxu0 0
        %649 = vmatpush.bf16.msra.mxu0 0
        %650 = vmatpush.bf16.msra.mxu0 %v641
        %651 = vmatmul.bf16.gmra.mxu0 %v637
        %v652 = vpop.f32.mrf.mxu0
        %v653 = vadd.f32 0.0, %v652
        %v654 = vpop.f32.mrf.mxu0
        %655 = vdwg.mxu0
        %656 = vrot.lane.b32.xlu0 %v595, 120
        %v657 = vpop.permute.xlu0 %656
        %658 = vrot.lane.b32.xlu0 %v595, 88
        %v659 = vpop.permute.xlu0 %658
        %v661 = vsel %vm599, %v657, 0
        %v664 = vsel %vm599, %v659, 0
        %666 = vmatpush.bf16.xpose.msra.mxu0 0
        %667 = vmatpush.bf16.xpose.msra.mxu0 0
        %668 = vmatpush.bf16.xpose.msra.mxu0 0
        %669 = vmatpush.bf16.xpose.msra.mxu0 0
        %670 = vmatpush.bf16.xpose.msra.mxu0 0
        %671 = vmatpush.bf16.xpose.msra.mxu0 0
        %672 = vmatpush.bf16.xpose.msra.mxu0 0
        %673 = vmatpush.bf16.xpose.msra.mxu0 %v664
        %674 = vmatmul.bf16.gmra.mxu0 %v661
        %v675 = vpop.f32.mrf.mxu0
        %v676 = vadd.f32 0.0, %v675
        %v677 = vpop.f32.mrf.mxu0
        %678 = vdwg.mxu0
        %v679 = vmul.f32 %v676, 0.35355338
        %v680 = vadd.f32 %v679, %v620
        %v681 = vsel %vm599, %v680, -inf
        %682 = vmax.xlane.f32.xlu0 %v681
        %v683 = vpop.xlane.xlu0 %682
        %v684 = vsub.f32 %v680, %v683
        %v685 = vmul.f32 %v684, 1.442695
        %v686 = vpow.pop %v685
        %v687 = vsel %vm599, %v686, 0.0
        %688 = vadd.xlane.f32.xlu0 %v687
        %v689 = vpop.xlane.xlu0 %688
        %v690 = vrcp.pop %v689
        %v691 = vmul.f32 %v686, %v690
        %v692 = vpack.c.bf16 %v691, %v691
        %693 = vrot.lane.b32.xlu0 %v595, 56
        %v694 = vpop.permute.xlu0 %693
        %v696 = vsel %vm599, %v692, 0
        %v699 = vsel %vm639, %v694, 0
        %701 = vmatpush.bf16.msra.mxu0 0
        %702 = vmatpush.bf16.msra.mxu0 0
        %703 = vmatpush.bf16.msra.mxu0 0
        %704 = vmatpush.bf16.msra.mxu0 0
        %705 = vmatpush.bf16.msra.mxu0 0
        %706 = vmatpush.bf16.msra.mxu0 0
        %707 = vmatpush.bf16.msra.mxu0 0
        %708 = vmatpush.bf16.msra.mxu0 %v699
        %709 = vmatmul.bf16.gmra.mxu0 %v696
        %v710 = vpop.f32.mrf.mxu0
        %v711 = vadd.f32 0.0, %v710
        %v712 = vpop.f32.mrf.mxu0
        %713 = vdwg.mxu0
        %714 = vrot.lane.b32.xlu0 %v595, 112
        %v715 = vpop.permute.xlu0 %714
        %716 = vrot.lane.b32.xlu0 %v595, 80
        %v717 = vpop.permute.xlu0 %716
        %v719 = vsel %vm599, %v715, 0
        %v722 = vsel %vm599, %v717, 0
        %724 = vmatpush.bf16.xpose.msra.mxu0 0
        %725 = vmatpush.bf16.xpose.msra.mxu0 0
        %726 = vmatpush.bf16.xpose.msra.mxu0 0
        %727 = vmatpush.bf16.xpose.msra.mxu0 0
        %728 = vmatpush.bf16.xpose.msra.mxu0 0
        %729 = vmatpush.bf16.xpose.msra.mxu0 0
        %730 = vmatpush.bf16.xpose.msra.mxu0 0
        %731 = vmatpush.bf16.xpose.msra.mxu0 %v722
        %732 = vmatmul.bf16.gmra.mxu0 %v719
        %v733 = vpop.f32.mrf.mxu0
        %v734 = vadd.f32 0.0, %v733
        %v735 = vpop.f32.mrf.mxu0
        %736 = vdwg.mxu0
        %v737 = vmul.f32 %v734, 0.35355338
        %v738 = vadd.f32 %v737, %v620
        %v739 = vsel %vm599, %v738, -inf
        %740 = vmax.xlane.f32.xlu0 %v739
        %v741 = vpop.xlane.xlu0 %740
        %v742 = vsub.f32 %v738, %v741
        %v743 = vmul.f32 %v742, 1.442695
        %v744 = vpow.pop %v743
        %v745 = vsel %vm599, %v744, 0.0
        %746 = vadd.xlane.f32.xlu0 %v745
        %v747 = vpop.xlane.xlu0 %746
        %v748 = vrcp.pop %v747
        %v749 = vmul.f32 %v744, %v748
        %v750 = vpack.c.bf16 %v749, %v749
        %751 = vrot.lane.b32.xlu0 %v595, 48
        %v752 = vpop.permute.xlu0 %751
        %v754 = vsel %vm599, %v750, 0
        %v757 = vsel %vm639, %v752, 0
        %759 = vmatpush.bf16.msra.mxu0 0
        %760 = vmatpush.bf16.msra.mxu0 0
        %761 = vmatpush.bf16.msra.mxu0 0
        %762 = vmatpush.bf16.msra.mxu0 0
        %763 = vmatpush.bf16.msra.mxu0 0
        %764 = vmatpush.bf16.msra.mxu0 0
        %765 = vmatpush.bf16.msra.mxu0 0
        %766 = vmatpush.bf16.msra.mxu0 %v757
        %767 = vmatmul.bf16.gmra.mxu0 %v754
        %v768 = vpop.f32.mrf.mxu0
        %v769 = vadd.f32 0.0, %v768
        %v770 = vpop.f32.mrf.mxu0
        %771 = vdwg.mxu0
        %772 = vrot.lane.b32.xlu0 %v595, 104
        %v773 = vpop.permute.xlu0 %772
        %774 = vrot.lane.b32.xlu0 %v595, 72
        %v775 = vpop.permute.xlu0 %774
        %v777 = vsel %vm599, %v773, 0
        %v780 = vsel %vm599, %v775, 0
        %782 = vmatpush.bf16.xpose.msra.mxu0 0
        %783 = vmatpush.bf16.xpose.msra.mxu0 0
        %784 = vmatpush.bf16.xpose.msra.mxu0 0
        %785 = vmatpush.bf16.xpose.msra.mxu0 0
        %786 = vmatpush.bf16.xpose.msra.mxu0 0
        %787 = vmatpush.bf16.xpose.msra.mxu0 0
        %788 = vmatpush.bf16.xpose.msra.mxu0 0
        %789 = vmatpush.bf16.xpose.msra.mxu0 %v780
        %790 = vmatmul.bf16.gmra.mxu0 %v777
        %v791 = vpop.f32.mrf.mxu0
        %v792 = vadd.f32 0.0, %v791
        %v793 = vpop.f32.mrf.mxu0
        %794 = vdwg.mxu0
        %v795 = vmul.f32 %v792, 0.35355338
        %v796 = vadd.f32 %v795, %v620
        %v797 = vsel %vm599, %v796, -inf
        %798 = vmax.xlane.f32.xlu0 %v797
        %v799 = vpop.xlane.xlu0 %798
        %v800 = vsub.f32 %v796, %v799
        %v801 = vmul.f32 %v800, 1.442695
        %v802 = vpow.pop %v801
        %v803 = vsel %vm599, %v802, 0.0
        %804 = vadd.xlane.f32.xlu0 %v803
        %v805 = vpop.xlane.xlu0 %804
        %v806 = vrcp.pop %v805
        %v807 = vmul.f32 %v802, %v806
        %v808 = vpack.c.bf16 %v807, %v807
        %809 = vrot.lane.b32.xlu0 %v595, 40
        %v810 = vpop.permute.xlu0 %809
        %v812 = vsel %vm599, %v808, 0
        %v815 = vsel %vm639, %v810, 0
        %817 = vmatpush.bf16.msra.mxu0 0
        %818 = vmatpush.bf16.msra.mxu0 0
        %819 = vmatpush.bf16.msra.mxu0 0
        %820 = vmatpush.bf16.msra.mxu0 0
        %821 = vmatpush.bf16.msra.mxu0 0
        %822 = vmatpush.bf16.msra.mxu0 0
        %823 = vmatpush.bf16.msra.mxu0 0
        %824 = vmatpush.bf16.msra.mxu0 %v815
        %825 = vmatmul.bf16.gmra.mxu0 %v812
        %v826 = vpop.f32.mrf.mxu0
        %v827 = vadd.f32 0.0, %v826
        %v828 = vpop.f32.mrf.mxu0
        %829 = vdwg.mxu0
        %831 = vrot.lane.b32.xlu0 %v711, 8
        %v832 = vpop.permute.xlu0 %831
        %835 = vrot.lane.b32.xlu0 %v769, 16
        %v836 = vpop.permute.xlu0 %835
        %839 = vrot.lane.b32.xlu0 %v827, 24
        %v840 = vpop.permute.xlu0 %839
        %v842 = vsel %vm599, %v653, %v832
        %vm843 = vcmask 130048
        %v844 = vsel %vm843, %v842, %v836
        %vm845 = vcmask 195584
        %v846 = vsel %vm845, %v844, %v840
        %v847 = vpack.c.bf16 %v846, %v846
        %v848 = vld [vmem:[#allocation4] sm:$0xf]
        %v849 = vld [vmem:[#allocation4 + $0x4] sm:$0xf]
        %v850 = vld [vmem:[#allocation4 + $0x8] sm:$0xf]
        %v851 = vld [vmem:[#allocation4 + $0xc] sm:$0xf]
        %v852 = vld [vmem:[%s7] sm:$0x1]
        %v854 = vperm.slane %v852, 0
        %v860 = vunpack.c.l.b16 %v848
        %v861 = vunpack.c.l.b16 %v849
        %v862 = vunpack.c.l.b16 %v850
        %v863 = vunpack.c.l.b16 %v851
        %v864 = vpack.c.b16 %v861, %v860
        %v865 = vpack.c.b16 %v863, %v862
        %v869 = vsel %vm515, %v847, 0
        %871 = vmatpush.bf16.msra.mxu0 0
        %872 = vmatpush.bf16.msra.mxu0 0
        %873 = vmatpush.bf16.msra.mxu0 0
        %874 = vmatpush.bf16.msra.mxu0 0
        %875 = vmatpush.bf16.msra.mxu0 0
        %876 = vmatpush.bf16.msra.mxu0 0
        %877 = vmatpush.bf16.msra.mxu0 %v865
        %878 = vmatpush.bf16.msra.mxu0 %v864
        %879 = vmatmul.bf16.gmra.mxu0 %v869
        %v880 = vpop.f32.mrf.mxu0
        %v881 = vadd.f32 %v854, %v880
        %v882 = vpop.f32.mrf.mxu0
        %883 = vdwg.mxu0
        %v884 = vadd.f32 %v514, %v881
        %v885 = vpack.c.bf16 %v884, %v884
        %v886 = vld [vmem:[#allocation6] sm:$0xf]
        %v887 = vld [vmem:[#allocation6 + $0x4] sm:$0xf]
        %v888 = vld [vmem:[#allocation6 + $0x8] sm:$0xf]
        %v889 = vld [vmem:[#allocation6 + $0xc] sm:$0xf]
        %v890 = vld [vmem:[%s9] sm:$0x1]
        %v892 = vperm.slane %v890, 0
        %v898 = vunpack.c.l.b16 %v886
        %v899 = vunpack.c.l.b16 %v887
        %v900 = vunpack.c.l.b16 %v888
        %v901 = vunpack.c.l.b16 %v889
        %v902 = vpack.c.b16 %v899, %v898
        %v903 = vpack.c.b16 %v901, %v900
        %v907 = vsel %vm515, %v885, 0
        %909 = vmatpush.bf16.msra.mxu0 0
        %910 = vmatpush.bf16.msra.mxu0 0
        %911 = vmatpush.bf16.msra.mxu0 0
        %912 = vmatpush.bf16.msra.mxu0 0
        %913 = vmatpush.bf16.msra.mxu0 0
        %914 = vmatpush.bf16.msra.mxu0 0
        %915 = vmatpush.bf16.msra.mxu0 %v903
        %916 = vmatpush.bf16.msra.mxu0 %v902
        %917 = vmatmul.bf16.gmra.mxu0 %v907
        %v918 = vpop.f32.mrf.mxu0
        %v919 = vadd.f32 %v892, %v918
        %v920 = vpop.f32.mrf.mxu0
        %921 = vdwg.mxu0
        %v922 = vmax.f32 %v919, 0.0
        %v923 = vpack.c.bf16 %v922, %v922
        %v924 = vld [vmem:[%s10] sm:$0xf]
        %v925 = vld [vmem:[%s10 + $0x4] sm:$0xf]
        %v926 = vld [vmem:[%s10 + $0x8] sm:$0xf]
        %v927 = vld [vmem:[%s10 + $0xc] sm:$0xf]
        %v928 = vld [vmem:[%s10 + $0x10] sm:$0xf]
        %v929 = vld [vmem:[%s10 + $0x14] sm:$0xf]
        %v930 = vld [vmem:[%s10 + $0x18] sm:$0xf]
        %v931 = vld [vmem:[%s10 + $0x1c] sm:$0xf]
        %v932 = vld [vmem:[%s11] sm:$0x1]
        %v934 = vperm.slane %v932, 0
        %v944 = vunpack.c.l.b16 %v924
        %v945 = vunpack.c.l.b16 %v925
        %v946 = vunpack.c.l.b16 %v926
        %v947 = vunpack.c.l.b16 %v927
        %v948 = vunpack.c.l.b16 %v928
        %v949 = vunpack.c.l.b16 %v929
        %v950 = vunpack.c.l.b16 %v930
        %v951 = vunpack.c.l.b16 %v931
        %v952 = vpack.c.b16 %v945, %v944
        %v953 = vpack.c.b16 %v947, %v946
        %v954 = vpack.c.b16 %v949, %v948
        %v955 = vpack.c.b16 %v951, %v950
        %vm960 = vcmask 523264
        %v962 = vsel %vm960, %v923, 0
        %964 = vmatpush.bf16.msra.mxu0 0
        %965 = vmatpush.bf16.msra.mxu0 0
        %966 = vmatpush.bf16.msra.mxu0 0
        %967 = vmatpush.bf16.msra.mxu0 0
        %968 = vmatpush.bf16.msra.mxu0 %v955
        %969 = vmatpush.bf16.msra.mxu0 %v954
        %970 = vmatpush.bf16.msra.mxu0 %v953
        %971 = vmatpush.bf16.msra.mxu0 %v952
        %972 = vmatmul.bf16.gmra.mxu0 %v962
        %v973 = vpop.f32.mrf.mxu0
        %v974 = vadd.f32 %v934, %v973
        %v975 = vpop.f32.mrf.mxu0
        %976 = vdwg.mxu0
        %v977 = vadd.f32 %v884, %v974
        %v978 = vsel %vm515, %v977, 0.0
        %979 = vadd.xlane.f32.xlu0 %v978
        %v980 = vpop.xlane.xlu0 %979
        %v981 = vmul.f32 %v980, %v525
        %v982 = vsub.f32 %v977, %v981
        %v983 = vmul.f32 %v982, %v982
        %v984 = vsel %vm515, %v983, 0.0
        %985 = vadd.xlane.f32.xlu0 %v984
        %v986 = vpop.xlane.xlu0 %985
        %v987 = vmul.f32 %v986, %v525
        %v988 = vadd.f32 %v987, 1e-05
        %v989 = vrsqrt.pop %v988
        %v990 = vmul.f32 %v989, %v988
        %v991 = vmul.f32 %v990, %v989
        %v992 = vmul.f32 0.5, %v991
        %v993 = vsub.f32 1.5, %v992
        %v994 = vmul.f32 %v989, %v993
        %vm995 = vweird.f32 %v988
        %vm996 = vweird.f32 %v989
        %vm997 = vmor %vm995, %vm996
        %v998 = vsel %vm997, %v989, %v994
        %v999 = vmul.f32 %v982, %v998
        %v1000 = vld [vmem:[%s12] sm:$0x1]
        %v1002 = vperm.slane %v1000, 0
        %v1004 = vmul.f32 %v999, %v1002
        %v1005 = vld [vmem:[%s13] sm:$0x1]
        %v1007 = vperm.slane %v1005, 0
        %v1009 = vadd.f32 %v1004, %v1007
        %1010 = vst.msk [vmem:[%s512] sm:$0xff] %vm515, %v1009
        %p1011 = scmp.lt.s32.totalorder %s27, 3
        %s1012 = scalar_select %p1011, %s27, 3
        %s1013 = smul.addr %s1012, 8
        %s1014 = scalar_lea.vmem %s14, %s1013
        // Predicated region
        $region89: #{encoder_forward.16} parent=75 // pred_check
          %p1015 = pneg %p344
        $region90: #{encoder_forward.16} parent=75 // pred_check_branch
          %1017 = sbr.rel (%p1015) target = $region92
        $region91: #{encoder_forward.16} parent=75 // pred_region
          _
        $region92: #{encoder_forward.16} parent=75 // pred_fallthru
          _
      $region76: #{encoder_forward.16} parent=5 // pred_fallthru
        _
      %p1018 = scmp.le.s32.totalorder 2, %s22
      // Predicated region
      $region93: #{encoder_forward.16} parent=5 // pred_check
        %p1019 = pneg %p1018
      $region94: #{encoder_forward.16} parent=5 // pred_check_branch
        %1021 = sbr.rel (%p1019) target = $region96
      $region95: #{encoder_forward.16} parent=5 // pred_region
        %s1022 = ssub.s32 %s22, 2
        // Predicated region
        $region97: #{encoder_forward.16} parent=95 // pred_check
          %p1023 = pneg %p350
        $region98: #{encoder_forward.16} parent=95 // pred_check_branch
          %1025 = sbr.rel (%p1023) target = $region100
        $region99: #{encoder_forward.16} parent=95 // pred_region
          %p1026 = scmp.lt.s32.totalorder %s28, 3
          %s1027 = scalar_select %p1026, %s28, 3
          %s1028 = smul.addr %s1027, 8
          %s1029 = scalar_lea.vmem %s14, %s1028
        $region100: #{encoder_forward.16} parent=95 // pred_fallthru
          _
      $region96: #{encoder_forward.16} parent=5 // pred_fallthru
        _
    $region6: #{encoder_forward.16} parent=1 // loop_footer
      %s26 = sadd.s32 1, %s22
    $region7: #{encoder_forward.16} parent=1 // loop_footer_branch
      %21 = sbr.rel target = $region3
    $region8: #{encoder_forward.16} parent=1 // loop_exit
      _
    %1030 = vsyncpa [#allocation3], 1
    %s1031 = scalar_lea.sflag [#allocation3], 1
    %1032 = vsyncpa %s1031, 1
    %1033 = vsyncpa [#allocation5], 1

// kernel: encoder_forward.15
$region0: #{encoder_forward.15}
  #allocation0 [shape = 'u32[]', space=smem, size = 0x4, offset = 0x4, fixed_abs, tag = 'smem constant byte address 0x4 - core index']
  #allocation1 [shape = 'u32[72,128]{1,0:T(1,128)}', space=vmem, size = 0x9000, scoped, tag = 'internal scratch']
  %s0 = inlined_call_operand.vmem [shape: f32[8,4,32], index: 0, kind: input, shape index: {}]
  %s1 = inlined_call_operand.vmem [shape: f32[4,4], index: 1, kind: input, shape index: {}]
  %s2 = inlined_call_operand.vmem [shape: f32[1,32], index: 2, kind: input, shape index: {}, may-alias: {2,12}]
  %s3 = inlined_call_operand.vmem [shape: f32[1,32], index: 3, kind: input, shape index: {}, may-alias: {3,7,11,13}]
  %s4 = inlined_call_operand.hbm [shape: bf16[32,96], index: 4, kind: input, shape index: {}]
  %s5 = inlined_call_operand.vmem [shape: f32[1,96], index: 5, kind: input, shape index: {}]
  %s6 = inlined_call_operand.hbm [shape: bf16[32,32], index: 6, kind: input, shape index: {}]
  %s7 = inlined_call_operand.vmem [shape: f32[1,32], index: 7, kind: input, shape index: {}, may-alias: {3,7,11,13}]
  %s8 = inlined_call_operand.hbm [shape: bf16[32,64], index: 8, kind: input, shape index: {}]
  %s9 = inlined_call_operand.vmem [shape: f32[1,64], index: 9, kind: input, shape index: {}]
  %s10 = inlined_call_operand.vmem [shape: bf16[64,32], index: 10, kind: input, shape index: {}]
  %s11 = inlined_call_operand.vmem [shape: f32[1,32], index: 11, kind: input, shape index: {}, may-alias: {3,7,11,13}]
  %s12 = inlined_call_operand.vmem [shape: f32[1,32], index: 12, kind: input, shape index: {}, may-alias: {2,12}]
  %s13 = inlined_call_operand.vmem [shape: f32[1,32], index: 13, kind: input, shape index: {}, may-alias: {3,7,11,13}]
  %s14 = inlined_call_operand.vmem [shape: f32[8,4,32], index: 14, kind: output, shape index: {}]
  %s15 = sld [smem:[#allocation0]]
  $region101: #{encoder_forward.15} parent=0
    _
  %s17 = ssub.s32 1, %s15
  %s18 = scalar_select 0, %s17, %s15
  $region1: #{encoder_forward.15} parent=0
    #allocation2 [shape = 'u8[8192]{0}', space=vmem, size = 0x2000, scoped, tag = 'input window, operand 4, single buffered']
    #allocation3 [shape = 's32[2]{0}', space=sflag, size = 0x8, scoped, tag = 'scoped memory for encoder_forward.15']
    #allocation4 [shape = 'u8[8192]{0}', space=vmem, size = 0x2000, scoped, tag = 'input window, operand 6, single buffered']
    #allocation5 [shape = 's32[1]{0}', space=sflag, size = 0x4, scoped, tag = 'scoped memory for encoder_forward.15']
    #allocation6 [shape = 'u8[8192]{0}', space=vmem, size = 0x2000, scoped, tag = 'input window, operand 8, single buffered']
    %19 = vsyncpa [#allocation3], 0
    %20 = vsyncpa [#allocation5], 0
    loop: start=0, step=1, limit=10
    $region2: #{encoder_forward.15} parent=1 // loop_pre_header
      _
    $region3: #{encoder_forward.15} parent=1 // loop_header
      %s22 = sphi 0, %s26
      %p23 = scmp.ge.s32.totalorder %s22, 10
      %s32 = sphi 0, %s34
      %s35 = sphi 0, %s32
      %s36 = sphi 0, %s35
      %s52 = sphi 0, %s36
      %s56 = sphi 0, %s56
      %s58 = sphi 0, %s56
      %s59 = sphi 0, %s58
      %s73 = sphi 0, %s59
      %s77 = sphi 0, %s77
      %s79 = sphi 0, %s77
      %s80 = sphi 0, %s79
      %s94 = sphi 0, %s80
      %s98 = sphi 0, %s98
      %s100 = sphi 0, %s98
      %s101 = sphi 0, %s100
      %s115 = sphi 0, %s101
      %s119 = sphi 0, %s119
      %s121 = sphi 0, %s119
      %s122 = sphi 0, %s121
      %s136 = sphi 0, %s122
      %s140 = sphi 0, %s140
      %s142 = sphi 0, %s140
      %s143 = sphi 0, %s142
      %s157 = sphi 0, %s143
      %s161 = sphi 0, %s161
      %s163 = sphi 0, %s161
      %s164 = sphi 0, %s163
      %s178 = sphi 0, %s164
      %s182 = sphi 0, %s182
      %s184 = sphi 0, %s182
      %s185 = sphi 0, %s184
      %s199 = sphi 0, %s185
      %s203 = sphi 0, %s203
      %s205 = sphi 0, %s203
      %s206 = sphi 0, %s205
      %s220 = sphi 0, %s206
      %s224 = sphi 0, %s224
      %s226 = sphi 0, %s224
      %s227 = sphi 0, %s226
      %s241 = sphi 0, %s227
      %s245 = sphi 0, %s245
      %s247 = sphi 0, %s245
      %s248 = sphi 0, %s247
      %s262 = sphi 0, %s248
      %s266 = sphi 0, %s266
      %s268 = sphi 0, %s266
      %s269 = sphi 0, %s268
      %s283 = sphi 0, %s269
      %s287 = sphi 0, %s287
      %s289 = sphi 0, %s287
      %s290 = sphi 0, %s289
      %s304 = sphi 0, %s290
      %s308 = sphi 0, %s308
      %s310 = sphi 0, %s308
      %s311 = sphi 0, %s310
      %s325 = sphi 0, %s311
      %s331 = sphi 0, %s333
      %s334 = sphi 0, %s331
      %s335 = sphi 0, %s334
      %s351 = sphi 0, %s335
    $region4: #{encoder_forward.15} parent=1 // loop_header_branch
      %25 = sbr.rel (%p23) target = $region8
    $region5: #{encoder_forward.15} parent=1 // loop_body
      %s27 = ssub.s32 %s22, 1
      %s28 = ssub.s32 %s22, 2
      %s29 = sadd.s32 %s22, 1
      %s30 = ssub.s32 %s22, %s29
      %p31 = scmp.eq.s32.totalorder %s30, 0
      %s33 = sadd.s32 %s32, 1
      %s34 = scalar_select %p31, %s32, %s33
      %p37 = pneg %p31
      %p38 = scmp.eq.s32.totalorder %s22, 7
      %p39 = por %p37, %p38
      %p40 = scmp.ne.s32.totalorder %s32, %s35
      %p41 = scmp.eq.s32.totalorder %s22, 0
      %p42 = por %p40, %p41
      %p43 = scmp.ne.s32.totalorder %s32, %s35
      %p44 = scmp.eq.s32.totalorder %s27, 7
      %p45 = por %p43, %p44
      %p46 = scmp.ne.s32.totalorder %s35, %s36
      %p47 = scmp.eq.s32.totalorder %s27, 0
      %p48 = por %p46, %p47
      %p49 = scmp.ne.s32.totalorder %s35, %s36
      %p50 = scmp.eq.s32.totalorder %s28, 7
      %p51 = por %p49, %p50
      %p53 = scmp.ne.s32.totalorder %s36, %s52
      %p54 = scmp.eq.s32.totalorder %s28, 0
      %p55 = por %p53, %p54
      %s57 = sadd.s32 %s56, 1
      %p60 = scmp.eq.s32.totalorder %s22, 7
      %p61 = scmp.ne.s32.totalorder %s56, %s58
      %p62 = scmp.eq.s32.totalorder %s22, 0
      %p63 = por %p61, %p62
      %p64 = scmp.ne.s32.totalorder %s56, %s58
      %p65 = scmp.eq.s32.totalorder %s27, 7
      %p66 = por %p64, %p65
      %p67 = scmp.ne.s32.totalorder %s58, %s59
      %p68 = scmp.eq.s32.totalorder %s27, 0
      %p69 = por %p67, %p68
      %p70 = scmp.ne.s32.totalorder %s58, %s59
      %p71 = scmp.eq.s32.totalorder %s28, 7
      %p72 = por %p70, %p71
      %p74 = scmp.ne.s32.totalorder %s59, %s73
      %p75 = scmp.eq.s32.totalorder %s28, 0
      %p76 = por %p74, %p75
      %s78 = sadd.s32 %s77, 1
      %p81 = scmp.eq.s32.totalorder %s22, 7
      %p82 = scmp.ne.s32.totalorder %s77, %s79
      %p83 = scmp.eq.s32.totalorder %s22, 0
      %p84 = por %p82, %p83
      %p85 = scmp.ne.s32.totalorder %s77, %s79
      %p86 = scmp.eq.s32.totalorder %s27, 7
      %p87 = por %p85, %p86
      %p88 = scmp.ne.s32.totalorder %s79, %s80
      %p89 = scmp.eq.s32.totalorder %s27, 0
      %p90 = por %p88, %p89
      %p91 = scmp.ne.s32.totalorder %s79, %s80
      %p92 = scmp.eq.s32.totalorder %s28, 7
      %p93 = por %p91, %p92
      %p95 = scmp.ne.s32.totalorder %s80, %s94
      %p96 = scmp.eq.s32.totalorder %s28, 0
      %p97 = por %p95, %p96
      %s99 = sadd.s32 %s98, 1
      %p102 = scmp.eq.s32.totalorder %s22, 7
      %p103 = scmp.ne.s32.totalorder %s98, %s100
      %p104 = scmp.eq.s32.totalorder %s22, 0
      %p105 = por %p103, %p104
      %p106 = scmp.ne.s32.totalorder %s98, %s100
      %p107 = scmp.eq.s32.totalorder %s27, 7
      %p108 = por %p106, %p107
      %p109 = scmp.ne.s32.totalorder %s100, %s101
      %p110 = scmp.eq.s32.totalorder %s27, 0
      %p111 = por %p109, %p110
      %p112 = scmp.ne.s32.totalorder %s100, %s101
      %p113 = scmp.eq.s32.totalorder %s28, 7
      %p114 = por %p112, %p113
      %p116 = scmp.ne.s32.totalorder %s101, %s115
      %p117 = scmp.eq.s32.totalorder %s28, 0
      %p118 = por %p116, %p117
      %s120 = sadd.s32 %s119, 1
      %p123 = scmp.eq.s32.totalorder %s22, 7
      %p124 = scmp.ne.s32.totalorder %s119, %s121
      %p125 = scmp.eq.s32.totalorder %s22, 0
      %p126 = por %p124, %p125
      %p127 = scmp.ne.s32.totalorder %s119, %s121
      %p128 = scmp.eq.s32.totalorder %s27, 7
      %p129 = por %p127, %p128
      %p130 = scmp.ne.s32.totalorder %s121, %s122
      %p131 = scmp.eq.s32.totalorder %s27, 0
      %p132 = por %p130, %p131
      %p133 = scmp.ne.s32.totalorder %s121, %s122
      %p134 = scmp.eq.s32.totalorder %s28, 7
      %p135 = por %p133, %p134
      %p137 = scmp.ne.s32.totalorder %s122, %s136
      %p138 = scmp.eq.s32.totalorder %s28, 0
      %p139 = por %p137, %p138
      %s141 = sadd.s32 %s140, 1
      %p144 = scmp.eq.s32.totalorder %s22, 7
      %p145 = scmp.ne.s32.totalorder %s140, %s142
      %p146 = scmp.eq.s32.totalorder %s22, 0
      %p147 = por %p145, %p146
      %p148 = scmp.ne.s32.totalorder %s140, %s142
      %p149 = scmp.eq.s32.totalorder %s27, 7
      %p150 = por %p148, %p149
      %p151 = scmp.ne.s32.totalorder %s142, %s143
      %p152 = scmp.eq.s32.totalorder %s27, 0
      %p153 = por %p151, %p152
      %p154 = scmp.ne.s32.totalorder %s142, %s143
      %p155 = scmp.eq.s32.totalorder %s28, 7
      %p156 = por %p154, %p155
      %p158 = scmp.ne.s32.totalorder %s143, %s157
      %p159 = scmp.eq.s32.totalorder %s28, 0
      %p160 = por %p158, %p159
      %s162 = sadd.s32 %s161, 1
      %p165 = scmp.eq.s32.totalorder %s22, 7
      %p166 = scmp.ne.s32.totalorder %s161, %s163
      %p167 = scmp.eq.s32.totalorder %s22, 0
      %p168 = por %p166, %p167
      %p169 = scmp.ne.s32.totalorder %s161, %s163
      %p170 = scmp.eq.s32.totalorder %s27, 7
      %p171 = por %p169, %p170
      %p172 = scmp.ne.s32.totalorder %s163, %s164
      %p173 = scmp.eq.s32.totalorder %s27, 0
      %p174 = por %p172, %p173
      %p175 = scmp.ne.s32.totalorder %s163, %s164
      %p176 = scmp.eq.s32.totalorder %s28, 7
      %p177 = por %p175, %p176
      %p179 = scmp.ne.s32.totalorder %s164, %s178
      %p180 = scmp.eq.s32.totalorder %s28, 0
      %p181 = por %p179, %p180
      %s183 = sadd.s32 %s182, 1
      %p186 = scmp.eq.s32.totalorder %s22, 7
      %p187 = scmp.ne.s32.totalorder %s182, %s184
      %p188 = scmp.eq.s32.totalorder %s22, 0
      %p189 = por %p187, %p188
      %p190 = scmp.ne.s32.totalorder %s182, %s184
      %p191 = scmp.eq.s32.totalorder %s27, 7
      %p192 = por %p190, %p191
      %p193 = scmp.ne.s32.totalorder %s184, %s185
      %p194 = scmp.eq.s32.totalorder %s27, 0
      %p195 = por %p193, %p194
      %p196 = scmp.ne.s32.totalorder %s184, %s185
      %p197 = scmp.eq.s32.totalorder %s28, 7
      %p198 = por %p196, %p197
      %p200 = scmp.ne.s32.totalorder %s185, %s199
      %p201 = scmp.eq.s32.totalorder %s28, 0
      %p202 = por %p200, %p201
      %s204 = sadd.s32 %s203, 1
      %p207 = scmp.eq.s32.totalorder %s22, 7
      %p208 = scmp.ne.s32.totalorder %s203, %s205
      %p209 = scmp.eq.s32.totalorder %s22, 0
      %p210 = por %p208, %p209
      %p211 = scmp.ne.s32.totalorder %s203, %s205
      %p212 = scmp.eq.s32.totalorder %s27, 7
      %p213 = por %p211, %p212
      %p214 = scmp.ne.s32.totalorder %s205, %s206
      %p215 = scmp.eq.s32.totalorder %s27, 0
      %p216 = por %p214, %p215
      %p217 = scmp.ne.s32.totalorder %s205, %s206
      %p218 = scmp.eq.s32.totalorder %s28, 7
      %p219 = por %p217, %p218
      %p221 = scmp.ne.s32.totalorder %s206, %s220
      %p222 = scmp.eq.s32.totalorder %s28, 0
      %p223 = por %p221, %p222
      %s225 = sadd.s32 %s224, 1
      %p228 = scmp.eq.s32.totalorder %s22, 7
      %p229 = scmp.ne.s32.totalorder %s224, %s226
      %p230 = scmp.eq.s32.totalorder %s22, 0
      %p231 = por %p229, %p230
      %p232 = scmp.ne.s32.totalorder %s224, %s226
      %p233 = scmp.eq.s32.totalorder %s27, 7
      %p234 = por %p232, %p233
      %p235 = scmp.ne.s32.totalorder %s226, %s227
      %p236 = scmp.eq.s32.totalorder %s27, 0
      %p237 = por %p235, %p236
      %p238 = scmp.ne.s32.totalorder %s226, %s227
      %p239 = scmp.eq.s32.totalorder %s28, 7
      %p240 = por %p238, %p239
      %p242 = scmp.ne.s32.totalorder %s227, %s241
      %p243 = scmp.eq.s32.totalorder %s28, 0
      %p244 = por %p242, %p243
      %s246 = sadd.s32 %s245, 1
      %p249 = scmp.eq.s32.totalorder %s22, 7
      %p250 = scmp.ne.s32.totalorder %s245, %s247
      %p251 = scmp.eq.s32.totalorder %s22, 0
      %p252 = por %p250, %p251
      %p253 = scmp.ne.s32.totalorder %s245, %s247
      %p254 = scmp.eq.s32.totalorder %s27, 7
      %p255 = por %p253, %p254
      %p256 = scmp.ne.s32.totalorder %s247, %s248
      %p257 = scmp.eq.s32.totalorder %s27, 0
      %p258 = por %p256, %p257
      %p259 = scmp.ne.s32.totalorder %s247, %s248
      %p260 = scmp.eq.s32.totalorder %s28, 7
      %p261 = por %p259, %p260
      %p263 = scmp.ne.s32.totalorder %s248, %s262
      %p264 = scmp.eq.s32.totalorder %s28, 0
      %p265 = por %p263, %p264
      %s267 = sadd.s32 %s266, 1
      %p270 = scmp.eq.s32.totalorder %s22, 7
      %p271 = scmp.ne.s32.totalorder %s266, %s268
      %p272 = scmp.eq.s32.totalorder %s22, 0
      %p273 = por %p271, %p272
      %p274 = scmp.ne.s32.totalorder %s266, %s268
      %p275 = scmp.eq.s32.totalorder %s27, 7
      %p276 = por %p274, %p275
      %p277 = scmp.ne.s32.totalorder %s268, %s269
      %p278 = scmp.eq.s32.totalorder %s27, 0
      %p279 = por %p277, %p278
      %p280 = scmp.ne.s32.totalorder %s268, %s269
      %p281 = scmp.eq.s32.totalorder %s28, 7
      %p282 = por %p280, %p281
      %p284 = scmp.ne.s32.totalorder %s269, %s283
      %p285 = scmp.eq.s32.totalorder %s28, 0
      %p286 = por %p284, %p285
      %s288 = sadd.s32 %s287, 1
      %p291 = scmp.eq.s32.totalorder %s22, 7
      %p292 = scmp.ne.s32.totalorder %s287, %s289
      %p293 = scmp.eq.s32.totalorder %s22, 0
      %p294 = por %p292, %p293
      %p295 = scmp.ne.s32.totalorder %s287, %s289
      %p296 = scmp.eq.s32.totalorder %s27, 7
      %p297 = por %p295, %p296
      %p298 = scmp.ne.s32.totalorder %s289, %s290
      %p299 = scmp.eq.s32.totalorder %s27, 0
      %p300 = por %p298, %p299
      %p301 = scmp.ne.s32.totalorder %s289, %s290
      %p302 = scmp.eq.s32.totalorder %s28, 7
      %p303 = por %p301, %p302
      %p305 = scmp.ne.s32.totalorder %s290, %s304
      %p306 = scmp.eq.s32.totalorder %s28, 0
      %p307 = por %p305, %p306
      %s309 = sadd.s32 %s308, 1
      %p312 = scmp.eq.s32.totalorder %s22, 7
      %p313 = scmp.ne.s32.totalorder %s308, %s310
      %p314 = scmp.eq.s32.totalorder %s22, 0
      %p315 = por %p313, %p314
      %p316 = scmp.ne.s32.totalorder %s308, %s310
      %p317 = scmp.eq.s32.totalorder %s27, 7
      %p318 = por %p316, %p317
      %p319 = scmp.ne.s32.totalorder %s310, %s311
      %p320 = scmp.eq.s32.totalorder %s27, 0
      %p321 = por %p319, %p320
      %p322 = scmp.ne.s32.totalorder %s310, %s311
      %p323 = scmp.eq.s32.totalorder %s28, 7
      %p324 = por %p322, %p323
      %p326 = scmp.ne.s32.totalorder %s311, %s325
      %p327 = scmp.eq.s32.totalorder %s28, 0
      %p328 = por %p326, %p327
      %s329 = ssub.s32 %s22, %s29
      %p330 = scmp.eq.s32.totalorder %s329, 0
      %s332 = sadd.s32 %s331, 1
      %s333 = scalar_select %p330, %s331, %s332
      %p336 = pneg %p330
      %p337 = scmp.eq.s32.totalorder %s22, 7
      %p338 = por %p336, %p337
      %p339 = scmp.ne.s32.totalorder %s331, %s334
      %p340 = scmp.eq.s32.totalorder %s22, 0
      %p341 = por %p339, %p340
      %p342 = scmp.ne.s32.totalorder %s331, %s334
      %p343 = scmp.eq.s32.totalorder %s27, 7
      %p344 = por %p342, %p343
      %p345 = scmp.ne.s32.totalorder %s334, %s335
      %p346 = scmp.eq.s32.totalorder %s27, 0
      %p347 = por %p345, %p346
      %p348 = scmp.ne.s32.totalorder %s334, %s335
      %p349 = scmp.eq.s32.totalorder %s28, 7
      %p350 = por %p348, %p349
      %p352 = scmp.ne.s32.totalorder %s335, %s351
      %p353 = scmp.eq.s32.totalorder %s28, 0
      %p354 = por %p352, %p353
      %p355 = scmp.le.s32.totalorder 1, %s22
      %p356 = scmp.lt.s32.totalorder %s22, 9
      %p357 = pnand %p355, %p356
      %p358 = pneg %p357
      // Predicated region
      $region9: #{encoder_forward.15} parent=5 // pred_check
        _
      $region10: #{encoder_forward.15} parent=5 // pred_check_branch
        %360 = sbr.rel (%p357) target = $region12
      $region11: #{encoder_forward.15} parent=5 // pred_region
        %s361 = ssub.s32 %s22, 1
        // Predicated region
        $region13: #{encoder_forward.15} parent=11 // pred_check
          %p362 = pneg %p69
        $region14: #{encoder_forward.15} parent=11 // pred_check_branch
          %364 = sbr.rel (%p362) target = $region16
        $region15: #{encoder_forward.15} parent=11 // pred_region
          _
        $region16: #{encoder_forward.15} parent=11 // pred_fallthru
          _
        // Predicated region
        $region17: #{encoder_forward.15} parent=11 // pred_check
          %p365 = pneg %p90
        $region18: #{encoder_forward.15} parent=11 // pred_check_branch
          %367 = sbr.rel (%p365) target = $region20
        $region19: #{encoder_forward.15} parent=11 // pred_region
          _
        $region20: #{encoder_forward.15} parent=11 // pred_fallthru
          _
        // Predicated region
        $region21: #{encoder_forward.15} parent=11 // pred_check
          %p368 = pneg %p111
        $region22: #{encoder_forward.15} parent=11 // pred_check_branch
          %370 = sbr.rel (%p368) target = $region24
        $region23: #{encoder_forward.15} parent=11 // pred_region
          _
        $region24: #{encoder_forward.15} parent=11 // pred_fallthru
          _
        // Predicated region
        $region25: #{encoder_forward.15} parent=11 // pred_check
          %p371 = pneg %p132
        $region26: #{encoder_forward.15} parent=11 // pred_check_branch
          %373 = sbr.rel (%p371) target = $region28
        $region27: #{encoder_forward.15} parent=11 // pred_region
          %375 = vsyncadd [#allocation3], 0
          %s376 = sshll.u32 %s4, 4
          %s377 = int_to_ptr.hbm [resolvable:$true] %s376
          %s378 = sshll.u32 [#allocation2], 4
          %s379 = int_to_ptr.vmem [resolvable:$true] %s378
          %384 = dma.hbm_to_vmem [thread:$0]  %s377, 256, %s379, [#allocation3], 64, 64, 4
        $region28: #{encoder_forward.15} parent=11 // pred_fallthru
          _
        // Predicated region
        $region29: #{encoder_forward.15} parent=11 // pred_check
          %p385 = pneg %p153
        $region30: #{encoder_forward.15} parent=11 // pred_check_branch
          %387 = sbr.rel (%p385) target = $region32
        $region31: #{encoder_forward.15} parent=11 // pred_region
          _
        $region32: #{encoder_forward.15} parent=11 // pred_fallthru
          _
        // Predicated region
        $region33: #{encoder_forward.15} parent=11 // pred_check
          %p388 = pneg %p174
        $region34: #{encoder_forward.15} parent=11 // pred_check_branch
          %390 = sbr.rel (%p388) target = $region36
        $region35: #{encoder_forward.15} parent=11 // pred_region
          %392 = vsyncadd [#allocation5], 0
          %s393 = sshll.u32 %s6, 4
          %s394 = int_to_ptr.hbm [resolvable:$true] %s393
          %s395 = sshll.u32 [#allocation4], 4
          %s396 = int_to_ptr.vmem [resolvable:$true] %s395
          %401 = dma.hbm_to_vmem [thread:$0]  %s394, 256, %s396, [#allocation5], 64, 64, 4
        $region36: #{encoder_forward.15} parent=11 // pred_fallthru
          _
        // Predicated region
        $region37: #{encoder_forward.15} parent=11 // pred_check
          %p402 = pneg %p195
        $region38: #{encoder_forward.15} parent=11 // pred_check_branch
          %404 = sbr.rel (%p402) target = $region40
        $region39: #{encoder_forward.15} parent=11 // pred_region
          _
        $region40: #{encoder_forward.15} parent=11 // pred_fallthru
          _
        // Predicated region
        $region41: #{encoder_forward.15} parent=11 // pred_check
          %p405 = pneg %p216
        $region42: #{encoder_forward.15} parent=11 // pred_check_branch
          %407 = sbr.rel (%p405) target = $region44
        $region43: #{encoder_forward.15} parent=11 // pred_region
          %409 = vsyncadd [#allocation5], 0
          %s410 = sshll.u32 %s8, 4
          %s411 = int_to_ptr.hbm [resolvable:$true] %s410
          %s412 = sshll.u32 [#allocation6], 4
          %s413 = int_to_ptr.vmem [resolvable:$true] %s412
          %418 = dma.hbm_to_vmem [thread:$0]  %s411, 256, %s413, [#allocation5], 64, 64, 4
        $region44: #{encoder_forward.15} parent=11 // pred_fallthru
          _
        // Predicated region
        $region45: #{encoder_forward.15} parent=11 // pred_check
          %p419 = pneg %p237
        $region46: #{encoder_forward.15} parent=11 // pred_check_branch
          %421 = sbr.rel (%p419) target = $region48
        $region47: #{encoder_forward.15} parent=11 // pred_region
          _
        $region48: #{encoder_forward.15} parent=11 // pred_fallthru
          _
        // Predicated region
        $region49: #{encoder_forward.15} parent=11 // pred_check
          %p422 = pneg %p258
        $region50: #{encoder_forward.15} parent=11 // pred_check_branch
          %424 = sbr.rel (%p422) target = $region52
        $region51: #{encoder_forward.15} parent=11 // pred_region
          _
        $region52: #{encoder_forward.15} parent=11 // pred_fallthru
          _
        // Predicated region
        $region53: #{encoder_forward.15} parent=11 // pred_check
          %p425 = pneg %p279
        $region54: #{encoder_forward.15} parent=11 // pred_check_branch
          %427 = sbr.rel (%p425) target = $region56
        $region55: #{encoder_forward.15} parent=11 // pred_region
          _
        $region56: #{encoder_forward.15} parent=11 // pred_fallthru
          _
        // Predicated region
        $region57: #{encoder_forward.15} parent=11 // pred_check
          %p428 = pneg %p300
        $region58: #{encoder_forward.15} parent=11 // pred_check_branch
          %430 = sbr.rel (%p428) target = $region60
        $region59: #{encoder_forward.15} parent=11 // pred_region
          _
        $region60: #{encoder_forward.15} parent=11 // pred_fallthru
          _
        // Predicated region
        $region61: #{encoder_forward.15} parent=11 // pred_check
          %p431 = pneg %p321
        $region62: #{encoder_forward.15} parent=11 // pred_check_branch
          %433 = sbr.rel (%p431) target = $region64
        $region63: #{encoder_forward.15} parent=11 // pred_region
          _
        $region64: #{encoder_forward.15} parent=11 // pred_fallthru
          _
      $region12: #{encoder_forward.15} parent=5 // pred_fallthru
        _
      %p434 = scmp.lt.s32.totalorder %s22, 8
      // Predicated region
      $region65: #{encoder_forward.15} parent=5 // pred_check
        %p435 = pneg %p434
      $region66: #{encoder_forward.15} parent=5 // pred_check_branch
        %437 = sbr.rel (%p435) target = $region68
      $region67: #{encoder_forward.15} parent=5 // pred_region
        // Predicated region
        $region69: #{encoder_forward.15} parent=67 // pred_check
          %p438 = pneg %p42
        $region70: #{encoder_forward.15} parent=67 // pred_check_branch
          %440 = sbr.rel (%p438) target = $region72
        $region71: #{encoder_forward.15} parent=67 // pred_region
          %p441 = scmp.lt.s32.totalorder %s22, 7
          %s442 = scalar_select %p441, %s22, 7
          %s443 = smul.addr %s442, 4
          %s444 = scalar_lea.vmem %s0, %s443
        $region72: #{encoder_forward.15} parent=67 // pred_fallthru
          _
      $region68: #{encoder_forward.15} parent=5 // pred_fallthru
        _
      %p445 = scmp.le.s32.totalorder 1, %s22
      %p446 = scmp.lt.s32.totalorder %s22, 9
      %p447 = pnand %p445, %p446
      %p448 = pneg %p447
      // Predicated region
      $region73: #{encoder_forward.15} parent=5 // pred_check
        _
      $region74: #{encoder_forward.15} parent=5 // pred_check_branch
        %450 = sbr.rel (%p447) target = $region76
      $region75: #{encoder_forward.15} parent=5 // pred_region
        %s451 = ssub.s32 %s22, 1
        // Predicated region
        $region77: #{encoder_forward.15} parent=75 // pred_check
          %p452 = pneg %p132
        $region78: #{encoder_forward.15} parent=75 // pred_check_branch
          %454 = sbr.rel (%p452) target = $region80
        $region79: #{encoder_forward.15} parent=75 // pred_region
          %456 = dma.done [#allocation3], 256
        $region80: #{encoder_forward.15} parent=75 // pred_fallthru
          _
        // Predicated region
        $region81: #{encoder_forward.15} parent=75 // pred_check
          %p457 = pneg %p174
        $region82: #{encoder_forward.15} parent=75 // pred_check_branch
          %459 = sbr.rel (%p457) target = $region84
        $region83: #{encoder_forward.15} parent=75 // pred_region
          %461 = dma.done [#allocation5], 256
        $region84: #{encoder_forward.15} parent=75 // pred_fallthru
          _
        // Predicated region
        $region85: #{encoder_forward.15} parent=75 // pred_check
          %p462 = pneg %p216
        $region86: #{encoder_forward.15} parent=75 // pred_check_branch
          %464 = sbr.rel (%p462) target = $region88
        $region87: #{encoder_forward.15} parent=75 // pred_region
          %466 = dma.done [#allocation5], 256
        $region88: #{encoder_forward.15} parent=75 // pred_fallthru
          _
        %p467 = scmp.lt.s32.totalorder %s27, 7
        %s468 = scalar_select %p467, %s27, 7
        %s469 = smul.addr %s468, 4
        %s470 = scalar_lea.vmem %s0, %s469
        %p471 = pneg %p48
        %p472 = pneg %p45
        %p473 = pneg %p69
        %p474 = pneg %p66
        %p475 = pneg %p90
        %p476 = pneg %p87
        %p477 = pneg %p111
        %p478 = pneg %p108
        %p479 = pneg %p132
        %p480 = pneg %p129
        %p481 = pneg %p153
        %p482 = pneg %p150
        %p483 = pneg %p174
        %p484 = pneg %p171
        %p485 = pneg %p195
        %p486 = pneg %p192
        %p487 = pneg %p216
        %p488 = pneg %p213
        %p489 = pneg %p237
        %p490 = pneg %p234
        %p491 = pneg %p258
        %p492 = pneg %p255
        %p493 = pneg %p279
        %p494 = pneg %p276
        %p495 = pneg %p300
        %p496 = pneg %p297
        %p497 = pneg %p321
        %p498 = pneg %p318
        %p499 = pneg %p347
        %p500 = pneg %p344
        %p501 = scmp.lt.s32.totalorder %s27, 7
        %s502 = scalar_select %p501, %s27, 7
        %s503 = smul.addr %s502, 4
        %s504 = scalar_lea.vmem %s14, %s503
        %p505 = scmp.lt.s32.totalorder %s27, 7
        %s506 = scalar_select %p505, %s27, 7
        %s507 = smul.addr %s506, 4
        %s508 = scalar_lea.vmem %s0, %s507
        %p509 = scmp.lt.s32.totalorder %s27, 7
        %s510 = scalar_select %p509, %s27, 7
        %s511 = smul.addr %s510, 4
        %s512 = scalar_lea.vmem %s14, %s511
        %v514 = vld [vmem:[%s508] sm:$0xf]
        %vm515 = vcmask 257024
        %v516 = vsel %vm515, %v514, 0.0
        %517 = vadd.xlane.f32.xlu0 %v516
        %v518 = vpop.xlane.xlu0 %517
        %v519 = vrcp.pop 32.0
        %v520 = vmul.f32 32.0, %v519
        %v521 = vsub.f32 1.0, %v520
        %v522 = vmul.f32 %v519, %v521
        %v523 = vadd.f32 %v519, %v522
        %vm524 = vweird.f32 %v519
        %v525 = vsel %vm524, %v519, %v523
        %v526 = vmul.f32 %v518, %v525
        %v527 = vsub.f32 %v514, %v526
        %v528 = vmul.f32 %v527, %v527
        %v529 = vsel %vm515, %v528, 0.0
        %530 = vadd.xlane.f32.xlu0 %v529
        %v531 = vpop.xlane.xlu0 %530
        %v532 = vmul.f32 %v531, %v525
        %v533 = vadd.f32 %v532, 1e-05
        %v534 = vrsqrt.pop %v533
        %v535 = vmul.f32 %v534, %v533
        %v536 = vmul.f32 %v535, %v534
        %v537 = vmul.f32 0.5, %v536
        %v538 = vsub.f32 1.5, %v537
        %v539 = vmul.f32 %v534, %v538
        %vm540 = vweird.f32 %v533
        %vm541 = vweird.f32 %v534
        %vm542 = vmor %vm540, %vm541
        %v543 = vsel %vm542, %v534, %v539
        %v544 = vmul.f32 %v527, %v543
        %v545 = vld [vmem:[%s2] sm:$0x1]
        %v547 = vperm.slane %v545, 0
        %v549 = vmul.f32 %v544, %v547
        %v550 = vld [vmem:[%s3] sm:$0x1]
        %v552 = vperm.slane %v550, 0
        %v554 = vadd.f32 %v549, %v552
        %v555 = vpack.c.bf16 %v554, %v554
        %v556 = vld [vmem:[#allocation2] sm:$0xf]
        %v557 = vld [vmem:[#allocation2 + $0x4] sm:$0xf]
        %v558 = vld [vmem:[#allocation2 + $0x8] sm:$0xf]
        %v559 = vld [vmem:[#allocation2 + $0xc] sm:$0xf]
        %v560 = vld [vmem:[%s5] sm:$0x1]
        %v562 = vperm.slane %v560, 0
        %v568 = vunpack.c.l.b16 %v556
        %v569 = vunpack.c.l.b16 %v557
        %v570 = vunpack.c.l.b16 %v558
        %v571 = vunpack.c.l.b16 %v559
        %v572 = vpack.c.b16 %v569, %v568
        %v573 = vpack.c.b16 %v571, %v570
        %vm576 = vcmask 261120
        %v578 = vsel %vm576, %v555, 0
        %580 = vmatpush.bf16.msra.mxu0 0
        %581 = vmatpush.bf16.msra.mxu0 0
        %582 = vmatpush.bf16.msra.mxu0 0
        %583 = vmatpush.bf16.msra.mxu0 0
        %584 = vmatpush.bf16.msra.mxu0 0
        %585 = vmatpush.bf16.msra.mxu0 0
        %586 = vmatpush.bf16.msra.mxu0 %v573
        %587 = vmatpush.bf16.msra.mxu0 %v572
        %588 = vmatmul.bf16.gmra.mxu0 %v578
        %v589 = vpop.f32.mrf.mxu0
        %v590 = vadd.f32 %v562, %v589
        %v591 = vpop.f32.mrf.mxu0
        %592 = vdwg.mxu0
        %v593 = vld [vmem:[%s1] sm:$0xf]
        %v594 = vmul.f32 %v593, -1e+09
        %v595 = vpack.c.bf16 %v590, %v590
        %597 = vrot.lane.b32.xlu0 %v595, 96
        %v598 = vpop.permute.xlu0 %597
        %vm599 = vcmask 64512
        %v601 = vsel %vm599, %v595, 0
        %v604 = vsel %vm599, %v598, 0
        %606 = vmatpush.bf16.xpose.msra.mxu0 0
        %607 = vmatpush.bf16.xpose.msra.mxu0 0
        %608 = vmatpush.bf16.xpose.msra.mxu0 0
        %609 = vmatpush.bf16.xpose.msra.mxu0 0
        %610 = vmatpush.bf16.xpose.msra.mxu0 0
        %611 = vmatpush.bf16.xpose.msra.mxu0 0
        %612 = vmatpush.bf16.xpose.msra.mxu0 0
        %613 = vmatpush.bf16.xpose.msra.mxu0 %v604
        %614 = vmatmul.bf16.gmra.mxu0 %v601
        %v615 = vpop.f32.mrf.mxu0
        %v616 = vadd.f32 0.0, %v615
        %v617 = vpop.f32.mrf.mxu0
        %618 = vdwg.mxu0
        %v619 = vmul.f32 %v616, 0.35355338
        %v620 = vadd.f32 %v619, %v594
        %vm621 = vcmask 27648
        %v622 = vsel %vm621, %v620, -inf
        %623 = vmax.xlane.f32.xlu0 %v622
        %v624 = vpop.xlane.xlu0 %623
        %v625 = vsub.f32 %v620, %v624
        %v626 = vmul.f32 %v625, 1.442695
        %v627 = vpow.pop %v626
        %v628 = vsel %vm621, %v627, 0.0
        %629 = vadd.xlane.f32.xlu0 %v628
        %v630 = vpop.xlane.xlu0 %629
        %v631 = vrcp.pop %v630
        %v632 = vmul.f32 %v627, %v631
        %v633 = vpack.c.bf16 %v632, %v632
        %634 = vrot.lane.b32.xlu0 %v595, 64
        %v635 = vpop.permute.xlu0 %634
        %vm636 = vcmask 31744
        %v638 = vsel %vm636, %v633, 0
        %vm640 = vcmask 1041408
        %v642 = vsel %vm640, %v635, 0
        %644 = vmatpush.bf16.msra.mxu0 0
        %645 = vmatpush.bf16.msra.mxu0 0
        %646 = vmatpush.bf16.msra.mxu0 0
        %647 = vmatpush.bf16.msra.mxu0 0
        %648 = vmatpush.bf16.msra.mxu0 0
        %649 = vmatpush.bf16.msra.mxu0 0
        %650 = vmatpush.bf16.msra.mxu0 0
        %651 = vmatpush.bf16.msra.mxu0 %v642
        %652 = vmatmul.bf16.gmra.mxu0 %v638
        %v653 = vpop.f32.mrf.mxu0
        %v654 = vadd.f32 0.0, %v653
        %v655 = vpop.f32.mrf.mxu0
        %656 = vdwg.mxu0
        %657 = vrot.lane.b32.xlu0 %v595, 120
        %v658 = vpop.permute.xlu0 %657
        %659 = vrot.lane.b32.xlu0 %v595, 88
        %v660 = vpop.permute.xlu0 %659
        %v662 = vsel %vm599, %v658, 0
        %v665 = vsel %vm599, %v660, 0
        %667 = vmatpush.bf16.xpose.msra.mxu0 0
        %668 = vmatpush.bf16.xpose.msra.mxu0 0
        %669 = vmatpush.bf16.xpose.msra.mxu0 0
        %670 = vmatpush.bf16.xpose.msra.mxu0 0
        %671 = vmatpush.bf16.xpose.msra.mxu0 0
        %672 = vmatpush.bf16.xpose.msra.mxu0 0
        %673 = vmatpush.bf16.xpose.msra.mxu0 0
        %674 = vmatpush.bf16.xpose.msra.mxu0 %v665
        %675 = vmatmul.bf16.gmra.mxu0 %v662
        %v676 = vpop.f32.mrf.mxu0
        %v677 = vadd.f32 0.0, %v676
        %v678 = vpop.f32.mrf.mxu0
        %679 = vdwg.mxu0
        %v680 = vmul.f32 %v677, 0.35355338
        %v681 = vadd.f32 %v680, %v594
        %v682 = vsel %vm621, %v681, -inf
        %683 = vmax.xlane.f32.xlu0 %v682
        %v684 = vpop.xlane.xlu0 %683
        %v685 = vsub.f32 %v681, %v684
        %v686 = vmul.f32 %v685, 1.442695
        %v687 = vpow.pop %v686
        %v688 = vsel %vm621, %v687, 0.0
        %689 = vadd.xlane.f32.xlu0 %v688
        %v690 = vpop.xlane.xlu0 %689
        %v691 = vrcp.pop %v690
        %v692 = vmul.f32 %v687, %v691
        %v693 = vpack.c.bf16 %v692, %v692
        %694 = vrot.lane.b32.xlu0 %v595, 56
        %v695 = vpop.permute.xlu0 %694
        %v697 = vsel %vm636, %v693, 0
        %v700 = vsel %vm640, %v695, 0
        %702 = vmatpush.bf16.msra.mxu0 0
        %703 = vmatpush.bf16.msra.mxu0 0
        %704 = vmatpush.bf16.msra.mxu0 0
        %705 = vmatpush.bf16.msra.mxu0 0
        %706 = vmatpush.bf16.msra.mxu0 0
        %707 = vmatpush.bf16.msra.mxu0 0
        %708 = vmatpush.bf16.msra.mxu0 0
        %709 = vmatpush.bf16.msra.mxu0 %v700
        %710 = vmatmul.bf16.gmra.mxu0 %v697
        %v711 = vpop.f32.mrf.mxu0
        %v712 = vadd.f32 0.0, %v711
        %v713 = vpop.f32.mrf.mxu0
        %714 = vdwg.mxu0
        %715 = vrot.lane.b32.xlu0 %v595, 112
        %v716 = vpop.permute.xlu0 %715
        %717 = vrot.lane.b32.xlu0 %v595, 80
        %v718 = vpop.permute.xlu0 %717
        %v720 = vsel %vm599, %v716, 0
        %v723 = vsel %vm599, %v718, 0
        %725 = vmatpush.bf16.xpose.msra.mxu0 0
        %726 = vmatpush.bf16.xpose.msra.mxu0 0
        %727 = vmatpush.bf16.xpose.msra.mxu0 0
        %728 = vmatpush.bf16.xpose.msra.mxu0 0
        %729 = vmatpush.bf16.xpose.msra.mxu0 0
        %730 = vmatpush.bf16.xpose.msra.mxu0 0
        %731 = vmatpush.bf16.xpose.msra.mxu0 0
        %732 = vmatpush.bf16.xpose.msra.mxu0 %v723
        %733 = vmatmul.bf16.gmra.mxu0 %v720
        %v734 = vpop.f32.mrf.mxu0
        %v735 = vadd.f32 0.0, %v734
        %v736 = vpop.f32.mrf.mxu0
        %737 = vdwg.mxu0
        %v738 = vmul.f32 %v735, 0.35355338
        %v739 = vadd.f32 %v738, %v594
        %v740 = vsel %vm621, %v739, -inf
        %741 = vmax.xlane.f32.xlu0 %v740
        %v742 = vpop.xlane.xlu0 %741
        %v743 = vsub.f32 %v739, %v742
        %v744 = vmul.f32 %v743, 1.442695
        %v745 = vpow.pop %v744
        %v746 = vsel %vm621, %v745, 0.0
        %747 = vadd.xlane.f32.xlu0 %v746
        %v748 = vpop.xlane.xlu0 %747
        %v749 = vrcp.pop %v748
        %v750 = vmul.f32 %v745, %v749
        %v751 = vpack.c.bf16 %v750, %v750
        %752 = vrot.lane.b32.xlu0 %v595, 48
        %v753 = vpop.permute.xlu0 %752
        %v755 = vsel %vm636, %v751, 0
        %v758 = vsel %vm640, %v753, 0
        %760 = vmatpush.bf16.msra.mxu0 0
        %761 = vmatpush.bf16.msra.mxu0 0
        %762 = vmatpush.bf16.msra.mxu0 0
        %763 = vmatpush.bf16.msra.mxu0 0
        %764 = vmatpush.bf16.msra.mxu0 0
        %765 = vmatpush.bf16.msra.mxu0 0
        %766 = vmatpush.bf16.msra.mxu0 0
        %767 = vmatpush.bf16.msra.mxu0 %v758
        %768 = vmatmul.bf16.gmra.mxu0 %v755
        %v769 = vpop.f32.mrf.mxu0
        %v770 = vadd.f32 0.0, %v769
        %v771 = vpop.f32.mrf.mxu0
        %772 = vdwg.mxu0
        %773 = vrot.lane.b32.xlu0 %v595, 104
        %v774 = vpop.permute.xlu0 %773
        %775 = vrot.lane.b32.xlu0 %v595, 72
        %v776 = vpop.permute.xlu0 %775
        %v778 = vsel %vm599, %v774, 0
        %v781 = vsel %vm599, %v776, 0
        %783 = vmatpush.bf16.xpose.msra.mxu0 0
        %784 = vmatpush.bf16.xpose.msra.mxu0 0
        %785 = vmatpush.bf16.xpose.msra.mxu0 0
        %786 = vmatpush.bf16.xpose.msra.mxu0 0
        %787 = vmatpush.bf16.xpose.msra.mxu0 0
        %788 = vmatpush.bf16.xpose.msra.mxu0 0
        %789 = vmatpush.bf16.xpose.msra.mxu0 0
        %790 = vmatpush.bf16.xpose.msra.mxu0 %v781
        %791 = vmatmul.bf16.gmra.mxu0 %v778
        %v792 = vpop.f32.mrf.mxu0
        %v793 = vadd.f32 0.0, %v792
        %v794 = vpop.f32.mrf.mxu0
        %795 = vdwg.mxu0
        %v796 = vmul.f32 %v793, 0.35355338
        %v797 = vadd.f32 %v796, %v594
        %v798 = vsel %vm621, %v797, -inf
        %799 = vmax.xlane.f32.xlu0 %v798
        %v800 = vpop.xlane.xlu0 %799
        %v801 = vsub.f32 %v797, %v800
        %v802 = vmul.f32 %v801, 1.442695
        %v803 = vpow.pop %v802
        %v804 = vsel %vm621, %v803, 0.0
        %805 = vadd.xlane.f32.xlu0 %v804
        %v806 = vpop.xlane.xlu0 %805
        %v807 = vrcp.pop %v806
        %v808 = vmul.f32 %v803, %v807
        %v809 = vpack.c.bf16 %v808, %v808
        %810 = vrot.lane.b32.xlu0 %v595, 40
        %v811 = vpop.permute.xlu0 %810
        %v813 = vsel %vm636, %v809, 0
        %v816 = vsel %vm640, %v811, 0
        %818 = vmatpush.bf16.msra.mxu0 0
        %819 = vmatpush.bf16.msra.mxu0 0
        %820 = vmatpush.bf16.msra.mxu0 0
        %821 = vmatpush.bf16.msra.mxu0 0
        %822 = vmatpush.bf16.msra.mxu0 0
        %823 = vmatpush.bf16.msra.mxu0 0
        %824 = vmatpush.bf16.msra.mxu0 0
        %825 = vmatpush.bf16.msra.mxu0 %v816
        %826 = vmatmul.bf16.gmra.mxu0 %v813
        %v827 = vpop.f32.mrf.mxu0
        %v828 = vadd.f32 0.0, %v827
        %v829 = vpop.f32.mrf.mxu0
        %830 = vdwg.mxu0
        %832 = vrot.lane.b32.xlu0 %v712, 8
        %v833 = vpop.permute.xlu0 %832
        %836 = vrot.lane.b32.xlu0 %v770, 16
        %v837 = vpop.permute.xlu0 %836
        %840 = vrot.lane.b32.xlu0 %v828, 24
        %v841 = vpop.permute.xlu0 %840
        %v843 = vsel %vm599, %v654, %v833
        %vm844 = vcmask 130048
        %v845 = vsel %vm844, %v843, %v837
        %vm846 = vcmask 195584
        %v847 = vsel %vm846, %v845, %v841
        %v848 = vpack.c.bf16 %v847, %v847
        %v849 = vld [vmem:[#allocation4] sm:$0xf]
        %v850 = vld [vmem:[#allocation4 + $0x4] sm:$0xf]
        %v851 = vld [vmem:[#allocation4 + $0x8] sm:$0xf]
        %v852 = vld [vmem:[#allocation4 + $0xc] sm:$0xf]
        %v853 = vld [vmem:[%s7] sm:$0x1]
        %v855 = vperm.slane %v853, 0
        %v861 = vunpack.c.l.b16 %v849
        %v862 = vunpack.c.l.b16 %v850
        %v863 = vunpack.c.l.b16 %v851
        %v864 = vunpack.c.l.b16 %v852
        %v865 = vpack.c.b16 %v862, %v861
        %v866 = vpack.c.b16 %v864, %v863
        %v870 = vsel %vm576, %v848, 0
        %872 = vmatpush.bf16.msra.mxu0 0
        %873 = vmatpush.bf16.msra.mxu0 0
        %874 = vmatpush.bf16.msra.mxu0 0
        %875 = vmatpush.bf16.msra.mxu0 0
        %876 = vmatpush.bf16.msra.mxu0 0
        %877 = vmatpush.bf16.msra.mxu0 0
        %878 = vmatpush.bf16.msra.mxu0 %v866
        %879 = vmatpush.bf16.msra.mxu0 %v865
        %880 = vmatmul.bf16.gmra.mxu0 %v870
        %v881 = vpop.f32.mrf.mxu0
        %v882 = vadd.f32 %v855, %v881
        %v883 = vpop.f32.mrf.mxu0
        %884 = vdwg.mxu0
        %v885 = vadd.f32 %v514, %v882
        %v886 = vpack.c.bf16 %v885, %v885
        %v887 = vld [vmem:[#allocation6] sm:$0xf]
        %v888 = vld [vmem:[#allocation6 + $0x4] sm:$0xf]
        %v889 = vld [vmem:[#allocation6 + $0x8] sm:$0xf]
        %v890 = vld [vmem:[#allocation6 + $0xc] sm:$0xf]
        %v891 = vld [vmem:[%s9] sm:$0x1]
        %v893 = vperm.slane %v891, 0
        %v899 = vunpack.c.l.b16 %v887
        %v900 = vunpack.c.l.b16 %v888
        %v901 = vunpack.c.l.b16 %v889
        %v902 = vunpack.c.l.b16 %v890
        %v903 = vpack.c.b16 %v900, %v899
        %v904 = vpack.c.b16 %v902, %v901
        %v908 = vsel %vm576, %v886, 0
        %910 = vmatpush.bf16.msra.mxu0 0
        %911 = vmatpush.bf16.msra.mxu0 0
        %912 = vmatpush.bf16.msra.mxu0 0
        %913 = vmatpush.bf16.msra.mxu0 0
        %914 = vmatpush.bf16.msra.mxu0 0
        %915 = vmatpush.bf16.msra.mxu0 0
        %916 = vmatpush.bf16.msra.mxu0 %v904
        %917 = vmatpush.bf16.msra.mxu0 %v903
        %918 = vmatmul.bf16.gmra.mxu0 %v908
        %v919 = vpop.f32.mrf.mxu0
        %v920 = vadd.f32 %v893, %v919
        %v921 = vpop.f32.mrf.mxu0
        %922 = vdwg.mxu0
        %v923 = vmax.f32 %v920, 0.0
        %v924 = vpack.c.bf16 %v923, %v923
        %v925 = vld [vmem:[%s10] sm:$0xf]
        %v926 = vld [vmem:[%s10 + $0x4] sm:$0xf]
        %v927 = vld [vmem:[%s10 + $0x8] sm:$0xf]
        %v928 = vld [vmem:[%s10 + $0xc] sm:$0xf]
        %v929 = vld [vmem:[%s10 + $0x10] sm:$0xf]
        %v930 = vld [vmem:[%s10 + $0x14] sm:$0xf]
        %v931 = vld [vmem:[%s10 + $0x18] sm:$0xf]
        %v932 = vld [vmem:[%s10 + $0x1c] sm:$0xf]
        %v933 = vld [vmem:[%s11] sm:$0x1]
        %v935 = vperm.slane %v933, 0
        %v945 = vunpack.c.l.b16 %v925
        %v946 = vunpack.c.l.b16 %v926
        %v947 = vunpack.c.l.b16 %v927
        %v948 = vunpack.c.l.b16 %v928
        %v949 = vunpack.c.l.b16 %v929
        %v950 = vunpack.c.l.b16 %v930
        %v951 = vunpack.c.l.b16 %v931
        %v952 = vunpack.c.l.b16 %v932
        %v953 = vpack.c.b16 %v946, %v945
        %v954 = vpack.c.b16 %v948, %v947
        %v955 = vpack.c.b16 %v950, %v949
        %v956 = vpack.c.b16 %v952, %v951
        %vm961 = vcmask 523264
        %v963 = vsel %vm961, %v924, 0
        %965 = vmatpush.bf16.msra.mxu0 0
        %966 = vmatpush.bf16.msra.mxu0 0
        %967 = vmatpush.bf16.msra.mxu0 0
        %968 = vmatpush.bf16.msra.mxu0 0
        %969 = vmatpush.bf16.msra.mxu0 %v956
        %970 = vmatpush.bf16.msra.mxu0 %v955
        %971 = vmatpush.bf16.msra.mxu0 %v954
        %972 = vmatpush.bf16.msra.mxu0 %v953
        %973 = vmatmul.bf16.gmra.mxu0 %v963
        %v974 = vpop.f32.mrf.mxu0
        %v975 = vadd.f32 %v935, %v974
        %v976 = vpop.f32.mrf.mxu0
        %977 = vdwg.mxu0
        %v978 = vadd.f32 %v885, %v975
        %v979 = vsel %vm515, %v978, 0.0
        %980 = vadd.xlane.f32.xlu0 %v979
        %v981 = vpop.xlane.xlu0 %980
        %v982 = vmul.f32 %v981, %v525
        %v983 = vsub.f32 %v978, %v982
        %v984 = vmul.f32 %v983, %v983
        %v985 = vsel %vm515, %v984, 0.0
        %986 = vadd.xlane.f32.xlu0 %v985
        %v987 = vpop.xlane.xlu0 %986
        %v988 = vmul.f32 %v987, %v525
        %v989 = vadd.f32 %v988, 1e-05
        %v990 = vrsqrt.pop %v989
        %v991 = vmul.f32 %v990, %v989
        %v992 = vmul.f32 %v991, %v990
        %v993 = vmul.f32 0.5, %v992
        %v994 = vsub.f32 1.5, %v993
        %v995 = vmul.f32 %v990, %v994
        %vm996 = vweird.f32 %v989
        %vm997 = vweird.f32 %v990
        %vm998 = vmor %vm996, %vm997
        %v999 = vsel %vm998, %v990, %v995
        %v1000 = vmul.f32 %v983, %v999
        %v1001 = vld [vmem:[%s12] sm:$0x1]
        %v1003 = vperm.slane %v1001, 0
        %v1005 = vmul.f32 %v1000, %v1003
        %v1006 = vld [vmem:[%s13] sm:$0x1]
        %v1008 = vperm.slane %v1006, 0
        %v1010 = vadd.f32 %v1005, %v1008
        %1011 = vst.msk [vmem:[%s512] sm:$0xf] %vm515, %v1010
        %p1012 = scmp.lt.s32.totalorder %s27, 7
        %s1013 = scalar_select %p1012, %s27, 7
        %s1014 = smul.addr %s1013, 4
        %s1015 = scalar_lea.vmem %s14, %s1014
        // Predicated region
        $region89: #{encoder_forward.15} parent=75 // pred_check
          %p1016 = pneg %p344
        $region90: #{encoder_forward.15} parent=75 // pred_check_branch
          %1018 = sbr.rel (%p1016) target = $region92
        $region91: #{encoder_forward.15} parent=75 // pred_region
          _
        $region92: #{encoder_forward.15} parent=75 // pred_fallthru
          _
      $region76: #{encoder_forward.15} parent=5 // pred_fallthru
        _
      %p1019 = scmp.le.s32.totalorder 2, %s22
      // Predicated region
      $region93: #{encoder_forward.15} parent=5 // pred_check
        %p1020 = pneg %p1019
      $region94: #{encoder_forward.15} parent=5 // pred_check_branch
        %1022 = sbr.rel (%p1020) target = $region96
      $region95: #{encoder_forward.15} parent=5 // pred_region
        %s1023 = ssub.s32 %s22, 2
        // Predicated region
        $region97: #{encoder_forward.15} parent=95 // pred_check
          %p1024 = pneg %p350
        $region98: #{encoder_forward.15} parent=95 // pred_check_branch
          %1026 = sbr.rel (%p1024) target = $region100
        $region99: #{encoder_forward.15} parent=95 // pred_region
          %p1027 = scmp.lt.s32.totalorder %s28, 7
          %s1028 = scalar_select %p1027, %s28, 7
          %s1029 = smul.addr %s1028, 4
          %s1030 = scalar_lea.vmem %s14, %s1029
        $region100: #{encoder_forward.15} parent=95 // pred_fallthru
          _
      $region96: #{encoder_forward.15} parent=5 // pred_fallthru
        _
    $region6: #{encoder_forward.15} parent=1 // loop_footer
      %s26 = sadd.s32 1, %s22
    $region7: #{encoder_forward.15} parent=1 // loop_footer_branch
      %21 = sbr.rel target = $region3
    $region8: #{encoder_forward.15} parent=1 // loop_exit
      _
    %1031 = vsyncpa [#allocation3], 1
    %s1032 = scalar_lea.sflag [#allocation3], 1
    %1033 = vsyncpa %s1032, 1
    %1034 = vsyncpa [#allocation5], 1

// kernel: encoder_forward.14
$region0: #{encoder_forward.14}
  #allocation0 [shape = 'u32[]', space=smem, size = 0x4, offset = 0x4, fixed_abs, tag = 'smem constant byte address 0x4 - core index']
  #allocation1 [shape = 'u32[72,128]{1,0:T(1,128)}', space=vmem, size = 0x9000, scoped, tag = 'internal scratch']
  %s0 = inlined_call_operand.vmem [shape: f32[4,8,32], index: 0, kind: input, shape index: {}]
  %s1 = inlined_call_operand.vmem [shape: f32[4,8], index: 1, kind: input, shape index: {}]
  %s2 = inlined_call_operand.vmem [shape: f32[1,32], index: 2, kind: input, shape index: {}, may-alias: {2,12}]
  %s3 = inlined_call_operand.vmem [shape: f32[1,32], index: 3, kind: input, shape index: {}, may-alias: {3,7,11,13}]
  %s4 = inlined_call_operand.vmem [shape: bf16[32,96], index: 4, kind: input, shape index: {}]
  %s5 = inlined_call_operand.vmem [shape: f32[1,96], index: 5, kind: input, shape index: {}]
  %s6 = inlined_call_operand.hbm [shape: bf16[32,32], index: 6, kind: input, shape index: {}]
  %s7 = inlined_call_operand.vmem [shape: f32[1,32], index: 7, kind: input, shape index: {}, may-alias: {3,7,11,13}]
  %s8 = inlined_call_operand.hbm [shape: bf16[32,64], index: 8, kind: input, shape index: {}]
  %s9 = inlined_call_operand.vmem [shape: f32[1,64], index: 9, kind: input, shape index: {}]
  %s10 = inlined_call_operand.vmem [shape: bf16[64,32], index: 10, kind: input, shape index: {}]
  %s11 = inlined_call_operand.vmem [shape: f32[1,32], index: 11, kind: input, shape index: {}, may-alias: {3,7,11,13}]
  %s12 = inlined_call_operand.vmem [shape: f32[1,32], index: 12, kind: input, shape index: {}, may-alias: {2,12}]
  %s13 = inlined_call_operand.vmem [shape: f32[1,32], index: 13, kind: input, shape index: {}, may-alias: {3,7,11,13}]
  %s14 = inlined_call_operand.vmem [shape: f32[4,8,32], index: 14, kind: output, shape index: {}]
  %s15 = sld [smem:[#allocation0]]
  $region97: #{encoder_forward.14} parent=0
    _
  %s17 = ssub.s32 1, %s15
  %s18 = scalar_select 0, %s17, %s15
  $region1: #{encoder_forward.14} parent=0
    #allocation2 [shape = 'u8[8192]{0}', space=vmem, size = 0x2000, scoped, tag = 'input window, operand 6, single buffered']
    #allocation3 [shape = 's32[2]{0}', space=sflag, size = 0x8, scoped, tag = 'scoped memory for encoder_forward.14']
    #allocation4 [shape = 'u8[8192]{0}', space=vmem, size = 0x2000, scoped, tag = 'input window, operand 8, single buffered']
    #allocation5 [shape = 's32[1]{0}', space=sflag, size = 0x4, scoped, tag = 'scoped memory for encoder_forward.14']
    %19 = vsyncpa [#allocation3], 0
    %20 = vsyncpa [#allocation5], 0
    loop: start=0, step=1, limit=6
    $region2: #{encoder_forward.14} parent=1 // loop_pre_header
      _
    $region3: #{encoder_forward.14} parent=1 // loop_header
      %s22 = sphi 0, %s26
      %p23 = scmp.ge.s32.totalorder %s22, 6
      %s32 = sphi 0, %s34
      %s35 = sphi 0, %s32
      %s36 = sphi 0, %s35
      %s52 = sphi 0, %s36
      %s56 = sphi 0, %s56
      %s58 = sphi 0, %s56
      %s59 = sphi 0, %s58
      %s73 = sphi 0, %s59
      %s77 = sphi 0, %s77
      %s79 = sphi 0, %s77
      %s80 = sphi 0, %s79
      %s94 = sphi 0, %s80
      %s98 = sphi 0, %s98
      %s100 = sphi 0, %s98
      %s101 = sphi 0, %s100
      %s115 = sphi 0, %s101
      %s119 = sphi 0, %s119
      %s121 = sphi 0, %s119
      %s122 = sphi 0, %s121
      %s136 = sphi 0, %s122
      %s140 = sphi 0, %s140
      %s142 = sphi 0, %s140
      %s143 = sphi 0, %s142
      %s157 = sphi 0, %s143
      %s161 = sphi 0, %s161
      %s163 = sphi 0, %s161
      %s164 = sphi 0, %s163
      %s178 = sphi 0, %s164
      %s182 = sphi 0, %s182
      %s184 = sphi 0, %s182
      %s185 = sphi 0, %s184
      %s199 = sphi 0, %s185
      %s203 = sphi 0, %s203
      %s205 = sphi 0, %s203
      %s206 = sphi 0, %s205
      %s220 = sphi 0, %s206
      %s224 = sphi 0, %s224
      %s226 = sphi 0, %s224
      %s227 = sphi 0, %s226
      %s241 = sphi 0, %s227
      %s245 = sphi 0, %s245
      %s247 = sphi 0, %s245
      %s248 = sphi 0, %s247
      %s262 = sphi 0, %s248
      %s266 = sphi 0, %s266
      %s268 = sphi 0, %s266
      %s269 = sphi 0, %s268
      %s283 = sphi 0, %s269
      %s287 = sphi 0, %s287
      %s289 = sphi 0, %s287
      %s290 = sphi 0, %s289
      %s304 = sphi 0, %s290
      %s308 = sphi 0, %s308
      %s310 = sphi 0, %s308
      %s311 = sphi 0, %s310
      %s325 = sphi 0, %s311
      %s331 = sphi 0, %s333
      %s334 = sphi 0, %s331
      %s335 = sphi 0, %s334
      %s351 = sphi 0, %s335
    $region4: #{encoder_forward.14} parent=1 // loop_header_branch
      %25 = sbr.rel (%p23) target = $region8
    $region5: #{encoder_forward.14} parent=1 // loop_body
      %s27 = ssub.s32 %s22, 1
      %s28 = ssub.s32 %s22, 2
      %s29 = sadd.s32 %s22, 1
      %s30 = ssub.s32 %s22, %s29
      %p31 = scmp.eq.s32.totalorder %s30, 0
      %s33 = sadd.s32 %s32, 1
      %s34 = scalar_select %p31, %s32, %s33
      %p37 = pneg %p31
      %p38 = scmp.eq.s32.totalorder %s22, 3
      %p39 = por %p37, %p38
      %p40 = scmp.ne.s32.totalorder %s32, %s35
      %p41 = scmp.eq.s32.totalorder %s22, 0
      %p42 = por %p40, %p41
      %p43 = scmp.ne.s32.totalorder %s32, %s35
      %p44 = scmp.eq.s32.totalorder %s27, 3
      %p45 = por %p43, %p44
      %p46 = scmp.ne.s32.totalorder %s35, %s36
      %p47 = scmp.eq.s32.totalorder %s27, 0
      %p48 = por %p46, %p47
      %p49 = scmp.ne.s32.totalorder %s35, %s36
      %p50 = scmp.eq.s32.totalorder %s28, 3
      %p51 = por %p49, %p50
      %p53 = scmp.ne.s32.totalorder %s36, %s52
      %p54 = scmp.eq.s32.totalorder %s28, 0
      %p55 = por %p53, %p54
      %s57 = sadd.s32 %s56, 1
      %p60 = scmp.eq.s32.totalorder %s22, 3
      %p61 = scmp.ne.s32.totalorder %s56, %s58
      %p62 = scmp.eq.s32.totalorder %s22, 0
      %p63 = por %p61, %p62
      %p64 = scmp.ne.s32.totalorder %s56, %s58
      %p65 = scmp.eq.s32.totalorder %s27, 3
      %p66 = por %p64, %p65
      %p67 = scmp.ne.s32.totalorder %s58, %s59
      %p68 = scmp.eq.s32.totalorder %s27, 0
      %p69 = por %p67, %p68
      %p70 = scmp.ne.s32.totalorder %s58, %s59
      %p71 = scmp.eq.s32.totalorder %s28, 3
      %p72 = por %p70, %p71
      %p74 = scmp.ne.s32.totalorder %s59, %s73
      %p75 = scmp.eq.s32.totalorder %s28, 0
      %p76 = por %p74, %p75
      %s78 = sadd.s32 %s77, 1
      %p81 = scmp.eq.s32.totalorder %s22, 3
      %p82 = scmp.ne.s32.totalorder %s77, %s79
      %p83 = scmp.eq.s32.totalorder %s22, 0
      %p84 = por %p82, %p83
      %p85 = scmp.ne.s32.totalorder %s77, %s79
      %p86 = scmp.eq.s32.totalorder %s27, 3
      %p87 = por %p85, %p86
      %p88 = scmp.ne.s32.totalorder %s79, %s80
      %p89 = scmp.eq.s32.totalorder %s27, 0
      %p90 = por %p88, %p89
      %p91 = scmp.ne.s32.totalorder %s79, %s80
      %p92 = scmp.eq.s32.totalorder %s28, 3
      %p93 = por %p91, %p92
      %p95 = scmp.ne.s32.totalorder %s80, %s94
      %p96 = scmp.eq.s32.totalorder %s28, 0
      %p97 = por %p95, %p96
      %s99 = sadd.s32 %s98, 1
      %p102 = scmp.eq.s32.totalorder %s22, 3
      %p103 = scmp.ne.s32.totalorder %s98, %s100
      %p104 = scmp.eq.s32.totalorder %s22, 0
      %p105 = por %p103, %p104
      %p106 = scmp.ne.s32.totalorder %s98, %s100
      %p107 = scmp.eq.s32.totalorder %s27, 3
      %p108 = por %p106, %p107
      %p109 = scmp.ne.s32.totalorder %s100, %s101
      %p110 = scmp.eq.s32.totalorder %s27, 0
      %p111 = por %p109, %p110
      %p112 = scmp.ne.s32.totalorder %s100, %s101
      %p113 = scmp.eq.s32.totalorder %s28, 3
      %p114 = por %p112, %p113
      %p116 = scmp.ne.s32.totalorder %s101, %s115
      %p117 = scmp.eq.s32.totalorder %s28, 0
      %p118 = por %p116, %p117
      %s120 = sadd.s32 %s119, 1
      %p123 = scmp.eq.s32.totalorder %s22, 3
      %p124 = scmp.ne.s32.totalorder %s119, %s121
      %p125 = scmp.eq.s32.totalorder %s22, 0
      %p126 = por %p124, %p125
      %p127 = scmp.ne.s32.totalorder %s119, %s121
      %p128 = scmp.eq.s32.totalorder %s27, 3
      %p129 = por %p127, %p128
      %p130 = scmp.ne.s32.totalorder %s121, %s122
      %p131 = scmp.eq.s32.totalorder %s27, 0
      %p132 = por %p130, %p131
      %p133 = scmp.ne.s32.totalorder %s121, %s122
      %p134 = scmp.eq.s32.totalorder %s28, 3
      %p135 = por %p133, %p134
      %p137 = scmp.ne.s32.totalorder %s122, %s136
      %p138 = scmp.eq.s32.totalorder %s28, 0
      %p139 = por %p137, %p138
      %s141 = sadd.s32 %s140, 1
      %p144 = scmp.eq.s32.totalorder %s22, 3
      %p145 = scmp.ne.s32.totalorder %s140, %s142
      %p146 = scmp.eq.s32.totalorder %s22, 0
      %p147 = por %p145, %p146
      %p148 = scmp.ne.s32.totalorder %s140, %s142
      %p149 = scmp.eq.s32.totalorder %s27, 3
      %p150 = por %p148, %p149
      %p151 = scmp.ne.s32.totalorder %s142, %s143
      %p152 = scmp.eq.s32.totalorder %s27, 0
      %p153 = por %p151, %p152
      %p154 = scmp.ne.s32.totalorder %s142, %s143
      %p155 = scmp.eq.s32.totalorder %s28, 3
      %p156 = por %p154, %p155
      %p158 = scmp.ne.s32.totalorder %s143, %s157
      %p159 = scmp.eq.s32.totalorder %s28, 0
      %p160 = por %p158, %p159
      %s162 = sadd.s32 %s161, 1
      %p165 = scmp.eq.s32.totalorder %s22, 3
      %p166 = scmp.ne.s32.totalorder %s161, %s163
      %p167 = scmp.eq.s32.totalorder %s22, 0
      %p168 = por %p166, %p167
      %p169 = scmp.ne.s32.totalorder %s161, %s163
      %p170 = scmp.eq.s32.totalorder %s27, 3
      %p171 = por %p169, %p170
      %p172 = scmp.ne.s32.totalorder %s163, %s164
      %p173 = scmp.eq.s32.totalorder %s27, 0
      %p174 = por %p172, %p173
      %p175 = scmp.ne.s32.totalorder %s163, %s164
      %p176 = scmp.eq.s32.totalorder %s28, 3
      %p177 = por %p175, %p176
      %p179 = scmp.ne.s32.totalorder %s164, %s178
      %p180 = scmp.eq.s32.totalorder %s28, 0
      %p181 = por %p179, %p180
      %s183 = sadd.s32 %s182, 1
      %p186 = scmp.eq.s32.totalorder %s22, 3
      %p187 = scmp.ne.s32.totalorder %s182, %s184
      %p188 = scmp.eq.s32.totalorder %s22, 0
      %p189 = por %p187, %p188
      %p190 = scmp.ne.s32.totalorder %s182, %s184
      %p191 = scmp.eq.s32.totalorder %s27, 3
      %p192 = por %p190, %p191
      %p193 = scmp.ne.s32.totalorder %s184, %s185
      %p194 = scmp.eq.s32.totalorder %s27, 0
      %p195 = por %p193, %p194
      %p196 = scmp.ne.s32.totalorder %s184, %s185
      %p197 = scmp.eq.s32.totalorder %s28, 3
      %p198 = por %p196, %p197
      %p200 = scmp.ne.s32.totalorder %s185, %s199
      %p201 = scmp.eq.s32.totalorder %s28, 0
      %p202 = por %p200, %p201
      %s204 = sadd.s32 %s203, 1
      %p207 = scmp.eq.s32.totalorder %s22, 3
      %p208 = scmp.ne.s32.totalorder %s203, %s205
      %p209 = scmp.eq.s32.totalorder %s22, 0
      %p210 = por %p208, %p209
      %p211 = scmp.ne.s32.totalorder %s203, %s205
      %p212 = scmp.eq.s32.totalorder %s27, 3
      %p213 = por %p211, %p212
      %p214 = scmp.ne.s32.totalorder %s205, %s206
      %p215 = scmp.eq.s32.totalorder %s27, 0
      %p216 = por %p214, %p215
      %p217 = scmp.ne.s32.totalorder %s205, %s206
      %p218 = scmp.eq.s32.totalorder %s28, 3
      %p219 = por %p217, %p218
      %p221 = scmp.ne.s32.totalorder %s206, %s220
      %p222 = scmp.eq.s32.totalorder %s28, 0
      %p223 = por %p221, %p222
      %s225 = sadd.s32 %s224, 1
      %p228 = scmp.eq.s32.totalorder %s22, 3
      %p229 = scmp.ne.s32.totalorder %s224, %s226
      %p230 = scmp.eq.s32.totalorder %s22, 0
      %p231 = por %p229, %p230
      %p232 = scmp.ne.s32.totalorder %s224, %s226
      %p233 = scmp.eq.s32.totalorder %s27, 3
      %p234 = por %p232, %p233
      %p235 = scmp.ne.s32.totalorder %s226, %s227
      %p236 = scmp.eq.s32.totalorder %s27, 0
      %p237 = por %p235, %p236
      %p238 = scmp.ne.s32.totalorder %s226, %s227
      %p239 = scmp.eq.s32.totalorder %s28, 3
      %p240 = por %p238, %p239
      %p242 = scmp.ne.s32.totalorder %s227, %s241
      %p243 = scmp.eq.s32.totalorder %s28, 0
      %p244 = por %p242, %p243
      %s246 = sadd.s32 %s245, 1
      %p249 = scmp.eq.s32.totalorder %s22, 3
      %p250 = scmp.ne.s32.totalorder %s245, %s247
      %p251 = scmp.eq.s32.totalorder %s22, 0
      %p252 = por %p250, %p251
      %p253 = scmp.ne.s32.totalorder %s245, %s247
      %p254 = scmp.eq.s32.totalorder %s27, 3
      %p255 = por %p253, %p254
      %p256 = scmp.ne.s32.totalorder %s247, %s248
      %p257 = scmp.eq.s32.totalorder %s27, 0
      %p258 = por %p256, %p257
      %p259 = scmp.ne.s32.totalorder %s247, %s248
      %p260 = scmp.eq.s32.totalorder %s28, 3
      %p261 = por %p259, %p260
      %p263 = scmp.ne.s32.totalorder %s248, %s262
      %p264 = scmp.eq.s32.totalorder %s28, 0
      %p265 = por %p263, %p264
      %s267 = sadd.s32 %s266, 1
      %p270 = scmp.eq.s32.totalorder %s22, 3
      %p271 = scmp.ne.s32.totalorder %s266, %s268
      %p272 = scmp.eq.s32.totalorder %s22, 0
      %p273 = por %p271, %p272
      %p274 = scmp.ne.s32.totalorder %s266, %s268
      %p275 = scmp.eq.s32.totalorder %s27, 3
      %p276 = por %p274, %p275
      %p277 = scmp.ne.s32.totalorder %s268, %s269
      %p278 = scmp.eq.s32.totalorder %s27, 0
      %p279 = por %p277, %p278
      %p280 = scmp.ne.s32.totalorder %s268, %s269
      %p281 = scmp.eq.s32.totalorder %s28, 3
      %p282 = por %p280, %p281
      %p284 = scmp.ne.s32.totalorder %s269, %s283
      %p285 = scmp.eq.s32.totalorder %s28, 0
      %p286 = por %p284, %p285
      %s288 = sadd.s32 %s287, 1
      %p291 = scmp.eq.s32.totalorder %s22, 3
      %p292 = scmp.ne.s32.totalorder %s287, %s289
      %p293 = scmp.eq.s32.totalorder %s22, 0
      %p294 = por %p292, %p293
      %p295 = scmp.ne.s32.totalorder %s287, %s289
      %p296 = scmp.eq.s32.totalorder %s27, 3
      %p297 = por %p295, %p296
      %p298 = scmp.ne.s32.totalorder %s289, %s290
      %p299 = scmp.eq.s32.totalorder %s27, 0
      %p300 = por %p298, %p299
      %p301 = scmp.ne.s32.totalorder %s289, %s290
      %p302 = scmp.eq.s32.totalorder %s28, 3
      %p303 = por %p301, %p302
      %p305 = scmp.ne.s32.totalorder %s290, %s304
      %p306 = scmp.eq.s32.totalorder %s28, 0
      %p307 = por %p305, %p306
      %s309 = sadd.s32 %s308, 1
      %p312 = scmp.eq.s32.totalorder %s22, 3
      %p313 = scmp.ne.s32.totalorder %s308, %s310
      %p314 = scmp.eq.s32.totalorder %s22, 0
      %p315 = por %p313, %p314
      %p316 = scmp.ne.s32.totalorder %s308, %s310
      %p317 = scmp.eq.s32.totalorder %s27, 3
      %p318 = por %p316, %p317
      %p319 = scmp.ne.s32.totalorder %s310, %s311
      %p320 = scmp.eq.s32.totalorder %s27, 0
      %p321 = por %p319, %p320
      %p322 = scmp.ne.s32.totalorder %s310, %s311
      %p323 = scmp.eq.s32.totalorder %s28, 3
      %p324 = por %p322, %p323
      %p326 = scmp.ne.s32.totalorder %s311, %s325
      %p327 = scmp.eq.s32.totalorder %s28, 0
      %p328 = por %p326, %p327
      %s329 = ssub.s32 %s22, %s29
      %p330 = scmp.eq.s32.totalorder %s329, 0
      %s332 = sadd.s32 %s331, 1
      %s333 = scalar_select %p330, %s331, %s332
      %p336 = pneg %p330
      %p337 = scmp.eq.s32.totalorder %s22, 3
      %p338 = por %p336, %p337
      %p339 = scmp.ne.s32.totalorder %s331, %s334
      %p340 = scmp.eq.s32.totalorder %s22, 0
      %p341 = por %p339, %p340
      %p342 = scmp.ne.s32.totalorder %s331, %s334
      %p343 = scmp.eq.s32.totalorder %s27, 3
      %p344 = por %p342, %p343
      %p345 = scmp.ne.s32.totalorder %s334, %s335
      %p346 = scmp.eq.s32.totalorder %s27, 0
      %p347 = por %p345, %p346
      %p348 = scmp.ne.s32.totalorder %s334, %s335
      %p349 = scmp.eq.s32.totalorder %s28, 3
      %p350 = por %p348, %p349
      %p352 = scmp.ne.s32.totalorder %s335, %s351
      %p353 = scmp.eq.s32.totalorder %s28, 0
      %p354 = por %p352, %p353
      %p355 = scmp.le.s32.totalorder 1, %s22
      %p356 = scmp.lt.s32.totalorder %s22, 5
      %p357 = pnand %p355, %p356
      %p358 = pneg %p357
      // Predicated region
      $region9: #{encoder_forward.14} parent=5 // pred_check
        _
      $region10: #{encoder_forward.14} parent=5 // pred_check_branch
        %360 = sbr.rel (%p357) target = $region12
      $region11: #{encoder_forward.14} parent=5 // pred_region
        %s361 = ssub.s32 %s22, 1
        // Predicated region
        $region13: #{encoder_forward.14} parent=11 // pred_check
          %p362 = pneg %p69
        $region14: #{encoder_forward.14} parent=11 // pred_check_branch
          %364 = sbr.rel (%p362) target = $region16
        $region15: #{encoder_forward.14} parent=11 // pred_region
          _
        $region16: #{encoder_forward.14} parent=11 // pred_fallthru
          _
        // Predicated region
        $region17: #{encoder_forward.14} parent=11 // pred_check
          %p365 = pneg %p90
        $region18: #{encoder_forward.14} parent=11 // pred_check_branch
          %367 = sbr.rel (%p365) target = $region20
        $region19: #{encoder_forward.14} parent=11 // pred_region
          _
        $region20: #{encoder_forward.14} parent=11 // pred_fallthru
          _
        // Predicated region
        $region21: #{encoder_forward.14} parent=11 // pred_check
          %p368 = pneg %p111
        $region22: #{encoder_forward.14} parent=11 // pred_check_branch
          %370 = sbr.rel (%p368) target = $region24
        $region23: #{encoder_forward.14} parent=11 // pred_region
          _
        $region24: #{encoder_forward.14} parent=11 // pred_fallthru
          _
        // Predicated region
        $region25: #{encoder_forward.14} parent=11 // pred_check
          %p371 = pneg %p132
        $region26: #{encoder_forward.14} parent=11 // pred_check_branch
          %373 = sbr.rel (%p371) target = $region28
        $region27: #{encoder_forward.14} parent=11 // pred_region
          _
        $region28: #{encoder_forward.14} parent=11 // pred_fallthru
          _
        // Predicated region
        $region29: #{encoder_forward.14} parent=11 // pred_check
          %p374 = pneg %p153
        $region30: #{encoder_forward.14} parent=11 // pred_check_branch
          %376 = sbr.rel (%p374) target = $region32
        $region31: #{encoder_forward.14} parent=11 // pred_region
          _
        $region32: #{encoder_forward.14} parent=11 // pred_fallthru
          _
        // Predicated region
        $region33: #{encoder_forward.14} parent=11 // pred_check
          %p377 = pneg %p174
        $region34: #{encoder_forward.14} parent=11 // pred_check_branch
          %379 = sbr.rel (%p377) target = $region36
        $region35: #{encoder_forward.14} parent=11 // pred_region
          %381 = vsyncadd [#allocation3], 0
          %s382 = sshll.u32 %s6, 4
          %s383 = int_to_ptr.hbm [resolvable:$true] %s382
          %s384 = sshll.u32 [#allocation2], 4
          %s385 = int_to_ptr.vmem [resolvable:$true] %s384
          %390 = dma.hbm_to_vmem [thread:$0]  %s383, 256, %s385, [#allocation3], 64, 64, 4
        $region36: #{encoder_forward.14} parent=11 // pred_fallthru
          _
        // Predicated region
        $region37: #{encoder_forward.14} parent=11 // pred_check
          %p391 = pneg %p195
        $region38: #{encoder_forward.14} parent=11 // pred_check_branch
          %393 = sbr.rel (%p391) target = $region40
        $region39: #{encoder_forward.14} parent=11 // pred_region
          _
        $region40: #{encoder_forward.14} parent=11 // pred_fallthru
          _
        // Predicated region
        $region41: #{encoder_forward.14} parent=11 // pred_check
          %p394 = pneg %p216
        $region42: #{encoder_forward.14} parent=11 // pred_check_branch
          %396 = sbr.rel (%p394) target = $region44
        $region43: #{encoder_forward.14} parent=11 // pred_region
          %398 = vsyncadd [#allocation5], 0
          %s399 = sshll.u32 %s8, 4
          %s400 = int_to_ptr.hbm [resolvable:$true] %s399
          %s401 = sshll.u32 [#allocation4], 4
          %s402 = int_to_ptr.vmem [resolvable:$true] %s401
          %407 = dma.hbm_to_vmem [thread:$0]  %s400, 256, %s402, [#allocation5], 64, 64, 4
        $region44: #{encoder_forward.14} parent=11 // pred_fallthru
          _
        // Predicated region
        $region45: #{encoder_forward.14} parent=11 // pred_check
          %p408 = pneg %p237
        $region46: #{encoder_forward.14} parent=11 // pred_check_branch
          %410 = sbr.rel (%p408) target = $region48
        $region47: #{encoder_forward.14} parent=11 // pred_region
          _
        $region48: #{encoder_forward.14} parent=11 // pred_fallthru
          _
        // Predicated region
        $region49: #{encoder_forward.14} parent=11 // pred_check
          %p411 = pneg %p258
        $region50: #{encoder_forward.14} parent=11 // pred_check_branch
          %413 = sbr.rel (%p411) target = $region52
        $region51: #{encoder_forward.14} parent=11 // pred_region
          _
        $region52: #{encoder_forward.14} parent=11 // pred_fallthru
          _
        // Predicated region
        $region53: #{encoder_forward.14} parent=11 // pred_check
          %p414 = pneg %p279
        $region54: #{encoder_forward.14} parent=11 // pred_check_branch
          %416 = sbr.rel (%p414) target = $region56
        $region55: #{encoder_forward.14} parent=11 // pred_region
          _
        $region56: #{encoder_forward.14} parent=11 // pred_fallthru
          _
        // Predicated region
        $region57: #{encoder_forward.14} parent=11 // pred_check
          %p417 = pneg %p300
        $region58: #{encoder_forward.14} parent=11 // pred_check_branch
          %419 = sbr.rel (%p417) target = $region60
        $region59: #{encoder_forward.14} parent=11 // pred_region
          _
        $region60: #{encoder_forward.14} parent=11 // pred_fallthru
          _
        // Predicated region
        $region61: #{encoder_forward.14} parent=11 // pred_check
          %p420 = pneg %p321
        $region62: #{encoder_forward.14} parent=11 // pred_check_branch
          %422 = sbr.rel (%p420) target = $region64
        $region63: #{encoder_forward.14} parent=11 // pred_region
          _
        $region64: #{encoder_forward.14} parent=11 // pred_fallthru
          _
      $region12: #{encoder_forward.14} parent=5 // pred_fallthru
        _
      %p423 = scmp.lt.s32.totalorder %s22, 4
      // Predicated region
      $region65: #{encoder_forward.14} parent=5 // pred_check
        %p424 = pneg %p423
      $region66: #{encoder_forward.14} parent=5 // pred_check_branch
        %426 = sbr.rel (%p424) target = $region68
      $region67: #{encoder_forward.14} parent=5 // pred_region
        // Predicated region
        $region69: #{encoder_forward.14} parent=67 // pred_check
          %p427 = pneg %p42
        $region70: #{encoder_forward.14} parent=67 // pred_check_branch
          %429 = sbr.rel (%p427) target = $region72
        $region71: #{encoder_forward.14} parent=67 // pred_region
          %p430 = scmp.lt.s32.totalorder %s22, 3
          %s431 = scalar_select %p430, %s22, 3
          %s432 = smul.addr %s431, 8
          %s433 = scalar_lea.vmem %s0, %s432
        $region72: #{encoder_forward.14} parent=67 // pred_fallthru
          _
      $region68: #{encoder_forward.14} parent=5 // pred_fallthru
        _
      %p434 = scmp.le.s32.totalorder 1, %s22
      %p435 = scmp.lt.s32.totalorder %s22, 5
      %p436 = pnand %p434, %p435
      %p437 = pneg %p436
      // Predicated region
      $region73: #{encoder_forward.14} parent=5 // pred_check
        _
      $region74: #{encoder_forward.14} parent=5 // pred_check_branch
        %439 = sbr.rel (%p436) target = $region76
      $region75: #{encoder_forward.14} parent=5 // pred_region
        %s440 = ssub.s32 %s22, 1
        // Predicated region
        $region77: #{encoder_forward.14} parent=75 // pred_check
          %p441 = pneg %p174
        $region78: #{encoder_forward.14} parent=75 // pred_check_branch
          %443 = sbr.rel (%p441) target = $region80
        $region79: #{encoder_forward.14} parent=75 // pred_region
          %445 = dma.done [#allocation3], 256
        $region80: #{encoder_forward.14} parent=75 // pred_fallthru
          _
        // Predicated region
        $region81: #{encoder_forward.14} parent=75 // pred_check
          %p446 = pneg %p216
        $region82: #{encoder_forward.14} parent=75 // pred_check_branch
          %448 = sbr.rel (%p446) target = $region84
        $region83: #{encoder_forward.14} parent=75 // pred_region
          %450 = dma.done [#allocation5], 256
        $region84: #{encoder_forward.14} parent=75 // pred_fallthru
          _
        %p451 = scmp.lt.s32.totalorder %s27, 3
        %s452 = scalar_select %p451, %s27, 3
        %s453 = smul.addr %s452, 8
        %s454 = scalar_lea.vmem %s0, %s453
        %p455 = pneg %p48
        %p456 = pneg %p45
        %p457 = pneg %p69
        %p458 = pneg %p66
        %p459 = pneg %p90
        %p460 = pneg %p87
        %p461 = pneg %p111
        %p462 = pneg %p108
        %p463 = pneg %p132
        %p464 = pneg %p129
        %p465 = pneg %p153
        %p466 = pneg %p150
        %p467 = pneg %p174
        %p468 = pneg %p171
        %p469 = pneg %p195
        %p470 = pneg %p192
        %p471 = pneg %p216
        %p472 = pneg %p213
        %p473 = pneg %p237
        %p474 = pneg %p234
        %p475 = pneg %p258
        %p476 = pneg %p255
        %p477 = pneg %p279
        %p478 = pneg %p276
        %p479 = pneg %p300
        %p480 = pneg %p297
        %p481 = pneg %p321
        %p482 = pneg %p318
        %p483 = pneg %p347
        %p484 = pneg %p344
        %p485 = scmp.lt.s32.totalorder %s27, 3
        %s486 = scalar_select %p485, %s27, 3
        %s487 = smul.addr %s486, 8
        %s488 = scalar_lea.vmem %s14, %s487
        %p489 = scmp.lt.s32.totalorder %s27, 3
        %s490 = scalar_select %p489, %s27, 3
        %s491 = smul.addr %s490, 8
        %s492 = scalar_lea.vmem %s0, %s491
        %p493 = scmp.lt.s32.totalorder %s27, 3
        %s494 = scalar_select %p493, %s27, 3
        %s495 = smul.addr %s494, 8
        %s496 = scalar_lea.vmem %s14, %s495
        %v498 = vld [vmem:[%s492] sm:$0xff]
        %vm499 = vcmask 261120
        %v500 = vsel %vm499, %v498, 0.0
        %501 = vadd.xlane.f32.xlu0 %v500
        %v502 = vpop.xlane.xlu0 %501
        %v503 = vrcp.pop 32.0
        %v504 = vmul.f32 32.0, %v503
        %v505 = vsub.f32 1.0, %v504
        %v506 = vmul.f32 %v503, %v505
        %v507 = vadd.f32 %v503, %v506
        %vm508 = vweird.f32 %v503
        %v509 = vsel %vm508, %v503, %v507
        %v510 = vmul.f32 %v502, %v509
        %v511 = vsub.f32 %v498, %v510
        %v512 = vmul.f32 %v511, %v511
        %v513 = vsel %vm499, %v512, 0.0
        %514 = vadd.xlane.f32.xlu0 %v513
        %v515 = vpop.xlane.xlu0 %514
        %v516 = vmul.f32 %v515, %v509
        %v517 = vadd.f32 %v516, 1e-05
        %v518 = vrsqrt.pop %v517
        %v519 = vmul.f32 %v518, %v517
        %v520 = vmul.f32 %v519, %v518
        %v521 = vmul.f32 0.5, %v520
        %v522 = vsub.f32 1.5, %v521
        %v523 = vmul.f32 %v518, %v522
        %vm524 = vweird.f32 %v517
        %vm525 = vweird.f32 %v518
        %vm526 = vmor %vm524, %vm525
        %v527 = vsel %vm526, %v518, %v523
        %v528 = vmul.f32 %v511, %v527
        %v529 = vld [vmem:[%s2] sm:$0x1]
        %v531 = vperm.slane %v529, 0
        %v533 = vmul.f32 %v528, %v531
        %v534 = vld [vmem:[%s3] sm:$0x1]
        %v536 = vperm.slane %v534, 0
        %v538 = vadd.f32 %v533, %v536
        %v539 = vpack.c.bf16 %v538, %v538
        %v540 = vld [vmem:[%s4] sm:$0xf]
        %v541 = vld [vmem:[%s4 + $0x4] sm:$0xf]
        %v542 = vld [vmem:[%s4 + $0x8] sm:$0xf]
        %v543 = vld [vmem:[%s4 + $0xc] sm:$0xf]
        %v544 = vld [vmem:[%s5] sm:$0x1]
        %v546 = vperm.slane %v544, 0
        %v552 = vunpack.c.l.b16 %v540
        %v553 = vunpack.c.l.b16 %v541
        %v554 = vunpack.c.l.b16 %v542
        %v555 = vunpack.c.l.b16 %v543
        %v556 = vpack.c.b16 %v553, %v552
        %v557 = vpack.c.b16 %v555, %v554
        %v561 = vsel %vm499, %v539, 0
        %563 = vmatpush.bf16.msra.mxu0 0
        %564 = vmatpush.bf16.msra.mxu0 0
        %565 = vmatpush.bf16.msra.mxu0 0
        %566 = vmatpush.bf16.msra.mxu0 0
        %567 = vmatpush.bf16.msra.mxu0 0
        %568 = vmatpush.bf16.msra.mxu0 0
        %569 = vmatpush.bf16.msra.mxu0 %v557
        %570 = vmatpush.bf16.msra.mxu0 %v556
        %571 = vmatmul.bf16.gmra.mxu0 %v561
        %v572 = vpop.f32.mrf.mxu0
        %v573 = vadd.f32 %v546, %v572
        %v574 = vpop.f32.mrf.mxu0
        %575 = vdwg.mxu0
        %s576 = scalar_lea.vmem %s1, %s27
        %v577 = vld [vmem:[%s576] sm:$0x1]
        %v578 = vmul.f32 %v577, -1e+09
        %v579 = vpack.c.bf16 %v573, %v573
        %581 = vrot.lane.b32.xlu0 %v579, 96
        %v582 = vpop.permute.xlu0 %581
        %vm583 = vcmask 64512
        %v585 = vsel %vm583, %v579, 0
        %v588 = vsel %vm583, %v582, 0
        %590 = vmatpush.bf16.xpose.msra.mxu0 0
        %591 = vmatpush.bf16.xpose.msra.mxu0 0
        %592 = vmatpush.bf16.xpose.msra.mxu0 0
        %593 = vmatpush.bf16.xpose.msra.mxu0 0
        %594 = vmatpush.bf16.xpose.msra.mxu0 0
        %595 = vmatpush.bf16.xpose.msra.mxu0 0
        %596 = vmatpush.bf16.xpose.msra.mxu0 0
        %597 = vmatpush.bf16.xpose.msra.mxu0 %v588
        %598 = vmatmul.bf16.gmra.mxu0 %v585
        %v599 = vpop.f32.mrf.mxu0
        %v600 = vadd.f32 0.0, %v599
        %v601 = vpop.f32.mrf.mxu0
        %602 = vdwg.mxu0
        %v603 = vmul.f32 %v600, 0.35355338
        %v604 = vperm.slane %v578, 0
        %v605 = vadd.f32 %v603, %v604
        %v606 = vsel %vm583, %v605, -inf
        %607 = vmax.xlane.f32.xlu0 %v606
        %v608 = vpop.xlane.xlu0 %607
        %v609 = vsub.f32 %v605, %v608
        %v610 = vmul.f32 %v609, 1.442695
        %v611 = vpow.pop %v610
        %v612 = vsel %vm583, %v611, 0.0
        %613 = vadd.xlane.f32.xlu0 %v612
        %v614 = vpop.xlane.xlu0 %613
        %v615 = vrcp.pop %v614
        %v616 = vmul.f32 %v611, %v615
        %v617 = vpack.c.bf16 %v616, %v616
        %618 = vrot.lane.b32.xlu0 %v579, 64
        %v619 = vpop.permute.xlu0 %618
        %v621 = vsel %vm583, %v617, 0
        %vm623 = vcmask 1043456
        %v625 = vsel %vm623, %v619, 0
        %627 = vmatpush.bf16.msra.mxu0 0
        %628 = vmatpush.bf16.msra.mxu0 0
        %629 = vmatpush.bf16.msra.mxu0 0
        %630 = vmatpush.bf16.msra.mxu0 0
        %631 = vmatpush.bf16.msra.mxu0 0
        %632 = vmatpush.bf16.msra.mxu0 0
        %633 = vmatpush.bf16.msra.mxu0 0
        %634 = vmatpush.bf16.msra.mxu0 %v625
        %635 = vmatmul.bf16.gmra.mxu0 %v621
        %v636 = vpop.f32.mrf.mxu0
        %v637 = vadd.f32 0.0, %v636
        %v638 = vpop.f32.mrf.mxu0
        %639 = vdwg.mxu0
        %640 = vrot.lane.b32.xlu0 %v579, 120
        %v641 = vpop.permute.xlu0 %640
        %642 = vrot.lane.b32.xlu0 %v579, 88
        %v643 = vpop.permute.xlu0 %642
        %v645 = vsel %vm583, %v641, 0
        %v648 = vsel %vm583, %v643, 0
        %650 = vmatpush.bf16.xpose.msra.mxu0 0
        %651 = vmatpush.bf16.xpose.msra.mxu0 0
        %652 = vmatpush.bf16.xpose.msra.mxu0 0
        %653 = vmatpush.bf16.xpose.msra.mxu0 0
        %654 = vmatpush.bf16.xpose.msra.mxu0 0
        %655 = vmatpush.bf16.xpose.msra.mxu0 0
        %656 = vmatpush.bf16.xpose.msra.mxu0 0
        %657 = vmatpush.bf16.xpose.msra.mxu0 %v648
        %658 = vmatmul.bf16.gmra.mxu0 %v645
        %v659 = vpop.f32.mrf.mxu0
        %v660 = vadd.f32 0.0, %v659
        %v661 = vpop.f32.mrf.mxu0
        %662 = vdwg.mxu0
        %v663 = vmul.f32 %v660, 0.35355338
        %v664 = vadd.f32 %v663, %v604
        %v665 = vsel %vm583, %v664, -inf
        %666 = vmax.xlane.f32.xlu0 %v665
        %v667 = vpop.xlane.xlu0 %666
        %v668 = vsub.f32 %v664, %v667
        %v669 = vmul.f32 %v668, 1.442695
        %v670 = vpow.pop %v669
        %v671 = vsel %vm583, %v670, 0.0
        %672 = vadd.xlane.f32.xlu0 %v671
        %v673 = vpop.xlane.xlu0 %672
        %v674 = vrcp.pop %v673
        %v675 = vmul.f32 %v670, %v674
        %v676 = vpack.c.bf16 %v675, %v675
        %677 = vrot.lane.b32.xlu0 %v579, 56
        %v678 = vpop.permute.xlu0 %677
        %v680 = vsel %vm583, %v676, 0
        %v683 = vsel %vm623, %v678, 0
        %685 = vmatpush.bf16.msra.mxu0 0
        %686 = vmatpush.bf16.msra.mxu0 0
        %687 = vmatpush.bf16.msra.mxu0 0
        %688 = vmatpush.bf16.msra.mxu0 0
        %689 = vmatpush.bf16.msra.mxu0 0
        %690 = vmatpush.bf16.msra.mxu0 0
        %691 = vmatpush.bf16.msra.mxu0 0
        %692 = vmatpush.bf16.msra.mxu0 %v683
        %693 = vmatmul.bf16.gmra.mxu0 %v680
        %v694 = vpop.f32.mrf.mxu0
        %v695 = vadd.f32 0.0, %v694
        %v696 = vpop.f32.mrf.mxu0
        %697 = vdwg.mxu0
        %698 = vrot.lane.b32.xlu0 %v579, 112
        %v699 = vpop.permute.xlu0 %698
        %700 = vrot.lane.b32.xlu0 %v579, 80
        %v701 = vpop.permute.xlu0 %700
        %v703 = vsel %vm583, %v699, 0
        %v706 = vsel %vm583, %v701, 0
        %708 = vmatpush.bf16.xpose.msra.mxu0 0
        %709 = vmatpush.bf16.xpose.msra.mxu0 0
        %710 = vmatpush.bf16.xpose.msra.mxu0 0
        %711 = vmatpush.bf16.xpose.msra.mxu0 0
        %712 = vmatpush.bf16.xpose.msra.mxu0 0
        %713 = vmatpush.bf16.xpose.msra.mxu0 0
        %714 = vmatpush.bf16.xpose.msra.mxu0 0
        %715 = vmatpush.bf16.xpose.msra.mxu0 %v706
        %716 = vmatmul.bf16.gmra.mxu0 %v703
        %v717 = vpop.f32.mrf.mxu0
        %v718 = vadd.f32 0.0, %v717
        %v719 = vpop.f32.mrf.mxu0
        %720 = vdwg.mxu0
        %v721 = vmul.f32 %v718, 0.35355338
        %v722 = vadd.f32 %v721, %v604
        %v723 = vsel %vm583, %v722, -inf
        %724 = vmax.xlane.f32.xlu0 %v723
        %v725 = vpop.xlane.xlu0 %724
        %v726 = vsub.f32 %v722, %v725
        %v727 = vmul.f32 %v726, 1.442695
        %v728 = vpow.pop %v727
        %v729 = vsel %vm583, %v728, 0.0
        %730 = vadd.xlane.f32.xlu0 %v729
        %v731 = vpop.xlane.xlu0 %730
        %v732 = vrcp.pop %v731
        %v733 = vmul.f32 %v728, %v732
        %v734 = vpack.c.bf16 %v733, %v733
        %735 = vrot.lane.b32.xlu0 %v579, 48
        %v736 = vpop.permute.xlu0 %735
        %v738 = vsel %vm583, %v734, 0
        %v741 = vsel %vm623, %v736, 0
        %743 = vmatpush.bf16.msra.mxu0 0
        %744 = vmatpush.bf16.msra.mxu0 0
        %745 = vmatpush.bf16.msra.mxu0 0
        %746 = vmatpush.bf16.msra.mxu0 0
        %747 = vmatpush.bf16.msra.mxu0 0
        %748 = vmatpush.bf16.msra.mxu0 0
        %749 = vmatpush.bf16.msra.mxu0 0
        %750 = vmatpush.bf16.msra.mxu0 %v741
        %751 = vmatmul.bf16.gmra.mxu0 %v738
        %v752 = vpop.f32.mrf.mxu0
        %v753 = vadd.f32 0.0, %v752
        %v754 = vpop.f32.mrf.mxu0
        %755 = vdwg.mxu0
        %756 = vrot.lane.b32.xlu0 %v579, 104
        %v757 = vpop.permute.xlu0 %756
        %758 = vrot.lane.b32.xlu0 %v579, 72
        %v759 = vpop.permute.xlu0 %758
        %v761 = vsel %vm583, %v757, 0
        %v764 = vsel %vm583, %v759, 0
        %766 = vmatpush.bf16.xpose.msra.mxu0 0
        %767 = vmatpush.bf16.xpose.msra.mxu0 0
        %768 = vmatpush.bf16.xpose.msra.mxu0 0
        %769 = vmatpush.bf16.xpose.msra.mxu0 0
        %770 = vmatpush.bf16.xpose.msra.mxu0 0
        %771 = vmatpush.bf16.xpose.msra.mxu0 0
        %772 = vmatpush.bf16.xpose.msra.mxu0 0
        %773 = vmatpush.bf16.xpose.msra.mxu0 %v764
        %774 = vmatmul.bf16.gmra.mxu0 %v761
        %v775 = vpop.f32.mrf.mxu0
        %v776 = vadd.f32 0.0, %v775
        %v777 = vpop.f32.mrf.mxu0
        %778 = vdwg.mxu0
        %v779 = vmul.f32 %v776, 0.35355338
        %v780 = vadd.f32 %v779, %v604
        %v781 = vsel %vm583, %v780, -inf
        %782 = vmax.xlane.f32.xlu0 %v781
        %v783 = vpop.xlane.xlu0 %782
        %v784 = vsub.f32 %v780, %v783
        %v785 = vmul.f32 %v784, 1.442695
        %v786 = vpow.pop %v785
        %v787 = vsel %vm583, %v786, 0.0
        %788 = vadd.xlane.f32.xlu0 %v787
        %v789 = vpop.xlane.xlu0 %788
        %v790 = vrcp.pop %v789
        %v791 = vmul.f32 %v786, %v790
        %v792 = vpack.c.bf16 %v791, %v791
        %793 = vrot.lane.b32.xlu0 %v579, 40
        %v794 = vpop.permute.xlu0 %793
        %v796 = vsel %vm583, %v792, 0
        %v799 = vsel %vm623, %v794, 0
        %801 = vmatpush.bf16.msra.mxu0 0
        %802 = vmatpush.bf16.msra.mxu0 0
        %803 = vmatpush.bf16.msra.mxu0 0
        %804 = vmatpush.bf16.msra.mxu0 0
        %805 = vmatpush.bf16.msra.mxu0 0
        %806 = vmatpush.bf16.msra.mxu0 0
        %807 = vmatpush.bf16.msra.mxu0 0
        %808 = vmatpush.bf16.msra.mxu0 %v799
        %809 = vmatmul.bf16.gmra.mxu0 %v796
        %v810 = vpop.f32.mrf.mxu0
        %v811 = vadd.f32 0.0, %v810
        %v812 = vpop.f32.mrf.mxu0
        %813 = vdwg.mxu0
        %815 = vrot.lane.b32.xlu0 %v695, 8
        %v816 = vpop.permute.xlu0 %815
        %819 = vrot.lane.b32.xlu0 %v753, 16
        %v820 = vpop.permute.xlu0 %819
        %823 = vrot.lane.b32.xlu0 %v811, 24
        %v824 = vpop.permute.xlu0 %823
        %v826 = vsel %vm583, %v637, %v816
        %vm827 = vcmask 130048
        %v828 = vsel %vm827, %v826, %v820
        %vm829 = vcmask 195584
        %v830 = vsel %vm829, %v828, %v824
        %v831 = vpack.c.bf16 %v830, %v830
        %v832 = vld [vmem:[#allocation2] sm:$0xf]
        %v833 = vld [vmem:[#allocation2 + $0x4] sm:$0xf]
        %v834 = vld [vmem:[#allocation2 + $0x8] sm:$0xf]
        %v835 = vld [vmem:[#allocation2 + $0xc] sm:$0xf]
        %v836 = vld [vmem:[%s7] sm:$0x1]
        %v838 = vperm.slane %v836, 0
        %v844 = vunpack.c.l.b16 %v832
        %v845 = vunpack.c.l.b16 %v833
        %v846 = vunpack.c.l.b16 %v834
        %v847 = vunpack.c.l.b16 %v835
        %v848 = vpack.c.b16 %v845, %v844
        %v849 = vpack.c.b16 %v847, %v846
        %v853 = vsel %vm499, %v831, 0
        %855 = vmatpush.bf16.msra.mxu0 0
        %856 = vmatpush.bf16.msra.mxu0 0
        %857 = vmatpush.bf16.msra.mxu0 0
        %858 = vmatpush.bf16.msra.mxu0 0
        %859 = vmatpush.bf16.msra.mxu0 0
        %860 = vmatpush.bf16.msra.mxu0 0
        %861 = vmatpush.bf16.msra.mxu0 %v849
        %862 = vmatpush.bf16.msra.mxu0 %v848
        %863 = vmatmul.bf16.gmra.mxu0 %v853
        %v864 = vpop.f32.mrf.mxu0
        %v865 = vadd.f32 %v838, %v864
        %v866 = vpop.f32.mrf.mxu0
        %867 = vdwg.mxu0
        %v868 = vadd.f32 %v498, %v865
        %v869 = vpack.c.bf16 %v868, %v868
        %v870 = vld [vmem:[#allocation4] sm:$0xf]
        %v871 = vld [vmem:[#allocation4 + $0x4] sm:$0xf]
        %v872 = vld [vmem:[#allocation4 + $0x8] sm:$0xf]
        %v873 = vld [vmem:[#allocation4 + $0xc] sm:$0xf]
        %v874 = vld [vmem:[%s9] sm:$0x1]
        %v876 = vperm.slane %v874, 0
        %v882 = vunpack.c.l.b16 %v870
        %v883 = vunpack.c.l.b16 %v871
        %v884 = vunpack.c.l.b16 %v872
        %v885 = vunpack.c.l.b16 %v873
        %v886 = vpack.c.b16 %v883, %v882
        %v887 = vpack.c.b16 %v885, %v884
        %v891 = vsel %vm499, %v869, 0
        %893 = vmatpush.bf16.msra.mxu0 0
        %894 = vmatpush.bf16.msra.mxu0 0
        %895 = vmatpush.bf16.msra.mxu0 0
        %896 = vmatpush.bf16.msra.mxu0 0
        %897 = vmatpush.bf16.msra.mxu0 0
        %898 = vmatpush.bf16.msra.mxu0 0
        %899 = vmatpush.bf16.msra.mxu0 %v887
        %900 = vmatpush.bf16.msra.mxu0 %v886
        %901 = vmatmul.bf16.gmra.mxu0 %v891
        %v902 = vpop.f32.mrf.mxu0
        %v903 = vadd.f32 %v876, %v902
        %v904 = vpop.f32.mrf.mxu0
        %905 = vdwg.mxu0
        %v906 = vmax.f32 %v903, 0.0
        %v907 = vpack.c.bf16 %v906, %v906
        %v908 = vld [vmem:[%s10] sm:$0xf]
        %v909 = vld [vmem:[%s10 + $0x4] sm:$0xf]
        %v910 = vld [vmem:[%s10 + $0x8] sm:$0xf]
        %v911 = vld [vmem:[%s10 + $0xc] sm:$0xf]
        %v912 = vld [vmem:[%s10 + $0x10] sm:$0xf]
        %v913 = vld [vmem:[%s10 + $0x14] sm:$0xf]
        %v914 = vld [vmem:[%s10 + $0x18] sm:$0xf]
        %v915 = vld [vmem:[%s10 + $0x1c] sm:$0xf]
        %v916 = vld [vmem:[%s11] sm:$0x1]
        %v918 = vperm.slane %v916, 0
        %v928 = vunpack.c.l.b16 %v908
        %v929 = vunpack.c.l.b16 %v909
        %v930 = vunpack.c.l.b16 %v910
        %v931 = vunpack.c.l.b16 %v911
        %v932 = vunpack.c.l.b16 %v912
        %v933 = vunpack.c.l.b16 %v913
        %v934 = vunpack.c.l.b16 %v914
        %v935 = vunpack.c.l.b16 %v915
        %v936 = vpack.c.b16 %v929, %v928
        %v937 = vpack.c.b16 %v931, %v930
        %v938 = vpack.c.b16 %v933, %v932
        %v939 = vpack.c.b16 %v935, %v934
        %vm944 = vcmask 523264
        %v946 = vsel %vm944, %v907, 0
        %948 = vmatpush.bf16.msra.mxu0 0
        %949 = vmatpush.bf16.msra.mxu0 0
        %950 = vmatpush.bf16.msra.mxu0 0
        %951 = vmatpush.bf16.msra.mxu0 0
        %952 = vmatpush.bf16.msra.mxu0 %v939
        %953 = vmatpush.bf16.msra.mxu0 %v938
        %954 = vmatpush.bf16.msra.mxu0 %v937
        %955 = vmatpush.bf16.msra.mxu0 %v936
        %956 = vmatmul.bf16.gmra.mxu0 %v946
        %v957 = vpop.f32.mrf.mxu0
        %v958 = vadd.f32 %v918, %v957
        %v959 = vpop.f32.mrf.mxu0
        %960 = vdwg.mxu0
        %v961 = vadd.f32 %v868, %v958
        %v962 = vsel %vm499, %v961, 0.0
        %963 = vadd.xlane.f32.xlu0 %v962
        %v964 = vpop.xlane.xlu0 %963
        %v965 = vmul.f32 %v964, %v509
        %v966 = vsub.f32 %v961, %v965
        %v967 = vmul.f32 %v966, %v966
        %v968 = vsel %vm499, %v967, 0.0
        %969 = vadd.xlane.f32.xlu0 %v968
        %v970 = vpop.xlane.xlu0 %969
        %v971 = vmul.f32 %v970, %v509
        %v972 = vadd.f32 %v971, 1e-05
        %v973 = vrsqrt.pop %v972
        %v974 = vmul.f32 %v973, %v972
        %v975 = vmul.f32 %v974, %v973
        %v976 = vmul.f32 0.5, %v975
        %v977 = vsub.f32 1.5, %v976
        %v978 = vmul.f32 %v973, %v977
        %vm979 = vweird.f32 %v972
        %vm980 = vweird.f32 %v973
        %vm981 = vmor %vm979, %vm980
        %v982 = vsel %vm981, %v973, %v978
        %v983 = vmul.f32 %v966, %v982
        %v984 = vld [vmem:[%s12] sm:$0x1]
        %v986 = vperm.slane %v984, 0
        %v988 = vmul.f32 %v983, %v986
        %v989 = vld [vmem:[%s13] sm:$0x1]
        %v991 = vperm.slane %v989, 0
        %v993 = vadd.f32 %v988, %v991
        %994 = vst.msk [vmem:[%s496] sm:$0xff] %vm499, %v993
        %p995 = scmp.lt.s32.totalorder %s27, 3
        %s996 = scalar_select %p995, %s27, 3
        %s997 = smul.addr %s996, 8
        %s998 = scalar_lea.vmem %s14, %s997
        // Predicated region
        $region85: #{encoder_forward.14} parent=75 // pred_check
          %p999 = pneg %p344
        $region86: #{encoder_forward.14} parent=75 // pred_check_branch
          %1001 = sbr.rel (%p999) target = $region88
        $region87: #{encoder_forward.14} parent=75 // pred_region
          _
        $region88: #{encoder_forward.14} parent=75 // pred_fallthru
          _
      $region76: #{encoder_forward.14} parent=5 // pred_fallthru
        _
      %p1002 = scmp.le.s32.totalorder 2, %s22
      // Predicated region
      $region89: #{encoder_forward.14} parent=5 // pred_check
        %p1003 = pneg %p1002
      $region90: #{encoder_forward.14} parent=5 // pred_check_branch
        %1005 = sbr.rel (%p1003) target = $region92
      $region91: #{encoder_forward.14} parent=5 // pred_region
        %s1006 = ssub.s32 %s22, 2
        // Predicated region
        $region93: #{encoder_forward.14} parent=91 // pred_check
          %p1007 = pneg %p350
        $region94: #{encoder_forward.14} parent=91 // pred_check_branch
          %1009 = sbr.rel (%p1007) target = $region96
        $region95: #{encoder_forward.14} parent=91 // pred_region
          %p1010 = scmp.lt.s32.totalorder %s28, 3
          %s1011 = scalar_select %p1010, %s28, 3
          %s1012 = smul.addr %s1011, 8
          %s1013 = scalar_lea.vmem %s14, %s1012
        $region96: #{encoder_forward.14} parent=91 // pred_fallthru
          _
      $region92: #{encoder_forward.14} parent=5 // pred_fallthru
        _
    $region6: #{encoder_forward.14} parent=1 // loop_footer
      %s26 = sadd.s32 1, %s22
    $region7: #{encoder_forward.14} parent=1 // loop_footer_branch
      %21 = sbr.rel target = $region3
    $region8: #{encoder_forward.14} parent=1 // loop_exit
      _
    %1014 = vsyncpa [#allocation3], 1
    %s1015 = scalar_lea.sflag [#allocation3], 1
    %1016 = vsyncpa %s1015, 1
    %1017 = vsyncpa [#allocation5], 1

// kernel: encoder_forward.17
$region0: #{encoder_forward.17}
  #allocation0 [shape = 'u32[]', space=smem, size = 0x4, offset = 0x4, fixed_abs, tag = 'smem constant byte address 0x4 - core index']
  #allocation1 [shape = 'u32[72,128]{1,0:T(1,128)}', space=vmem, size = 0x9000, scoped, tag = 'internal scratch']
  %s0 = inlined_call_operand.vmem [shape: f32[8,4,32], index: 0, kind: input, shape index: {}]
  %s1 = inlined_call_operand.vmem [shape: f32[4,4], index: 1, kind: input, shape index: {}]
  %s2 = inlined_call_operand.vmem [shape: f32[1,32], index: 2, kind: input, shape index: {}, may-alias: {2,12}]
  %s3 = inlined_call_operand.vmem [shape: f32[1,32], index: 3, kind: input, shape index: {}, may-alias: {3,7,11,13}]
  %s4 = inlined_call_operand.vmem [shape: bf16[32,96], index: 4, kind: input, shape index: {}]
  %s5 = inlined_call_operand.vmem [shape: f32[1,96], index: 5, kind: input, shape index: {}]
  %s6 = inlined_call_operand.vmem [shape: bf16[32,32], index: 6, kind: input, shape index: {}]
  %s7 = inlined_call_operand.vmem [shape: f32[1,32], index: 7, kind: input, shape index: {}, may-alias: {3,7,11,13}]
  %s8 = inlined_call_operand.vmem [shape: bf16[32,64], index: 8, kind: input, shape index: {}]
  %s9 = inlined_call_operand.vmem [shape: f32[1,64], index: 9, kind: input, shape index: {}]
  %s10 = inlined_call_operand.vmem [shape: bf16[64,32], index: 10, kind: input, shape index: {}]
  %s11 = inlined_call_operand.vmem [shape: f32[1,32], index: 11, kind: input, shape index: {}, may-alias: {3,7,11,13}]
  %s12 = inlined_call_operand.vmem [shape: f32[1,32], index: 12, kind: input, shape index: {}, may-alias: {2,12}]
  %s13 = inlined_call_operand.vmem [shape: f32[1,32], index: 13, kind: input, shape index: {}, may-alias: {3,7,11,13}]
  %s14 = inlined_call_operand.vmem [shape: f32[8,4,32], index: 14, kind: output, shape index: {}]
  %s15 = sld [smem:[#allocation0]]
  $region89: #{encoder_forward.17} parent=0
    _
  %s17 = ssub.s32 1, %s15
  %s18 = scalar_select 0, %s17, %s15
  loop: start=0, step=1, limit=10
  $region2: #{encoder_forward.17} parent=0 // loop_pre_header
    _
  $region3: #{encoder_forward.17} parent=0 // loop_header
    %s20 = sphi 0, %s24
    %p21 = scmp.ge.s32.totalorder %s20, 10
    %s30 = sphi 0, %s32
    %s33 = sphi 0, %s30
    %s34 = sphi 0, %s33
    %s50 = sphi 0, %s34
    %s54 = sphi 0, %s54
    %s56 = sphi 0, %s54
    %s57 = sphi 0, %s56
    %s71 = sphi 0, %s57
    %s75 = sphi 0, %s75
    %s77 = sphi 0, %s75
    %s78 = sphi 0, %s77
    %s92 = sphi 0, %s78
    %s96 = sphi 0, %s96
    %s98 = sphi 0, %s96
    %s99 = sphi 0, %s98
    %s113 = sphi 0, %s99
    %s117 = sphi 0, %s117
    %s119 = sphi 0, %s117
    %s120 = sphi 0, %s119
    %s134 = sphi 0, %s120
    %s138 = sphi 0, %s138
    %s140 = sphi 0, %s138
    %s141 = sphi 0, %s140
    %s155 = sphi 0, %s141
    %s159 = sphi 0, %s159
    %s161 = sphi 0, %s159
    %s162 = sphi 0, %s161
    %s176 = sphi 0, %s162
    %s180 = sphi 0, %s180
    %s182 = sphi 0, %s180
    %s183 = sphi 0, %s182
    %s197 = sphi 0, %s183
    %s201 = sphi 0, %s201
    %s203 = sphi 0, %s201
    %s204 = sphi 0, %s203
    %s218 = sphi 0, %s204
    %s222 = sphi 0, %s222
    %s224 = sphi 0, %s222
    %s225 = sphi 0, %s224
    %s239 = sphi 0, %s225
    %s243 = sphi 0, %s243
    %s245 = sphi 0, %s243
    %s246 = sphi 0, %s245
    %s260 = sphi 0, %s246
    %s264 = sphi 0, %s264
    %s266 = sphi 0, %s264
    %s267 = sphi 0, %s266
    %s281 = sphi 0, %s267
    %s285 = sphi 0, %s285
    %s287 = sphi 0, %s285
    %s288 = sphi 0, %s287
    %s302 = sphi 0, %s288
    %s306 = sphi 0, %s306
    %s308 = sphi 0, %s306
    %s309 = sphi 0, %s308
    %s323 = sphi 0, %s309
    %s329 = sphi 0, %s331
    %s332 = sphi 0, %s329
    %s333 = sphi 0, %s332
    %s349 = sphi 0, %s333
  $region4: #{encoder_forward.17} parent=0 // loop_header_branch
    %23 = sbr.rel (%p21) target = $region8
  $region5: #{encoder_forward.17} parent=0 // loop_body
    %s25 = ssub.s32 %s20, 1
    %s26 = ssub.s32 %s20, 2
    %s27 = sadd.s32 %s20, 1
    %s28 = ssub.s32 %s20, %s27
    %p29 = scmp.eq.s32.totalorder %s28, 0
    %s31 = sadd.s32 %s30, 1
    %s32 = scalar_select %p29, %s30, %s31
    %p35 = pneg %p29
    %p36 = scmp.eq.s32.totalorder %s20, 7
    %p37 = por %p35, %p36
    %p38 = scmp.ne.s32.totalorder %s30, %s33
    %p39 = scmp.eq.s32.totalorder %s20, 0
    %p40 = por %p38, %p39
    %p41 = scmp.ne.s32.totalorder %s30, %s33
    %p42 = scmp.eq.s32.totalorder %s25, 7
    %p43 = por %p41, %p42
    %p44 = scmp.ne.s32.totalorder %s33, %s34
    %p45 = scmp.eq.s32.totalorder %s25, 0
    %p46 = por %p44, %p45
    %p47 = scmp.ne.s32.totalorder %s33, %s34
    %p48 = scmp.eq.s32.totalorder %s26, 7
    %p49 = por %p47, %p48
    %p51 = scmp.ne.s32.totalorder %s34, %s50
    %p52 = scmp.eq.s32.totalorder %s26, 0
    %p53 = por %p51, %p52
    %s55 = sadd.s32 %s54, 1
    %p58 = scmp.eq.s32.totalorder %s20, 7
    %p59 = scmp.ne.s32.totalorder %s54, %s56
    %p60 = scmp.eq.s32.totalorder %s20, 0
    %p61 = por %p59, %p60
    %p62 = scmp.ne.s32.totalorder %s54, %s56
    %p63 = scmp.eq.s32.totalorder %s25, 7
    %p64 = por %p62, %p63
    %p65 = scmp.ne.s32.totalorder %s56, %s57
    %p66 = scmp.eq.s32.totalorder %s25, 0
    %p67 = por %p65, %p66
    %p68 = scmp.ne.s32.totalorder %s56, %s57
    %p69 = scmp.eq.s32.totalorder %s26, 7
    %p70 = por %p68, %p69
    %p72 = scmp.ne.s32.totalorder %s57, %s71
    %p73 = scmp.eq.s32.totalorder %s26, 0
    %p74 = por %p72, %p73
    %s76 = sadd.s32 %s75, 1
    %p79 = scmp.eq.s32.totalorder %s20, 7
    %p80 = scmp.ne.s32.totalorder %s75, %s77
    %p81 = scmp.eq.s32.totalorder %s20, 0
    %p82 = por %p80, %p81
    %p83 = scmp.ne.s32.totalorder %s75, %s77
    %p84 = scmp.eq.s32.totalorder %s25, 7
    %p85 = por %p83, %p84
    %p86 = scmp.ne.s32.totalorder %s77, %s78
    %p87 = scmp.eq.s32.totalorder %s25, 0
    %p88 = por %p86, %p87
    %p89 = scmp.ne.s32.totalorder %s77, %s78
    %p90 = scmp.eq.s32.totalorder %s26, 7
    %p91 = por %p89, %p90
    %p93 = scmp.ne.s32.totalorder %s78, %s92
    %p94 = scmp.eq.s32.totalorder %s26, 0
    %p95 = por %p93, %p94
    %s97 = sadd.s32 %s96, 1
    %p100 = scmp.eq.s32.totalorder %s20, 7
    %p101 = scmp.ne.s32.totalorder %s96, %s98
    %p102 = scmp.eq.s32.totalorder %s20, 0
    %p103 = por %p101, %p102
    %p104 = scmp.ne.s32.totalorder %s96, %s98
    %p105 = scmp.eq.s32.totalorder %s25, 7
    %p106 = por %p104, %p105
    %p107 = scmp.ne.s32.totalorder %s98, %s99
    %p108 = scmp.eq.s32.totalorder %s25, 0
    %p109 = por %p107, %p108
    %p110 = scmp.ne.s32.totalorder %s98, %s99
    %p111 = scmp.eq.s32.totalorder %s26, 7
    %p112 = por %p110, %p111
    %p114 = scmp.ne.s32.totalorder %s99, %s113
    %p115 = scmp.eq.s32.totalorder %s26, 0
    %p116 = por %p114, %p115
    %s118 = sadd.s32 %s117, 1
    %p121 = scmp.eq.s32.totalorder %s20, 7
    %p122 = scmp.ne.s32.totalorder %s117, %s119
    %p123 = scmp.eq.s32.totalorder %s20, 0
    %p124 = por %p122, %p123
    %p125 = scmp.ne.s32.totalorder %s117, %s119
    %p126 = scmp.eq.s32.totalorder %s25, 7
    %p127 = por %p125, %p126
    %p128 = scmp.ne.s32.totalorder %s119, %s120
    %p129 = scmp.eq.s32.totalorder %s25, 0
    %p130 = por %p128, %p129
    %p131 = scmp.ne.s32.totalorder %s119, %s120
    %p132 = scmp.eq.s32.totalorder %s26, 7
    %p133 = por %p131, %p132
    %p135 = scmp.ne.s32.totalorder %s120, %s134
    %p136 = scmp.eq.s32.totalorder %s26, 0
    %p137 = por %p135, %p136
    %s139 = sadd.s32 %s138, 1
    %p142 = scmp.eq.s32.totalorder %s20, 7
    %p143 = scmp.ne.s32.totalorder %s138, %s140
    %p144 = scmp.eq.s32.totalorder %s20, 0
    %p145 = por %p143, %p144
    %p146 = scmp.ne.s32.totalorder %s138, %s140
    %p147 = scmp.eq.s32.totalorder %s25, 7
    %p148 = por %p146, %p147
    %p149 = scmp.ne.s32.totalorder %s140, %s141
    %p150 = scmp.eq.s32.totalorder %s25, 0
    %p151 = por %p149, %p150
    %p152 = scmp.ne.s32.totalorder %s140, %s141
    %p153 = scmp.eq.s32.totalorder %s26, 7
    %p154 = por %p152, %p153
    %p156 = scmp.ne.s32.totalorder %s141, %s155
    %p157 = scmp.eq.s32.totalorder %s26, 0
    %p158 = por %p156, %p157
    %s160 = sadd.s32 %s159, 1
    %p163 = scmp.eq.s32.totalorder %s20, 7
    %p164 = scmp.ne.s32.totalorder %s159, %s161
    %p165 = scmp.eq.s32.totalorder %s20, 0
    %p166 = por %p164, %p165
    %p167 = scmp.ne.s32.totalorder %s159, %s161
    %p168 = scmp.eq.s32.totalorder %s25, 7
    %p169 = por %p167, %p168
    %p170 = scmp.ne.s32.totalorder %s161, %s162
    %p171 = scmp.eq.s32.totalorder %s25, 0
    %p172 = por %p170, %p171
    %p173 = scmp.ne.s32.totalorder %s161, %s162
    %p174 = scmp.eq.s32.totalorder %s26, 7
    %p175 = por %p173, %p174
    %p177 = scmp.ne.s32.totalorder %s162, %s176
    %p178 = scmp.eq.s32.totalorder %s26, 0
    %p179 = por %p177, %p178
    %s181 = sadd.s32 %s180, 1
    %p184 = scmp.eq.s32.totalorder %s20, 7
    %p185 = scmp.ne.s32.totalorder %s180, %s182
    %p186 = scmp.eq.s32.totalorder %s20, 0
    %p187 = por %p185, %p186
    %p188 = scmp.ne.s32.totalorder %s180, %s182
    %p189 = scmp.eq.s32.totalorder %s25, 7
    %p190 = por %p188, %p189
    %p191 = scmp.ne.s32.totalorder %s182, %s183
    %p192 = scmp.eq.s32.totalorder %s25, 0
    %p193 = por %p191, %p192
    %p194 = scmp.ne.s32.totalorder %s182, %s183
    %p195 = scmp.eq.s32.totalorder %s26, 7
    %p196 = por %p194, %p195
    %p198 = scmp.ne.s32.totalorder %s183, %s197
    %p199 = scmp.eq.s32.totalorder %s26, 0
    %p200 = por %p198, %p199
    %s202 = sadd.s32 %s201, 1
    %p205 = scmp.eq.s32.totalorder %s20, 7
    %p206 = scmp.ne.s32.totalorder %s201, %s203
    %p207 = scmp.eq.s32.totalorder %s20, 0
    %p208 = por %p206, %p207
    %p209 = scmp.ne.s32.totalorder %s201, %s203
    %p210 = scmp.eq.s32.totalorder %s25, 7
    %p211 = por %p209, %p210
    %p212 = scmp.ne.s32.totalorder %s203, %s204
    %p213 = scmp.eq.s32.totalorder %s25, 0
    %p214 = por %p212, %p213
    %p215 = scmp.ne.s32.totalorder %s203, %s204
    %p216 = scmp.eq.s32.totalorder %s26, 7
    %p217 = por %p215, %p216
    %p219 = scmp.ne.s32.totalorder %s204, %s218
    %p220 = scmp.eq.s32.totalorder %s26, 0
    %p221 = por %p219, %p220
    %s223 = sadd.s32 %s222, 1
    %p226 = scmp.eq.s32.totalorder %s20, 7
    %p227 = scmp.ne.s32.totalorder %s222, %s224
    %p228 = scmp.eq.s32.totalorder %s20, 0
    %p229 = por %p227, %p228
    %p230 = scmp.ne.s32.totalorder %s222, %s224
    %p231 = scmp.eq.s32.totalorder %s25, 7
    %p232 = por %p230, %p231
    %p233 = scmp.ne.s32.totalorder %s224, %s225
    %p234 = scmp.eq.s32.totalorder %s25, 0
    %p235 = por %p233, %p234
    %p236 = scmp.ne.s32.totalorder %s224, %s225
    %p237 = scmp.eq.s32.totalorder %s26, 7
    %p238 = por %p236, %p237
    %p240 = scmp.ne.s32.totalorder %s225, %s239
    %p241 = scmp.eq.s32.totalorder %s26, 0
    %p242 = por %p240, %p241
    %s244 = sadd.s32 %s243, 1
    %p247 = scmp.eq.s32.totalorder %s20, 7
    %p248 = scmp.ne.s32.totalorder %s243, %s245
    %p249 = scmp.eq.s32.totalorder %s20, 0
    %p250 = por %p248, %p249
    %p251 = scmp.ne.s32.totalorder %s243, %s245
    %p252 = scmp.eq.s32.totalorder %s25, 7
    %p253 = por %p251, %p252
    %p254 = scmp.ne.s32.totalorder %s245, %s246
    %p255 = scmp.eq.s32.totalorder %s25, 0
    %p256 = por %p254, %p255
    %p257 = scmp.ne.s32.totalorder %s245, %s246
    %p258 = scmp.eq.s32.totalorder %s26, 7
    %p259 = por %p257, %p258
    %p261 = scmp.ne.s32.totalorder %s246, %s260
    %p262 = scmp.eq.s32.totalorder %s26, 0
    %p263 = por %p261, %p262
    %s265 = sadd.s32 %s264, 1
    %p268 = scmp.eq.s32.totalorder %s20, 7
    %p269 = scmp.ne.s32.totalorder %s264, %s266
    %p270 = scmp.eq.s32.totalorder %s20, 0
    %p271 = por %p269, %p270
    %p272 = scmp.ne.s32.totalorder %s264, %s266
    %p273 = scmp.eq.s32.totalorder %s25, 7
    %p274 = por %p272, %p273
    %p275 = scmp.ne.s32.totalorder %s266, %s267
    %p276 = scmp.eq.s32.totalorder %s25, 0
    %p277 = por %p275, %p276
    %p278 = scmp.ne.s32.totalorder %s266, %s267
    %p279 = scmp.eq.s32.totalorder %s26, 7
    %p280 = por %p278, %p279
    %p282 = scmp.ne.s32.totalorder %s267, %s281
    %p283 = scmp.eq.s32.totalorder %s26, 0
    %p284 = por %p282, %p283
    %s286 = sadd.s32 %s285, 1
    %p289 = scmp.eq.s32.totalorder %s20, 7
    %p290 = scmp.ne.s32.totalorder %s285, %s287
    %p291 = scmp.eq.s32.totalorder %s20, 0
    %p292 = por %p290, %p291
    %p293 = scmp.ne.s32.totalorder %s285, %s287
    %p294 = scmp.eq.s32.totalorder %s25, 7
    %p295 = por %p293, %p294
    %p296 = scmp.ne.s32.totalorder %s287, %s288
    %p297 = scmp.eq.s32.totalorder %s25, 0
    %p298 = por %p296, %p297
    %p299 = scmp.ne.s32.totalorder %s287, %s288
    %p300 = scmp.eq.s32.totalorder %s26, 7
    %p301 = por %p299, %p300
    %p303 = scmp.ne.s32.totalorder %s288, %s302
    %p304 = scmp.eq.s32.totalorder %s26, 0
    %p305 = por %p303, %p304
    %s307 = sadd.s32 %s306, 1
    %p310 = scmp.eq.s32.totalorder %s20, 7
    %p311 = scmp.ne.s32.totalorder %s306, %s308
    %p312 = scmp.eq.s32.totalorder %s20, 0
    %p313 = por %p311, %p312
    %p314 = scmp.ne.s32.totalorder %s306, %s308
    %p315 = scmp.eq.s32.totalorder %s25, 7
    %p316 = por %p314, %p315
    %p317 = scmp.ne.s32.totalorder %s308, %s309
    %p318 = scmp.eq.s32.totalorder %s25, 0
    %p319 = por %p317, %p318
    %p320 = scmp.ne.s32.totalorder %s308, %s309
    %p321 = scmp.eq.s32.totalorder %s26, 7
    %p322 = por %p320, %p321
    %p324 = scmp.ne.s32.totalorder %s309, %s323
    %p325 = scmp.eq.s32.totalorder %s26, 0
    %p326 = por %p324, %p325
    %s327 = ssub.s32 %s20, %s27
    %p328 = scmp.eq.s32.totalorder %s327, 0
    %s330 = sadd.s32 %s329, 1
    %s331 = scalar_select %p328, %s329, %s330
    %p334 = pneg %p328
    %p335 = scmp.eq.s32.totalorder %s20, 7
    %p336 = por %p334, %p335
    %p337 = scmp.ne.s32.totalorder %s329, %s332
    %p338 = scmp.eq.s32.totalorder %s20, 0
    %p339 = por %p337, %p338
    %p340 = scmp.ne.s32.totalorder %s329, %s332
    %p341 = scmp.eq.s32.totalorder %s25, 7
    %p342 = por %p340, %p341
    %p343 = scmp.ne.s32.totalorder %s332, %s333
    %p344 = scmp.eq.s32.totalorder %s25, 0
    %p345 = por %p343, %p344
    %p346 = scmp.ne.s32.totalorder %s332, %s333
    %p347 = scmp.eq.s32.totalorder %s26, 7
    %p348 = por %p346, %p347
    %p350 = scmp.ne.s32.totalorder %s333, %s349
    %p351 = scmp.eq.s32.totalorder %s26, 0
    %p352 = por %p350, %p351
    %p353 = scmp.le.s32.totalorder 1, %s20
    %p354 = scmp.lt.s32.totalorder %s20, 9
    %p355 = pnand %p353, %p354
    %p356 = pneg %p355
    // Predicated region
    $region9: #{encoder_forward.17} parent=5 // pred_check
      _
    $region10: #{encoder_forward.17} parent=5 // pred_check_branch
      %358 = sbr.rel (%p355) target = $region12
    $region11: #{encoder_forward.17} parent=5 // pred_region
      %s359 = ssub.s32 %s20, 1
      // Predicated region
      $region13: #{encoder_forward.17} parent=11 // pred_check
        %p360 = pneg %p67
      $region14: #{encoder_forward.17} parent=11 // pred_check_branch
        %362 = sbr.rel (%p360) target = $region16
      $region15: #{encoder_forward.17} parent=11 // pred_region
        _
      $region16: #{encoder_forward.17} parent=11 // pred_fallthru
        _
      // Predicated region
      $region17: #{encoder_forward.17} parent=11 // pred_check
        %p363 = pneg %p88
      $region18: #{encoder_forward.17} parent=11 // pred_check_branch
        %365 = sbr.rel (%p363) target = $region20
      $region19: #{encoder_forward.17} parent=11 // pred_region
        _
      $region20: #{encoder_forward.17} parent=11 // pred_fallthru
        _
      // Predicated region
      $region21: #{encoder_forward.17} parent=11 // pred_check
        %p366 = pneg %p109
      $region22: #{encoder_forward.17} parent=11 // pred_check_branch
        %368 = sbr.rel (%p366) target = $region24
      $region23: #{encoder_forward.17} parent=11 // pred_region
        _
      $region24: #{encoder_forward.17} parent=11 // pred_fallthru
        _
      // Predicated region
      $region25: #{encoder_forward.17} parent=11 // pred_check
        %p369 = pneg %p130
      $region26: #{encoder_forward.17} parent=11 // pred_check_branch
        %371 = sbr.rel (%p369) target = $region28
      $region27: #{encoder_forward.17} parent=11 // pred_region
        _
      $region28: #{encoder_forward.17} parent=11 // pred_fallthru
        _
      // Predicated region
      $region29: #{encoder_forward.17} parent=11 // pred_check
        %p372 = pneg %p151
      $region30: #{encoder_forward.17} parent=11 // pred_check_branch
        %374 = sbr.rel (%p372) target = $region32
      $region31: #{encoder_forward.17} parent=11 // pred_region
        _
      $region32: #{encoder_forward.17} parent=11 // pred_fallthru
        _
      // Predicated region
      $region33: #{encoder_forward.17} parent=11 // pred_check
        %p375 = pneg %p172
      $region34: #{encoder_forward.17} parent=11 // pred_check_branch
        %377 = sbr.rel (%p375) target = $region36
      $region35: #{encoder_forward.17} parent=11 // pred_region
        _
      $region36: #{encoder_forward.17} parent=11 // pred_fallthru
        _
      // Predicated region
      $region37: #{encoder_forward.17} parent=11 // pred_check
        %p378 = pneg %p193
      $region38: #{encoder_forward.17} parent=11 // pred_check_branch
        %380 = sbr.rel (%p378) target = $region40
      $region39: #{encoder_forward.17} parent=11 // pred_region
        _
      $region40: #{encoder_forward.17} parent=11 // pred_fallthru
        _
      // Predicated region
      $region41: #{encoder_forward.17} parent=11 // pred_check
        %p381 = pneg %p214
      $region42: #{encoder_forward.17} parent=11 // pred_check_branch
        %383 = sbr.rel (%p381) target = $region44
      $region43: #{encoder_forward.17} parent=11 // pred_region
        _
      $region44: #{encoder_forward.17} parent=11 // pred_fallthru
        _
      // Predicated region
      $region45: #{encoder_forward.17} parent=11 // pred_check
        %p384 = pneg %p235
      $region46: #{encoder_forward.17} parent=11 // pred_check_branch
        %386 = sbr.rel (%p384) target = $region48
      $region47: #{encoder_forward.17} parent=11 // pred_region
        _
      $region48: #{encoder_forward.17} parent=11 // pred_fallthru
        _
      // Predicated region
      $region49: #{encoder_forward.17} parent=11 // pred_check
        %p387 = pneg %p256
      $region50: #{encoder_forward.17} parent=11 // pred_check_branch
        %389 = sbr.rel (%p387) target = $region52
      $region51: #{encoder_forward.17} parent=11 // pred_region
        _
      $region52: #{encoder_forward.17} parent=11 // pred_fallthru
        _
      // Predicated region
      $region53: #{encoder_forward.17} parent=11 // pred_check
        %p390 = pneg %p277
      $region54: #{encoder_forward.17} parent=11 // pred_check_branch
        %392 = sbr.rel (%p390) target = $region56
      $region55: #{encoder_forward.17} parent=11 // pred_region
        _
      $region56: #{encoder_forward.17} parent=11 // pred_fallthru
        _
      // Predicated region
      $region57: #{encoder_forward.17} parent=11 // pred_check
        %p393 = pneg %p298
      $region58: #{encoder_forward.17} parent=11 // pred_check_branch
        %395 = sbr.rel (%p393) target = $region60
      $region59: #{encoder_forward.17} parent=11 // pred_region
        _
      $region60: #{encoder_forward.17} parent=11 // pred_fallthru
        _
      // Predicated region
      $region61: #{encoder_forward.17} parent=11 // pred_check
        %p396 = pneg %p319
      $region62: #{encoder_forward.17} parent=11 // pred_check_branch
        %398 = sbr.rel (%p396) target = $region64
      $region63: #{encoder_forward.17} parent=11 // pred_region
        _
      $region64: #{encoder_forward.17} parent=11 // pred_fallthru
        _
    $region12: #{encoder_forward.17} parent=5 // pred_fallthru
      _
    %p399 = scmp.lt.s32.totalorder %s20, 8
    // Predicated region
    $region65: #{encoder_forward.17} parent=5 // pred_check
      %p400 = pneg %p399
    $region66: #{encoder_forward.17} parent=5 // pred_check_branch
      %402 = sbr.rel (%p400) target = $region68
    $region67: #{encoder_forward.17} parent=5 // pred_region
      // Predicated region
      $region69: #{encoder_forward.17} parent=67 // pred_check
        %p403 = pneg %p40
      $region70: #{encoder_forward.17} parent=67 // pred_check_branch
        %405 = sbr.rel (%p403) target = $region72
      $region71: #{encoder_forward.17} parent=67 // pred_region
        %p406 = scmp.lt.s32.totalorder %s20, 7
        %s407 = scalar_select %p406, %s20, 7
        %s408 = smul.addr %s407, 4
        %s409 = scalar_lea.vmem %s0, %s408
      $region72: #{encoder_forward.17} parent=67 // pred_fallthru
        _
    $region68: #{encoder_forward.17} parent=5 // pred_fallthru
      _
    %p410 = scmp.le.s32.totalorder 1, %s20
    %p411 = scmp.lt.s32.totalorder %s20, 9
    %p412 = pnand %p410, %p411
    %p413 = pneg %p412
    // Predicated region
    $region73: #{encoder_forward.17} parent=5 // pred_check
      _
    $region74: #{encoder_forward.17} parent=5 // pred_check_branch
      %415 = sbr.rel (%p412) target = $region76
    $region75: #{encoder_forward.17} parent=5 // pred_region
      %s416 = ssub.s32 %s20, 1
      %p417 = scmp.lt.s32.totalorder %s25, 7
      %s418 = scalar_select %p417, %s25, 7
      %s419 = smul.addr %s418, 4
      %s420 = scalar_lea.vmem %s0, %s419
      %p421 = pneg %p46
      %p422 = pneg %p43
      %p423 = pneg %p67
      %p424 = pneg %p64
      %p425 = pneg %p88
      %p426 = pneg %p85
      %p427 = pneg %p109
      %p428 = pneg %p106
      %p429 = pneg %p130
      %p430 = pneg %p127
      %p431 = pneg %p151
      %p432 = pneg %p148
      %p433 = pneg %p172
      %p434 = pneg %p169
      %p435 = pneg %p193
      %p436 = pneg %p190
      %p437 = pneg %p214
      %p438 = pneg %p211
      %p439 = pneg %p235
      %p440 = pneg %p232
      %p441 = pneg %p256
      %p442 = pneg %p253
      %p443 = pneg %p277
      %p444 = pneg %p274
      %p445 = pneg %p298
      %p446 = pneg %p295
      %p447 = pneg %p319
      %p448 = pneg %p316
      %p449 = pneg %p345
      %p450 = pneg %p342
      %p451 = scmp.lt.s32.totalorder %s25, 7
      %s452 = scalar_select %p451, %s25, 7
      %s453 = smul.addr %s452, 4
      %s454 = scalar_lea.vmem %s14, %s453
      %p455 = scmp.lt.s32.totalorder %s25, 7
      %s456 = scalar_select %p455, %s25, 7
      %s457 = smul.addr %s456, 4
      %s458 = scalar_lea.vmem %s0, %s457
      %p459 = scmp.lt.s32.totalorder %s25, 7
      %s460 = scalar_select %p459, %s25, 7
      %s461 = smul.addr %s460, 4
      %s462 = scalar_lea.vmem %s14, %s461
      %v464 = vld [vmem:[%s458] sm:$0xf]
      %vm465 = vcmask 257024
      %v466 = vsel %vm465, %v464, 0.0
      %467 = vadd.xlane.f32.xlu0 %v466
      %v468 = vpop.xlane.xlu0 %467
      %v469 = vrcp.pop 32.0
      %v470 = vmul.f32 32.0, %v469
      %v471 = vsub.f32 1.0, %v470
      %v472 = vmul.f32 %v469, %v471
      %v473 = vadd.f32 %v469, %v472
      %vm474 = vweird.f32 %v469
      %v475 = vsel %vm474, %v469, %v473
      %v476 = vmul.f32 %v468, %v475
      %v477 = vsub.f32 %v464, %v476
      %v478 = vmul.f32 %v477, %v477
      %v479 = vsel %vm465, %v478, 0.0
      %480 = vadd.xlane.f32.xlu0 %v479
      %v481 = vpop.xlane.xlu0 %480
      %v482 = vmul.f32 %v481, %v475
      %v483 = vadd.f32 %v482, 1e-05
      %v484 = vrsqrt.pop %v483
      %v485 = vmul.f32 %v484, %v483
      %v486 = vmul.f32 %v485, %v484
      %v487 = vmul.f32 0.5, %v486
      %v488 = vsub.f32 1.5, %v487
      %v489 = vmul.f32 %v484, %v488
      %vm490 = vweird.f32 %v483
      %vm491 = vweird.f32 %v484
      %vm492 = vmor %vm490, %vm491
      %v493 = vsel %vm492, %v484, %v489
      %v494 = vmul.f32 %v477, %v493
      %v495 = vld [vmem:[%s2] sm:$0x1]
      %v497 = vperm.slane %v495, 0
      %v499 = vmul.f32 %v494, %v497
      %v500 = vld [vmem:[%s3] sm:$0x1]
      %v502 = vperm.slane %v500, 0
      %v504 = vadd.f32 %v499, %v502
      %v505 = vpack.c.bf16 %v504, %v504
      %v506 = vld [vmem:[%s4] sm:$0xf]
      %v507 = vld [vmem:[%s4 + $0x4] sm:$0xf]
      %v508 = vld [vmem:[%s4 + $0x8] sm:$0xf]
      %v509 = vld [vmem:[%s4 + $0xc] sm:$0xf]
      %v510 = vld [vmem:[%s5] sm:$0x1]
      %v512 = vperm.slane %v510, 0
      %v518 = vunpack.c.l.b16 %v506
      %v519 = vunpack.c.l.b16 %v507
      %v520 = vunpack.c.l.b16 %v508
      %v521 = vunpack.c.l.b16 %v509
      %v522 = vpack.c.b16 %v519, %v518
      %v523 = vpack.c.b16 %v521, %v520
      %vm526 = vcmask 261120
      %v528 = vsel %vm526, %v505, 0
      %530 = vmatpush.bf16.msra.mxu0 0
      %531 = vmatpush.bf16.msra.mxu0 0
      %532 = vmatpush.bf16.msra.mxu0 0
      %533 = vmatpush.bf16.msra.mxu0 0
      %534 = vmatpush.bf16.msra.mxu0 0
      %535 = vmatpush.bf16.msra.mxu0 0
      %536 = vmatpush.bf16.msra.mxu0 %v523
      %537 = vmatpush.bf16.msra.mxu0 %v522
      %538 = vmatmul.bf16.gmra.mxu0 %v528
      %v539 = vpop.f32.mrf.mxu0
      %v540 = vadd.f32 %v512, %v539
      %v541 = vpop.f32.mrf.mxu0
      %542 = vdwg.mxu0
      %v543 = vld [vmem:[%s1] sm:$0xf]
      %v544 = vmul.f32 %v543, -1e+09
      %v545 = vpack.c.bf16 %v540, %v540
      %547 = vrot.lane.b32.xlu0 %v545, 96
      %v548 = vpop.permute.xlu0 %547
      %vm549 = vcmask 64512
      %v551 = vsel %vm549, %v545, 0
      %v554 = vsel %vm549, %v548, 0
      %556 = vmatpush.bf16.xpose.msra.mxu0 0
      %557 = vmatpush.bf16.xpose.msra.mxu0 0
      %558 = vmatpush.bf16.xpose.msra.mxu0 0
      %559 = vmatpush.bf16.xpose.msra.mxu0 0
      %560 = vmatpush.bf16.xpose.msra.mxu0 0
      %561 = vmatpush.bf16.xpose.msra.mxu0 0
      %562 = vmatpush.bf16.xpose.msra.mxu0 0
      %563 = vmatpush.bf16.xpose.msra.mxu0 %v554
      %564 = vmatmul.bf16.gmra.mxu0 %v551
      %v565 = vpop.f32.mrf.mxu0
      %v566 = vadd.f32 0.0, %v565
      %v567 = vpop.f32.mrf.mxu0
      %568 = vdwg.mxu0
      %v569 = vmul.f32 %v566, 0.35355338
      %v570 = vadd.f32 %v569, %v544
      %vm571 = vcmask 27648
      %v572 = vsel %vm571, %v570, -inf
      %573 = vmax.xlane.f32.xlu0 %v572
      %v574 = vpop.xlane.xlu0 %573
      %v575 = vsub.f32 %v570, %v574
      %v576 = vmul.f32 %v575, 1.442695
      %v577 = vpow.pop %v576
      %v578 = vsel %vm571, %v577, 0.0
      %579 = vadd.xlane.f32.xlu0 %v578
      %v580 = vpop.xlane.xlu0 %579
      %v581 = vrcp.pop %v580
      %v582 = vmul.f32 %v577, %v581
      %v583 = vpack.c.bf16 %v582, %v582
      %584 = vrot.lane.b32.xlu0 %v545, 64
      %v585 = vpop.permute.xlu0 %584
      %vm586 = vcmask 31744
      %v588 = vsel %vm586, %v583, 0
      %vm590 = vcmask 1041408
      %v592 = vsel %vm590, %v585, 0
      %594 = vmatpush.bf16.msra.mxu0 0
      %595 = vmatpush.bf16.msra.mxu0 0
      %596 = vmatpush.bf16.msra.mxu0 0
      %597 = vmatpush.bf16.msra.mxu0 0
      %598 = vmatpush.bf16.msra.mxu0 0
      %599 = vmatpush.bf16.msra.mxu0 0
      %600 = vmatpush.bf16.msra.mxu0 0
      %601 = vmatpush.bf16.msra.mxu0 %v592
      %602 = vmatmul.bf16.gmra.mxu0 %v588
      %v603 = vpop.f32.mrf.mxu0
      %v604 = vadd.f32 0.0, %v603
      %v605 = vpop.f32.mrf.mxu0
      %606 = vdwg.mxu0
      %607 = vrot.lane.b32.xlu0 %v545, 120
      %v608 = vpop.permute.xlu0 %607
      %609 = vrot.lane.b32.xlu0 %v545, 88
      %v610 = vpop.permute.xlu0 %609
      %v612 = vsel %vm549, %v608, 0
      %v615 = vsel %vm549, %v610, 0
      %617 = vmatpush.bf16.xpose.msra.mxu0 0
      %618 = vmatpush.bf16.xpose.msra.mxu0 0
      %619 = vmatpush.bf16.xpose.msra.mxu0 0
      %620 = vmatpush.bf16.xpose.msra.mxu0 0
      %621 = vmatpush.bf16.xpose.msra.mxu0 0
      %622 = vmatpush.bf16.xpose.msra.mxu0 0
      %623 = vmatpush.bf16.xpose.msra.mxu0 0
      %624 = vmatpush.bf16.xpose.msra.mxu0 %v615
      %625 = vmatmul.bf16.gmra.mxu0 %v612
      %v626 = vpop.f32.mrf.mxu0
      %v627 = vadd.f32 0.0, %v626
      %v628 = vpop.f32.mrf.mxu0
      %629 = vdwg.mxu0
      %v630 = vmul.f32 %v627, 0.35355338
      %v631 = vadd.f32 %v630, %v544
      %v632 = vsel %vm571, %v631, -inf
      %633 = vmax.xlane.f32.xlu0 %v632
      %v634 = vpop.xlane.xlu0 %633
      %v635 = vsub.f32 %v631, %v634
      %v636 = vmul.f32 %v635, 1.442695
      %v637 = vpow.pop %v636
      %v638 = vsel %vm571, %v637, 0.0
      %639 = vadd.xlane.f32.xlu0 %v638
      %v640 = vpop.xlane.xlu0 %639
      %v641 = vrcp.pop %v640
      %v642 = vmul.f32 %v637, %v641
      %v643 = vpack.c.bf16 %v642, %v642
      %644 = vrot.lane.b32.xlu0 %v545, 56
      %v645 = vpop.permute.xlu0 %644
      %v647 = vsel %vm586, %v643, 0
      %v650 = vsel %vm590, %v645, 0
      %652 = vmatpush.bf16.msra.mxu0 0
      %653 = vmatpush.bf16.msra.mxu0 0
      %654 = vmatpush.bf16.msra.mxu0 0
      %655 = vmatpush.bf16.msra.mxu0 0
      %656 = vmatpush.bf16.msra.mxu0 0
      %657 = vmatpush.bf16.msra.mxu0 0
      %658 = vmatpush.bf16.msra.mxu0 0
      %659 = vmatpush.bf16.msra.mxu0 %v650
      %660 = vmatmul.bf16.gmra.mxu0 %v647
      %v661 = vpop.f32.mrf.mxu0
      %v662 = vadd.f32 0.0, %v661
      %v663 = vpop.f32.mrf.mxu0
      %664 = vdwg.mxu0
      %665 = vrot.lane.b32.xlu0 %v545, 112
      %v666 = vpop.permute.xlu0 %665
      %667 = vrot.lane.b32.xlu0 %v545, 80
      %v668 = vpop.permute.xlu0 %667
      %v670 = vsel %vm549, %v666, 0
      %v673 = vsel %vm549, %v668, 0
      %675 = vmatpush.bf16.xpose.msra.mxu0 0
      %676 = vmatpush.bf16.xpose.msra.mxu0 0
      %677 = vmatpush.bf16.xpose.msra.mxu0 0
      %678 = vmatpush.bf16.xpose.msra.mxu0 0
      %679 = vmatpush.bf16.xpose.msra.mxu0 0
      %680 = vmatpush.bf16.xpose.msra.mxu0 0
      %681 = vmatpush.bf16.xpose.msra.mxu0 0
      %682 = vmatpush.bf16.xpose.msra.mxu0 %v673
      %683 = vmatmul.bf16.gmra.mxu0 %v670
      %v684 = vpop.f32.mrf.mxu0
      %v685 = vadd.f32 0.0, %v684
      %v686 = vpop.f32.mrf.mxu0
      %687 = vdwg.mxu0
      %v688 = vmul.f32 %v685, 0.35355338
      %v689 = vadd.f32 %v688, %v544
      %v690 = vsel %vm571, %v689, -inf
      %691 = vmax.xlane.f32.xlu0 %v690
      %v692 = vpop.xlane.xlu0 %691
      %v693 = vsub.f32 %v689, %v692
      %v694 = vmul.f32 %v693, 1.442695
      %v695 = vpow.pop %v694
      %v696 = vsel %vm571, %v695, 0.0
      %697 = vadd.xlane.f32.xlu0 %v696
      %v698 = vpop.xlane.xlu0 %697
      %v699 = vrcp.pop %v698
      %v700 = vmul.f32 %v695, %v699
      %v701 = vpack.c.bf16 %v700, %v700
      %702 = vrot.lane.b32.xlu0 %v545, 48
      %v703 = vpop.permute.xlu0 %702
      %v705 = vsel %vm586, %v701, 0
      %v708 = vsel %vm590, %v703, 0
      %710 = vmatpush.bf16.msra.mxu0 0
      %711 = vmatpush.bf16.msra.mxu0 0
      %712 = vmatpush.bf16.msra.mxu0 0
      %713 = vmatpush.bf16.msra.mxu0 0
      %714 = vmatpush.bf16.msra.mxu0 0
      %715 = vmatpush.bf16.msra.mxu0 0
      %716 = vmatpush.bf16.msra.mxu0 0
      %717 = vmatpush.bf16.msra.mxu0 %v708
      %718 = vmatmul.bf16.gmra.mxu0 %v705
      %v719 = vpop.f32.mrf.mxu0
      %v720 = vadd.f32 0.0, %v719
      %v721 = vpop.f32.mrf.mxu0
      %722 = vdwg.mxu0
      %723 = vrot.lane.b32.xlu0 %v545, 104
      %v724 = vpop.permute.xlu0 %723
      %725 = vrot.lane.b32.xlu0 %v545, 72
      %v726 = vpop.permute.xlu0 %725
      %v728 = vsel %vm549, %v724, 0
      %v731 = vsel %vm549, %v726, 0
      %733 = vmatpush.bf16.xpose.msra.mxu0 0
      %734 = vmatpush.bf16.xpose.msra.mxu0 0
      %735 = vmatpush.bf16.xpose.msra.mxu0 0
      %736 = vmatpush.bf16.xpose.msra.mxu0 0
      %737 = vmatpush.bf16.xpose.msra.mxu0 0
      %738 = vmatpush.bf16.xpose.msra.mxu0 0
      %739 = vmatpush.bf16.xpose.msra.mxu0 0
      %740 = vmatpush.bf16.xpose.msra.mxu0 %v731
      %741 = vmatmul.bf16.gmra.mxu0 %v728
      %v742 = vpop.f32.mrf.mxu0
      %v743 = vadd.f32 0.0, %v742
      %v744 = vpop.f32.mrf.mxu0
      %745 = vdwg.mxu0
      %v746 = vmul.f32 %v743, 0.35355338
      %v747 = vadd.f32 %v746, %v544
      %v748 = vsel %vm571, %v747, -inf
      %749 = vmax.xlane.f32.xlu0 %v748
      %v750 = vpop.xlane.xlu0 %749
      %v751 = vsub.f32 %v747, %v750
      %v752 = vmul.f32 %v751, 1.442695
      %v753 = vpow.pop %v752
      %v754 = vsel %vm571, %v753, 0.0
      %755 = vadd.xlane.f32.xlu0 %v754
      %v756 = vpop.xlane.xlu0 %755
      %v757 = vrcp.pop %v756
      %v758 = vmul.f32 %v753, %v757
      %v759 = vpack.c.bf16 %v758, %v758
      %760 = vrot.lane.b32.xlu0 %v545, 40
      %v761 = vpop.permute.xlu0 %760
      %v763 = vsel %vm586, %v759, 0
      %v766 = vsel %vm590, %v761, 0
      %768 = vmatpush.bf16.msra.mxu0 0
      %769 = vmatpush.bf16.msra.mxu0 0
      %770 = vmatpush.bf16.msra.mxu0 0
      %771 = vmatpush.bf16.msra.mxu0 0
      %772 = vmatpush.bf16.msra.mxu0 0
      %773 = vmatpush.bf16.msra.mxu0 0
      %774 = vmatpush.bf16.msra.mxu0 0
      %775 = vmatpush.bf16.msra.mxu0 %v766
      %776 = vmatmul.bf16.gmra.mxu0 %v763
      %v777 = vpop.f32.mrf.mxu0
      %v778 = vadd.f32 0.0, %v777
      %v779 = vpop.f32.mrf.mxu0
      %780 = vdwg.mxu0
      %782 = vrot.lane.b32.xlu0 %v662, 8
      %v783 = vpop.permute.xlu0 %782
      %786 = vrot.lane.b32.xlu0 %v720, 16
      %v787 = vpop.permute.xlu0 %786
      %790 = vrot.lane.b32.xlu0 %v778, 24
      %v791 = vpop.permute.xlu0 %790
      %v793 = vsel %vm549, %v604, %v783
      %vm794 = vcmask 130048
      %v795 = vsel %vm794, %v793, %v787
      %vm796 = vcmask 195584
      %v797 = vsel %vm796, %v795, %v791
      %v798 = vpack.c.bf16 %v797, %v797
      %v799 = vld [vmem:[%s6] sm:$0xf]
      %v800 = vld [vmem:[%s6 + $0x4] sm:$0xf]
      %v801 = vld [vmem:[%s6 + $0x8] sm:$0xf]
      %v802 = vld [vmem:[%s6 + $0xc] sm:$0xf]
      %v803 = vld [vmem:[%s7] sm:$0x1]
      %v805 = vperm.slane %v803, 0
      %v811 = vunpack.c.l.b16 %v799
      %v812 = vunpack.c.l.b16 %v800
      %v813 = vunpack.c.l.b16 %v801
      %v814 = vunpack.c.l.b16 %v802
      %v815 = vpack.c.b16 %v812, %v811
      %v816 = vpack.c.b16 %v814, %v813
      %v820 = vsel %vm526, %v798, 0
      %822 = vmatpush.bf16.msra.mxu0 0
      %823 = vmatpush.bf16.msra.mxu0 0
      %824 = vmatpush.bf16.msra.mxu0 0
      %825 = vmatpush.bf16.msra.mxu0 0
      %826 = vmatpush.bf16.msra.mxu0 0
      %827 = vmatpush.bf16.msra.mxu0 0
      %828 = vmatpush.bf16.msra.mxu0 %v816
      %829 = vmatpush.bf16.msra.mxu0 %v815
      %830 = vmatmul.bf16.gmra.mxu0 %v820
      %v831 = vpop.f32.mrf.mxu0
      %v832 = vadd.f32 %v805, %v831
      %v833 = vpop.f32.mrf.mxu0
      %834 = vdwg.mxu0
      %v835 = vadd.f32 %v464, %v832
      %v836 = vpack.c.bf16 %v835, %v835
      %v837 = vld [vmem:[%s8] sm:$0xf]
      %v838 = vld [vmem:[%s8 + $0x4] sm:$0xf]
      %v839 = vld [vmem:[%s8 + $0x8] sm:$0xf]
      %v840 = vld [vmem:[%s8 + $0xc] sm:$0xf]
      %v841 = vld [vmem:[%s9] sm:$0x1]
      %v843 = vperm.slane %v841, 0
      %v849 = vunpack.c.l.b16 %v837
      %v850 = vunpack.c.l.b16 %v838
      %v851 = vunpack.c.l.b16 %v839
      %v852 = vunpack.c.l.b16 %v840
      %v853 = vpack.c.b16 %v850, %v849
      %v854 = vpack.c.b16 %v852, %v851
      %v858 = vsel %vm526, %v836, 0
      %860 = vmatpush.bf16.msra.mxu0 0
      %861 = vmatpush.bf16.msra.mxu0 0
      %862 = vmatpush.bf16.msra.mxu0 0
      %863 = vmatpush.bf16.msra.mxu0 0
      %864 = vmatpush.bf16.msra.mxu0 0
      %865 = vmatpush.bf16.msra.mxu0 0
      %866 = vmatpush.bf16.msra.mxu0 %v854
      %867 = vmatpush.bf16.msra.mxu0 %v853
      %868 = vmatmul.bf16.gmra.mxu0 %v858
      %v869 = vpop.f32.mrf.mxu0
      %v870 = vadd.f32 %v843, %v869
      %v871 = vpop.f32.mrf.mxu0
      %872 = vdwg.mxu0
      %v873 = vmax.f32 %v870, 0.0
      %v874 = vpack.c.bf16 %v873, %v873
      %v875 = vld [vmem:[%s10] sm:$0xf]
      %v876 = vld [vmem:[%s10 + $0x4] sm:$0xf]
      %v877 = vld [vmem:[%s10 + $0x8] sm:$0xf]
      %v878 = vld [vmem:[%s10 + $0xc] sm:$0xf]
      %v879 = vld [vmem:[%s10 + $0x10] sm:$0xf]
      %v880 = vld [vmem:[%s10 + $0x14] sm:$0xf]
      %v881 = vld [vmem:[%s10 + $0x18] sm:$0xf]
      %v882 = vld [vmem:[%s10 + $0x1c] sm:$0xf]
      %v883 = vld [vmem:[%s11] sm:$0x1]
      %v885 = vperm.slane %v883, 0
      %v895 = vunpack.c.l.b16 %v875
      %v896 = vunpack.c.l.b16 %v876
      %v897 = vunpack.c.l.b16 %v877
      %v898 = vunpack.c.l.b16 %v878
      %v899 = vunpack.c.l.b16 %v879
      %v900 = vunpack.c.l.b16 %v880
      %v901 = vunpack.c.l.b16 %v881
      %v902 = vunpack.c.l.b16 %v882
      %v903 = vpack.c.b16 %v896, %v895
      %v904 = vpack.c.b16 %v898, %v897
      %v905 = vpack.c.b16 %v900, %v899
      %v906 = vpack.c.b16 %v902, %v901
      %vm911 = vcmask 523264
      %v913 = vsel %vm911, %v874, 0
      %915 = vmatpush.bf16.msra.mxu0 0
      %916 = vmatpush.bf16.msra.mxu0 0
      %917 = vmatpush.bf16.msra.mxu0 0
      %918 = vmatpush.bf16.msra.mxu0 0
      %919 = vmatpush.bf16.msra.mxu0 %v906
      %920 = vmatpush.bf16.msra.mxu0 %v905
      %921 = vmatpush.bf16.msra.mxu0 %v904
      %922 = vmatpush.bf16.msra.mxu0 %v903
      %923 = vmatmul.bf16.gmra.mxu0 %v913
      %v924 = vpop.f32.mrf.mxu0
      %v925 = vadd.f32 %v885, %v924
      %v926 = vpop.f32.mrf.mxu0
      %927 = vdwg.mxu0
      %v928 = vadd.f32 %v835, %v925
      %v929 = vsel %vm465, %v928, 0.0
      %930 = vadd.xlane.f32.xlu0 %v929
      %v931 = vpop.xlane.xlu0 %930
      %v932 = vmul.f32 %v931, %v475
      %v933 = vsub.f32 %v928, %v932
      %v934 = vmul.f32 %v933, %v933
      %v935 = vsel %vm465, %v934, 0.0
      %936 = vadd.xlane.f32.xlu0 %v935
      %v937 = vpop.xlane.xlu0 %936
      %v938 = vmul.f32 %v937, %v475
      %v939 = vadd.f32 %v938, 1e-05
      %v940 = vrsqrt.pop %v939
      %v941 = vmul.f32 %v940, %v939
      %v942 = vmul.f32 %v941, %v940
      %v943 = vmul.f32 0.5, %v942
      %v944 = vsub.f32 1.5, %v943
      %v945 = vmul.f32 %v940, %v944
      %vm946 = vweird.f32 %v939
      %vm947 = vweird.f32 %v940
      %vm948 = vmor %vm946, %vm947
      %v949 = vsel %vm948, %v940, %v945
      %v950 = vmul.f32 %v933, %v949
      %v951 = vld [vmem:[%s12] sm:$0x1]
      %v953 = vperm.slane %v951, 0
      %v955 = vmul.f32 %v950, %v953
      %v956 = vld [vmem:[%s13] sm:$0x1]
      %v958 = vperm.slane %v956, 0
      %v960 = vadd.f32 %v955, %v958
      %961 = vst.msk [vmem:[%s462] sm:$0xf] %vm465, %v960
      %p962 = scmp.lt.s32.totalorder %s25, 7
      %s963 = scalar_select %p962, %s25, 7
      %s964 = smul.addr %s963, 4
      %s965 = scalar_lea.vmem %s14, %s964
      // Predicated region
      $region77: #{encoder_forward.17} parent=75 // pred_check
        %p966 = pneg %p342
      $region78: #{encoder_forward.17} parent=75 // pred_check_branch
        %968 = sbr.rel (%p966) target = $region80
      $region79: #{encoder_forward.17} parent=75 // pred_region
        _
      $region80: #{encoder_forward.17} parent=75 // pred_fallthru
        _
    $region76: #{encoder_forward.17} parent=5 // pred_fallthru
      _
    %p969 = scmp.le.s32.totalorder 2, %s20
    // Predicated region
    $region81: #{encoder_forward.17} parent=5 // pred_check
      %p970 = pneg %p969
    $region82: #{encoder_forward.17} parent=5 // pred_check_branch
      %972 = sbr.rel (%p970) target = $region84
    $region83: #{encoder_forward.17} parent=5 // pred_region
      %s973 = ssub.s32 %s20, 2
      // Predicated region
      $region85: #{encoder_forward.17} parent=83 // pred_check
        %p974 = pneg %p348
      $region86: #{encoder_forward.17} parent=83 // pred_check_branch
        %976 = sbr.rel (%p974) target = $region88
      $region87: #{encoder_forward.17} parent=83 // pred_region
        %p977 = scmp.lt.s32.totalorder %s26, 7
        %s978 = scalar_select %p977, %s26, 7
        %s979 = smul.addr %s978, 4
        %s980 = scalar_lea.vmem %s14, %s979
      $region88: #{encoder_forward.17} parent=83 // pred_fallthru
        _
    $region84: #{encoder_forward.17} parent=5 // pred_fallthru
      _
  $region6: #{encoder_forward.17} parent=0 // loop_footer
    %s24 = sadd.s32 1, %s20
  $region7: #{encoder_forward.17} parent=0 // loop_footer_branch
    %19 = sbr.rel target = $region3
  $region8: #{encoder_forward.17} parent=0 // loop_exit
    _

// kernel: encoder_forward.18
$region0: #{encoder_forward.18}
  #allocation0 [shape = 'u32[]', space=smem, size = 0x4, offset = 0x4, fixed_abs, tag = 'smem constant byte address 0x4 - core index']
  #allocation1 [shape = 'u32[72,128]{1,0:T(1,128)}', space=vmem, size = 0x9000, scoped, tag = 'internal scratch']
  %s0 = inlined_call_operand.vmem [shape: f32[4,8,32], index: 0, kind: input, shape index: {}]
  %s1 = inlined_call_operand.vmem [shape: f32[4,8], index: 1, kind: input, shape index: {}]
  %s2 = inlined_call_operand.vmem [shape: f32[1,32], index: 2, kind: input, shape index: {}, may-alias: {2,12}]
  %s3 = inlined_call_operand.vmem [shape: f32[1,32], index: 3, kind: input, shape index: {}, may-alias: {3,7,11,13}]
  %s4 = inlined_call_operand.vmem [shape: bf16[32,96], index: 4, kind: input, shape index: {}]
  %s5 = inlined_call_operand.vmem [shape: f32[1,96], index: 5, kind: input, shape index: {}]
  %s6 = inlined_call_operand.vmem [shape: bf16[32,32], index: 6, kind: input, shape index: {}]
  %s7 = inlined_call_operand.vmem [shape: f32[1,32], index: 7, kind: input, shape index: {}, may-alias: {3,7,11,13}]
  %s8 = inlined_call_operand.vmem [shape: bf16[32,64], index: 8, kind: input, shape index: {}]
  %s9 = inlined_call_operand.vmem [shape: f32[1,64], index: 9, kind: input, shape index: {}]
  %s10 = inlined_call_operand.vmem [shape: bf16[64,32], index: 10, kind: input, shape index: {}]
  %s11 = inlined_call_operand.vmem [shape: f32[1,32], index: 11, kind: input, shape index: {}, may-alias: {3,7,11,13}]
  %s12 = inlined_call_operand.vmem [shape: f32[1,32], index: 12, kind: input, shape index: {}, may-alias: {2,12}]
  %s13 = inlined_call_operand.vmem [shape: f32[1,32], index: 13, kind: input, shape index: {}, may-alias: {3,7,11,13}]
  %s14 = inlined_call_operand.vmem [shape: f32[4,8,32], index: 14, kind: output, shape index: {}]
  %s15 = sld [smem:[#allocation0]]
  $region89: #{encoder_forward.18} parent=0
    _
  %s17 = ssub.s32 1, %s15
  %s18 = scalar_select 0, %s17, %s15
  loop: start=0, step=1, limit=6
  $region2: #{encoder_forward.18} parent=0 // loop_pre_header
    _
  $region3: #{encoder_forward.18} parent=0 // loop_header
    %s20 = sphi 0, %s24
    %p21 = scmp.ge.s32.totalorder %s20, 6
    %s30 = sphi 0, %s32
    %s33 = sphi 0, %s30
    %s34 = sphi 0, %s33
    %s50 = sphi 0, %s34
    %s54 = sphi 0, %s54
    %s56 = sphi 0, %s54
    %s57 = sphi 0, %s56
    %s71 = sphi 0, %s57
    %s75 = sphi 0, %s75
    %s77 = sphi 0, %s75
    %s78 = sphi 0, %s77
    %s92 = sphi 0, %s78
    %s96 = sphi 0, %s96
    %s98 = sphi 0, %s96
    %s99 = sphi 0, %s98
    %s113 = sphi 0, %s99
    %s117 = sphi 0, %s117
    %s119 = sphi 0, %s117
    %s120 = sphi 0, %s119
    %s134 = sphi 0, %s120
    %s138 = sphi 0, %s138
    %s140 = sphi 0, %s138
    %s141 = sphi 0, %s140
    %s155 = sphi 0, %s141
    %s159 = sphi 0, %s159
    %s161 = sphi 0, %s159
    %s162 = sphi 0, %s161
    %s176 = sphi 0, %s162
    %s180 = sphi 0, %s180
    %s182 = sphi 0, %s180
    %s183 = sphi 0, %s182
    %s197 = sphi 0, %s183
    %s201 = sphi 0, %s201
    %s203 = sphi 0, %s201
    %s204 = sphi 0, %s203
    %s218 = sphi 0, %s204
    %s222 = sphi 0, %s222
    %s224 = sphi 0, %s222
    %s225 = sphi 0, %s224
    %s239 = sphi 0, %s225
    %s243 = sphi 0, %s243
    %s245 = sphi 0, %s243
    %s246 = sphi 0, %s245
    %s260 = sphi 0, %s246
    %s264 = sphi 0, %s264
    %s266 = sphi 0, %s264
    %s267 = sphi 0, %s266
    %s281 = sphi 0, %s267
    %s285 = sphi 0, %s285
    %s287 = sphi 0, %s285
    %s288 = sphi 0, %s287
    %s302 = sphi 0, %s288
    %s306 = sphi 0, %s306
    %s308 = sphi 0, %s306
    %s309 = sphi 0, %s308
    %s323 = sphi 0, %s309
    %s329 = sphi 0, %s331
    %s332 = sphi 0, %s329
    %s333 = sphi 0, %s332
    %s349 = sphi 0, %s333
  $region4: #{encoder_forward.18} parent=0 // loop_header_branch
    %23 = sbr.rel (%p21) target = $region8
  $region5: #{encoder_forward.18} parent=0 // loop_body
    %s25 = ssub.s32 %s20, 1
    %s26 = ssub.s32 %s20, 2
    %s27 = sadd.s32 %s20, 1
    %s28 = ssub.s32 %s20, %s27
    %p29 = scmp.eq.s32.totalorder %s28, 0
    %s31 = sadd.s32 %s30, 1
    %s32 = scalar_select %p29, %s30, %s31
    %p35 = pneg %p29
    %p36 = scmp.eq.s32.totalorder %s20, 3
    %p37 = por %p35, %p36
    %p38 = scmp.ne.s32.totalorder %s30, %s33
    %p39 = scmp.eq.s32.totalorder %s20, 0
    %p40 = por %p38, %p39
    %p41 = scmp.ne.s32.totalorder %s30, %s33
    %p42 = scmp.eq.s32.totalorder %s25, 3
    %p43 = por %p41, %p42
    %p44 = scmp.ne.s32.totalorder %s33, %s34
    %p45 = scmp.eq.s32.totalorder %s25, 0
    %p46 = por %p44, %p45
    %p47 = scmp.ne.s32.totalorder %s33, %s34
    %p48 = scmp.eq.s32.totalorder %s26, 3
    %p49 = por %p47, %p48
    %p51 = scmp.ne.s32.totalorder %s34, %s50
    %p52 = scmp.eq.s32.totalorder %s26, 0
    %p53 = por %p51, %p52
    %s55 = sadd.s32 %s54, 1
    %p58 = scmp.eq.s32.totalorder %s20, 3
    %p59 = scmp.ne.s32.totalorder %s54, %s56
    %p60 = scmp.eq.s32.totalorder %s20, 0
    %p61 = por %p59, %p60
    %p62 = scmp.ne.s32.totalorder %s54, %s56
    %p63 = scmp.eq.s32.totalorder %s25, 3
    %p64 = por %p62, %p63
    %p65 = scmp.ne.s32.totalorder %s56, %s57
    %p66 = scmp.eq.s32.totalorder %s25, 0
    %p67 = por %p65, %p66
    %p68 = scmp.ne.s32.totalorder %s56, %s57
    %p69 = scmp.eq.s32.totalorder %s26, 3
    %p70 = por %p68, %p69
    %p72 = scmp.ne.s32.totalorder %s57, %s71
    %p73 = scmp.eq.s32.totalorder %s26, 0
    %p74 = por %p72, %p73
    %s76 = sadd.s32 %s75, 1
    %p79 = scmp.eq.s32.totalorder %s20, 3
    %p80 = scmp.ne.s32.totalorder %s75, %s77
    %p81 = scmp.eq.s32.totalorder %s20, 0
    %p82 = por %p80, %p81
    %p83 = scmp.ne.s32.totalorder %s75, %s77
    %p84 = scmp.eq.s32.totalorder %s25, 3
    %p85 = por %p83, %p84
    %p86 = scmp.ne.s32.totalorder %s77, %s78
    %p87 = scmp.eq.s32.totalorder %s25, 0
    %p88 = por %p86, %p87
    %p89 = scmp.ne.s32.totalorder %s77, %s78
    %p90 = scmp.eq.s32.totalorder %s26, 3
    %p91 = por %p89, %p90
    %p93 = scmp.ne.s32.totalorder %s78, %s92
    %p94 = scmp.eq.s32.totalorder %s26, 0
    %p95 = por %p93, %p94
    %s97 = sadd.s32 %s96, 1
    %p100 = scmp.eq.s32.totalorder %s20, 3
    %p101 = scmp.ne.s32.totalorder %s96, %s98
    %p102 = scmp.eq.s32.totalorder %s20, 0
    %p103 = por %p101, %p102
    %p104 = scmp.ne.s32.totalorder %s96, %s98
    %p105 = scmp.eq.s32.totalorder %s25, 3
    %p106 = por %p104, %p105
    %p107 = scmp.ne.s32.totalorder %s98, %s99
    %p108 = scmp.eq.s32.totalorder %s25, 0
    %p109 = por %p107, %p108
    %p110 = scmp.ne.s32.totalorder %s98, %s99
    %p111 = scmp.eq.s32.totalorder %s26, 3
    %p112 = por %p110, %p111
    %p114 = scmp.ne.s32.totalorder %s99, %s113
    %p115 = scmp.eq.s32.totalorder %s26, 0
    %p116 = por %p114, %p115
    %s118 = sadd.s32 %s117, 1
    %p121 = scmp.eq.s32.totalorder %s20, 3
    %p122 = scmp.ne.s32.totalorder %s117, %s119
    %p123 = scmp.eq.s32.totalorder %s20, 0
    %p124 = por %p122, %p123
    %p125 = scmp.ne.s32.totalorder %s117, %s119
    %p126 = scmp.eq.s32.totalorder %s25, 3
    %p127 = por %p125, %p126
    %p128 = scmp.ne.s32.totalorder %s119, %s120
    %p129 = scmp.eq.s32.totalorder %s25, 0
    %p130 = por %p128, %p129
    %p131 = scmp.ne.s32.totalorder %s119, %s120
    %p132 = scmp.eq.s32.totalorder %s26, 3
    %p133 = por %p131, %p132
    %p135 = scmp.ne.s32.totalorder %s120, %s134
    %p136 = scmp.eq.s32.totalorder %s26, 0
    %p137 = por %p135, %p136
    %s139 = sadd.s32 %s138, 1
    %p142 = scmp.eq.s32.totalorder %s20, 3
    %p143 = scmp.ne.s32.totalorder %s138, %s140
    %p144 = scmp.eq.s32.totalorder %s20, 0
    %p145 = por %p143, %p144
    %p146 = scmp.ne.s32.totalorder %s138, %s140
    %p147 = scmp.eq.s32.totalorder %s25, 3
    %p148 = por %p146, %p147
    %p149 = scmp.ne.s32.totalorder %s140, %s141
    %p150 = scmp.eq.s32.totalorder %s25, 0
    %p151 = por %p149, %p150
    %p152 = scmp.ne.s32.totalorder %s140, %s141
    %p153 = scmp.eq.s32.totalorder %s26, 3
    %p154 = por %p152, %p153
    %p156 = scmp.ne.s32.totalorder %s141, %s155
    %p157 = scmp.eq.s32.totalorder %s26, 0
    %p158 = por %p156, %p157
    %s160 = sadd.s32 %s159, 1
    %p163 = scmp.eq.s32.totalorder %s20, 3
    %p164 = scmp.ne.s32.totalorder %s159, %s161
    %p165 = scmp.eq.s32.totalorder %s20, 0
    %p166 = por %p164, %p165
    %p167 = scmp.ne.s32.totalorder %s159, %s161
    %p168 = scmp.eq.s32.totalorder %s25, 3
    %p169 = por %p167, %p168
    %p170 = scmp.ne.s32.totalorder %s161, %s162
    %p171 = scmp.eq.s32.totalorder %s25, 0
    %p172 = por %p170, %p171
    %p173 = scmp.ne.s32.totalorder %s161, %s162
    %p174 = scmp.eq.s32.totalorder %s26, 3
    %p175 = por %p173, %p174
    %p177 = scmp.ne.s32.totalorder %s162, %s176
    %p178 = scmp.eq.s32.totalorder %s26, 0
    %p179 = por %p177, %p178
    %s181 = sadd.s32 %s180, 1
    %p184 = scmp.eq.s32.totalorder %s20, 3
    %p185 = scmp.ne.s32.totalorder %s180, %s182
    %p186 = scmp.eq.s32.totalorder %s20, 0
    %p187 = por %p185, %p186
    %p188 = scmp.ne.s32.totalorder %s180, %s182
    %p189 = scmp.eq.s32.totalorder %s25, 3
    %p190 = por %p188, %p189
    %p191 = scmp.ne.s32.totalorder %s182, %s183
    %p192 = scmp.eq.s32.totalorder %s25, 0
    %p193 = por %p191, %p192
    %p194 = scmp.ne.s32.totalorder %s182, %s183
    %p195 = scmp.eq.s32.totalorder %s26, 3
    %p196 = por %p194, %p195
    %p198 = scmp.ne.s32.totalorder %s183, %s197
    %p199 = scmp.eq.s32.totalorder %s26, 0
    %p200 = por %p198, %p199
    %s202 = sadd.s32 %s201, 1
    %p205 = scmp.eq.s32.totalorder %s20, 3
    %p206 = scmp.ne.s32.totalorder %s201, %s203
    %p207 = scmp.eq.s32.totalorder %s20, 0
    %p208 = por %p206, %p207
    %p209 = scmp.ne.s32.totalorder %s201, %s203
    %p210 = scmp.eq.s32.totalorder %s25, 3
    %p211 = por %p209, %p210
    %p212 = scmp.ne.s32.totalorder %s203, %s204
    %p213 = scmp.eq.s32.totalorder %s25, 0
    %p214 = por %p212, %p213
    %p215 = scmp.ne.s32.totalorder %s203, %s204
    %p216 = scmp.eq.s32.totalorder %s26, 3
    %p217 = por %p215, %p216
    %p219 = scmp.ne.s32.totalorder %s204, %s218
    %p220 = scmp.eq.s32.totalorder %s26, 0
    %p221 = por %p219, %p220
    %s223 = sadd.s32 %s222, 1
    %p226 = scmp.eq.s32.totalorder %s20, 3
    %p227 = scmp.ne.s32.totalorder %s222, %s224
    %p228 = scmp.eq.s32.totalorder %s20, 0
    %p229 = por %p227, %p228
    %p230 = scmp.ne.s32.totalorder %s222, %s224
    %p231 = scmp.eq.s32.totalorder %s25, 3
    %p232 = por %p230, %p231
    %p233 = scmp.ne.s32.totalorder %s224, %s225
    %p234 = scmp.eq.s32.totalorder %s25, 0
    %p235 = por %p233, %p234
    %p236 = scmp.ne.s32.totalorder %s224, %s225
    %p237 = scmp.eq.s32.totalorder %s26, 3
    %p238 = por %p236, %p237
    %p240 = scmp.ne.s32.totalorder %s225, %s239
    %p241 = scmp.eq.s32.totalorder %s26, 0
    %p242 = por %p240, %p241
    %s244 = sadd.s32 %s243, 1
    %p247 = scmp.eq.s32.totalorder %s20, 3
    %p248 = scmp.ne.s32.totalorder %s243, %s245
    %p249 = scmp.eq.s32.totalorder %s20, 0
    %p250 = por %p248, %p249
    %p251 = scmp.ne.s32.totalorder %s243, %s245
    %p252 = scmp.eq.s32.totalorder %s25, 3
    %p253 = por %p251, %p252
    %p254 = scmp.ne.s32.totalorder %s245, %s246
    %p255 = scmp.eq.s32.totalorder %s25, 0
    %p256 = por %p254, %p255
    %p257 = scmp.ne.s32.totalorder %s245, %s246
    %p258 = scmp.eq.s32.totalorder %s26, 3
    %p259 = por %p257, %p258
    %p261 = scmp.ne.s32.totalorder %s246, %s260
    %p262 = scmp.eq.s32.totalorder %s26, 0
    %p263 = por %p261, %p262
    %s265 = sadd.s32 %s264, 1
    %p268 = scmp.eq.s32.totalorder %s20, 3
    %p269 = scmp.ne.s32.totalorder %s264, %s266
    %p270 = scmp.eq.s32.totalorder %s20, 0
    %p271 = por %p269, %p270
    %p272 = scmp.ne.s32.totalorder %s264, %s266
    %p273 = scmp.eq.s32.totalorder %s25, 3
    %p274 = por %p272, %p273
    %p275 = scmp.ne.s32.totalorder %s266, %s267
    %p276 = scmp.eq.s32.totalorder %s25, 0
    %p277 = por %p275, %p276
    %p278 = scmp.ne.s32.totalorder %s266, %s267
    %p279 = scmp.eq.s32.totalorder %s26, 3
    %p280 = por %p278, %p279
    %p282 = scmp.ne.s32.totalorder %s267, %s281
    %p283 = scmp.eq.s32.totalorder %s26, 0
    %p284 = por %p282, %p283
    %s286 = sadd.s32 %s285, 1
    %p289 = scmp.eq.s32.totalorder %s20, 3
    %p290 = scmp.ne.s32.totalorder %s285, %s287
    %p291 = scmp.eq.s32.totalorder %s20, 0
    %p292 = por %p290, %p291
    %p293 = scmp.ne.s32.totalorder %s285, %s287
    %p294 = scmp.eq.s32.totalorder %s25, 3
    %p295 = por %p293, %p294
    %p296 = scmp.ne.s32.totalorder %s287, %s288
    %p297 = scmp.eq.s32.totalorder %s25, 0
    %p298 = por %p296, %p297
    %p299 = scmp.ne.s32.totalorder %s287, %s288
    %p300 = scmp.eq.s32.totalorder %s26, 3
    %p301 = por %p299, %p300
    %p303 = scmp.ne.s32.totalorder %s288, %s302
    %p304 = scmp.eq.s32.totalorder %s26, 0
    %p305 = por %p303, %p304
    %s307 = sadd.s32 %s306, 1
    %p310 = scmp.eq.s32.totalorder %s20, 3
    %p311 = scmp.ne.s32.totalorder %s306, %s308
    %p312 = scmp.eq.s32.totalorder %s20, 0
    %p313 = por %p311, %p312
    %p314 = scmp.ne.s32.totalorder %s306, %s308
    %p315 = scmp.eq.s32.totalorder %s25, 3
    %p316 = por %p314, %p315
    %p317 = scmp.ne.s32.totalorder %s308, %s309
    %p318 = scmp.eq.s32.totalorder %s25, 0
    %p319 = por %p317, %p318
    %p320 = scmp.ne.s32.totalorder %s308, %s309
    %p321 = scmp.eq.s32.totalorder %s26, 3
    %p322 = por %p320, %p321
    %p324 = scmp.ne.s32.totalorder %s309, %s323
    %p325 = scmp.eq.s32.totalorder %s26, 0
    %p326 = por %p324, %p325
    %s327 = ssub.s32 %s20, %s27
    %p328 = scmp.eq.s32.totalorder %s327, 0
    %s330 = sadd.s32 %s329, 1
    %s331 = scalar_select %p328, %s329, %s330
    %p334 = pneg %p328
    %p335 = scmp.eq.s32.totalorder %s20, 3
    %p336 = por %p334, %p335
    %p337 = scmp.ne.s32.totalorder %s329, %s332
    %p338 = scmp.eq.s32.totalorder %s20, 0
    %p339 = por %p337, %p338
    %p340 = scmp.ne.s32.totalorder %s329, %s332
    %p341 = scmp.eq.s32.totalorder %s25, 3
    %p342 = por %p340, %p341
    %p343 = scmp.ne.s32.totalorder %s332, %s333
    %p344 = scmp.eq.s32.totalorder %s25, 0
    %p345 = por %p343, %p344
    %p346 = scmp.ne.s32.totalorder %s332, %s333
    %p347 = scmp.eq.s32.totalorder %s26, 3
    %p348 = por %p346, %p347
    %p350 = scmp.ne.s32.totalorder %s333, %s349
    %p351 = scmp.eq.s32.totalorder %s26, 0
    %p352 = por %p350, %p351
    %p353 = scmp.le.s32.totalorder 1, %s20
    %p354 = scmp.lt.s32.totalorder %s20, 5
    %p355 = pnand %p353, %p354
    %p356 = pneg %p355
    // Predicated region
    $region9: #{encoder_forward.18} parent=5 // pred_check
      _
    $region10: #{encoder_forward.18} parent=5 // pred_check_branch
      %358 = sbr.rel (%p355) target = $region12
    $region11: #{encoder_forward.18} parent=5 // pred_region
      %s359 = ssub.s32 %s20, 1
      // Predicated region
      $region13: #{encoder_forward.18} parent=11 // pred_check
        %p360 = pneg %p67
      $region14: #{encoder_forward.18} parent=11 // pred_check_branch
        %362 = sbr.rel (%p360) target = $region16
      $region15: #{encoder_forward.18} parent=11 // pred_region
        _
      $region16: #{encoder_forward.18} parent=11 // pred_fallthru
        _
      // Predicated region
      $region17: #{encoder_forward.18} parent=11 // pred_check
        %p363 = pneg %p88
      $region18: #{encoder_forward.18} parent=11 // pred_check_branch
        %365 = sbr.rel (%p363) target = $region20
      $region19: #{encoder_forward.18} parent=11 // pred_region
        _
      $region20: #{encoder_forward.18} parent=11 // pred_fallthru
        _
      // Predicated region
      $region21: #{encoder_forward.18} parent=11 // pred_check
        %p366 = pneg %p109
      $region22: #{encoder_forward.18} parent=11 // pred_check_branch
        %368 = sbr.rel (%p366) target = $region24
      $region23: #{encoder_forward.18} parent=11 // pred_region
        _
      $region24: #{encoder_forward.18} parent=11 // pred_fallthru
        _
      // Predicated region
      $region25: #{encoder_forward.18} parent=11 // pred_check
        %p369 = pneg %p130
      $region26: #{encoder_forward.18} parent=11 // pred_check_branch
        %371 = sbr.rel (%p369) target = $region28
      $region27: #{encoder_forward.18} parent=11 // pred_region
        _
      $region28: #{encoder_forward.18} parent=11 // pred_fallthru
        _
      // Predicated region
      $region29: #{encoder_forward.18} parent=11 // pred_check
        %p372 = pneg %p151
      $region30: #{encoder_forward.18} parent=11 // pred_check_branch
        %374 = sbr.rel (%p372) target = $region32
      $region31: #{encoder_forward.18} parent=11 // pred_region
        _
      $region32: #{encoder_forward.18} parent=11 // pred_fallthru
        _
      // Predicated region
      $region33: #{encoder_forward.18} parent=11 // pred_check
        %p375 = pneg %p172
      $region34: #{encoder_forward.18} parent=11 // pred_check_branch
        %377 = sbr.rel (%p375) target = $region36
      $region35: #{encoder_forward.18} parent=11 // pred_region
        _
      $region36: #{encoder_forward.18} parent=11 // pred_fallthru
        _
      // Predicated region
      $region37: #{encoder_forward.18} parent=11 // pred_check
        %p378 = pneg %p193
      $region38: #{encoder_forward.18} parent=11 // pred_check_branch
        %380 = sbr.rel (%p378) target = $region40
      $region39: #{encoder_forward.18} parent=11 // pred_region
        _
      $region40: #{encoder_forward.18} parent=11 // pred_fallthru
        _
      // Predicated region
      $region41: #{encoder_forward.18} parent=11 // pred_check
        %p381 = pneg %p214
      $region42: #{encoder_forward.18} parent=11 // pred_check_branch
        %383 = sbr.rel (%p381) target = $region44
      $region43: #{encoder_forward.18} parent=11 // pred_region
        _
      $region44: #{encoder_forward.18} parent=11 // pred_fallthru
        _
      // Predicated region
      $region45: #{encoder_forward.18} parent=11 // pred_check
        %p384 = pneg %p235
      $region46: #{encoder_forward.18} parent=11 // pred_check_branch
        %386 = sbr.rel (%p384) target = $region48
      $region47: #{encoder_forward.18} parent=11 // pred_region
        _
      $region48: #{encoder_forward.18} parent=11 // pred_fallthru
        _
      // Predicated region
      $region49: #{encoder_forward.18} parent=11 // pred_check
        %p387 = pneg %p256
      $region50: #{encoder_forward.18} parent=11 // pred_check_branch
        %389 = sbr.rel (%p387) target = $region52
      $region51: #{encoder_forward.18} parent=11 // pred_region
        _
      $region52: #{encoder_forward.18} parent=11 // pred_fallthru
        _
      // Predicated region
      $region53: #{encoder_forward.18} parent=11 // pred_check
        %p390 = pneg %p277
      $region54: #{encoder_forward.18} parent=11 // pred_check_branch
        %392 = sbr.rel (%p390) target = $region56
      $region55: #{encoder_forward.18} parent=11 // pred_region
        _
      $region56: #{encoder_forward.18} parent=11 // pred_fallthru
        _
      // Predicated region
      $region57: #{encoder_forward.18} parent=11 // pred_check
        %p393 = pneg %p298
      $region58: #{encoder_forward.18} parent=11 // pred_check_branch
        %395 = sbr.rel (%p393) target = $region60
      $region59: #{encoder_forward.18} parent=11 // pred_region
        _
      $region60: #{encoder_forward.18} parent=11 // pred_fallthru
        _
      // Predicated region
      $region61: #{encoder_forward.18} parent=11 // pred_check
        %p396 = pneg %p319
      $region62: #{encoder_forward.18} parent=11 // pred_check_branch
        %398 = sbr.rel (%p396) target = $region64
      $region63: #{encoder_forward.18} parent=11 // pred_region
        _
      $region64: #{encoder_forward.18} parent=11 // pred_fallthru
        _
    $region12: #{encoder_forward.18} parent=5 // pred_fallthru
      _
    %p399 = scmp.lt.s32.totalorder %s20, 4
    // Predicated region
    $region65: #{encoder_forward.18} parent=5 // pred_check
      %p400 = pneg %p399
    $region66: #{encoder_forward.18} parent=5 // pred_check_branch
      %402 = sbr.rel (%p400) target = $region68
    $region67: #{encoder_forward.18} parent=5 // pred_region
      // Predicated region
      $region69: #{encoder_forward.18} parent=67 // pred_check
        %p403 = pneg %p40
      $region70: #{encoder_forward.18} parent=67 // pred_check_branch
        %405 = sbr.rel (%p403) target = $region72
      $region71: #{encoder_forward.18} parent=67 // pred_region
        %p406 = scmp.lt.s32.totalorder %s20, 3
        %s407 = scalar_select %p406, %s20, 3
        %s408 = smul.addr %s407, 8
        %s409 = scalar_lea.vmem %s0, %s408
      $region72: #{encoder_forward.18} parent=67 // pred_fallthru
        _
    $region68: #{encoder_forward.18} parent=5 // pred_fallthru
      _
    %p410 = scmp.le.s32.totalorder 1, %s20
    %p411 = scmp.lt.s32.totalorder %s20, 5
    %p412 = pnand %p410, %p411
    %p413 = pneg %p412
    // Predicated region
    $region73: #{encoder_forward.18} parent=5 // pred_check
      _
    $region74: #{encoder_forward.18} parent=5 // pred_check_branch
      %415 = sbr.rel (%p412) target = $region76
    $region75: #{encoder_forward.18} parent=5 // pred_region
      %s416 = ssub.s32 %s20, 1
      %p417 = scmp.lt.s32.totalorder %s25, 3
      %s418 = scalar_select %p417, %s25, 3
      %s419 = smul.addr %s418, 8
      %s420 = scalar_lea.vmem %s0, %s419
      %p421 = pneg %p46
      %p422 = pneg %p43
      %p423 = pneg %p67
      %p424 = pneg %p64
      %p425 = pneg %p88
      %p426 = pneg %p85
      %p427 = pneg %p109
      %p428 = pneg %p106
      %p429 = pneg %p130
      %p430 = pneg %p127
      %p431 = pneg %p151
      %p432 = pneg %p148
      %p433 = pneg %p172
      %p434 = pneg %p169
      %p435 = pneg %p193
      %p436 = pneg %p190
      %p437 = pneg %p214
      %p438 = pneg %p211
      %p439 = pneg %p235
      %p440 = pneg %p232
      %p441 = pneg %p256
      %p442 = pneg %p253
      %p443 = pneg %p277
      %p444 = pneg %p274
      %p445 = pneg %p298
      %p446 = pneg %p295
      %p447 = pneg %p319
      %p448 = pneg %p316
      %p449 = pneg %p345
      %p450 = pneg %p342
      %p451 = scmp.lt.s32.totalorder %s25, 3
      %s452 = scalar_select %p451, %s25, 3
      %s453 = smul.addr %s452, 8
      %s454 = scalar_lea.vmem %s14, %s453
      %p455 = scmp.lt.s32.totalorder %s25, 3
      %s456 = scalar_select %p455, %s25, 3
      %s457 = smul.addr %s456, 8
      %s458 = scalar_lea.vmem %s0, %s457
      %p459 = scmp.lt.s32.totalorder %s25, 3
      %s460 = scalar_select %p459, %s25, 3
      %s461 = smul.addr %s460, 8
      %s462 = scalar_lea.vmem %s14, %s461
      %v464 = vld [vmem:[%s458] sm:$0xff]
      %vm465 = vcmask 261120
      %v466 = vsel %vm465, %v464, 0.0
      %467 = vadd.xlane.f32.xlu0 %v466
      %v468 = vpop.xlane.xlu0 %467
      %v469 = vrcp.pop 32.0
      %v470 = vmul.f32 32.0, %v469
      %v471 = vsub.f32 1.0, %v470
      %v472 = vmul.f32 %v469, %v471
      %v473 = vadd.f32 %v469, %v472
      %vm474 = vweird.f32 %v469
      %v475 = vsel %vm474, %v469, %v473
      %v476 = vmul.f32 %v468, %v475
      %v477 = vsub.f32 %v464, %v476
      %v478 = vmul.f32 %v477, %v477
      %v479 = vsel %vm465, %v478, 0.0
      %480 = vadd.xlane.f32.xlu0 %v479
      %v481 = vpop.xlane.xlu0 %480
      %v482 = vmul.f32 %v481, %v475
      %v483 = vadd.f32 %v482, 1e-05
      %v484 = vrsqrt.pop %v483
      %v485 = vmul.f32 %v484, %v483
      %v486 = vmul.f32 %v485, %v484
      %v487 = vmul.f32 0.5, %v486
      %v488 = vsub.f32 1.5, %v487
      %v489 = vmul.f32 %v484, %v488
      %vm490 = vweird.f32 %v483
      %vm491 = vweird.f32 %v484
      %vm492 = vmor %vm490, %vm491
      %v493 = vsel %vm492, %v484, %v489
      %v494 = vmul.f32 %v477, %v493
      %v495 = vld [vmem:[%s2] sm:$0x1]
      %v497 = vperm.slane %v495, 0
      %v499 = vmul.f32 %v494, %v497
      %v500 = vld [vmem:[%s3] sm:$0x1]
      %v502 = vperm.slane %v500, 0
      %v504 = vadd.f32 %v499, %v502
      %v505 = vpack.c.bf16 %v504, %v504
      %v506 = vld [vmem:[%s4] sm:$0xf]
      %v507 = vld [vmem:[%s4 + $0x4] sm:$0xf]
      %v508 = vld [vmem:[%s4 + $0x8] sm:$0xf]
      %v509 = vld [vmem:[%s4 + $0xc] sm:$0xf]
      %v510 = vld [vmem:[%s5] sm:$0x1]
      %v512 = vperm.slane %v510, 0
      %v518 = vunpack.c.l.b16 %v506
      %v519 = vunpack.c.l.b16 %v507
      %v520 = vunpack.c.l.b16 %v508
      %v521 = vunpack.c.l.b16 %v509
      %v522 = vpack.c.b16 %v519, %v518
      %v523 = vpack.c.b16 %v521, %v520
      %v527 = vsel %vm465, %v505, 0
      %529 = vmatpush.bf16.msra.mxu0 0
      %530 = vmatpush.bf16.msra.mxu0 0
      %531 = vmatpush.bf16.msra.mxu0 0
      %532 = vmatpush.bf16.msra.mxu0 0
      %533 = vmatpush.bf16.msra.mxu0 0
      %534 = vmatpush.bf16.msra.mxu0 0
      %535 = vmatpush.bf16.msra.mxu0 %v523
      %536 = vmatpush.bf16.msra.mxu0 %v522
      %537 = vmatmul.bf16.gmra.mxu0 %v527
      %v538 = vpop.f32.mrf.mxu0
      %v539 = vadd.f32 %v512, %v538
      %v540 = vpop.f32.mrf.mxu0
      %541 = vdwg.mxu0
      %s542 = scalar_lea.vmem %s1, %s25
      %v543 = vld [vmem:[%s542] sm:$0x1]
      %v544 = vmul.f32 %v543, -1e+09
      %v545 = vpack.c.bf16 %v539, %v539
      %547 = vrot.lane.b32.xlu0 %v545, 96
      %v548 = vpop.permute.xlu0 %547
      %vm549 = vcmask 64512
      %v551 = vsel %vm549, %v545, 0
      %v554 = vsel %vm549, %v548, 0
      %556 = vmatpush.bf16.xpose.msra.mxu0 0
      %557 = vmatpush.bf16.xpose.msra.mxu0 0
      %558 = vmatpush.bf16.xpose.msra.mxu0 0
      %559 = vmatpush.bf16.xpose.msra.mxu0 0
      %560 = vmatpush.bf16.xpose.msra.mxu0 0
      %561 = vmatpush.bf16.xpose.msra.mxu0 0
      %562 = vmatpush.bf16.xpose.msra.mxu0 0
      %563 = vmatpush.bf16.xpose.msra.mxu0 %v554
      %564 = vmatmul.bf16.gmra.mxu0 %v551
      %v565 = vpop.f32.mrf.mxu0
      %v566 = vadd.f32 0.0, %v565
      %v567 = vpop.f32.mrf.mxu0
      %568 = vdwg.mxu0
      %v569 = vmul.f32 %v566, 0.35355338
      %v570 = vperm.slane %v544, 0
      %v571 = vadd.f32 %v569, %v570
      %v572 = vsel %vm549, %v571, -inf
      %573 = vmax.xlane.f32.xlu0 %v572
      %v574 = vpop.xlane.xlu0 %573
      %v575 = vsub.f32 %v571, %v574
      %v576 = vmul.f32 %v575, 1.442695
      %v577 = vpow.pop %v576
      %v578 = vsel %vm549, %v577, 0.0
      %579 = vadd.xlane.f32.xlu0 %v578
      %v580 = vpop.xlane.xlu0 %579
      %v581 = vrcp.pop %v580
      %v582 = vmul.f32 %v577, %v581
      %v583 = vpack.c.bf16 %v582, %v582
      %584 = vrot.lane.b32.xlu0 %v545, 64
      %v585 = vpop.permute.xlu0 %584
      %v587 = vsel %vm549, %v583, 0
      %vm589 = vcmask 1043456
      %v591 = vsel %vm589, %v585, 0
      %593 = vmatpush.bf16.msra.mxu0 0
      %594 = vmatpush.bf16.msra.mxu0 0
      %595 = vmatpush.bf16.msra.mxu0 0
      %596 = vmatpush.bf16.msra.mxu0 0
      %597 = vmatpush.bf16.msra.mxu0 0
      %598 = vmatpush.bf16.msra.mxu0 0
      %599 = vmatpush.bf16.msra.mxu0 0
      %600 = vmatpush.bf16.msra.mxu0 %v591
      %601 = vmatmul.bf16.gmra.mxu0 %v587
      %v602 = vpop.f32.mrf.mxu0
      %v603 = vadd.f32 0.0, %v602
      %v604 = vpop.f32.mrf.mxu0
      %605 = vdwg.mxu0
      %606 = vrot.lane.b32.xlu0 %v545, 120
      %v607 = vpop.permute.xlu0 %606
      %608 = vrot.lane.b32.xlu0 %v545, 88
      %v609 = vpop.permute.xlu0 %608
      %v611 = vsel %vm549, %v607, 0
      %v614 = vsel %vm549, %v609, 0
      %616 = vmatpush.bf16.xpose.msra.mxu0 0
      %617 = vmatpush.bf16.xpose.msra.mxu0 0
      %618 = vmatpush.bf16.xpose.msra.mxu0 0
      %619 = vmatpush.bf16.xpose.msra.mxu0 0
      %620 = vmatpush.bf16.xpose.msra.mxu0 0
      %621 = vmatpush.bf16.xpose.msra.mxu0 0
      %622 = vmatpush.bf16.xpose.msra.mxu0 0
      %623 = vmatpush.bf16.xpose.msra.mxu0 %v614
      %624 = vmatmul.bf16.gmra.mxu0 %v611
      %v625 = vpop.f32.mrf.mxu0
      %v626 = vadd.f32 0.0, %v625
      %v627 = vpop.f32.mrf.mxu0
      %628 = vdwg.mxu0
      %v629 = vmul.f32 %v626, 0.35355338
      %v630 = vadd.f32 %v629, %v570
      %v631 = vsel %vm549, %v630, -inf
      %632 = vmax.xlane.f32.xlu0 %v631
      %v633 = vpop.xlane.xlu0 %632
      %v634 = vsub.f32 %v630, %v633
      %v635 = vmul.f32 %v634, 1.442695
      %v636 = vpow.pop %v635
      %v637 = vsel %vm549, %v636, 0.0
      %638 = vadd.xlane.f32.xlu0 %v637
      %v639 = vpop.xlane.xlu0 %638
      %v640 = vrcp.pop %v639
      %v641 = vmul.f32 %v636, %v640
      %v642 = vpack.c.bf16 %v641, %v641
      %643 = vrot.lane.b32.xlu0 %v545, 56
      %v644 = vpop.permute.xlu0 %643
      %v646 = vsel %vm549, %v642, 0
      %v649 = vsel %vm589, %v644, 0
      %651 = vmatpush.bf16.msra.mxu0 0
      %652 = vmatpush.bf16.msra.mxu0 0
      %653 = vmatpush.bf16.msra.mxu0 0
      %654 = vmatpush.bf16.msra.mxu0 0
      %655 = vmatpush.bf16.msra.mxu0 0
      %656 = vmatpush.bf16.msra.mxu0 0
      %657 = vmatpush.bf16.msra.mxu0 0
      %658 = vmatpush.bf16.msra.mxu0 %v649
      %659 = vmatmul.bf16.gmra.mxu0 %v646
      %v660 = vpop.f32.mrf.mxu0
      %v661 = vadd.f32 0.0, %v660
      %v662 = vpop.f32.mrf.mxu0
      %663 = vdwg.mxu0
      %664 = vrot.lane.b32.xlu0 %v545, 112
      %v665 = vpop.permute.xlu0 %664
      %666 = vrot.lane.b32.xlu0 %v545, 80
      %v667 = vpop.permute.xlu0 %666
      %v669 = vsel %vm549, %v665, 0
      %v672 = vsel %vm549, %v667, 0
      %674 = vmatpush.bf16.xpose.msra.mxu0 0
      %675 = vmatpush.bf16.xpose.msra.mxu0 0
      %676 = vmatpush.bf16.xpose.msra.mxu0 0
      %677 = vmatpush.bf16.xpose.msra.mxu0 0
      %678 = vmatpush.bf16.xpose.msra.mxu0 0
      %679 = vmatpush.bf16.xpose.msra.mxu0 0
      %680 = vmatpush.bf16.xpose.msra.mxu0 0
      %681 = vmatpush.bf16.xpose.msra.mxu0 %v672
      %682 = vmatmul.bf16.gmra.mxu0 %v669
      %v683 = vpop.f32.mrf.mxu0
      %v684 = vadd.f32 0.0, %v683
      %v685 = vpop.f32.mrf.mxu0
      %686 = vdwg.mxu0
      %v687 = vmul.f32 %v684, 0.35355338
      %v688 = vadd.f32 %v687, %v570
      %v689 = vsel %vm549, %v688, -inf
      %690 = vmax.xlane.f32.xlu0 %v689
      %v691 = vpop.xlane.xlu0 %690
      %v692 = vsub.f32 %v688, %v691
      %v693 = vmul.f32 %v692, 1.442695
      %v694 = vpow.pop %v693
      %v695 = vsel %vm549, %v694, 0.0
      %696 = vadd.xlane.f32.xlu0 %v695
      %v697 = vpop.xlane.xlu0 %696
      %v698 = vrcp.pop %v697
      %v699 = vmul.f32 %v694, %v698
      %v700 = vpack.c.bf16 %v699, %v699
      %701 = vrot.lane.b32.xlu0 %v545, 48
      %v702 = vpop.permute.xlu0 %701
      %v704 = vsel %vm549, %v700, 0
      %v707 = vsel %vm589, %v702, 0
      %709 = vmatpush.bf16.msra.mxu0 0
      %710 = vmatpush.bf16.msra.mxu0 0
      %711 = vmatpush.bf16.msra.mxu0 0
      %712 = vmatpush.bf16.msra.mxu0 0
      %713 = vmatpush.bf16.msra.mxu0 0
      %714 = vmatpush.bf16.msra.mxu0 0
      %715 = vmatpush.bf16.msra.mxu0 0
      %716 = vmatpush.bf16.msra.mxu0 %v707
      %717 = vmatmul.bf16.gmra.mxu0 %v704
      %v718 = vpop.f32.mrf.mxu0
      %v719 = vadd.f32 0.0, %v718
      %v720 = vpop.f32.mrf.mxu0
      %721 = vdwg.mxu0
      %722 = vrot.lane.b32.xlu0 %v545, 104
      %v723 = vpop.permute.xlu0 %722
      %724 = vrot.lane.b32.xlu0 %v545, 72
      %v725 = vpop.permute.xlu0 %724
      %v727 = vsel %vm549, %v723, 0
      %v730 = vsel %vm549, %v725, 0
      %732 = vmatpush.bf16.xpose.msra.mxu0 0
      %733 = vmatpush.bf16.xpose.msra.mxu0 0
      %734 = vmatpush.bf16.xpose.msra.mxu0 0
      %735 = vmatpush.bf16.xpose.msra.mxu0 0
      %736 = vmatpush.bf16.xpose.msra.mxu0 0
      %737 = vmatpush.bf16.xpose.msra.mxu0 0
      %738 = vmatpush.bf16.xpose.msra.mxu0 0
      %739 = vmatpush.bf16.xpose.msra.mxu0 %v730
      %740 = vmatmul.bf16.gmra.mxu0 %v727
      %v741 = vpop.f32.mrf.mxu0
      %v742 = vadd.f32 0.0, %v741
      %v743 = vpop.f32.mrf.mxu0
      %744 = vdwg.mxu0
      %v745 = vmul.f32 %v742, 0.35355338
      %v746 = vadd.f32 %v745, %v570
      %v747 = vsel %vm549, %v746, -inf
      %748 = vmax.xlane.f32.xlu0 %v747
      %v749 = vpop.xlane.xlu0 %748
      %v750 = vsub.f32 %v746, %v749
      %v751 = vmul.f32 %v750, 1.442695
      %v752 = vpow.pop %v751
      %v753 = vsel %vm549, %v752, 0.0
      %754 = vadd.xlane.f32.xlu0 %v753
      %v755 = vpop.xlane.xlu0 %754
      %v756 = vrcp.pop %v755
      %v757 = vmul.f32 %v752, %v756
      %v758 = vpack.c.bf16 %v757, %v757
      %759 = vrot.lane.b32.xlu0 %v545, 40
      %v760 = vpop.permute.xlu0 %759
      %v762 = vsel %vm549, %v758, 0
      %v765 = vsel %vm589, %v760, 0
      %767 = vmatpush.bf16.msra.mxu0 0
      %768 = vmatpush.bf16.msra.mxu0 0
      %769 = vmatpush.bf16.msra.mxu0 0
      %770 = vmatpush.bf16.msra.mxu0 0
      %771 = vmatpush.bf16.msra.mxu0 0
      %772 = vmatpush.bf16.msra.mxu0 0
      %773 = vmatpush.bf16.msra.mxu0 0
      %774 = vmatpush.bf16.msra.mxu0 %v765
      %775 = vmatmul.bf16.gmra.mxu0 %v762
      %v776 = vpop.f32.mrf.mxu0
      %v777 = vadd.f32 0.0, %v776
      %v778 = vpop.f32.mrf.mxu0
      %779 = vdwg.mxu0
      %781 = vrot.lane.b32.xlu0 %v661, 8
      %v782 = vpop.permute.xlu0 %781
      %785 = vrot.lane.b32.xlu0 %v719, 16
      %v786 = vpop.permute.xlu0 %785
      %789 = vrot.lane.b32.xlu0 %v777, 24
      %v790 = vpop.permute.xlu0 %789
      %v792 = vsel %vm549, %v603, %v782
      %vm793 = vcmask 130048
      %v794 = vsel %vm793, %v792, %v786
      %vm795 = vcmask 195584
      %v796 = vsel %vm795, %v794, %v790
      %v797 = vpack.c.bf16 %v796, %v796
      %v798 = vld [vmem:[%s6] sm:$0xf]
      %v799 = vld [vmem:[%s6 + $0x4] sm:$0xf]
      %v800 = vld [vmem:[%s6 + $0x8] sm:$0xf]
      %v801 = vld [vmem:[%s6 + $0xc] sm:$0xf]
      %v802 = vld [vmem:[%s7] sm:$0x1]
      %v804 = vperm.slane %v802, 0
      %v810 = vunpack.c.l.b16 %v798
      %v811 = vunpack.c.l.b16 %v799
      %v812 = vunpack.c.l.b16 %v800
      %v813 = vunpack.c.l.b16 %v801
      %v814 = vpack.c.b16 %v811, %v810
      %v815 = vpack.c.b16 %v813, %v812
      %v819 = vsel %vm465, %v797, 0
      %821 = vmatpush.bf16.msra.mxu0 0
      %822 = vmatpush.bf16.msra.mxu0 0
      %823 = vmatpush.bf16.msra.mxu0 0
      %824 = vmatpush.bf16.msra.mxu0 0
      %825 = vmatpush.bf16.msra.mxu0 0
      %826 = vmatpush.bf16.msra.mxu0 0
      %827 = vmatpush.bf16.msra.mxu0 %v815
      %828 = vmatpush.bf16.msra.mxu0 %v814
      %829 = vmatmul.bf16.gmra.mxu0 %v819
      %v830 = vpop.f32.mrf.mxu0
      %v831 = vadd.f32 %v804, %v830
      %v832 = vpop.f32.mrf.mxu0
      %833 = vdwg.mxu0
      %v834 = vadd.f32 %v464, %v831
      %v835 = vpack.c.bf16 %v834, %v834
      %v836 = vld [vmem:[%s8] sm:$0xf]
      %v837 = vld [vmem:[%s8 + $0x4] sm:$0xf]
      %v838 = vld [vmem:[%s8 + $0x8] sm:$0xf]
      %v839 = vld [vmem:[%s8 + $0xc] sm:$0xf]
      %v840 = vld [vmem:[%s9] sm:$0x1]
      %v842 = vperm.slane %v840, 0
      %v848 = vunpack.c.l.b16 %v836
      %v849 = vunpack.c.l.b16 %v837
      %v850 = vunpack.c.l.b16 %v838
      %v851 = vunpack.c.l.b16 %v839
      %v852 = vpack.c.b16 %v849, %v848
      %v853 = vpack.c.b16 %v851, %v850
      %v857 = vsel %vm465, %v835, 0
      %859 = vmatpush.bf16.msra.mxu0 0
      %860 = vmatpush.bf16.msra.mxu0 0
      %861 = vmatpush.bf16.msra.mxu0 0
      %862 = vmatpush.bf16.msra.mxu0 0
      %863 = vmatpush.bf16.msra.mxu0 0
      %864 = vmatpush.bf16.msra.mxu0 0
      %865 = vmatpush.bf16.msra.mxu0 %v853
      %866 = vmatpush.bf16.msra.mxu0 %v852
      %867 = vmatmul.bf16.gmra.mxu0 %v857
      %v868 = vpop.f32.mrf.mxu0
      %v869 = vadd.f32 %v842, %v868
      %v870 = vpop.f32.mrf.mxu0
      %871 = vdwg.mxu0
      %v872 = vmax.f32 %v869, 0.0
      %v873 = vpack.c.bf16 %v872, %v872
      %v874 = vld [vmem:[%s10] sm:$0xf]
      %v875 = vld [vmem:[%s10 + $0x4] sm:$0xf]
      %v876 = vld [vmem:[%s10 + $0x8] sm:$0xf]
      %v877 = vld [vmem:[%s10 + $0xc] sm:$0xf]
      %v878 = vld [vmem:[%s10 + $0x10] sm:$0xf]
      %v879 = vld [vmem:[%s10 + $0x14] sm:$0xf]
      %v880 = vld [vmem:[%s10 + $0x18] sm:$0xf]
      %v881 = vld [vmem:[%s10 + $0x1c] sm:$0xf]
      %v882 = vld [vmem:[%s11] sm:$0x1]
      %v884 = vperm.slane %v882, 0
      %v894 = vunpack.c.l.b16 %v874
      %v895 = vunpack.c.l.b16 %v875
      %v896 = vunpack.c.l.b16 %v876
      %v897 = vunpack.c.l.b16 %v877
      %v898 = vunpack.c.l.b16 %v878
      %v899 = vunpack.c.l.b16 %v879
      %v900 = vunpack.c.l.b16 %v880
      %v901 = vunpack.c.l.b16 %v881
      %v902 = vpack.c.b16 %v895, %v894
      %v903 = vpack.c.b16 %v897, %v896
      %v904 = vpack.c.b16 %v899, %v898
      %v905 = vpack.c.b16 %v901, %v900
      %vm910 = vcmask 523264
      %v912 = vsel %vm910, %v873, 0
      %914 = vmatpush.bf16.msra.mxu0 0
      %915 = vmatpush.bf16.msra.mxu0 0
      %916 = vmatpush.bf16.msra.mxu0 0
      %917 = vmatpush.bf16.msra.mxu0 0
      %918 = vmatpush.bf16.msra.mxu0 %v905
      %919 = vmatpush.bf16.msra.mxu0 %v904
      %920 = vmatpush.bf16.msra.mxu0 %v903
      %921 = vmatpush.bf16.msra.mxu0 %v902
      %922 = vmatmul.bf16.gmra.mxu0 %v912
      %v923 = vpop.f32.mrf.mxu0
      %v924 = vadd.f32 %v884, %v923
      %v925 = vpop.f32.mrf.mxu0
      %926 = vdwg.mxu0
      %v927 = vadd.f32 %v834, %v924
      %v928 = vsel %vm465, %v927, 0.0
      %929 = vadd.xlane.f32.xlu0 %v928
      %v930 = vpop.xlane.xlu0 %929
      %v931 = vmul.f32 %v930, %v475
      %v932 = vsub.f32 %v927, %v931
      %v933 = vmul.f32 %v932, %v932
      %v934 = vsel %vm465, %v933, 0.0
      %935 = vadd.xlane.f32.xlu0 %v934
      %v936 = vpop.xlane.xlu0 %935
      %v937 = vmul.f32 %v936, %v475
      %v938 = vadd.f32 %v937, 1e-05
      %v939 = vrsqrt.pop %v938
      %v940 = vmul.f32 %v939, %v938
      %v941 = vmul.f32 %v940, %v939
      %v942 = vmul.f32 0.5, %v941
      %v943 = vsub.f32 1.5, %v942
      %v944 = vmul.f32 %v939, %v943
      %vm945 = vweird.f32 %v938
      %vm946 = vweird.f32 %v939
      %vm947 = vmor %vm945, %vm946
      %v948 = vsel %vm947, %v939, %v944
      %v949 = vmul.f32 %v932, %v948
      %v950 = vld [vmem:[%s12] sm:$0x1]
      %v952 = vperm.slane %v950, 0
      %v954 = vmul.f32 %v949, %v952
      %v955 = vld [vmem:[%s13] sm:$0x1]
      %v957 = vperm.slane %v955, 0
      %v959 = vadd.f32 %v954, %v957
      %960 = vst.msk [vmem:[%s462] sm:$0xff] %vm465, %v959
      %p961 = scmp.lt.s32.totalorder %s25, 3
      %s962 = scalar_select %p961, %s25, 3
      %s963 = smul.addr %s962, 8
      %s964 = scalar_lea.vmem %s14, %s963
      // Predicated region
      $region77: #{encoder_forward.18} parent=75 // pred_check
        %p965 = pneg %p342
      $region78: #{encoder_forward.18} parent=75 // pred_check_branch
        %967 = sbr.rel (%p965) target = $region80
      $region79: #{encoder_forward.18} parent=75 // pred_region
        _
      $region80: #{encoder_forward.18} parent=75 // pred_fallthru
        _
    $region76: #{encoder_forward.18} parent=5 // pred_fallthru
      _
    %p968 = scmp.le.s32.totalorder 2, %s20
    // Predicated region
    $region81: #{encoder_forward.18} parent=5 // pred_check
      %p969 = pneg %p968
    $region82: #{encoder_forward.18} parent=5 // pred_check_branch
      %971 = sbr.rel (%p969) target = $region84
    $region83: #{encoder_forward.18} parent=5 // pred_region
      %s972 = ssub.s32 %s20, 2
      // Predicated region
      $region85: #{encoder_forward.18} parent=83 // pred_check
        %p973 = pneg %p348
      $region86: #{encoder_forward.18} parent=83 // pred_check_branch
        %975 = sbr.rel (%p973) target = $region88
      $region87: #{encoder_forward.18} parent=83 // pred_region
        %p976 = scmp.lt.s32.totalorder %s26, 3
        %s977 = scalar_select %p976, %s26, 3
        %s978 = smul.addr %s977, 8
        %s979 = scalar_lea.vmem %s14, %s978
      $region88: #{encoder_forward.18} parent=83 // pred_fallthru
        _
    $region84: #{encoder_forward.18} parent=5 // pred_fallthru
      _
  $region6: #{encoder_forward.18} parent=0 // loop_footer
    %s24 = sadd.s32 1, %s20
  $region7: #{encoder_forward.18} parent=0 // loop_footer_branch
    %19 = sbr.rel target = $region3
  $region8: #{encoder_forward.18} parent=0 // loop_exit
    _

</llo_original>
